<compile_context>
chip_gen: v7x
topology: tpu7x:2x2x1
jax: 0.10.0
libtpu: 0.0.40
codegen_flags: <defaults>
</compile_context>

<pallas_src>
import functools

import jax
import jax.numpy as jnp
from jax import lax
from jax.experimental import pallas as pl
from jax.experimental.pallas import tpu as pltpu

LOSS_EPS = 1e-5      # module's self._loss_eps
RMSD_EPS = 1e-5      # eps inside sqrt of RMSD
DIST_EPS = 1e-3      # eps inside sqrt of pairwise distances
NEWTON_ITERS = 10    # QCP Newton iterations (converges in <10 for fp32)
TN = 128             # residue tile width (lane axis)
CCH = 512            # column-chunk width for the O(N^2) distance loop (also the lane pad unit)


def _qcp_rmsd_tile(p_ref, q_ref, w_ref):
    """Weighted Theobald/QCP optimal-superposition RMSD for one residue tile.

    p_ref, q_ref: Refs viewing (1, 3, A, TN) -- xyz planes major, atoms on sublanes,
                  residues on lanes.
    w_ref:        Ref viewing (1, A, TN) per-atom weights (0/1 validity).
    Returns per-residue RMSD, shape (1, TN).
    """
    wt = w_ref[0]                                            # (A, TN)
    Px, Py, Pz = p_ref[0, 0], p_ref[0, 1], p_ref[0, 2]       # (A, TN) each
    Qx, Qy, Qz = q_ref[0, 0], q_ref[0, 1], q_ref[0, 2]

    def rsum(x):                                             # (A, TN) -> (1, TN)
        return jnp.sum(x, axis=0, keepdims=True)

    # P-side weighted coords are the only (A, TN) products carried into the
    # cross-covariance; wQ* is never materialized (vreg-pressure fix).
    wPx, wPy, wPz = wt * Px, wt * Py, wt * Pz
    W = rsum(wt)
    SPx, SPy, SPz = rsum(wPx), rsum(wPy), rsum(wPz)
    SPP = rsum(wPx * Px + wPy * Py + wPz * Pz)
    SQx, SQy, SQz = rsum(wt * Qx), rsum(wt * Qy), rsum(wt * Qz)
    SQQ = rsum(wt * (Qx * Qx + Qy * Qy + Qz * Qz))
    Mxx, Mxy, Mxz = rsum(wPx * Qx), rsum(wPx * Qy), rsum(wPx * Qz)
    Myx, Myy, Myz = rsum(wPy * Qx), rsum(wPy * Qy), rsum(wPy * Qz)
    Mzx, Mzy, Mzz = rsum(wPz * Qx), rsum(wPz * Qy), rsum(wPz * Qz)

    # Exact algebra for the weighted centering with eps in the denominator:
    #   Pc = P - (sum w P)/(W+eps)  =>  S = M - k*SP*SQ,  G = SPP - k*|SP|^2,
    #   with k = (2 - W/(W+eps)) / (W+eps).
    inv_d = 1.0 / (W + LOSS_EPS)
    kk = inv_d * (2.0 - W * inv_d)
    G1 = SPP - kk * (SPx * SPx + SPy * SPy + SPz * SPz)
    G2 = SQQ - kk * (SQx * SQx + SQy * SQy + SQz * SQz)
    Sxx = Mxx - kk * SPx * SQx; Sxy = Mxy - kk * SPx * SQy; Sxz = Mxz - kk * SPx * SQz
    Syx = Myx - kk * SPy * SQx; Syy = Myy - kk * SPy * SQy; Syz = Myz - kk * SPy * SQz
    Szx = Mzx - kk * SPz * SQx; Szy = Mzy - kk * SPz * SQy; Szz = Mzz - kk * SPz * SQz

    Sxx2, Syy2, Szz2 = Sxx * Sxx, Syy * Syy, Szz * Szz
    Sxy2, Syx2 = Sxy * Sxy, Syx * Syx
    Sxz2, Szx2 = Sxz * Sxz, Szx * Szx
    Syz2, Szy2 = Syz * Syz, Szy * Szy

    SyzSzymSyySzz2 = 2.0 * (Syz * Szy - Syy * Szz)
    Sxx2Syy2Szz2Syz2Szy2 = Syy2 + Szz2 - Sxx2 + Syz2 + Szy2

    c2 = -2.0 * (Sxx2 + Syy2 + Szz2 + Sxy2 + Syx2 + Sxz2 + Szx2 + Syz2 + Szy2)
    c1 = 8.0 * (Sxx * Syz * Szy + Syy * Szx * Sxz + Szz * Sxy * Syx
                - Sxx * Syy * Szz - Syz * Szx * Sxy - Szy * Syx * Sxz)

    SxzpSzx = Sxz + Szx; SyzpSzy = Syz + Szy; SxypSyx = Sxy + Syx
    SyzmSzy = Syz - Szy; SxzmSzx = Sxz - Szx; SxymSyx = Sxy - Syx
    SxxpSyy = Sxx + Syy; SxxmSyy = Sxx - Syy
    Sxy2Sxz2Syx2Szx2 = Sxy2 + Sxz2 - Syx2 - Szx2

    c0 = (Sxy2Sxz2Syx2Szx2 * Sxy2Sxz2Syx2Szx2
          + (Sxx2Syy2Szz2Syz2Szy2 + SyzSzymSyySzz2)
          * (Sxx2Syy2Szz2Syz2Szy2 - SyzSzymSyySzz2)
          + (-SxzpSzx * SyzmSzy + SxymSyx * (SxxmSyy - Szz))
          * (-SxzmSzx * SyzpSzy + SxymSyx * (SxxmSyy + Szz))
          + (-SxzpSzx * SyzpSzy - SxypSyx * (SxxpSyy - Szz))
          * (-SxzmSzx * SyzmSzy - SxypSyx * (SxxpSyy + Szz))
          + (SxypSyx * SyzpSzy + SxzpSzx * (SxxmSyy + Szz))
          * (-SxymSyx * SyzmSzy + SxzpSzx * (SxxpSyy + Szz))
          + (SxypSyx * SyzmSzy + SxzmSzx * (SxxmSyy - Szz))
          * (-SxymSyx * SyzpSzy + SxzmSzx * (SxxpSyy - Szz)))

    e0 = 0.5 * (G1 + G2)
    lam = e0
    for _ in range(NEWTON_ITERS):                            # static unroll, VPU + EUP
        lam2 = lam * lam
        bq = (lam2 + c2) * lam
        aq = bq + c1
        dp = 2.0 * lam2 * lam + bq + aq
        lam = lam - (aq * lam + c0) * pl.reciprocal(dp + 1e-12, approx=True)

    msd = jnp.maximum(2.0 * (e0 - lam) * inv_d, 0.0)
    return jnp.sqrt(msd + RMSD_EPS)


def _recon_loss_kernel(loss_scale,
                       scal_ref, cmt_ref, lmt_ref,
                       fp_ref, ft_ref, fw_ref,
                       nbp_ref, nbt_ref, nbw_ref,
                       cols_ref, rows_ref,
                       out_ref,
                       acc_f, acc_n, acc_d):
    b = pl.program_id(0)
    nt = pl.program_id(1)
    last = pl.num_programs(1) - 1

    @pl.when(nt == 0)
    def _():
        acc_f[...] = jnp.zeros_like(acc_f)
        acc_n[...] = jnp.zeros_like(acc_n)
        acc_d[...] = jnp.zeros_like(acc_d)

    w = scal_ref[4 * b]               # norm_scale = 1 / (1 - min(t, 0.9))
    csum = scal_ref[4 * b + 1]        # sum of (C > 0)

    cm_t = cmt_ref[0]                 # (1, TN)  row-tile (C > 0)
    lm_t = lmt_ref[0]                 # (1, TN)  row-tile loss_mask
    wl = w * lm_t

    # ---- fragment RMSD loss --------------------------------------------------
    r_f = _qcp_rmsd_tile(fp_ref, ft_ref, fw_ref) * wl
    acc_f[...] += cm_t * r_f * r_f

    # ---- neighborhood RMSD loss ----------------------------------------------
    r_n = _qcp_rmsd_tile(nbp_ref, nbt_ref, nbw_ref) * wl
    acc_n[...] += cm_t * r_n * r_n

    # ---- residue center-of-mass pairwise distance loss ------------------------
    # Columns walked in CCH-lane chunks so live temporaries are (TN, CCH), not (TN, Np).
    rows = rows_ref[0]                # (TN, 8) = [comP xyz | comT xyz | cmask | lmask]
    rpx, rpy, rpz = rows[:, 0:1], rows[:, 1:2], rows[:, 2:3]
    rtx, rty, rtz = rows[:, 3:4], rows[:, 4:5], rows[:, 5:6]
    n_chunks = cols_ref.shape[1]      # static

    def chunk_body(j, acc):
        ch = cols_ref[0, j]           # (8, CCH) = [comP xyz | comT xyz | cmask | 0]
        dpx = rpx - ch[0:1, :]; dpy = rpy - ch[1:2, :]; dpz = rpz - ch[2:3, :]
        d2p = dpx * dpx + dpy * dpy + dpz * dpz          # >= 0, no maximum needed
        dtx = rtx - ch[3:4, :]; dty = rty - ch[4:5, :]; dtz = rtz - ch[5:6, :]
        d2t = dtx * dtx + dty * dty + dtz * dtz
        derr = jnp.sqrt(d2p + DIST_EPS) - jnp.sqrt(d2t + DIST_EPS)
        return acc + jnp.sum(ch[6:7, :] * (derr * derr), axis=1, keepdims=True)

    row_num = lax.fori_loop(0, n_chunks, chunk_body,
                            jnp.zeros((TN, 1), jnp.float32))      # (TN, 1)

    cm_r = rows[:, 6:7]                                           # (TN, 1)
    lm_r = rows[:, 7:8]
    d_per = (cm_r * row_num) / (cm_r * csum + LOSS_EPS) * w
    acc_d[...] += cm_r * lm_r * d_per

    # ---- finalize per-batch scalars into one lane-padded output --------------
    @pl.when(nt == last)
    def _():
        frag_den = scal_ref[4 * b + 2]     # sum(cmask) + eps
        dist_den = scal_ref[4 * b + 3]     # sum(cmask * lmask) + eps
        frag = jnp.sum(acc_f[...]) / frag_den
        nbr = jnp.sum(acc_n[...]) / frag_den
        dist = loss_scale * jnp.sum(acc_d[...]) / dist_den
        lane = lax.broadcasted_iota(jnp.int32, (1, 1, 128), 2)
        out_ref[...] = (jnp.where(lane == 0, frag, 0.0)
                        + jnp.where(lane == 1, nbr, 0.0)
                        + jnp.where(lane == 2, dist, 0.0))


# ----------------------------- plain-JAX glue ---------------------------------
def _frag_layout(Xf, B, N, A):
    # (B, N, k, 4, 3) -> (B, 3, A, N): residues on lanes, atoms on sublanes.
    return jnp.transpose(Xf.reshape(B, N, A, 3), (0, 3, 2, 1))


def _pad_atoms(x, a_pad):
    """Pad the atom (sublane) axis (-2) up to a_pad with zeros."""
    a = x.shape[-2]
    if a_pad > a:
        pad_width = [(0, 0)] * x.ndim
        pad_width[-2] = (0, a_pad - a)
        x = jnp.pad(x, pad_width)
    return x


def _gather_fragments(X0, X1, C, k):
    """Contiguous k-residue windows centered on each residue (index-clamped)."""
    # TODO(synk): could be built in-kernel with pltpu.roll on a halo'd (B,3,4,Np) block
    #             to cut fragment DMA ~7x; kept in XLA for this revision.
    B, N = C.shape
    A = 4 * k
    half = k // 2
    offsets = jnp.arange(k) - half
    idx = jnp.arange(N)[:, None] + offsets[None, :]          # (N, k)
    in_range = (idx >= 0) & (idx < N)
    idxc = jnp.clip(idx, 0, N - 1)

    X0_f = jax.vmap(lambda x: x[idxc])(X0)                   # (B, N, k, 4, 3)
    X1_f = jax.vmap(lambda x: x[idxc])(X1)
    C_f = jax.vmap(lambda c: c[idxc])(C)                     # (B, N, k)
    valid = ((C_f == C[:, :, None]) & (C_f > 0)
             & (C[:, :, None] > 0) & in_range[None])

    # Recenter each window on its own residue's CA (RMSD is translation invariant;
    # keeps the in-kernel cross-covariance algebra well conditioned).
    X0_f = X0_f - X0[:, :, None, 1:2, :]
    X1_f = X1_f - X1[:, :, None, 1:2, :]

    w = jnp.broadcast_to(valid[..., None], valid.shape + (4,)).reshape(B, N, A)
    return (_frag_layout(X0_f, B, N, A),
            _frag_layout(X1_f, B, N, A),
            jnp.transpose(w.astype(jnp.float32), (0, 2, 1)))          # (B, A, N)


def _gather_neighborhoods(X0, X1, C, k):
    """k nearest residues (by target CA distance) for each residue."""
    # TODO(synk): this O(N^2) XLA distance matrix + top_k + 8x-duplicated gather should be
    #             tiled (or moved into a Pallas pass) for realistic N; kept for this revision.
    B, N = C.shape
    A = 4 * k
    ca = X1[:, :, 1, :]                                      # CA atoms of target
    valid = C > 0
    diff = ca[:, :, None, :] - ca[:, None, :, :]
    d2 = jnp.sum(diff * diff, axis=-1)
    d2 = jnp.where(valid[:, None, :] & valid[:, :, None], d2, 1e9)
    _, nbr_idx = lax.top_k(-d2, k)                           # (B, N, k)

    X0_n = jax.vmap(lambda x, i: x[i])(X0, nbr_idx)          # (B, N, k, 4, 3)
    X1_n = jax.vmap(lambda x, i: x[i])(X1, nbr_idx)
    C_n = jax.vmap(lambda c, i: c[i])(C, nbr_idx)            # (B, N, k)
    valid_n = (C_n > 0) & valid[:, :, None]

    X0_n = X0_n - X0[:, :, None, 1:2, :]
    X1_n = X1_n - X1[:, :, None, 1:2, :]

    w = jnp.broadcast_to(valid_n[..., None], valid_n.shape + (4,)).reshape(B, N, A)
    return (_frag_layout(X0_n, B, N, A),
            _frag_layout(X1_n, B, N, A),
            jnp.transpose(w.astype(jnp.float32), (0, 2, 1)))


def reconstruction_losses(X0_pred, X1, Xt, C, t, loss_mask,
                          loss_scale=10.0, k_frag=7, k_nbr=8):
    """JAX/Pallas equivalent of ReconstructionLosses.forward."""
    del Xt  # X_t_2 is not used by the fragment/neighborhood/distance losses
    B, N = C.shape
    AF, AN = 4 * k_frag, 4 * k_nbr
    AFp = -(-AF // 8) * 8     # pad atom axis to a sublane multiple (28 -> 32 for k=7)
    ANp = -(-AN // 8) * 8
    f32 = jnp.float32

    X0 = X0_pred.astype(f32)
    X = X1.astype(f32)
    cmask = (C > 0).astype(f32)
    lmask = loss_mask.astype(f32)

    # loss_denom side effect of forward (not part of returned dict)
    _loss_denom = jnp.sum(lmask, axis=-1) * 3  # noqa: F841

    fp, ft, fw = _gather_fragments(X0, X, C, k_frag)          # (B,3,AF,N), (B,AF,N)
    nbp, nbt, nbw = _gather_neighborhoods(X0, X, C, k_nbr)
    fp, ft, fw = _pad_atoms(fp, AFp), _pad_atoms(ft, AFp), _pad_atoms(fw, AFp)
    nbp, nbt, nbw = _pad_atoms(nbp, ANp), _pad_atoms(nbt, ANp), _pad_atoms(nbw, ANp)

    # Residue centres of mass computed in XLA; shipped lane-dense to the kernel.
    com_p = jnp.mean(X0, axis=2)                              # (B, N, 3)
    com_t = jnp.mean(X, axis=2)
    # Column block packs the column cmask as feature 6 (no separate (1,1,Np) mask input).
    colfeat = jnp.concatenate([com_p, com_t, cmask[..., None],
                               jnp.zeros((B, N, 1), f32)], axis=-1)      # (B, N, 8)
    rows = jnp.concatenate([com_p, com_t,
                            cmask[..., None], lmask[..., None]], axis=-1)  # (B, N, 8)

    cm3 = cmask[:, None, :]                                   # (B, 1, N)
    lm3 = lmask[:, None, :]

    # Pad residues to a multiple of the column chunk (padding carries zero masks/weights);
    # CCH is a multiple of TN so the lane-tile grid stays aligned.
    Np = pl.cdiv(N, CCH) * CCH
    pad = Np - N
    if pad:
        padl = lambda x: jnp.pad(x, [(0, 0)] * (x.ndim - 1) + [(0, pad)])
        fp, ft, fw = padl(fp), padl(ft), padl(fw)
        nbp, nbt, nbw = padl(nbp), padl(nbt), padl(nbw)
        cm3, lm3 = padl(cm3), padl(lm3)
        colfeat = jnp.pad(colfeat, [(0, 0), (0, pad), (0, 0)])
        rows = jnp.pad(rows, [(0, 0), (0, pad), (0, 0)])
    n_tiles = Np // TN
    n_chunks = Np // CCH

    cols = jnp.transpose(colfeat, (0, 2, 1))                          # (B, 8, Np)
    cols = cols.reshape(B, 8, n_chunks, CCH).transpose(0, 2, 1, 3)    # (B, n_chunks, 8, CCH)

    csum = jnp.sum(cmask, axis=-1)
    dsum = jnp.sum(cmask * lmask, axis=-1)
    w_norm = 1.0 / (1.0 - jnp.minimum(t.astype(f32), 0.9))    # norm_scale
    # Flat 1-D SMEM scalar table: [w, csum, csum+eps, dsum+eps] per batch member.
    scal = jnp.stack([w_norm, csum, csum + LOSS_EPS, dsum + LOSS_EPS], axis=-1).reshape(-1)

    # VMEM budget from the actual block sizes (double-buffered per-step blocks + resident
    # column block + live chunk temporaries), clamped to <= 32 MiB (safe on v5e/v6e/v7x).
    per_step = 4 * TN * (7 * AFp + 7 * ANp + 8 + 2) + 4 * 128
    resident = 4 * 8 * Np
    chunk_tmp = 4 * 8 * TN * CCH
    vmem_bytes = int(min(max(2 * (per_step + resident) + chunk_tmp + (4 << 20), 16 << 20),
                         32 << 20))

    kernel = functools.partial(_recon_loss_kernel, float(loss_scale))

    out = pl.pallas_call(
        kernel,
        out_shape=jax.ShapeDtypeStruct((B, 1, 128), f32),
        grid_spec=pltpu.PrefetchScalarGridSpec(
            num_scalar_prefetch=0,
            grid=(B, n_tiles),
            in_specs=[
                pl.BlockSpec(memory_space=pltpu.MemorySpace.SMEM),          # scal (4B,)
                pl.BlockSpec((1, 1, TN), lambda b, n: (b, 0, n)),           # cmask (row tile)
                pl.BlockSpec((1, 1, TN), lambda b, n: (b, 0, n)),           # loss_mask (row tile)
                pl.BlockSpec((1, 3, AFp, TN), lambda b, n: (b, 0, 0, n)),   # fragment pred coords
                pl.BlockSpec((1, 3, AFp, TN), lambda b, n: (b, 0, 0, n)),   # fragment true coords
                pl.BlockSpec((1, AFp, TN), lambda b, n: (b, 0, n)),         # fragment atom weights
                pl.BlockSpec((1, 3, ANp, TN), lambda b, n: (b, 0, 0, n)),   # neighborhood pred
                pl.BlockSpec((1, 3, ANp, TN), lambda b, n: (b, 0, 0, n)),   # neighborhood true
                pl.BlockSpec((1, ANp, TN), lambda b, n: (b, 0, n)),         # neighborhood weights
                pl.BlockSpec((1, n_chunks, 8, CCH), lambda b, n: (b, 0, 0, 0)),  # COM cols + cmask
                pl.BlockSpec((1, TN, 8), lambda b, n: (b, n, 0)),           # COM rows + row masks
            ],
            out_specs=pl.BlockSpec((1, 1, 128), lambda b, n: (b, 0, 0)),
            scratch_shapes=[pltpu.VMEM((1, TN), f32),     # fragment accumulator (lane partials)
                            pltpu.VMEM((1, TN), f32),     # neighborhood accumulator
                            pltpu.VMEM((TN, 1), f32)],    # distance accumulator (row partials)
        ),
        compiler_params=pltpu.CompilerParams(
            dimension_semantics=("parallel", "arbitrary"),
            vmem_limit_bytes=vmem_bytes),
    )(scal, cm3, lm3, fp, ft, fw, nbp, nbt, nbw, cols, rows)

    frag_mse = out[:, 0, 0]
    nbr_mse = out[:, 0, 1]
    dist_mse = out[:, 0, 2]

    weights = jnp.sum(cmask, axis=-1)

    def batch_avg(x):
        return jnp.sum(weights * x) / (jnp.sum(weights) + LOSS_EPS)

    return {
        "fragment_mse": frag_mse,
        "batch_fragment_mse": batch_avg(frag_mse),
        "neighborhood_mse": nbr_mse,
        "batch_neighborhood_mse": batch_avg(nbr_mse),
        "distance_mse": dist_mse,
        "batch_distance_mse": batch_avg(dist_mse),
    }


if __name__ == "__main__":
    key = jax.random.PRNGKey(0)
    B, N = 2, 16
    kx, kp, ktn, kt, km = jax.random.split(key, 5)

    X = 3.0 * jax.random.normal(kx, (B, N, 4, 3), dtype=jnp.float32)            # target backbone
    X0_pred = X + 0.5 * jax.random.normal(kp, (B, N, 4, 3), dtype=jnp.float32)  # denoised prediction
    Xt = X + 1.0 * jax.random.normal(ktn, (B, N, 4, 3), dtype=jnp.float32)      # noisy structure (unused)
    C = jnp.array([[1] * 8 + [2] * 8,
                   [1] * 15 + [0]], dtype=jnp.int32)                            # chain map, one masked residue
    t = jax.random.uniform(kt, (B,), dtype=jnp.float32)                         # diffusion times
    loss_mask = (jax.random.uniform(km, (B, N)) > 0.2).astype(jnp.float32)

    losses = reconstruction_losses(X0_pred, X, Xt, C, t, loss_mask)
    jax.block_until_ready(losses)
    print("KERNEL_OK")
</pallas_src>

<mosaic_0001>
module attributes {stable_mosaic.version = 11 : i64} {
  func.func @_recon_loss_kernel(%arg0: i32, %arg1: i32, %arg2: memref<8xf32, #tpu.memory_space<smem>>, %arg3: memref<1x1x128xf32, #tpu.memory_space<vmem>>, %arg4: memref<1x1x128xf32, #tpu.memory_space<vmem>>, %arg5: memref<1x3x32x128xf32, #tpu.memory_space<vmem>>, %arg6: memref<1x3x32x128xf32, #tpu.memory_space<vmem>>, %arg7: memref<1x32x128xf32, #tpu.memory_space<vmem>>, %arg8: memref<1x3x32x128xf32, #tpu.memory_space<vmem>>, %arg9: memref<1x3x32x128xf32, #tpu.memory_space<vmem>>, %arg10: memref<1x32x128xf32, #tpu.memory_space<vmem>>, %arg11: memref<1x1x8x512xf32, #tpu.memory_space<vmem>>, %arg12: memref<1x128x8xf32, #tpu.memory_space<vmem>>, %arg13: memref<1x1x128xf32, #tpu.memory_space<vmem>>, %arg14: memref<1x128xf32, #tpu.memory_space<vmem>>, %arg15: memref<1x128xf32, #tpu.memory_space<vmem>>, %arg16: memref<128x1xf32, #tpu.memory_space<vmem>>) attributes {dimension_semantics = [#tpu.dimension_semantics<parallel>, #tpu.dimension_semantics<arbitrary>], iteration_bounds = array<i64: 2, 4>, scalar_prefetch = 0 : i64, scratch_operands = 3 : i64, tpu.core_type = #tpu.core_type<tc>, window_params = [{transform_indices = @transform_0, window_bounds = array<i64: 8>}, {transform_indices = @transform_1, window_bounds = array<i64: 1, 1, 128>}, {transform_indices = @transform_2, window_bounds = array<i64: 1, 1, 128>}, {transform_indices = @transform_3, window_bounds = array<i64: 1, 3, 32, 128>}, {transform_indices = @transform_4, window_bounds = array<i64: 1, 3, 32, 128>}, {transform_indices = @transform_5, window_bounds = array<i64: 1, 32, 128>}, {transform_indices = @transform_6, window_bounds = array<i64: 1, 3, 32, 128>}, {transform_indices = @transform_7, window_bounds = array<i64: 1, 3, 32, 128>}, {transform_indices = @transform_8, window_bounds = array<i64: 1, 32, 128>}, {transform_indices = @transform_9, window_bounds = array<i64: 1, 1, 8, 512>}, {transform_indices = @transform_10, window_bounds = array<i64: 1, 128, 8>}, {transform_indices = @transform_11, window_bounds = array<i64: 1, 1, 128>}]} {
    %c0_i32 = arith.constant 0 : i32
    %0 = arith.cmpi eq, %arg1, %c0_i32 : i32
    %1 = arith.extui %0 : i1 to i32
    %c0_i32_0 = arith.constant 0 : i32
    %2 = arith.cmpi ne, %1, %c0_i32_0 : i32
    scf.if %2 {
      %cst_192 = arith.constant 0.000000e+00 : f32
      %930 = vector.broadcast %cst_192 : f32 to vector<1x128xf32>
      %c0_193 = arith.constant 0 : index
      %c0_194 = arith.constant 0 : index
      %931 = vector.load %arg14[%c0_193, %c0_194] : memref<1x128xf32, #tpu.memory_space<vmem>>, vector<1x128xf32>
      tpu.vector_store %arg14[%c0_193, %c0_194], %930 {strides = array<i32>} : memref<1x128xf32, #tpu.memory_space<vmem>>, vector<1x128xf32>,
      %cst_195 = arith.constant 0.000000e+00 : f32
      %932 = vector.broadcast %cst_195 : f32 to vector<1x128xf32>
      %c0_196 = arith.constant 0 : index
      %c0_197 = arith.constant 0 : index
      %933 = vector.load %arg15[%c0_196, %c0_197] : memref<1x128xf32, #tpu.memory_space<vmem>>, vector<1x128xf32>
      tpu.vector_store %arg15[%c0_196, %c0_197], %932 {strides = array<i32>} : memref<1x128xf32, #tpu.memory_space<vmem>>, vector<1x128xf32>,
      %cst_198 = arith.constant 0.000000e+00 : f32
      %934 = vector.broadcast %cst_198 : f32 to vector<128x1xf32>
      %c0_199 = arith.constant 0 : index
      %c0_200 = arith.constant 0 : index
      %935 = vector.load %arg16[%c0_199, %c0_200] : memref<128x1xf32, #tpu.memory_space<vmem>>, vector<128x1xf32>
      tpu.vector_store %arg16[%c0_199, %c0_200], %934 {strides = array<i32>} : memref<128x1xf32, #tpu.memory_space<vmem>>, vector<128x1xf32>,
    } else {
    }
    %c4_i32 = arith.constant 4 : i32
    %3 = arith.muli %c4_i32, %arg0 : i32
    %4 = arith.index_cast %3 : i32 to index
    %5 = memref.load %arg2[%4] : memref<8xf32, #tpu.memory_space<smem>>
    %c4_i32_1 = arith.constant 4 : i32
    %6 = arith.muli %c4_i32_1, %arg0 : i32
    %c1_i32 = arith.constant 1 : i32
    %7 = arith.addi %6, %c1_i32 : i32
    %8 = arith.index_cast %7 : i32 to index
    %9 = memref.load %arg2[%8] : memref<8xf32, #tpu.memory_space<smem>>
    %c0 = arith.constant 0 : index
    %c0_2 = arith.constant 0 : index
    %c0_3 = arith.constant 0 : index
    %10 = vector.load %arg3[%c0, %c0_2, %c0_3] : memref<1x1x128xf32, #tpu.memory_space<vmem>>, vector<1x1x128xf32>
    %11 = vector.shape_cast %10 : vector<1x1x128xf32> to vector<1x128xf32>
    %c0_4 = arith.constant 0 : index
    %c0_5 = arith.constant 0 : index
    %c0_6 = arith.constant 0 : index
    %12 = vector.load %arg4[%c0_4, %c0_5, %c0_6] : memref<1x1x128xf32, #tpu.memory_space<vmem>>, vector<1x1x128xf32>
    %13 = vector.shape_cast %12 : vector<1x1x128xf32> to vector<1x128xf32>
    %14 = vector.broadcast %5 : f32 to vector<1x128xf32>
    %15 = arith.mulf %14, %13 : vector<1x128xf32>
    %c0_7 = arith.constant 0 : index
    %c0_8 = arith.constant 0 : index
    %c0_9 = arith.constant 0 : index
    %16 = vector.load %arg7[%c0_7, %c0_8, %c0_9] : memref<1x32x128xf32, #tpu.memory_space<vmem>>, vector<1x32x128xf32>
    %17 = vector.shape_cast %16 : vector<1x32x128xf32> to vector<32x128xf32>
    %c0_10 = arith.constant 0 : index
    %c0_11 = arith.constant 0 : index
    %c0_12 = arith.constant 0 : index
    %c0_13 = arith.constant 0 : index
    %18 = vector.load %arg5[%c0_10, %c0_11, %c0_12, %c0_13] : memref<1x3x32x128xf32, #tpu.memory_space<vmem>>, vector<1x1x32x128xf32>
    %19 = vector.shape_cast %18 : vector<1x1x32x128xf32> to vector<32x128xf32>
    %c0_14 = arith.constant 0 : index
    %c1 = arith.constant 1 : index
    %c0_15 = arith.constant 0 : index
    %c0_16 = arith.constant 0 : index
    %20 = vector.load %arg5[%c0_14, %c1, %c0_15, %c0_16] : memref<1x3x32x128xf32, #tpu.memory_space<vmem>>, vector<1x1x32x128xf32>
    %21 = vector.shape_cast %20 : vector<1x1x32x128xf32> to vector<32x128xf32>
    %c0_17 = arith.constant 0 : index
    %c2 = arith.constant 2 : index
    %c0_18 = arith.constant 0 : index
    %c0_19 = arith.constant 0 : index
    %22 = vector.load %arg5[%c0_17, %c2, %c0_18, %c0_19] : memref<1x3x32x128xf32, #tpu.memory_space<vmem>>, vector<1x1x32x128xf32>
    %23 = vector.shape_cast %22 : vector<1x1x32x128xf32> to vector<32x128xf32>
    %c0_20 = arith.constant 0 : index
    %c0_21 = arith.constant 0 : index
    %c0_22 = arith.constant 0 : index
    %c0_23 = arith.constant 0 : index
    %24 = vector.load %arg6[%c0_20, %c0_21, %c0_22, %c0_23] : memref<1x3x32x128xf32, #tpu.memory_space<vmem>>, vector<1x1x32x128xf32>
    %25 = vector.shape_cast %24 : vector<1x1x32x128xf32> to vector<32x128xf32>
    %c0_24 = arith.constant 0 : index
    %c1_25 = arith.constant 1 : index
    %c0_26 = arith.constant 0 : index
    %c0_27 = arith.constant 0 : index
    %26 = vector.load %arg6[%c0_24, %c1_25, %c0_26, %c0_27] : memref<1x3x32x128xf32, #tpu.memory_space<vmem>>, vector<1x1x32x128xf32>
    %27 = vector.shape_cast %26 : vector<1x1x32x128xf32> to vector<32x128xf32>
    %c0_28 = arith.constant 0 : index
    %c2_29 = arith.constant 2 : index
    %c0_30 = arith.constant 0 : index
    %c0_31 = arith.constant 0 : index
    %28 = vector.load %arg6[%c0_28, %c2_29, %c0_30, %c0_31] : memref<1x3x32x128xf32, #tpu.memory_space<vmem>>, vector<1x1x32x128xf32>
    %29 = vector.shape_cast %28 : vector<1x1x32x128xf32> to vector<32x128xf32>
    %30 = arith.mulf %17, %19 : vector<32x128xf32>
    %31 = arith.mulf %17, %21 : vector<32x128xf32>
    %32 = arith.mulf %17, %23 : vector<32x128xf32>
    %cst = arith.constant dense<0.000000e+00> : vector<128xf32>
    %33 = vector.multi_reduction <add>, %17, %cst [0] : vector<32x128xf32> to vector<128xf32>
    %34 = vector.shape_cast %33 : vector<128xf32> to vector<1x128xf32>
    %cst_32 = arith.constant dense<0.000000e+00> : vector<128xf32>
    %35 = vector.multi_reduction <add>, %30, %cst_32 [0] : vector<32x128xf32> to vector<128xf32>
    %36 = vector.shape_cast %35 : vector<128xf32> to vector<1x128xf32>
    %cst_33 = arith.constant dense<0.000000e+00> : vector<128xf32>
    %37 = vector.multi_reduction <add>, %31, %cst_33 [0] : vector<32x128xf32> to vector<128xf32>
    %38 = vector.shape_cast %37 : vector<128xf32> to vector<1x128xf32>
    %cst_34 = arith.constant dense<0.000000e+00> : vector<128xf32>
    %39 = vector.multi_reduction <add>, %32, %cst_34 [0] : vector<32x128xf32> to vector<128xf32>
    %40 = vector.shape_cast %39 : vector<128xf32> to vector<1x128xf32>
    %41 = arith.mulf %30, %19 : vector<32x128xf32>
    %42 = arith.mulf %31, %21 : vector<32x128xf32>
    %43 = arith.addf %41, %42 : vector<32x128xf32>
    %44 = arith.mulf %32, %23 : vector<32x128xf32>
    %45 = arith.addf %43, %44 : vector<32x128xf32>
    %cst_35 = arith.constant dense<0.000000e+00> : vector<128xf32>
    %46 = vector.multi_reduction <add>, %45, %cst_35 [0] : vector<32x128xf32> to vector<128xf32>
    %47 = vector.shape_cast %46 : vector<128xf32> to vector<1x128xf32>
    %48 = arith.mulf %17, %25 : vector<32x128xf32>
    %cst_36 = arith.constant dense<0.000000e+00> : vector<128xf32>
    %49 = vector.multi_reduction <add>, %48, %cst_36 [0] : vector<32x128xf32> to vector<128xf32>
    %50 = vector.shape_cast %49 : vector<128xf32> to vector<1x128xf32>
    %51 = arith.mulf %17, %27 : vector<32x128xf32>
    %cst_37 = arith.constant dense<0.000000e+00> : vector<128xf32>
    %52 = vector.multi_reduction <add>, %51, %cst_37 [0] : vector<32x128xf32> to vector<128xf32>
    %53 = vector.shape_cast %52 : vector<128xf32> to vector<1x128xf32>
    %54 = arith.mulf %17, %29 : vector<32x128xf32>
    %cst_38 = arith.constant dense<0.000000e+00> : vector<128xf32>
    %55 = vector.multi_reduction <add>, %54, %cst_38 [0] : vector<32x128xf32> to vector<128xf32>
    %56 = vector.shape_cast %55 : vector<128xf32> to vector<1x128xf32>
    %57 = arith.mulf %25, %25 : vector<32x128xf32>
    %58 = arith.mulf %27, %27 : vector<32x128xf32>
    %59 = arith.addf %57, %58 : vector<32x128xf32>
    %60 = arith.mulf %29, %29 : vector<32x128xf32>
    %61 = arith.addf %59, %60 : vector<32x128xf32>
    %62 = arith.mulf %17, %61 : vector<32x128xf32>
    %cst_39 = arith.constant dense<0.000000e+00> : vector<128xf32>
    %63 = vector.multi_reduction <add>, %62, %cst_39 [0] : vector<32x128xf32> to vector<128xf32>
    %64 = vector.shape_cast %63 : vector<128xf32> to vector<1x128xf32>
    %65 = arith.mulf %30, %25 : vector<32x128xf32>
    %cst_40 = arith.constant dense<0.000000e+00> : vector<128xf32>
    %66 = vector.multi_reduction <add>, %65, %cst_40 [0] : vector<32x128xf32> to vector<128xf32>
    %67 = vector.shape_cast %66 : vector<128xf32> to vector<1x128xf32>
    %68 = arith.mulf %30, %27 : vector<32x128xf32>
    %cst_41 = arith.constant dense<0.000000e+00> : vector<128xf32>
    %69 = vector.multi_reduction <add>, %68, %cst_41 [0] : vector<32x128xf32> to vector<128xf32>
    %70 = vector.shape_cast %69 : vector<128xf32> to vector<1x128xf32>
    %71 = arith.mulf %30, %29 : vector<32x128xf32>
    %cst_42 = arith.constant dense<0.000000e+00> : vector<128xf32>
    %72 = vector.multi_reduction <add>, %71, %cst_42 [0] : vector<32x128xf32> to vector<128xf32>
    %73 = vector.shape_cast %72 : vector<128xf32> to vector<1x128xf32>
    %74 = arith.mulf %31, %25 : vector<32x128xf32>
    %cst_43 = arith.constant dense<0.000000e+00> : vector<128xf32>
    %75 = vector.multi_reduction <add>, %74, %cst_43 [0] : vector<32x128xf32> to vector<128xf32>
    %76 = vector.shape_cast %75 : vector<128xf32> to vector<1x128xf32>
    %77 = arith.mulf %31, %27 : vector<32x128xf32>
    %cst_44 = arith.constant dense<0.000000e+00> : vector<128xf32>
    %78 = vector.multi_reduction <add>, %77, %cst_44 [0] : vector<32x128xf32> to vector<128xf32>
    %79 = vector.shape_cast %78 : vector<128xf32> to vector<1x128xf32>
    %80 = arith.mulf %31, %29 : vector<32x128xf32>
    %cst_45 = arith.constant dense<0.000000e+00> : vector<128xf32>
    %81 = vector.multi_reduction <add>, %80, %cst_45 [0] : vector<32x128xf32> to vector<128xf32>
    %82 = vector.shape_cast %81 : vector<128xf32> to vector<1x128xf32>
    %83 = arith.mulf %32, %25 : vector<32x128xf32>
    %cst_46 = arith.constant dense<0.000000e+00> : vector<128xf32>
    %84 = vector.multi_reduction <add>, %83, %cst_46 [0] : vector<32x128xf32> to vector<128xf32>
    %85 = vector.shape_cast %84 : vector<128xf32> to vector<1x128xf32>
    %86 = arith.mulf %32, %27 : vector<32x128xf32>
    %cst_47 = arith.constant dense<0.000000e+00> : vector<128xf32>
    %87 = vector.multi_reduction <add>, %86, %cst_47 [0] : vector<32x128xf32> to vector<128xf32>
    %88 = vector.shape_cast %87 : vector<128xf32> to vector<1x128xf32>
    %89 = arith.mulf %32, %29 : vector<32x128xf32>
    %cst_48 = arith.constant dense<0.000000e+00> : vector<128xf32>
    %90 = vector.multi_reduction <add>, %89, %cst_48 [0] : vector<32x128xf32> to vector<128xf32>
    %91 = vector.shape_cast %90 : vector<128xf32> to vector<1x128xf32>
    %cst_49 = arith.constant 9.99999974E-6 : f32
    %92 = vector.broadcast %cst_49 : f32 to vector<1x128xf32>
    %93 = arith.addf %34, %92 : vector<1x128xf32>
    %cst_50 = arith.constant 1.000000e+00 : f32
    %94 = vector.broadcast %cst_50 : f32 to vector<1x128xf32>
    %95 = arith.divf %94, %93 : vector<1x128xf32>
    %96 = arith.mulf %34, %95 : vector<1x128xf32>
    %cst_51 = arith.constant 2.000000e+00 : f32
    %97 = vector.broadcast %cst_51 : f32 to vector<1x128xf32>
    %98 = arith.subf %97, %96 : vector<1x128xf32>
    %99 = arith.mulf %95, %98 : vector<1x128xf32>
    %100 = arith.mulf %36, %36 : vector<1x128xf32>
    %101 = arith.mulf %38, %38 : vector<1x128xf32>
    %102 = arith.addf %100, %101 : vector<1x128xf32>
    %103 = arith.mulf %40, %40 : vector<1x128xf32>
    %104 = arith.addf %102, %103 : vector<1x128xf32>
    %105 = arith.mulf %99, %104 : vector<1x128xf32>
    %106 = arith.subf %47, %105 : vector<1x128xf32>
    %107 = arith.mulf %50, %50 : vector<1x128xf32>
    %108 = arith.mulf %53, %53 : vector<1x128xf32>
    %109 = arith.addf %107, %108 : vector<1x128xf32>
    %110 = arith.mulf %56, %56 : vector<1x128xf32>
    %111 = arith.addf %109, %110 : vector<1x128xf32>
    %112 = arith.mulf %99, %111 : vector<1x128xf32>
    %113 = arith.subf %64, %112 : vector<1x128xf32>
    %114 = arith.mulf %99, %36 : vector<1x128xf32>
    %115 = arith.mulf %114, %50 : vector<1x128xf32>
    %116 = arith.subf %67, %115 : vector<1x128xf32>
    %117 = arith.mulf %99, %36 : vector<1x128xf32>
    %118 = arith.mulf %117, %53 : vector<1x128xf32>
    %119 = arith.subf %70, %118 : vector<1x128xf32>
    %120 = arith.mulf %99, %36 : vector<1x128xf32>
    %121 = arith.mulf %120, %56 : vector<1x128xf32>
    %122 = arith.subf %73, %121 : vector<1x128xf32>
    %123 = arith.mulf %99, %38 : vector<1x128xf32>
    %124 = arith.mulf %123, %50 : vector<1x128xf32>
    %125 = arith.subf %76, %124 : vector<1x128xf32>
    %126 = arith.mulf %99, %38 : vector<1x128xf32>
    %127 = arith.mulf %126, %53 : vector<1x128xf32>
    %128 = arith.subf %79, %127 : vector<1x128xf32>
    %129 = arith.mulf %99, %38 : vector<1x128xf32>
    %130 = arith.mulf %129, %56 : vector<1x128xf32>
    %131 = arith.subf %82, %130 : vector<1x128xf32>
    %132 = arith.mulf %99, %40 : vector<1x128xf32>
    %133 = arith.mulf %132, %50 : vector<1x128xf32>
    %134 = arith.subf %85, %133 : vector<1x128xf32>
    %135 = arith.mulf %99, %40 : vector<1x128xf32>
    %136 = arith.mulf %135, %53 : vector<1x128xf32>
    %137 = arith.subf %88, %136 : vector<1x128xf32>
    %138 = arith.mulf %99, %40 : vector<1x128xf32>
    %139 = arith.mulf %138, %56 : vector<1x128xf32>
    %140 = arith.subf %91, %139 : vector<1x128xf32>
    %141 = arith.mulf %116, %116 : vector<1x128xf32>
    %142 = arith.mulf %128, %128 : vector<1x128xf32>
    %143 = arith.mulf %140, %140 : vector<1x128xf32>
    %144 = arith.mulf %119, %119 : vector<1x128xf32>
    %145 = arith.mulf %125, %125 : vector<1x128xf32>
    %146 = arith.mulf %122, %122 : vector<1x128xf32>
    %147 = arith.mulf %134, %134 : vector<1x128xf32>
    %148 = arith.mulf %131, %131 : vector<1x128xf32>
    %149 = arith.mulf %137, %137 : vector<1x128xf32>
    %150 = arith.mulf %131, %137 : vector<1x128xf32>
    %151 = arith.mulf %128, %140 : vector<1x128xf32>
    %152 = arith.subf %150, %151 : vector<1x128xf32>
    %cst_52 = arith.constant 2.000000e+00 : f32
    %153 = vector.broadcast %cst_52 : f32 to vector<1x128xf32>
    %154 = arith.mulf %153, %152 : vector<1x128xf32>
    %155 = arith.addf %142, %143 : vector<1x128xf32>
    %156 = arith.subf %155, %141 : vector<1x128xf32>
    %157 = arith.addf %156, %148 : vector<1x128xf32>
    %158 = arith.addf %157, %149 : vector<1x128xf32>
    %159 = arith.addf %141, %142 : vector<1x128xf32>
    %160 = arith.addf %159, %143 : vector<1x128xf32>
    %161 = arith.addf %160, %144 : vector<1x128xf32>
    %162 = arith.addf %161, %145 : vector<1x128xf32>
    %163 = arith.addf %162, %146 : vector<1x128xf32>
    %164 = arith.addf %163, %147 : vector<1x128xf32>
    %165 = arith.addf %164, %148 : vector<1x128xf32>
    %166 = arith.addf %165, %149 : vector<1x128xf32>
    %cst_53 = arith.constant -2.000000e+00 : f32
    %167 = vector.broadcast %cst_53 : f32 to vector<1x128xf32>
    %168 = arith.mulf %167, %166 : vector<1x128xf32>
    %169 = arith.mulf %116, %131 : vector<1x128xf32>
    %170 = arith.mulf %169, %137 : vector<1x128xf32>
    %171 = arith.mulf %128, %134 : vector<1x128xf32>
    %172 = arith.mulf %171, %122 : vector<1x128xf32>
    %173 = arith.addf %170, %172 : vector<1x128xf32>
    %174 = arith.mulf %140, %119 : vector<1x128xf32>
    %175 = arith.mulf %174, %125 : vector<1x128xf32>
    %176 = arith.addf %173, %175 : vector<1x128xf32>
    %177 = arith.mulf %116, %128 : vector<1x128xf32>
    %178 = arith.mulf %177, %140 : vector<1x128xf32>
    %179 = arith.subf %176, %178 : vector<1x128xf32>
    %180 = arith.mulf %131, %134 : vector<1x128xf32>
    %181 = arith.mulf %180, %119 : vector<1x128xf32>
    %182 = arith.subf %179, %181 : vector<1x128xf32>
    %183 = arith.mulf %137, %125 : vector<1x128xf32>
    %184 = arith.mulf %183, %122 : vector<1x128xf32>
    %185 = arith.subf %182, %184 : vector<1x128xf32>
    %cst_54 = arith.constant 8.000000e+00 : f32
    %186 = vector.broadcast %cst_54 : f32 to vector<1x128xf32>
    %187 = arith.mulf %186, %185 : vector<1x128xf32>
    %188 = arith.addf %122, %134 : vector<1x128xf32>
    %189 = arith.addf %131, %137 : vector<1x128xf32>
    %190 = arith.addf %119, %125 : vector<1x128xf32>
    %191 = arith.subf %131, %137 : vector<1x128xf32>
    %192 = arith.subf %122, %134 : vector<1x128xf32>
    %193 = arith.subf %119, %125 : vector<1x128xf32>
    %194 = arith.addf %116, %128 : vector<1x128xf32>
    %195 = arith.subf %116, %128 : vector<1x128xf32>
    %196 = arith.addf %144, %146 : vector<1x128xf32>
    %197 = arith.subf %196, %145 : vector<1x128xf32>
    %198 = arith.subf %197, %147 : vector<1x128xf32>
    %199 = arith.mulf %198, %198 : vector<1x128xf32>
    %200 = arith.addf %158, %154 : vector<1x128xf32>
    %201 = arith.subf %158, %154 : vector<1x128xf32>
    %202 = arith.mulf %200, %201 : vector<1x128xf32>
    %203 = arith.addf %199, %202 : vector<1x128xf32>
    %cst_55 = arith.constant 0.000000e+00 : f32
    %204 = vector.broadcast %cst_55 : f32 to vector<1x128xf32>
    %205 = arith.subf %204, %188 : vector<1x128xf32>
    %206 = arith.mulf %205, %191 : vector<1x128xf32>
    %207 = arith.subf %195, %140 : vector<1x128xf32>
    %208 = arith.mulf %193, %207 : vector<1x128xf32>
    %209 = arith.addf %206, %208 : vector<1x128xf32>
    %cst_56 = arith.constant 0.000000e+00 : f32
    %210 = vector.broadcast %cst_56 : f32 to vector<1x128xf32>
    %211 = arith.subf %210, %192 : vector<1x128xf32>
    %212 = arith.mulf %211, %189 : vector<1x128xf32>
    %213 = arith.addf %195, %140 : vector<1x128xf32>
    %214 = arith.mulf %193, %213 : vector<1x128xf32>
    %215 = arith.addf %212, %214 : vector<1x128xf32>
    %216 = arith.mulf %209, %215 : vector<1x128xf32>
    %217 = arith.addf %203, %216 : vector<1x128xf32>
    %cst_57 = arith.constant 0.000000e+00 : f32
    %218 = vector.broadcast %cst_57 : f32 to vector<1x128xf32>
    %219 = arith.subf %218, %188 : vector<1x128xf32>
    %220 = arith.mulf %219, %189 : vector<1x128xf32>
    %221 = arith.subf %194, %140 : vector<1x128xf32>
    %222 = arith.mulf %190, %221 : vector<1x128xf32>
    %223 = arith.subf %220, %222 : vector<1x128xf32>
    %cst_58 = arith.constant 0.000000e+00 : f32
    %224 = vector.broadcast %cst_58 : f32 to vector<1x128xf32>
    %225 = arith.subf %224, %192 : vector<1x128xf32>
    %226 = arith.mulf %225, %191 : vector<1x128xf32>
    %227 = arith.addf %194, %140 : vector<1x128xf32>
    %228 = arith.mulf %190, %227 : vector<1x128xf32>
    %229 = arith.subf %226, %228 : vector<1x128xf32>
    %230 = arith.mulf %223, %229 : vector<1x128xf32>
    %231 = arith.addf %217, %230 : vector<1x128xf32>
    %232 = arith.mulf %190, %189 : vector<1x128xf32>
    %233 = arith.addf %195, %140 : vector<1x128xf32>
    %234 = arith.mulf %188, %233 : vector<1x128xf32>
    %235 = arith.addf %232, %234 : vector<1x128xf32>
    %cst_59 = arith.constant 0.000000e+00 : f32
    %236 = vector.broadcast %cst_59 : f32 to vector<1x128xf32>
    %237 = arith.subf %236, %193 : vector<1x128xf32>
    %238 = arith.mulf %237, %191 : vector<1x128xf32>
    %239 = arith.addf %194, %140 : vector<1x128xf32>
    %240 = arith.mulf %188, %239 : vector<1x128xf32>
    %241 = arith.addf %238, %240 : vector<1x128xf32>
    %242 = arith.mulf %235, %241 : vector<1x128xf32>
    %243 = arith.addf %231, %242 : vector<1x128xf32>
    %244 = arith.mulf %190, %191 : vector<1x128xf32>
    %245 = arith.subf %195, %140 : vector<1x128xf32>
    %246 = arith.mulf %192, %245 : vector<1x128xf32>
    %247 = arith.addf %244, %246 : vector<1x128xf32>
    %cst_60 = arith.constant 0.000000e+00 : f32
    %248 = vector.broadcast %cst_60 : f32 to vector<1x128xf32>
    %249 = arith.subf %248, %193 : vector<1x128xf32>
    %250 = arith.mulf %249, %189 : vector<1x128xf32>
    %251 = arith.subf %194, %140 : vector<1x128xf32>
    %252 = arith.mulf %192, %251 : vector<1x128xf32>
    %253 = arith.addf %250, %252 : vector<1x128xf32>
    %254 = arith.mulf %247, %253 : vector<1x128xf32>
    %255 = arith.addf %243, %254 : vector<1x128xf32>
    %256 = arith.addf %106, %113 : vector<1x128xf32>
    %cst_61 = arith.constant 5.000000e-01 : f32
    %257 = vector.broadcast %cst_61 : f32 to vector<1x128xf32>
    %258 = arith.mulf %257, %256 : vector<1x128xf32>
    %259 = arith.mulf %258, %258 : vector<1x128xf32>
    %260 = arith.addf %259, %168 : vector<1x128xf32>
    %261 = arith.mulf %260, %258 : vector<1x128xf32>
    %262 = arith.addf %261, %187 : vector<1x128xf32>
    %cst_62 = arith.constant 2.000000e+00 : f32
    %263 = vector.broadcast %cst_62 : f32 to vector<1x128xf32>
    %264 = arith.mulf %263, %259 : vector<1x128xf32>
    %265 = arith.mulf %264, %258 : vector<1x128xf32>
    %266 = arith.addf %265, %261 : vector<1x128xf32>
    %267 = arith.addf %266, %262 : vector<1x128xf32>
    %268 = arith.mulf %262, %258 : vector<1x128xf32>
    %269 = arith.addf %268, %255 : vector<1x128xf32>
    %cst_63 = arith.constant 9.99999996E-13 : f32
    %270 = vector.broadcast %cst_63 : f32 to vector<1x128xf32>
    %271 = arith.addf %267, %270 : vector<1x128xf32>
    %272 = tpu.reciprocal %271 {approx = true} : vector<1x128xf32> -> vector<1x128xf32>
    %273 = arith.mulf %269, %272 : vector<1x128xf32>
    %274 = arith.subf %258, %273 : vector<1x128xf32>
    %275 = arith.mulf %274, %274 : vector<1x128xf32>
    %276 = arith.addf %275, %168 : vector<1x128xf32>
    %277 = arith.mulf %276, %274 : vector<1x128xf32>
    %278 = arith.addf %277, %187 : vector<1x128xf32>
    %cst_64 = arith.constant 2.000000e+00 : f32
    %279 = vector.broadcast %cst_64 : f32 to vector<1x128xf32>
    %280 = arith.mulf %279, %275 : vector<1x128xf32>
    %281 = arith.mulf %280, %274 : vector<1x128xf32>
    %282 = arith.addf %281, %277 : vector<1x128xf32>
    %283 = arith.addf %282, %278 : vector<1x128xf32>
    %284 = arith.mulf %278, %274 : vector<1x128xf32>
    %285 = arith.addf %284, %255 : vector<1x128xf32>
    %cst_65 = arith.constant 9.99999996E-13 : f32
    %286 = vector.broadcast %cst_65 : f32 to vector<1x128xf32>
    %287 = arith.addf %283, %286 : vector<1x128xf32>
    %288 = tpu.reciprocal %287 {approx = true} : vector<1x128xf32> -> vector<1x128xf32>
    %289 = arith.mulf %285, %288 : vector<1x128xf32>
    %290 = arith.subf %274, %289 : vector<1x128xf32>
    %291 = arith.mulf %290, %290 : vector<1x128xf32>
    %292 = arith.addf %291, %168 : vector<1x128xf32>
    %293 = arith.mulf %292, %290 : vector<1x128xf32>
    %294 = arith.addf %293, %187 : vector<1x128xf32>
    %cst_66 = arith.constant 2.000000e+00 : f32
    %295 = vector.broadcast %cst_66 : f32 to vector<1x128xf32>
    %296 = arith.mulf %295, %291 : vector<1x128xf32>
    %297 = arith.mulf %296, %290 : vector<1x128xf32>
    %298 = arith.addf %297, %293 : vector<1x128xf32>
    %299 = arith.addf %298, %294 : vector<1x128xf32>
    %300 = arith.mulf %294, %290 : vector<1x128xf32>
    %301 = arith.addf %300, %255 : vector<1x128xf32>
    %cst_67 = arith.constant 9.99999996E-13 : f32
    %302 = vector.broadcast %cst_67 : f32 to vector<1x128xf32>
    %303 = arith.addf %299, %302 : vector<1x128xf32>
    %304 = tpu.reciprocal %303 {approx = true} : vector<1x128xf32> -> vector<1x128xf32>
    %305 = arith.mulf %301, %304 : vector<1x128xf32>
    %306 = arith.subf %290, %305 : vector<1x128xf32>
    %307 = arith.mulf %306, %306 : vector<1x128xf32>
    %308 = arith.addf %307, %168 : vector<1x128xf32>
    %309 = arith.mulf %308, %306 : vector<1x128xf32>
    %310 = arith.addf %309, %187 : vector<1x128xf32>
    %cst_68 = arith.constant 2.000000e+00 : f32
    %311 = vector.broadcast %cst_68 : f32 to vector<1x128xf32>
    %312 = arith.mulf %311, %307 : vector<1x128xf32>
    %313 = arith.mulf %312, %306 : vector<1x128xf32>
    %314 = arith.addf %313, %309 : vector<1x128xf32>
    %315 = arith.addf %314, %310 : vector<1x128xf32>
    %316 = arith.mulf %310, %306 : vector<1x128xf32>
    %317 = arith.addf %316, %255 : vector<1x128xf32>
    %cst_69 = arith.constant 9.99999996E-13 : f32
    %318 = vector.broadcast %cst_69 : f32 to vector<1x128xf32>
    %319 = arith.addf %315, %318 : vector<1x128xf32>
    %320 = tpu.reciprocal %319 {approx = true} : vector<1x128xf32> -> vector<1x128xf32>
    %321 = arith.mulf %317, %320 : vector<1x128xf32>
    %322 = arith.subf %306, %321 : vector<1x128xf32>
    %323 = arith.mulf %322, %322 : vector<1x128xf32>
    %324 = arith.addf %323, %168 : vector<1x128xf32>
    %325 = arith.mulf %324, %322 : vector<1x128xf32>
    %326 = arith.addf %325, %187 : vector<1x128xf32>
    %cst_70 = arith.constant 2.000000e+00 : f32
    %327 = vector.broadcast %cst_70 : f32 to vector<1x128xf32>
    %328 = arith.mulf %327, %323 : vector<1x128xf32>
    %329 = arith.mulf %328, %322 : vector<1x128xf32>
    %330 = arith.addf %329, %325 : vector<1x128xf32>
    %331 = arith.addf %330, %326 : vector<1x128xf32>
    %332 = arith.mulf %326, %322 : vector<1x128xf32>
    %333 = arith.addf %332, %255 : vector<1x128xf32>
    %cst_71 = arith.constant 9.99999996E-13 : f32
    %334 = vector.broadcast %cst_71 : f32 to vector<1x128xf32>
    %335 = arith.addf %331, %334 : vector<1x128xf32>
    %336 = tpu.reciprocal %335 {approx = true} : vector<1x128xf32> -> vector<1x128xf32>
    %337 = arith.mulf %333, %336 : vector<1x128xf32>
    %338 = arith.subf %322, %337 : vector<1x128xf32>
    %339 = arith.mulf %338, %338 : vector<1x128xf32>
    %340 = arith.addf %339, %168 : vector<1x128xf32>
    %341 = arith.mulf %340, %338 : vector<1x128xf32>
    %342 = arith.addf %341, %187 : vector<1x128xf32>
    %cst_72 = arith.constant 2.000000e+00 : f32
    %343 = vector.broadcast %cst_72 : f32 to vector<1x128xf32>
    %344 = arith.mulf %343, %339 : vector<1x128xf32>
    %345 = arith.mulf %344, %338 : vector<1x128xf32>
    %346 = arith.addf %345, %341 : vector<1x128xf32>
    %347 = arith.addf %346, %342 : vector<1x128xf32>
    %348 = arith.mulf %342, %338 : vector<1x128xf32>
    %349 = arith.addf %348, %255 : vector<1x128xf32>
    %cst_73 = arith.constant 9.99999996E-13 : f32
    %350 = vector.broadcast %cst_73 : f32 to vector<1x128xf32>
    %351 = arith.addf %347, %350 : vector<1x128xf32>
    %352 = tpu.reciprocal %351 {approx = true} : vector<1x128xf32> -> vector<1x128xf32>
    %353 = arith.mulf %349, %352 : vector<1x128xf32>
    %354 = arith.subf %338, %353 : vector<1x128xf32>
    %355 = arith.mulf %354, %354 : vector<1x128xf32>
    %356 = arith.addf %355, %168 : vector<1x128xf32>
    %357 = arith.mulf %356, %354 : vector<1x128xf32>
    %358 = arith.addf %357, %187 : vector<1x128xf32>
    %cst_74 = arith.constant 2.000000e+00 : f32
    %359 = vector.broadcast %cst_74 : f32 to vector<1x128xf32>
    %360 = arith.mulf %359, %355 : vector<1x128xf32>
    %361 = arith.mulf %360, %354 : vector<1x128xf32>
    %362 = arith.addf %361, %357 : vector<1x128xf32>
    %363 = arith.addf %362, %358 : vector<1x128xf32>
    %364 = arith.mulf %358, %354 : vector<1x128xf32>
    %365 = arith.addf %364, %255 : vector<1x128xf32>
    %cst_75 = arith.constant 9.99999996E-13 : f32
    %366 = vector.broadcast %cst_75 : f32 to vector<1x128xf32>
    %367 = arith.addf %363, %366 : vector<1x128xf32>
    %368 = tpu.reciprocal %367 {approx = true} : vector<1x128xf32> -> vector<1x128xf32>
    %369 = arith.mulf %365, %368 : vector<1x128xf32>
    %370 = arith.subf %354, %369 : vector<1x128xf32>
    %371 = arith.mulf %370, %370 : vector<1x128xf32>
    %372 = arith.addf %371, %168 : vector<1x128xf32>
    %373 = arith.mulf %372, %370 : vector<1x128xf32>
    %374 = arith.addf %373, %187 : vector<1x128xf32>
    %cst_76 = arith.constant 2.000000e+00 : f32
    %375 = vector.broadcast %cst_76 : f32 to vector<1x128xf32>
    %376 = arith.mulf %375, %371 : vector<1x128xf32>
    %377 = arith.mulf %376, %370 : vector<1x128xf32>
    %378 = arith.addf %377, %373 : vector<1x128xf32>
    %379 = arith.addf %378, %374 : vector<1x128xf32>
    %380 = arith.mulf %374, %370 : vector<1x128xf32>
    %381 = arith.addf %380, %255 : vector<1x128xf32>
    %cst_77 = arith.constant 9.99999996E-13 : f32
    %382 = vector.broadcast %cst_77 : f32 to vector<1x128xf32>
    %383 = arith.addf %379, %382 : vector<1x128xf32>
    %384 = tpu.reciprocal %383 {approx = true} : vector<1x128xf32> -> vector<1x128xf32>
    %385 = arith.mulf %381, %384 : vector<1x128xf32>
    %386 = arith.subf %370, %385 : vector<1x128xf32>
    %387 = arith.mulf %386, %386 : vector<1x128xf32>
    %388 = arith.addf %387, %168 : vector<1x128xf32>
    %389 = arith.mulf %388, %386 : vector<1x128xf32>
    %390 = arith.addf %389, %187 : vector<1x128xf32>
    %cst_78 = arith.constant 2.000000e+00 : f32
    %391 = vector.broadcast %cst_78 : f32 to vector<1x128xf32>
    %392 = arith.mulf %391, %387 : vector<1x128xf32>
    %393 = arith.mulf %392, %386 : vector<1x128xf32>
    %394 = arith.addf %393, %389 : vector<1x128xf32>
    %395 = arith.addf %394, %390 : vector<1x128xf32>
    %396 = arith.mulf %390, %386 : vector<1x128xf32>
    %397 = arith.addf %396, %255 : vector<1x128xf32>
    %cst_79 = arith.constant 9.99999996E-13 : f32
    %398 = vector.broadcast %cst_79 : f32 to vector<1x128xf32>
    %399 = arith.addf %395, %398 : vector<1x128xf32>
    %400 = tpu.reciprocal %399 {approx = true} : vector<1x128xf32> -> vector<1x128xf32>
    %401 = arith.mulf %397, %400 : vector<1x128xf32>
    %402 = arith.subf %386, %401 : vector<1x128xf32>
    %403 = arith.mulf %402, %402 : vector<1x128xf32>
    %404 = arith.addf %403, %168 : vector<1x128xf32>
    %405 = arith.mulf %404, %402 : vector<1x128xf32>
    %406 = arith.addf %405, %187 : vector<1x128xf32>
    %cst_80 = arith.constant 2.000000e+00 : f32
    %407 = vector.broadcast %cst_80 : f32 to vector<1x128xf32>
    %408 = arith.mulf %407, %403 : vector<1x128xf32>
    %409 = arith.mulf %408, %402 : vector<1x128xf32>
    %410 = arith.addf %409, %405 : vector<1x128xf32>
    %411 = arith.addf %410, %406 : vector<1x128xf32>
    %412 = arith.mulf %406, %402 : vector<1x128xf32>
    %413 = arith.addf %412, %255 : vector<1x128xf32>
    %cst_81 = arith.constant 9.99999996E-13 : f32
    %414 = vector.broadcast %cst_81 : f32 to vector<1x128xf32>
    %415 = arith.addf %411, %414 : vector<1x128xf32>
    %416 = tpu.reciprocal %415 {approx = true} : vector<1x128xf32> -> vector<1x128xf32>
    %417 = arith.mulf %413, %416 : vector<1x128xf32>
    %418 = arith.subf %402, %417 : vector<1x128xf32>
    %419 = arith.subf %258, %418 : vector<1x128xf32>
    %cst_82 = arith.constant 2.000000e+00 : f32
    %420 = vector.broadcast %cst_82 : f32 to vector<1x128xf32>
    %421 = arith.mulf %420, %419 : vector<1x128xf32>
    %422 = arith.mulf %421, %95 : vector<1x128xf32>
    %cst_83 = arith.constant 0.000000e+00 : f32
    %423 = vector.broadcast %cst_83 : f32 to vector<1x128xf32>
    %424 = arith.maximumf %422, %423 : vector<1x128xf32>
    %cst_84 = arith.constant 9.99999974E-6 : f32
    %425 = vector.broadcast %cst_84 : f32 to vector<1x128xf32>
    %426 = arith.addf %424, %425 : vector<1x128xf32>
    %427 = math.sqrt %426 : vector<1x128xf32>
    %428 = arith.mulf %427, %15 : vector<1x128xf32>
    %c0_85 = arith.constant 0 : index
    %c0_86 = arith.constant 0 : index
    %429 = vector.load %arg14[%c0_85, %c0_86] : memref<1x128xf32, #tpu.memory_space<vmem>>, vector<1x128xf32>
    %430 = arith.mulf %11, %428 : vector<1x128xf32>
    %431 = arith.mulf %430, %428 : vector<1x128xf32>
    %432 = arith.addf %429, %431 : vector<1x128xf32>
    %c0_87 = arith.constant 0 : index
    %c0_88 = arith.constant 0 : index
    %433 = vector.load %arg14[%c0_87, %c0_88] : memref<1x128xf32, #tpu.memory_space<vmem>>, vector<1x128xf32>
    tpu.vector_store %arg14[%c0_87, %c0_88], %432 {strides = array<i32>} : memref<1x128xf32, #tpu.memory_space<vmem>>, vector<1x128xf32>,
    %c0_89 = arith.constant 0 : index
    %c0_90 = arith.constant 0 : index
    %c0_91 = arith.constant 0 : index
    %434 = vector.load %arg10[%c0_89, %c0_90, %c0_91] : memref<1x32x128xf32, #tpu.memory_space<vmem>>, vector<1x32x128xf32>
    %435 = vector.shape_cast %434 : vector<1x32x128xf32> to vector<32x128xf32>
    %c0_92 = arith.constant 0 : index
    %c0_93 = arith.constant 0 : index
    %c0_94 = arith.constant 0 : index
    %c0_95 = arith.constant 0 : index
    %436 = vector.load %arg8[%c0_92, %c0_93, %c0_94, %c0_95] : memref<1x3x32x128xf32, #tpu.memory_space<vmem>>, vector<1x1x32x128xf32>
    %437 = vector.shape_cast %436 : vector<1x1x32x128xf32> to vector<32x128xf32>
    %c0_96 = arith.constant 0 : index
    %c1_97 = arith.constant 1 : index
    %c0_98 = arith.constant 0 : index
    %c0_99 = arith.constant 0 : index
    %438 = vector.load %arg8[%c0_96, %c1_97, %c0_98, %c0_99] : memref<1x3x32x128xf32, #tpu.memory_space<vmem>>, vector<1x1x32x128xf32>
    %439 = vector.shape_cast %438 : vector<1x1x32x128xf32> to vector<32x128xf32>
    %c0_100 = arith.constant 0 : index
    %c2_101 = arith.constant 2 : index
    %c0_102 = arith.constant 0 : index
    %c0_103 = arith.constant 0 : index
    %440 = vector.load %arg8[%c0_100, %c2_101, %c0_102, %c0_103] : memref<1x3x32x128xf32, #tpu.memory_space<vmem>>, vector<1x1x32x128xf32>
    %441 = vector.shape_cast %440 : vector<1x1x32x128xf32> to vector<32x128xf32>
    %c0_104 = arith.constant 0 : index
    %c0_105 = arith.constant 0 : index
    %c0_106 = arith.constant 0 : index
    %c0_107 = arith.constant 0 : index
    %442 = vector.load %arg9[%c0_104, %c0_105, %c0_106, %c0_107] : memref<1x3x32x128xf32, #tpu.memory_space<vmem>>, vector<1x1x32x128xf32>
    %443 = vector.shape_cast %442 : vector<1x1x32x128xf32> to vector<32x128xf32>
    %c0_108 = arith.constant 0 : index
    %c1_109 = arith.constant 1 : index
    %c0_110 = arith.constant 0 : index
    %c0_111 = arith.constant 0 : index
    %444 = vector.load %arg9[%c0_108, %c1_109, %c0_110, %c0_111] : memref<1x3x32x128xf32, #tpu.memory_space<vmem>>, vector<1x1x32x128xf32>
    %445 = vector.shape_cast %444 : vector<1x1x32x128xf32> to vector<32x128xf32>
    %c0_112 = arith.constant 0 : index
    %c2_113 = arith.constant 2 : index
    %c0_114 = arith.constant 0 : index
    %c0_115 = arith.constant 0 : index
    %446 = vector.load %arg9[%c0_112, %c2_113, %c0_114, %c0_115] : memref<1x3x32x128xf32, #tpu.memory_space<vmem>>, vector<1x1x32x128xf32>
    %447 = vector.shape_cast %446 : vector<1x1x32x128xf32> to vector<32x128xf32>
    %448 = arith.mulf %435, %437 : vector<32x128xf32>
    %449 = arith.mulf %435, %439 : vector<32x128xf32>
    %450 = arith.mulf %435, %441 : vector<32x128xf32>
    %cst_116 = arith.constant dense<0.000000e+00> : vector<128xf32>
    %451 = vector.multi_reduction <add>, %435, %cst_116 [0] : vector<32x128xf32> to vector<128xf32>
    %452 = vector.shape_cast %451 : vector<128xf32> to vector<1x128xf32>
    %cst_117 = arith.constant dense<0.000000e+00> : vector<128xf32>
    %453 = vector.multi_reduction <add>, %448, %cst_117 [0] : vector<32x128xf32> to vector<128xf32>
    %454 = vector.shape_cast %453 : vector<128xf32> to vector<1x128xf32>
    %cst_118 = arith.constant dense<0.000000e+00> : vector<128xf32>
    %455 = vector.multi_reduction <add>, %449, %cst_118 [0] : vector<32x128xf32> to vector<128xf32>
    %456 = vector.shape_cast %455 : vector<128xf32> to vector<1x128xf32>
    %cst_119 = arith.constant dense<0.000000e+00> : vector<128xf32>
    %457 = vector.multi_reduction <add>, %450, %cst_119 [0] : vector<32x128xf32> to vector<128xf32>
    %458 = vector.shape_cast %457 : vector<128xf32> to vector<1x128xf32>
    %459 = arith.mulf %448, %437 : vector<32x128xf32>
    %460 = arith.mulf %449, %439 : vector<32x128xf32>
    %461 = arith.addf %459, %460 : vector<32x128xf32>
    %462 = arith.mulf %450, %441 : vector<32x128xf32>
    %463 = arith.addf %461, %462 : vector<32x128xf32>
    %cst_120 = arith.constant dense<0.000000e+00> : vector<128xf32>
    %464 = vector.multi_reduction <add>, %463, %cst_120 [0] : vector<32x128xf32> to vector<128xf32>
    %465 = vector.shape_cast %464 : vector<128xf32> to vector<1x128xf32>
    %466 = arith.mulf %435, %443 : vector<32x128xf32>
    %cst_121 = arith.constant dense<0.000000e+00> : vector<128xf32>
    %467 = vector.multi_reduction <add>, %466, %cst_121 [0] : vector<32x128xf32> to vector<128xf32>
    %468 = vector.shape_cast %467 : vector<128xf32> to vector<1x128xf32>
    %469 = arith.mulf %435, %445 : vector<32x128xf32>
    %cst_122 = arith.constant dense<0.000000e+00> : vector<128xf32>
    %470 = vector.multi_reduction <add>, %469, %cst_122 [0] : vector<32x128xf32> to vector<128xf32>
    %471 = vector.shape_cast %470 : vector<128xf32> to vector<1x128xf32>
    %472 = arith.mulf %435, %447 : vector<32x128xf32>
    %cst_123 = arith.constant dense<0.000000e+00> : vector<128xf32>
    %473 = vector.multi_reduction <add>, %472, %cst_123 [0] : vector<32x128xf32> to vector<128xf32>
    %474 = vector.shape_cast %473 : vector<128xf32> to vector<1x128xf32>
    %475 = arith.mulf %443, %443 : vector<32x128xf32>
    %476 = arith.mulf %445, %445 : vector<32x128xf32>
    %477 = arith.addf %475, %476 : vector<32x128xf32>
    %478 = arith.mulf %447, %447 : vector<32x128xf32>
    %479 = arith.addf %477, %478 : vector<32x128xf32>
    %480 = arith.mulf %435, %479 : vector<32x128xf32>
    %cst_124 = arith.constant dense<0.000000e+00> : vector<128xf32>
    %481 = vector.multi_reduction <add>, %480, %cst_124 [0] : vector<32x128xf32> to vector<128xf32>
    %482 = vector.shape_cast %481 : vector<128xf32> to vector<1x128xf32>
    %483 = arith.mulf %448, %443 : vector<32x128xf32>
    %cst_125 = arith.constant dense<0.000000e+00> : vector<128xf32>
    %484 = vector.multi_reduction <add>, %483, %cst_125 [0] : vector<32x128xf32> to vector<128xf32>
    %485 = vector.shape_cast %484 : vector<128xf32> to vector<1x128xf32>
    %486 = arith.mulf %448, %445 : vector<32x128xf32>
    %cst_126 = arith.constant dense<0.000000e+00> : vector<128xf32>
    %487 = vector.multi_reduction <add>, %486, %cst_126 [0] : vector<32x128xf32> to vector<128xf32>
    %488 = vector.shape_cast %487 : vector<128xf32> to vector<1x128xf32>
    %489 = arith.mulf %448, %447 : vector<32x128xf32>
    %cst_127 = arith.constant dense<0.000000e+00> : vector<128xf32>
    %490 = vector.multi_reduction <add>, %489, %cst_127 [0] : vector<32x128xf32> to vector<128xf32>
    %491 = vector.shape_cast %490 : vector<128xf32> to vector<1x128xf32>
    %492 = arith.mulf %449, %443 : vector<32x128xf32>
    %cst_128 = arith.constant dense<0.000000e+00> : vector<128xf32>
    %493 = vector.multi_reduction <add>, %492, %cst_128 [0] : vector<32x128xf32> to vector<128xf32>
    %494 = vector.shape_cast %493 : vector<128xf32> to vector<1x128xf32>
    %495 = arith.mulf %449, %445 : vector<32x128xf32>
    %cst_129 = arith.constant dense<0.000000e+00> : vector<128xf32>
    %496 = vector.multi_reduction <add>, %495, %cst_129 [0] : vector<32x128xf32> to vector<128xf32>
    %497 = vector.shape_cast %496 : vector<128xf32> to vector<1x128xf32>
    %498 = arith.mulf %449, %447 : vector<32x128xf32>
    %cst_130 = arith.constant dense<0.000000e+00> : vector<128xf32>
    %499 = vector.multi_reduction <add>, %498, %cst_130 [0] : vector<32x128xf32> to vector<128xf32>
    %500 = vector.shape_cast %499 : vector<128xf32> to vector<1x128xf32>
    %501 = arith.mulf %450, %443 : vector<32x128xf32>
    %cst_131 = arith.constant dense<0.000000e+00> : vector<128xf32>
    %502 = vector.multi_reduction <add>, %501, %cst_131 [0] : vector<32x128xf32> to vector<128xf32>
    %503 = vector.shape_cast %502 : vector<128xf32> to vector<1x128xf32>
    %504 = arith.mulf %450, %445 : vector<32x128xf32>
    %cst_132 = arith.constant dense<0.000000e+00> : vector<128xf32>
    %505 = vector.multi_reduction <add>, %504, %cst_132 [0] : vector<32x128xf32> to vector<128xf32>
    %506 = vector.shape_cast %505 : vector<128xf32> to vector<1x128xf32>
    %507 = arith.mulf %450, %447 : vector<32x128xf32>
    %cst_133 = arith.constant dense<0.000000e+00> : vector<128xf32>
    %508 = vector.multi_reduction <add>, %507, %cst_133 [0] : vector<32x128xf32> to vector<128xf32>
    %509 = vector.shape_cast %508 : vector<128xf32> to vector<1x128xf32>
    %cst_134 = arith.constant 9.99999974E-6 : f32
    %510 = vector.broadcast %cst_134 : f32 to vector<1x128xf32>
    %511 = arith.addf %452, %510 : vector<1x128xf32>
    %cst_135 = arith.constant 1.000000e+00 : f32
    %512 = vector.broadcast %cst_135 : f32 to vector<1x128xf32>
    %513 = arith.divf %512, %511 : vector<1x128xf32>
    %514 = arith.mulf %452, %513 : vector<1x128xf32>
    %cst_136 = arith.constant 2.000000e+00 : f32
    %515 = vector.broadcast %cst_136 : f32 to vector<1x128xf32>
    %516 = arith.subf %515, %514 : vector<1x128xf32>
    %517 = arith.mulf %513, %516 : vector<1x128xf32>
    %518 = arith.mulf %454, %454 : vector<1x128xf32>
    %519 = arith.mulf %456, %456 : vector<1x128xf32>
    %520 = arith.addf %518, %519 : vector<1x128xf32>
    %521 = arith.mulf %458, %458 : vector<1x128xf32>
    %522 = arith.addf %520, %521 : vector<1x128xf32>
    %523 = arith.mulf %517, %522 : vector<1x128xf32>
    %524 = arith.subf %465, %523 : vector<1x128xf32>
    %525 = arith.mulf %468, %468 : vector<1x128xf32>
    %526 = arith.mulf %471, %471 : vector<1x128xf32>
    %527 = arith.addf %525, %526 : vector<1x128xf32>
    %528 = arith.mulf %474, %474 : vector<1x128xf32>
    %529 = arith.addf %527, %528 : vector<1x128xf32>
    %530 = arith.mulf %517, %529 : vector<1x128xf32>
    %531 = arith.subf %482, %530 : vector<1x128xf32>
    %532 = arith.mulf %517, %454 : vector<1x128xf32>
    %533 = arith.mulf %532, %468 : vector<1x128xf32>
    %534 = arith.subf %485, %533 : vector<1x128xf32>
    %535 = arith.mulf %517, %454 : vector<1x128xf32>
    %536 = arith.mulf %535, %471 : vector<1x128xf32>
    %537 = arith.subf %488, %536 : vector<1x128xf32>
    %538 = arith.mulf %517, %454 : vector<1x128xf32>
    %539 = arith.mulf %538, %474 : vector<1x128xf32>
    %540 = arith.subf %491, %539 : vector<1x128xf32>
    %541 = arith.mulf %517, %456 : vector<1x128xf32>
    %542 = arith.mulf %541, %468 : vector<1x128xf32>
    %543 = arith.subf %494, %542 : vector<1x128xf32>
    %544 = arith.mulf %517, %456 : vector<1x128xf32>
    %545 = arith.mulf %544, %471 : vector<1x128xf32>
    %546 = arith.subf %497, %545 : vector<1x128xf32>
    %547 = arith.mulf %517, %456 : vector<1x128xf32>
    %548 = arith.mulf %547, %474 : vector<1x128xf32>
    %549 = arith.subf %500, %548 : vector<1x128xf32>
    %550 = arith.mulf %517, %458 : vector<1x128xf32>
    %551 = arith.mulf %550, %468 : vector<1x128xf32>
    %552 = arith.subf %503, %551 : vector<1x128xf32>
    %553 = arith.mulf %517, %458 : vector<1x128xf32>
    %554 = arith.mulf %553, %471 : vector<1x128xf32>
    %555 = arith.subf %506, %554 : vector<1x128xf32>
    %556 = arith.mulf %517, %458 : vector<1x128xf32>
    %557 = arith.mulf %556, %474 : vector<1x128xf32>
    %558 = arith.subf %509, %557 : vector<1x128xf32>
    %559 = arith.mulf %534, %534 : vector<1x128xf32>
    %560 = arith.mulf %546, %546 : vector<1x128xf32>
    %561 = arith.mulf %558, %558 : vector<1x128xf32>
    %562 = arith.mulf %537, %537 : vector<1x128xf32>
    %563 = arith.mulf %543, %543 : vector<1x128xf32>
    %564 = arith.mulf %540, %540 : vector<1x128xf32>
    %565 = arith.mulf %552, %552 : vector<1x128xf32>
    %566 = arith.mulf %549, %549 : vector<1x128xf32>
    %567 = arith.mulf %555, %555 : vector<1x128xf32>
    %568 = arith.mulf %549, %555 : vector<1x128xf32>
    %569 = arith.mulf %546, %558 : vector<1x128xf32>
    %570 = arith.subf %568, %569 : vector<1x128xf32>
    %cst_137 = arith.constant 2.000000e+00 : f32
    %571 = vector.broadcast %cst_137 : f32 to vector<1x128xf32>
    %572 = arith.mulf %571, %570 : vector<1x128xf32>
    %573 = arith.addf %560, %561 : vector<1x128xf32>
    %574 = arith.subf %573, %559 : vector<1x128xf32>
    %575 = arith.addf %574, %566 : vector<1x128xf32>
    %576 = arith.addf %575, %567 : vector<1x128xf32>
    %577 = arith.addf %559, %560 : vector<1x128xf32>
    %578 = arith.addf %577, %561 : vector<1x128xf32>
    %579 = arith.addf %578, %562 : vector<1x128xf32>
    %580 = arith.addf %579, %563 : vector<1x128xf32>
    %581 = arith.addf %580, %564 : vector<1x128xf32>
    %582 = arith.addf %581, %565 : vector<1x128xf32>
    %583 = arith.addf %582, %566 : vector<1x128xf32>
    %584 = arith.addf %583, %567 : vector<1x128xf32>
    %cst_138 = arith.constant -2.000000e+00 : f32
    %585 = vector.broadcast %cst_138 : f32 to vector<1x128xf32>
    %586 = arith.mulf %585, %584 : vector<1x128xf32>
    %587 = arith.mulf %534, %549 : vector<1x128xf32>
    %588 = arith.mulf %587, %555 : vector<1x128xf32>
    %589 = arith.mulf %546, %552 : vector<1x128xf32>
    %590 = arith.mulf %589, %540 : vector<1x128xf32>
    %591 = arith.addf %588, %590 : vector<1x128xf32>
    %592 = arith.mulf %558, %537 : vector<1x128xf32>
    %593 = arith.mulf %592, %543 : vector<1x128xf32>
    %594 = arith.addf %591, %593 : vector<1x128xf32>
    %595 = arith.mulf %534, %546 : vector<1x128xf32>
    %596 = arith.mulf %595, %558 : vector<1x128xf32>
    %597 = arith.subf %594, %596 : vector<1x128xf32>
    %598 = arith.mulf %549, %552 : vector<1x128xf32>
    %599 = arith.mulf %598, %537 : vector<1x128xf32>
    %600 = arith.subf %597, %599 : vector<1x128xf32>
    %601 = arith.mulf %555, %543 : vector<1x128xf32>
    %602 = arith.mulf %601, %540 : vector<1x128xf32>
    %603 = arith.subf %600, %602 : vector<1x128xf32>
    %cst_139 = arith.constant 8.000000e+00 : f32
    %604 = vector.broadcast %cst_139 : f32 to vector<1x128xf32>
    %605 = arith.mulf %604, %603 : vector<1x128xf32>
    %606 = arith.addf %540, %552 : vector<1x128xf32>
    %607 = arith.addf %549, %555 : vector<1x128xf32>
    %608 = arith.addf %537, %543 : vector<1x128xf32>
    %609 = arith.subf %549, %555 : vector<1x128xf32>
    %610 = arith.subf %540, %552 : vector<1x128xf32>
    %611 = arith.subf %537, %543 : vector<1x128xf32>
    %612 = arith.addf %534, %546 : vector<1x128xf32>
    %613 = arith.subf %534, %546 : vector<1x128xf32>
    %614 = arith.addf %562, %564 : vector<1x128xf32>
    %615 = arith.subf %614, %563 : vector<1x128xf32>
    %616 = arith.subf %615, %565 : vector<1x128xf32>
    %617 = arith.mulf %616, %616 : vector<1x128xf32>
    %618 = arith.addf %576, %572 : vector<1x128xf32>
    %619 = arith.subf %576, %572 : vector<1x128xf32>
    %620 = arith.mulf %618, %619 : vector<1x128xf32>
    %621 = arith.addf %617, %620 : vector<1x128xf32>
    %cst_140 = arith.constant 0.000000e+00 : f32
    %622 = vector.broadcast %cst_140 : f32 to vector<1x128xf32>
    %623 = arith.subf %622, %606 : vector<1x128xf32>
    %624 = arith.mulf %623, %609 : vector<1x128xf32>
    %625 = arith.subf %613, %558 : vector<1x128xf32>
    %626 = arith.mulf %611, %625 : vector<1x128xf32>
    %627 = arith.addf %624, %626 : vector<1x128xf32>
    %cst_141 = arith.constant 0.000000e+00 : f32
    %628 = vector.broadcast %cst_141 : f32 to vector<1x128xf32>
    %629 = arith.subf %628, %610 : vector<1x128xf32>
    %630 = arith.mulf %629, %607 : vector<1x128xf32>
    %631 = arith.addf %613, %558 : vector<1x128xf32>
    %632 = arith.mulf %611, %631 : vector<1x128xf32>
    %633 = arith.addf %630, %632 : vector<1x128xf32>
    %634 = arith.mulf %627, %633 : vector<1x128xf32>
    %635 = arith.addf %621, %634 : vector<1x128xf32>
    %cst_142 = arith.constant 0.000000e+00 : f32
    %636 = vector.broadcast %cst_142 : f32 to vector<1x128xf32>
    %637 = arith.subf %636, %606 : vector<1x128xf32>
    %638 = arith.mulf %637, %607 : vector<1x128xf32>
    %639 = arith.subf %612, %558 : vector<1x128xf32>
    %640 = arith.mulf %608, %639 : vector<1x128xf32>
    %641 = arith.subf %638, %640 : vector<1x128xf32>
    %cst_143 = arith.constant 0.000000e+00 : f32
    %642 = vector.broadcast %cst_143 : f32 to vector<1x128xf32>
    %643 = arith.subf %642, %610 : vector<1x128xf32>
    %644 = arith.mulf %643, %609 : vector<1x128xf32>
    %645 = arith.addf %612, %558 : vector<1x128xf32>
    %646 = arith.mulf %608, %645 : vector<1x128xf32>
    %647 = arith.subf %644, %646 : vector<1x128xf32>
    %648 = arith.mulf %641, %647 : vector<1x128xf32>
    %649 = arith.addf %635, %648 : vector<1x128xf32>
    %650 = arith.mulf %608, %607 : vector<1x128xf32>
    %651 = arith.addf %613, %558 : vector<1x128xf32>
    %652 = arith.mulf %606, %651 : vector<1x128xf32>
    %653 = arith.addf %650, %652 : vector<1x128xf32>
    %cst_144 = arith.constant 0.000000e+00 : f32
    %654 = vector.broadcast %cst_144 : f32 to vector<1x128xf32>
    %655 = arith.subf %654, %611 : vector<1x128xf32>
    %656 = arith.mulf %655, %609 : vector<1x128xf32>
    %657 = arith.addf %612, %558 : vector<1x128xf32>
    %658 = arith.mulf %606, %657 : vector<1x128xf32>
    %659 = arith.addf %656, %658 : vector<1x128xf32>
    %660 = arith.mulf %653, %659 : vector<1x128xf32>
    %661 = arith.addf %649, %660 : vector<1x128xf32>
    %662 = arith.mulf %608, %609 : vector<1x128xf32>
    %663 = arith.subf %613, %558 : vector<1x128xf32>
    %664 = arith.mulf %610, %663 : vector<1x128xf32>
    %665 = arith.addf %662, %664 : vector<1x128xf32>
    %cst_145 = arith.constant 0.000000e+00 : f32
    %666 = vector.broadcast %cst_145 : f32 to vector<1x128xf32>
    %667 = arith.subf %666, %611 : vector<1x128xf32>
    %668 = arith.mulf %667, %607 : vector<1x128xf32>
    %669 = arith.subf %612, %558 : vector<1x128xf32>
    %670 = arith.mulf %610, %669 : vector<1x128xf32>
    %671 = arith.addf %668, %670 : vector<1x128xf32>
    %672 = arith.mulf %665, %671 : vector<1x128xf32>
    %673 = arith.addf %661, %672 : vector<1x128xf32>
    %674 = arith.addf %524, %531 : vector<1x128xf32>
    %cst_146 = arith.constant 5.000000e-01 : f32
    %675 = vector.broadcast %cst_146 : f32 to vector<1x128xf32>
    %676 = arith.mulf %675, %674 : vector<1x128xf32>
    %677 = arith.mulf %676, %676 : vector<1x128xf32>
    %678 = arith.addf %677, %586 : vector<1x128xf32>
    %679 = arith.mulf %678, %676 : vector<1x128xf32>
    %680 = arith.addf %679, %605 : vector<1x128xf32>
    %cst_147 = arith.constant 2.000000e+00 : f32
    %681 = vector.broadcast %cst_147 : f32 to vector<1x128xf32>
    %682 = arith.mulf %681, %677 : vector<1x128xf32>
    %683 = arith.mulf %682, %676 : vector<1x128xf32>
    %684 = arith.addf %683, %679 : vector<1x128xf32>
    %685 = arith.addf %684, %680 : vector<1x128xf32>
    %686 = arith.mulf %680, %676 : vector<1x128xf32>
    %687 = arith.addf %686, %673 : vector<1x128xf32>
    %cst_148 = arith.constant 9.99999996E-13 : f32
    %688 = vector.broadcast %cst_148 : f32 to vector<1x128xf32>
    %689 = arith.addf %685, %688 : vector<1x128xf32>
    %690 = tpu.reciprocal %689 {approx = true} : vector<1x128xf32> -> vector<1x128xf32>
    %691 = arith.mulf %687, %690 : vector<1x128xf32>
    %692 = arith.subf %676, %691 : vector<1x128xf32>
    %693 = arith.mulf %692, %692 : vector<1x128xf32>
    %694 = arith.addf %693, %586 : vector<1x128xf32>
    %695 = arith.mulf %694, %692 : vector<1x128xf32>
    %696 = arith.addf %695, %605 : vector<1x128xf32>
    %cst_149 = arith.constant 2.000000e+00 : f32
    %697 = vector.broadcast %cst_149 : f32 to vector<1x128xf32>
    %698 = arith.mulf %697, %693 : vector<1x128xf32>
    %699 = arith.mulf %698, %692 : vector<1x128xf32>
    %700 = arith.addf %699, %695 : vector<1x128xf32>
    %701 = arith.addf %700, %696 : vector<1x128xf32>
    %702 = arith.mulf %696, %692 : vector<1x128xf32>
    %703 = arith.addf %702, %673 : vector<1x128xf32>
    %cst_150 = arith.constant 9.99999996E-13 : f32
    %704 = vector.broadcast %cst_150 : f32 to vector<1x128xf32>
    %705 = arith.addf %701, %704 : vector<1x128xf32>
    %706 = tpu.reciprocal %705 {approx = true} : vector<1x128xf32> -> vector<1x128xf32>
    %707 = arith.mulf %703, %706 : vector<1x128xf32>
    %708 = arith.subf %692, %707 : vector<1x128xf32>
    %709 = arith.mulf %708, %708 : vector<1x128xf32>
    %710 = arith.addf %709, %586 : vector<1x128xf32>
    %711 = arith.mulf %710, %708 : vector<1x128xf32>
    %712 = arith.addf %711, %605 : vector<1x128xf32>
    %cst_151 = arith.constant 2.000000e+00 : f32
    %713 = vector.broadcast %cst_151 : f32 to vector<1x128xf32>
    %714 = arith.mulf %713, %709 : vector<1x128xf32>
    %715 = arith.mulf %714, %708 : vector<1x128xf32>
    %716 = arith.addf %715, %711 : vector<1x128xf32>
    %717 = arith.addf %716, %712 : vector<1x128xf32>
    %718 = arith.mulf %712, %708 : vector<1x128xf32>
    %719 = arith.addf %718, %673 : vector<1x128xf32>
    %cst_152 = arith.constant 9.99999996E-13 : f32
    %720 = vector.broadcast %cst_152 : f32 to vector<1x128xf32>
    %721 = arith.addf %717, %720 : vector<1x128xf32>
    %722 = tpu.reciprocal %721 {approx = true} : vector<1x128xf32> -> vector<1x128xf32>
    %723 = arith.mulf %719, %722 : vector<1x128xf32>
    %724 = arith.subf %708, %723 : vector<1x128xf32>
    %725 = arith.mulf %724, %724 : vector<1x128xf32>
    %726 = arith.addf %725, %586 : vector<1x128xf32>
    %727 = arith.mulf %726, %724 : vector<1x128xf32>
    %728 = arith.addf %727, %605 : vector<1x128xf32>
    %cst_153 = arith.constant 2.000000e+00 : f32
    %729 = vector.broadcast %cst_153 : f32 to vector<1x128xf32>
    %730 = arith.mulf %729, %725 : vector<1x128xf32>
    %731 = arith.mulf %730, %724 : vector<1x128xf32>
    %732 = arith.addf %731, %727 : vector<1x128xf32>
    %733 = arith.addf %732, %728 : vector<1x128xf32>
    %734 = arith.mulf %728, %724 : vector<1x128xf32>
    %735 = arith.addf %734, %673 : vector<1x128xf32>
    %cst_154 = arith.constant 9.99999996E-13 : f32
    %736 = vector.broadcast %cst_154 : f32 to vector<1x128xf32>
    %737 = arith.addf %733, %736 : vector<1x128xf32>
    %738 = tpu.reciprocal %737 {approx = true} : vector<1x128xf32> -> vector<1x128xf32>
    %739 = arith.mulf %735, %738 : vector<1x128xf32>
    %740 = arith.subf %724, %739 : vector<1x128xf32>
    %741 = arith.mulf %740, %740 : vector<1x128xf32>
    %742 = arith.addf %741, %586 : vector<1x128xf32>
    %743 = arith.mulf %742, %740 : vector<1x128xf32>
    %744 = arith.addf %743, %605 : vector<1x128xf32>
    %cst_155 = arith.constant 2.000000e+00 : f32
    %745 = vector.broadcast %cst_155 : f32 to vector<1x128xf32>
    %746 = arith.mulf %745, %741 : vector<1x128xf32>
    %747 = arith.mulf %746, %740 : vector<1x128xf32>
    %748 = arith.addf %747, %743 : vector<1x128xf32>
    %749 = arith.addf %748, %744 : vector<1x128xf32>
    %750 = arith.mulf %744, %740 : vector<1x128xf32>
    %751 = arith.addf %750, %673 : vector<1x128xf32>
    %cst_156 = arith.constant 9.99999996E-13 : f32
    %752 = vector.broadcast %cst_156 : f32 to vector<1x128xf32>
    %753 = arith.addf %749, %752 : vector<1x128xf32>
    %754 = tpu.reciprocal %753 {approx = true} : vector<1x128xf32> -> vector<1x128xf32>
    %755 = arith.mulf %751, %754 : vector<1x128xf32>
    %756 = arith.subf %740, %755 : vector<1x128xf32>
    %757 = arith.mulf %756, %756 : vector<1x128xf32>
    %758 = arith.addf %757, %586 : vector<1x128xf32>
    %759 = arith.mulf %758, %756 : vector<1x128xf32>
    %760 = arith.addf %759, %605 : vector<1x128xf32>
    %cst_157 = arith.constant 2.000000e+00 : f32
    %761 = vector.broadcast %cst_157 : f32 to vector<1x128xf32>
    %762 = arith.mulf %761, %757 : vector<1x128xf32>
    %763 = arith.mulf %762, %756 : vector<1x128xf32>
    %764 = arith.addf %763, %759 : vector<1x128xf32>
    %765 = arith.addf %764, %760 : vector<1x128xf32>
    %766 = arith.mulf %760, %756 : vector<1x128xf32>
    %767 = arith.addf %766, %673 : vector<1x128xf32>
    %cst_158 = arith.constant 9.99999996E-13 : f32
    %768 = vector.broadcast %cst_158 : f32 to vector<1x128xf32>
    %769 = arith.addf %765, %768 : vector<1x128xf32>
    %770 = tpu.reciprocal %769 {approx = true} : vector<1x128xf32> -> vector<1x128xf32>
    %771 = arith.mulf %767, %770 : vector<1x128xf32>
    %772 = arith.subf %756, %771 : vector<1x128xf32>
    %773 = arith.mulf %772, %772 : vector<1x128xf32>
    %774 = arith.addf %773, %586 : vector<1x128xf32>
    %775 = arith.mulf %774, %772 : vector<1x128xf32>
    %776 = arith.addf %775, %605 : vector<1x128xf32>
    %cst_159 = arith.constant 2.000000e+00 : f32
    %777 = vector.broadcast %cst_159 : f32 to vector<1x128xf32>
    %778 = arith.mulf %777, %773 : vector<1x128xf32>
    %779 = arith.mulf %778, %772 : vector<1x128xf32>
    %780 = arith.addf %779, %775 : vector<1x128xf32>
    %781 = arith.addf %780, %776 : vector<1x128xf32>
    %782 = arith.mulf %776, %772 : vector<1x128xf32>
    %783 = arith.addf %782, %673 : vector<1x128xf32>
    %cst_160 = arith.constant 9.99999996E-13 : f32
    %784 = vector.broadcast %cst_160 : f32 to vector<1x128xf32>
    %785 = arith.addf %781, %784 : vector<1x128xf32>
    %786 = tpu.reciprocal %785 {approx = true} : vector<1x128xf32> -> vector<1x128xf32>
    %787 = arith.mulf %783, %786 : vector<1x128xf32>
    %788 = arith.subf %772, %787 : vector<1x128xf32>
    %789 = arith.mulf %788, %788 : vector<1x128xf32>
    %790 = arith.addf %789, %586 : vector<1x128xf32>
    %791 = arith.mulf %790, %788 : vector<1x128xf32>
    %792 = arith.addf %791, %605 : vector<1x128xf32>
    %cst_161 = arith.constant 2.000000e+00 : f32
    %793 = vector.broadcast %cst_161 : f32 to vector<1x128xf32>
    %794 = arith.mulf %793, %789 : vector<1x128xf32>
    %795 = arith.mulf %794, %788 : vector<1x128xf32>
    %796 = arith.addf %795, %791 : vector<1x128xf32>
    %797 = arith.addf %796, %792 : vector<1x128xf32>
    %798 = arith.mulf %792, %788 : vector<1x128xf32>
    %799 = arith.addf %798, %673 : vector<1x128xf32>
    %cst_162 = arith.constant 9.99999996E-13 : f32
    %800 = vector.broadcast %cst_162 : f32 to vector<1x128xf32>
    %801 = arith.addf %797, %800 : vector<1x128xf32>
    %802 = tpu.reciprocal %801 {approx = true} : vector<1x128xf32> -> vector<1x128xf32>
    %803 = arith.mulf %799, %802 : vector<1x128xf32>
    %804 = arith.subf %788, %803 : vector<1x128xf32>
    %805 = arith.mulf %804, %804 : vector<1x128xf32>
    %806 = arith.addf %805, %586 : vector<1x128xf32>
    %807 = arith.mulf %806, %804 : vector<1x128xf32>
    %808 = arith.addf %807, %605 : vector<1x128xf32>
    %cst_163 = arith.constant 2.000000e+00 : f32
    %809 = vector.broadcast %cst_163 : f32 to vector<1x128xf32>
    %810 = arith.mulf %809, %805 : vector<1x128xf32>
    %811 = arith.mulf %810, %804 : vector<1x128xf32>
    %812 = arith.addf %811, %807 : vector<1x128xf32>
    %813 = arith.addf %812, %808 : vector<1x128xf32>
    %814 = arith.mulf %808, %804 : vector<1x128xf32>
    %815 = arith.addf %814, %673 : vector<1x128xf32>
    %cst_164 = arith.constant 9.99999996E-13 : f32
    %816 = vector.broadcast %cst_164 : f32 to vector<1x128xf32>
    %817 = arith.addf %813, %816 : vector<1x128xf32>
    %818 = tpu.reciprocal %817 {approx = true} : vector<1x128xf32> -> vector<1x128xf32>
    %819 = arith.mulf %815, %818 : vector<1x128xf32>
    %820 = arith.subf %804, %819 : vector<1x128xf32>
    %821 = arith.mulf %820, %820 : vector<1x128xf32>
    %822 = arith.addf %821, %586 : vector<1x128xf32>
    %823 = arith.mulf %822, %820 : vector<1x128xf32>
    %824 = arith.addf %823, %605 : vector<1x128xf32>
    %cst_165 = arith.constant 2.000000e+00 : f32
    %825 = vector.broadcast %cst_165 : f32 to vector<1x128xf32>
    %826 = arith.mulf %825, %821 : vector<1x128xf32>
    %827 = arith.mulf %826, %820 : vector<1x128xf32>
    %828 = arith.addf %827, %823 : vector<1x128xf32>
    %829 = arith.addf %828, %824 : vector<1x128xf32>
    %830 = arith.mulf %824, %820 : vector<1x128xf32>
    %831 = arith.addf %830, %673 : vector<1x128xf32>
    %cst_166 = arith.constant 9.99999996E-13 : f32
    %832 = vector.broadcast %cst_166 : f32 to vector<1x128xf32>
    %833 = arith.addf %829, %832 : vector<1x128xf32>
    %834 = tpu.reciprocal %833 {approx = true} : vector<1x128xf32> -> vector<1x128xf32>
    %835 = arith.mulf %831, %834 : vector<1x128xf32>
    %836 = arith.subf %820, %835 : vector<1x128xf32>
    %837 = arith.subf %676, %836 : vector<1x128xf32>
    %cst_167 = arith.constant 2.000000e+00 : f32
    %838 = vector.broadcast %cst_167 : f32 to vector<1x128xf32>
    %839 = arith.mulf %838, %837 : vector<1x128xf32>
    %840 = arith.mulf %839, %513 : vector<1x128xf32>
    %cst_168 = arith.constant 0.000000e+00 : f32
    %841 = vector.broadcast %cst_168 : f32 to vector<1x128xf32>
    %842 = arith.maximumf %840, %841 : vector<1x128xf32>
    %cst_169 = arith.constant 9.99999974E-6 : f32
    %843 = vector.broadcast %cst_169 : f32 to vector<1x128xf32>
    %844 = arith.addf %842, %843 : vector<1x128xf32>
    %845 = math.sqrt %844 : vector<1x128xf32>
    %846 = arith.mulf %845, %15 : vector<1x128xf32>
    %c0_170 = arith.constant 0 : index
    %c0_171 = arith.constant 0 : index
    %847 = vector.load %arg15[%c0_170, %c0_171] : memref<1x128xf32, #tpu.memory_space<vmem>>, vector<1x128xf32>
    %848 = arith.mulf %11, %846 : vector<1x128xf32>
    %849 = arith.mulf %848, %846 : vector<1x128xf32>
    %850 = arith.addf %847, %849 : vector<1x128xf32>
    %c0_172 = arith.constant 0 : index
    %c0_173 = arith.constant 0 : index
    %851 = vector.load %arg15[%c0_172, %c0_173] : memref<1x128xf32, #tpu.memory_space<vmem>>, vector<1x128xf32>
    tpu.vector_store %arg15[%c0_172, %c0_173], %850 {strides = array<i32>} : memref<1x128xf32, #tpu.memory_space<vmem>>, vector<1x128xf32>,
    %c0_174 = arith.constant 0 : index
    %c0_175 = arith.constant 0 : index
    %c0_176 = arith.constant 0 : index
    %852 = vector.load %arg12[%c0_174, %c0_175, %c0_176] : memref<1x128x8xf32, #tpu.memory_space<vmem>>, vector<1x128x8xf32>
    %853 = vector.shape_cast %852 : vector<1x128x8xf32> to vector<128x8xf32>
    %854 = vector.extract_strided_slice %853 {offsets = [0, 0], sizes = [128, 1], strides = [1, 1]} : vector<128x8xf32> to vector<128x1xf32>
    %855 = vector.extract_strided_slice %853 {offsets = [0, 1], sizes = [128, 1], strides = [1, 1]} : vector<128x8xf32> to vector<128x1xf32>
    %856 = vector.extract_strided_slice %853 {offsets = [0, 2], sizes = [128, 1], strides = [1, 1]} : vector<128x8xf32> to vector<128x1xf32>
    %857 = vector.extract_strided_slice %853 {offsets = [0, 3], sizes = [128, 1], strides = [1, 1]} : vector<128x8xf32> to vector<128x1xf32>
    %858 = vector.extract_strided_slice %853 {offsets = [0, 4], sizes = [128, 1], strides = [1, 1]} : vector<128x8xf32> to vector<128x1xf32>
    %859 = vector.extract_strided_slice %853 {offsets = [0, 5], sizes = [128, 1], strides = [1, 1]} : vector<128x8xf32> to vector<128x1xf32>
    %cst_177 = arith.constant 0.000000e+00 : f32
    %860 = vector.broadcast %cst_177 : f32 to vector<128x1xf32>
    %c0_i32_178 = arith.constant 0 : i32
    %c0_179 = arith.constant 0 : index
    %861 = arith.index_cast %c0_i32_178 : i32 to index
    %c0_180 = arith.constant 0 : index
    %c0_181 = arith.constant 0 : index
    %862 = vector.load %arg11[%c0_179, %861, %c0_180, %c0_181] : memref<1x1x8x512xf32, #tpu.memory_space<vmem>>, vector<1x1x8x512xf32>
    %863 = vector.shape_cast %862 : vector<1x1x8x512xf32> to vector<8x512xf32>
    %864 = vector.extract_strided_slice %863 {offsets = [0, 0], sizes = [1, 512], strides = [1, 1]} : vector<8x512xf32> to vector<1x512xf32>
    %865 = vector.broadcast %854 : vector<128x1xf32> to vector<128x512xf32>
    %866 = vector.broadcast %864 : vector<1x512xf32> to vector<128x512xf32>
    %867 = arith.subf %865, %866 : vector<128x512xf32>
    %868 = vector.extract_strided_slice %863 {offsets = [1, 0], sizes = [1, 512], strides = [1, 1]} : vector<8x512xf32> to vector<1x512xf32>
    %869 = vector.broadcast %855 : vector<128x1xf32> to vector<128x512xf32>
    %870 = vector.broadcast %868 : vector<1x512xf32> to vector<128x512xf32>
    %871 = arith.subf %869, %870 : vector<128x512xf32>
    %872 = vector.extract_strided_slice %863 {offsets = [2, 0], sizes = [1, 512], strides = [1, 1]} : vector<8x512xf32> to vector<1x512xf32>
    %873 = vector.broadcast %856 : vector<128x1xf32> to vector<128x512xf32>
    %874 = vector.broadcast %872 : vector<1x512xf32> to vector<128x512xf32>
    %875 = arith.subf %873, %874 : vector<128x512xf32>
    %876 = arith.mulf %867, %867 : vector<128x512xf32>
    %877 = arith.mulf %871, %871 : vector<128x512xf32>
    %878 = arith.addf %876, %877 : vector<128x512xf32>
    %879 = arith.mulf %875, %875 : vector<128x512xf32>
    %880 = arith.addf %878, %879 : vector<128x512xf32>
    %881 = vector.extract_strided_slice %863 {offsets = [3, 0], sizes = [1, 512], strides = [1, 1]} : vector<8x512xf32> to vector<1x512xf32>
    %882 = vector.broadcast %857 : vector<128x1xf32> to vector<128x512xf32>
    %883 = vector.broadcast %881 : vector<1x512xf32> to vector<128x512xf32>
    %884 = arith.subf %882, %883 : vector<128x512xf32>
    %885 = vector.extract_strided_slice %863 {offsets = [4, 0], sizes = [1, 512], strides = [1, 1]} : vector<8x512xf32> to vector<1x512xf32>
    %886 = vector.broadcast %858 : vector<128x1xf32> to vector<128x512xf32>
    %887 = vector.broadcast %885 : vector<1x512xf32> to vector<128x512xf32>
    %888 = arith.subf %886, %887 : vector<128x512xf32>
    %889 = vector.extract_strided_slice %863 {offsets = [5, 0], sizes = [1, 512], strides = [1, 1]} : vector<8x512xf32> to vector<1x512xf32>
    %890 = vector.broadcast %859 : vector<128x1xf32> to vector<128x512xf32>
    %891 = vector.broadcast %889 : vector<1x512xf32> to vector<128x512xf32>
    %892 = arith.subf %890, %891 : vector<128x512xf32>
    %893 = arith.mulf %884, %884 : vector<128x512xf32>
    %894 = arith.mulf %888, %888 : vector<128x512xf32>
    %895 = arith.addf %893, %894 : vector<128x512xf32>
    %896 = arith.mulf %892, %892 : vector<128x512xf32>
    %897 = arith.addf %895, %896 : vector<128x512xf32>
    %cst_182 = arith.constant 1.000000e-03 : f32
    %898 = vector.broadcast %cst_182 : f32 to vector<128x512xf32>
    %899 = arith.addf %880, %898 : vector<128x512xf32>
    %900 = math.sqrt %899 : vector<128x512xf32>
    %cst_183 = arith.constant 1.000000e-03 : f32
    %901 = vector.broadcast %cst_183 : f32 to vector<128x512xf32>
    %902 = arith.addf %897, %901 : vector<128x512xf32>
    %903 = math.sqrt %902 : vector<128x512xf32>
    %904 = arith.subf %900, %903 : vector<128x512xf32>
    %905 = vector.extract_strided_slice %863 {offsets = [6, 0], sizes = [1, 512], strides = [1, 1]} : vector<8x512xf32> to vector<1x512xf32>
    %906 = arith.mulf %904, %904 : vector<128x512xf32>
    %907 = vector.broadcast %905 : vector<1x512xf32> to vector<128x512xf32>
    %908 = arith.mulf %907, %906 : vector<128x512xf32>
    %cst_184 = arith.constant dense<0.000000e+00> : vector<128xf32>
    %909 = vector.multi_reduction <add>, %908, %cst_184 [1] : vector<128x512xf32> to vector<128xf32>
    %910 = vector.shape_cast %909 : vector<128xf32> to vector<128x1xf32>
    %911 = arith.addf %860, %910 : vector<128x1xf32>
    %c1_i32_185 = arith.constant 1 : i32
    %912 = vector.extract_strided_slice %853 {offsets = [0, 6], sizes = [128, 1], strides = [1, 1]} : vector<128x8xf32> to vector<128x1xf32>
    %913 = vector.extract_strided_slice %853 {offsets = [0, 7], sizes = [128, 1], strides = [1, 1]} : vector<128x8xf32> to vector<128x1xf32>
    %914 = arith.mulf %912, %911 : vector<128x1xf32>
    %915 = vector.broadcast %9 : f32 to vector<128x1xf32>
    %916 = arith.mulf %912, %915 : vector<128x1xf32>
    %cst_186 = arith.constant 9.99999974E-6 : f32
    %917 = vector.broadcast %cst_186 : f32 to vector<128x1xf32>
    %918 = arith.addf %916, %917 : vector<128x1xf32>
    %919 = arith.divf %914, %918 : vector<128x1xf32>
    %920 = vector.broadcast %5 : f32 to vector<128x1xf32>
    %921 = arith.mulf %919, %920 : vector<128x1xf32>
    %c0_187 = arith.constant 0 : index
    %c0_188 = arith.constant 0 : index
    %922 = vector.load %arg16[%c0_187, %c0_188] : memref<128x1xf32, #tpu.memory_space<vmem>>, vector<128x1xf32>
    %923 = arith.mulf %912, %913 : vector<128x1xf32>
    %924 = arith.mulf %923, %921 : vector<128x1xf32>
    %925 = arith.addf %922, %924 : vector<128x1xf32>
    %c0_189 = arith.constant 0 : index
    %c0_190 = arith.constant 0 : index
    %926 = vector.load %arg16[%c0_189, %c0_190] : memref<128x1xf32, #tpu.memory_space<vmem>>, vector<128x1xf32>
    tpu.vector_store %arg16[%c0_189, %c0_190], %925 {strides = array<i32>} : memref<128x1xf32, #tpu.memory_space<vmem>>, vector<128x1xf32>,
    %c3_i32 = arith.constant 3 : i32
    %927 = arith.cmpi eq, %arg1, %c3_i32 : i32
    %928 = arith.extui %927 : i1 to i32
    %c0_i32_191 = arith.constant 0 : i32
    %929 = arith.cmpi ne, %928, %c0_i32_191 : i32
    scf.if %929 {
      %c4_i32_192 = arith.constant 4 : i32
      %930 = arith.muli %c4_i32_192, %arg0 : i32
      %c2_i32 = arith.constant 2 : i32
      %931 = arith.addi %930, %c2_i32 : i32
      %932 = arith.index_cast %931 : i32 to index
      %933 = memref.load %arg2[%932] : memref<8xf32, #tpu.memory_space<smem>>
      %c4_i32_193 = arith.constant 4 : i32
      %934 = arith.muli %c4_i32_193, %arg0 : i32
      %c3_i32_194 = arith.constant 3 : i32
      %935 = arith.addi %934, %c3_i32_194 : i32
      %936 = arith.index_cast %935 : i32 to index
      %937 = memref.load %arg2[%936] : memref<8xf32, #tpu.memory_space<smem>>
      %c0_195 = arith.constant 0 : index
      %c0_196 = arith.constant 0 : index
      %938 = vector.load %arg14[%c0_195, %c0_196] : memref<1x128xf32, #tpu.memory_space<vmem>>, vector<1x128xf32>
      %939 = vector.shape_cast %938 : vector<1x128xf32> to vector<1x1x128xf32>
      %cst_197 = arith.constant dense<0.000000e+00> : vector<1xf32>
      %940 = vector.multi_reduction <add>, %939, %cst_197 [1, 2] : vector<1x1x128xf32> to vector<1xf32>
      %941 = vector.shape_cast %940 : vector<1xf32> to vector<1x1x1xf32>
      %942 = vector.extract %941[0, 0, 0] : f32 from vector<1x1x1xf32>
      %943 = arith.divf %942, %933 : f32
      %c0_198 = arith.constant 0 : index
      %c0_199 = arith.constant 0 : index
      %944 = vector.load %arg15[%c0_198, %c0_199] : memref<1x128xf32, #tpu.memory_space<vmem>>, vector<1x128xf32>
      %945 = vector.shape_cast %944 : vector<1x128xf32> to vector<1x1x128xf32>
      %cst_200 = arith.constant dense<0.000000e+00> : vector<1xf32>
      %946 = vector.multi_reduction <add>, %945, %cst_200 [1, 2] : vector<1x1x128xf32> to vector<1xf32>
      %947 = vector.shape_cast %946 : vector<1xf32> to vector<1x1x1xf32>
      %948 = vector.extract %947[0, 0, 0] : f32 from vector<1x1x1xf32>
      %949 = arith.divf %948, %933 : f32
      %c0_201 = arith.constant 0 : index
      %c0_202 = arith.constant 0 : index
      %950 = vector.load %arg16[%c0_201, %c0_202] : memref<128x1xf32, #tpu.memory_space<vmem>>, vector<128x1xf32>
      %951 = vector.shape_cast %950 : vector<128x1xf32> to vector<1x128x1xf32>
      %cst_203 = arith.constant dense<0.000000e+00> : vector<1xf32>
      %952 = vector.multi_reduction <add>, %951, %cst_203 [1, 2] : vector<1x128x1xf32> to vector<1xf32>
      %953 = vector.shape_cast %952 : vector<1xf32> to vector<1x1x1xf32>
      %954 = vector.extract %953[0, 0, 0] : f32 from vector<1x1x1xf32>
      %cst_204 = arith.constant 1.000000e+01 : f32
      %955 = arith.mulf %cst_204, %954 : f32
      %956 = arith.divf %955, %937 : f32
      %957 = tpu.iota {dimensions = array<i32: 2>} : vector<1x1x128xi32>
      %c0_i32_205 = arith.constant 0 : i32
      %958 = vector.broadcast %c0_i32_205 : i32 to vector<1x1x128xi32>
      %959 = arith.cmpi eq, %957, %958 : vector<1x1x128xi32>
      %cst_206 = arith.constant 0.000000e+00 : f32
      %960 = vector.broadcast %943 : f32 to vector<1x1x128xf32>
      %961 = vector.broadcast %cst_206 : f32 to vector<1x1x128xf32>
      %962 = arith.select %959, %960, %961 : vector<1x1x128xi1>, vector<1x1x128xf32>
      %c1_i32_207 = arith.constant 1 : i32
      %963 = vector.broadcast %c1_i32_207 : i32 to vector<1x1x128xi32>
      %964 = arith.cmpi eq, %957, %963 : vector<1x1x128xi32>
      %cst_208 = arith.constant 0.000000e+00 : f32
      %965 = vector.broadcast %949 : f32 to vector<1x1x128xf32>
      %966 = vector.broadcast %cst_208 : f32 to vector<1x1x128xf32>
      %967 = arith.select %964, %965, %966 : vector<1x1x128xi1>, vector<1x1x128xf32>
      %968 = arith.addf %962, %967 : vector<1x1x128xf32>
      %c2_i32_209 = arith.constant 2 : i32
      %969 = vector.broadcast %c2_i32_209 : i32 to vector<1x1x128xi32>
      %970 = arith.cmpi eq, %957, %969 : vector<1x1x128xi32>
      %cst_210 = arith.constant 0.000000e+00 : f32
      %971 = vector.broadcast %956 : f32 to vector<1x1x128xf32>
      %972 = vector.broadcast %cst_210 : f32 to vector<1x1x128xf32>
      %973 = arith.select %970, %971, %972 : vector<1x1x128xi1>, vector<1x1x128xf32>
      %974 = arith.addf %968, %973 : vector<1x1x128xf32>
      %c0_211 = arith.constant 0 : index
      %c0_212 = arith.constant 0 : index
      %c0_213 = arith.constant 0 : index
      %975 = vector.load %arg13[%c0_211, %c0_212, %c0_213] : memref<1x1x128xf32, #tpu.memory_space<vmem>>, vector<1x1x128xf32>
      tpu.vector_store %arg13[%c0_211, %c0_212, %c0_213], %974 {strides = array<i32>} : memref<1x1x128xf32, #tpu.memory_space<vmem>>, vector<1x1x128xf32>,
    } else {
    }
    return
  }
  func.func @transform_0(%arg0: i32, %arg1: i32) -> i32 {
    %c0_i32 = arith.constant 0 : i32
    %c0_i32_0 = arith.constant 0 : i32
    return %c0_i32 : i32
  }
  func.func @transform_1(%arg0: i32, %arg1: i32) -> (i32, i32, i32) {
    %c0_i32 = arith.constant 0 : i32
    %c0_i32_0 = arith.constant 0 : i32
    return %arg0, %c0_i32, %arg1 : i32, i32, i32
  }
  func.func @transform_2(%arg0: i32, %arg1: i32) -> (i32, i32, i32) {
    %c0_i32 = arith.constant 0 : i32
    %c0_i32_0 = arith.constant 0 : i32
    return %arg0, %c0_i32, %arg1 : i32, i32, i32
  }
  func.func @transform_3(%arg0: i32, %arg1: i32) -> (i32, i32, i32, i32) {
    %c0_i32 = arith.constant 0 : i32
    %c0_i32_0 = arith.constant 0 : i32
    %c0_i32_1 = arith.constant 0 : i32
    return %arg0, %c0_i32, %c0_i32_0, %arg1 : i32, i32, i32, i32
  }
  func.func @transform_4(%arg0: i32, %arg1: i32) -> (i32, i32, i32, i32) {
    %c0_i32 = arith.constant 0 : i32
    %c0_i32_0 = arith.constant 0 : i32
    %c0_i32_1 = arith.constant 0 : i32
    return %arg0, %c0_i32, %c0_i32_0, %arg1 : i32, i32, i32, i32
  }
  func.func @transform_5(%arg0: i32, %arg1: i32) -> (i32, i32, i32) {
    %c0_i32 = arith.constant 0 : i32
    %c0_i32_0 = arith.constant 0 : i32
    return %arg0, %c0_i32, %arg1 : i32, i32, i32
  }
  func.func @transform_6(%arg0: i32, %arg1: i32) -> (i32, i32, i32, i32) {
    %c0_i32 = arith.constant 0 : i32
    %c0_i32_0 = arith.constant 0 : i32
    %c0_i32_1 = arith.constant 0 : i32
    return %arg0, %c0_i32, %c0_i32_0, %arg1 : i32, i32, i32, i32
  }
  func.func @transform_7(%arg0: i32, %arg1: i32) -> (i32, i32, i32, i32) {
    %c0_i32 = arith.constant 0 : i32
    %c0_i32_0 = arith.constant 0 : i32
    %c0_i32_1 = arith.constant 0 : i32
    return %arg0, %c0_i32, %c0_i32_0, %arg1 : i32, i32, i32, i32
  }
  func.func @transform_8(%arg0: i32, %arg1: i32) -> (i32, i32, i32) {
    %c0_i32 = arith.constant 0 : i32
    %c0_i32_0 = arith.constant 0 : i32
    return %arg0, %c0_i32, %arg1 : i32, i32, i32
  }
  func.func @transform_9(%arg0: i32, %arg1: i32) -> (i32, i32, i32, i32) {
    %c0_i32 = arith.constant 0 : i32
    %c0_i32_0 = arith.constant 0 : i32
    %c0_i32_1 = arith.constant 0 : i32
    %c0_i32_2 = arith.constant 0 : i32
    return %arg0, %c0_i32, %c0_i32_0, %c0_i32_1 : i32, i32, i32, i32
  }
  func.func @transform_10(%arg0: i32, %arg1: i32) -> (i32, i32, i32) {
    %c0_i32 = arith.constant 0 : i32
    %c0_i32_0 = arith.constant 0 : i32
    return %arg0, %arg1, %c0_i32 : i32, i32, i32
  }
  func.func @transform_11(%arg0: i32, %arg1: i32) -> (i32, i32, i32) {
    %c0_i32 = arith.constant 0 : i32
    %c0_i32_0 = arith.constant 0 : i32
    %c0_i32_1 = arith.constant 0 : i32
    return %arg0, %c0_i32, %c0_i32_0 : i32, i32, i32
  }
}

</mosaic_0001>

<llo_original>
// kernel: tpu_custom_call.1
$region0: #{tpu_custom_call.1}
  #allocation0 [shape = 'u32[]', space=smem, size = 0x4, offset = 0x4, fixed_abs, tag = 'smem constant byte address 0x4 - core index']
  #allocation1 [shape = 'u32[144,128]{1,0:T(1,128)}', space=vmem, size = 0x12000, scoped, tag = 'internal scratch']
  #allocation2 [shape = 'f32[1,128]{1,0:T(1,128)}', space=vmem, size = 0x200, scoped, tag = 'scratch operand']
  #allocation3 [shape = 'f32[1,128]{1,0:T(1,128)}', space=vmem, size = 0x200, scoped, tag = 'scratch operand']
  #allocation4 [shape = 'f32[128,1]{1,0:T(8,128)}', space=vmem, size = 0x10000, scoped, tag = 'scratch operand']
  %s0 = inlined_call_operand.vmem [shape: f32[8], index: 0, kind: input, shape index: {}]
  %s1 = inlined_call_operand.vmem [shape: f32[2,1,512], index: 1, kind: input, shape index: {}]
  %s2 = inlined_call_operand.hbm [shape: f32[2,1,512], index: 2, kind: input, shape index: {}]
  %s3 = inlined_call_operand.vmem [shape: f32[2,3,32,512], index: 3, kind: input, shape index: {}]
  %s4 = inlined_call_operand.hbm [shape: f32[2,3,32,512], index: 4, kind: input, shape index: {}]
  %s5 = inlined_call_operand.vmem [shape: f32[2,32,512], index: 5, kind: input, shape index: {}]
  %s6 = inlined_call_operand.hbm [shape: f32[2,3,32,512], index: 6, kind: input, shape index: {}]
  %s7 = inlined_call_operand.hbm [shape: f32[2,3,32,512], index: 7, kind: input, shape index: {}]
  %s8 = inlined_call_operand.hbm [shape: f32[2,32,512], index: 8, kind: input, shape index: {}]
  %s9 = inlined_call_operand.vmem [shape: f32[2,1,8,512], index: 9, kind: input, shape index: {}]
  %s10 = inlined_call_operand.vmem [shape: f32[2,512,8], index: 10, kind: input, shape index: {}]
  %s11 = inlined_call_operand.hbm [shape: f32[2,1,128], index: 11, kind: output, shape index: {}]
  %s12 = sld [smem:[#allocation0]]
  $region185: #{tpu_custom_call.1} parent=0
    _
  %s14 = ssub.s32 1, %s12
  %s15 = scalar_select 0, %s14, %s12
  $region1: #{tpu_custom_call.1} parent=0
    #allocation5 [shape = 'u8[512]{0}', space=smem, size = 0x200, scoped, tag = 'input window, operand 0, single buffered']
    #allocation6 [shape = 's32[2]{0}', space=sflag, size = 0x8, scoped, tag = 'scoped memory for tpu_custom_call.1']
    #allocation7 [shape = 's32[2]{0}', space=sflag, size = 0x8, scoped, tag = 'scoped memory for tpu_custom_call.1']
    #allocation8 [shape = 's32[2]{0}', space=sflag, size = 0x8, scoped, tag = 'scoped memory for tpu_custom_call.1']
    #allocation9 [shape = 'u8[1024]{0}', space=vmem, size = 0x400, scoped, tag = 'input window, operand 2']
    #allocation10 [shape = 'u8[98304]{0}', space=vmem, size = 0x18000, scoped, tag = 'input window, operand 3']
    #allocation11 [shape = 'u8[98304]{0}', space=vmem, size = 0x18000, scoped, tag = 'input window, operand 4']
    #allocation12 [shape = 's32[2]{0}', space=sflag, size = 0x8, scoped, tag = 'scoped memory for tpu_custom_call.1']
    #allocation13 [shape = 'u8[32768]{0}', space=vmem, size = 0x8000, scoped, tag = 'input window, operand 5']
    #allocation14 [shape = 'u8[98304]{0}', space=vmem, size = 0x18000, scoped, tag = 'input window, operand 6']
    #allocation15 [shape = 'u8[98304]{0}', space=vmem, size = 0x18000, scoped, tag = 'input window, operand 7']
    #allocation16 [shape = 's32[2]{0}', space=sflag, size = 0x8, scoped, tag = 'scoped memory for tpu_custom_call.1']
    #allocation17 [shape = 'u8[32768]{0}', space=vmem, size = 0x8000, scoped, tag = 'input window, operand 8']
    #allocation18 [shape = 'u8[1024]{0}', space=vmem, size = 0x400, scoped, tag = 'output window, operand 0']
    %16 = vsyncpa [#allocation8], 0
    %17 = vsyncpa [#allocation6], 0
    %s18 = scalar_lea.sflag [#allocation6], 1
    %19 = vsyncpa %s18, 0
    %20 = vsyncpa [#allocation12], 0
    %s21 = scalar_lea.sflag [#allocation12], 1
    %22 = vsyncpa %s21, 0
    %23 = vsyncpa [#allocation16], 0
    %s24 = scalar_lea.sflag [#allocation16], 1
    %25 = vsyncpa %s24, 0
    %26 = vsyncpa [#allocation7], 0
    %s27 = scalar_lea.sflag [#allocation7], 1
    %28 = vsyncpa %s27, 0
    loop: start=0, step=1, limit=10
    $region2: #{tpu_custom_call.1} parent=1 // loop_pre_header
      _
    $region3: #{tpu_custom_call.1} parent=1 // loop_header
      %s30 = sphi 0, %s34
      %p31 = scmp.ge.s32.totalorder %s30, 10
      %s37 = sphi 0, %s49
      %s38 = sphi 0, %s45
      %s39 = sphi 0, %s37
      %s40 = sphi 0, %s38
      %s41 = sphi 0, %s39
      %s42 = sphi 0, %s40
      %s50 = sphi 0, %s50
      %s52 = sphi 0, %s50
      %s53 = sphi 0, %s52
      %s67 = sphi 0, %s53
      %s75 = sphi 0, %s77
      %s78 = sphi 0, %s75
      %s79 = sphi 0, %s78
      %s95 = sphi 0, %s79
      %s103 = sphi 0, %s105
      %s106 = sphi 0, %s103
      %s107 = sphi 0, %s106
      %s123 = sphi 0, %s107
      %s131 = sphi 0, %s133
      %s134 = sphi 0, %s131
      %s135 = sphi 0, %s134
      %s151 = sphi 0, %s135
      %s159 = sphi 0, %s161
      %s162 = sphi 0, %s159
      %s163 = sphi 0, %s162
      %s179 = sphi 0, %s163
      %s187 = sphi 0, %s189
      %s190 = sphi 0, %s187
      %s191 = sphi 0, %s190
      %s207 = sphi 0, %s191
      %s215 = sphi 0, %s217
      %s218 = sphi 0, %s215
      %s219 = sphi 0, %s218
      %s235 = sphi 0, %s219
      %s243 = sphi 0, %s245
      %s246 = sphi 0, %s243
      %s247 = sphi 0, %s246
      %s263 = sphi 0, %s247
      %s271 = sphi 0, %s273
      %s274 = sphi 0, %s271
      %s275 = sphi 0, %s274
      %s291 = sphi 0, %s275
      %s297 = sphi 0, %s299
      %s300 = sphi 0, %s297
      %s301 = sphi 0, %s300
      %s317 = sphi 0, %s301
      %s325 = sphi 0, %s327
      %s328 = sphi 0, %s325
      %s329 = sphi 0, %s328
      %s345 = sphi 0, %s329
      %s351 = sphi 0, %s353
      %s354 = sphi 0, %s351
      %s355 = sphi 0, %s354
      %s371 = sphi 0, %s355
    $region4: #{tpu_custom_call.1} parent=1 // loop_header_branch
      %33 = sbr.rel (%p31) target = $region8
    $region5: #{tpu_custom_call.1} parent=1 // loop_body
      %s35 = ssub.s32 %s30, 1
      %s36 = ssub.s32 %s30, 2
      %s43 = sadd.s32 1, %s38
      %p44 = scmp.ge.s32.totalorder %s43, 4
      %s45 = scalar_select %p44, 0, %s43
      %s46 = sadd.s32 1, %s37
      %s47 = scalar_select %p44, %s46, %s37
      %p48 = scmp.ge.s32.totalorder %s47, 2
      %s49 = scalar_select %p48, 0, %s47
      %s51 = sadd.s32 %s50, 1
      %p54 = scmp.eq.s32.totalorder %s30, 7
      %p55 = scmp.ne.s32.totalorder %s50, %s52
      %p56 = scmp.eq.s32.totalorder %s30, 0
      %p57 = por %p55, %p56
      %p58 = scmp.ne.s32.totalorder %s50, %s52
      %p59 = scmp.eq.s32.totalorder %s35, 7
      %p60 = por %p58, %p59
      %p61 = scmp.ne.s32.totalorder %s52, %s53
      %p62 = scmp.eq.s32.totalorder %s35, 0
      %p63 = por %p61, %p62
      %p64 = scmp.ne.s32.totalorder %s52, %s53
      %p65 = scmp.eq.s32.totalorder %s36, 7
      %p66 = por %p64, %p65
      %p68 = scmp.ne.s32.totalorder %s53, %s67
      %p69 = scmp.eq.s32.totalorder %s36, 0
      %p70 = por %p68, %p69
      %s71 = ssub.s32 %s37, %s49
      %s72 = ssub.s32 %s38, %s45
      %s73 = sor.u32 %s71, %s72
      %p74 = scmp.eq.s32.totalorder %s73, 0
      %s76 = sadd.s32 %s75, 1
      %s77 = scalar_select %p74, %s75, %s76
      %p80 = pneg %p74
      %p81 = scmp.eq.s32.totalorder %s30, 7
      %p82 = por %p80, %p81
      %p83 = scmp.ne.s32.totalorder %s75, %s78
      %p84 = scmp.eq.s32.totalorder %s30, 0
      %p85 = por %p83, %p84
      %p86 = scmp.ne.s32.totalorder %s75, %s78
      %p87 = scmp.eq.s32.totalorder %s35, 7
      %p88 = por %p86, %p87
      %p89 = scmp.ne.s32.totalorder %s78, %s79
      %p90 = scmp.eq.s32.totalorder %s35, 0
      %p91 = por %p89, %p90
      %p92 = scmp.ne.s32.totalorder %s78, %s79
      %p93 = scmp.eq.s32.totalorder %s36, 7
      %p94 = por %p92, %p93
      %p96 = scmp.ne.s32.totalorder %s79, %s95
      %p97 = scmp.eq.s32.totalorder %s36, 0
      %p98 = por %p96, %p97
      %s99 = ssub.s32 %s37, %s49
      %s100 = ssub.s32 %s38, %s45
      %s101 = sor.u32 %s99, %s100
      %p102 = scmp.eq.s32.totalorder %s101, 0
      %s104 = sadd.s32 %s103, 1
      %s105 = scalar_select %p102, %s103, %s104
      %p108 = pneg %p102
      %p109 = scmp.eq.s32.totalorder %s30, 7
      %p110 = por %p108, %p109
      %p111 = scmp.ne.s32.totalorder %s103, %s106
      %p112 = scmp.eq.s32.totalorder %s30, 0
      %p113 = por %p111, %p112
      %p114 = scmp.ne.s32.totalorder %s103, %s106
      %p115 = scmp.eq.s32.totalorder %s35, 7
      %p116 = por %p114, %p115
      %p117 = scmp.ne.s32.totalorder %s106, %s107
      %p118 = scmp.eq.s32.totalorder %s35, 0
      %p119 = por %p117, %p118
      %p120 = scmp.ne.s32.totalorder %s106, %s107
      %p121 = scmp.eq.s32.totalorder %s36, 7
      %p122 = por %p120, %p121
      %p124 = scmp.ne.s32.totalorder %s107, %s123
      %p125 = scmp.eq.s32.totalorder %s36, 0
      %p126 = por %p124, %p125
      %s127 = ssub.s32 %s37, %s49
      %s128 = ssub.s32 %s38, %s45
      %s129 = sor.u32 %s127, %s128
      %p130 = scmp.eq.s32.totalorder %s129, 0
      %s132 = sadd.s32 %s131, 1
      %s133 = scalar_select %p130, %s131, %s132
      %p136 = pneg %p130
      %p137 = scmp.eq.s32.totalorder %s30, 7
      %p138 = por %p136, %p137
      %p139 = scmp.ne.s32.totalorder %s131, %s134
      %p140 = scmp.eq.s32.totalorder %s30, 0
      %p141 = por %p139, %p140
      %p142 = scmp.ne.s32.totalorder %s131, %s134
      %p143 = scmp.eq.s32.totalorder %s35, 7
      %p144 = por %p142, %p143
      %p145 = scmp.ne.s32.totalorder %s134, %s135
      %p146 = scmp.eq.s32.totalorder %s35, 0
      %p147 = por %p145, %p146
      %p148 = scmp.ne.s32.totalorder %s134, %s135
      %p149 = scmp.eq.s32.totalorder %s36, 7
      %p150 = por %p148, %p149
      %p152 = scmp.ne.s32.totalorder %s135, %s151
      %p153 = scmp.eq.s32.totalorder %s36, 0
      %p154 = por %p152, %p153
      %s155 = ssub.s32 %s37, %s49
      %s156 = ssub.s32 %s38, %s45
      %s157 = sor.u32 %s155, %s156
      %p158 = scmp.eq.s32.totalorder %s157, 0
      %s160 = sadd.s32 %s159, 1
      %s161 = scalar_select %p158, %s159, %s160
      %p164 = pneg %p158
      %p165 = scmp.eq.s32.totalorder %s30, 7
      %p166 = por %p164, %p165
      %p167 = scmp.ne.s32.totalorder %s159, %s162
      %p168 = scmp.eq.s32.totalorder %s30, 0
      %p169 = por %p167, %p168
      %p170 = scmp.ne.s32.totalorder %s159, %s162
      %p171 = scmp.eq.s32.totalorder %s35, 7
      %p172 = por %p170, %p171
      %p173 = scmp.ne.s32.totalorder %s162, %s163
      %p174 = scmp.eq.s32.totalorder %s35, 0
      %p175 = por %p173, %p174
      %p176 = scmp.ne.s32.totalorder %s162, %s163
      %p177 = scmp.eq.s32.totalorder %s36, 7
      %p178 = por %p176, %p177
      %p180 = scmp.ne.s32.totalorder %s163, %s179
      %p181 = scmp.eq.s32.totalorder %s36, 0
      %p182 = por %p180, %p181
      %s183 = ssub.s32 %s37, %s49
      %s184 = ssub.s32 %s38, %s45
      %s185 = sor.u32 %s183, %s184
      %p186 = scmp.eq.s32.totalorder %s185, 0
      %s188 = sadd.s32 %s187, 1
      %s189 = scalar_select %p186, %s187, %s188
      %p192 = pneg %p186
      %p193 = scmp.eq.s32.totalorder %s30, 7
      %p194 = por %p192, %p193
      %p195 = scmp.ne.s32.totalorder %s187, %s190
      %p196 = scmp.eq.s32.totalorder %s30, 0
      %p197 = por %p195, %p196
      %p198 = scmp.ne.s32.totalorder %s187, %s190
      %p199 = scmp.eq.s32.totalorder %s35, 7
      %p200 = por %p198, %p199
      %p201 = scmp.ne.s32.totalorder %s190, %s191
      %p202 = scmp.eq.s32.totalorder %s35, 0
      %p203 = por %p201, %p202
      %p204 = scmp.ne.s32.totalorder %s190, %s191
      %p205 = scmp.eq.s32.totalorder %s36, 7
      %p206 = por %p204, %p205
      %p208 = scmp.ne.s32.totalorder %s191, %s207
      %p209 = scmp.eq.s32.totalorder %s36, 0
      %p210 = por %p208, %p209
      %s211 = ssub.s32 %s37, %s49
      %s212 = ssub.s32 %s38, %s45
      %s213 = sor.u32 %s211, %s212
      %p214 = scmp.eq.s32.totalorder %s213, 0
      %s216 = sadd.s32 %s215, 1
      %s217 = scalar_select %p214, %s215, %s216
      %p220 = pneg %p214
      %p221 = scmp.eq.s32.totalorder %s30, 7
      %p222 = por %p220, %p221
      %p223 = scmp.ne.s32.totalorder %s215, %s218
      %p224 = scmp.eq.s32.totalorder %s30, 0
      %p225 = por %p223, %p224
      %p226 = scmp.ne.s32.totalorder %s215, %s218
      %p227 = scmp.eq.s32.totalorder %s35, 7
      %p228 = por %p226, %p227
      %p229 = scmp.ne.s32.totalorder %s218, %s219
      %p230 = scmp.eq.s32.totalorder %s35, 0
      %p231 = por %p229, %p230
      %p232 = scmp.ne.s32.totalorder %s218, %s219
      %p233 = scmp.eq.s32.totalorder %s36, 7
      %p234 = por %p232, %p233
      %p236 = scmp.ne.s32.totalorder %s219, %s235
      %p237 = scmp.eq.s32.totalorder %s36, 0
      %p238 = por %p236, %p237
      %s239 = ssub.s32 %s37, %s49
      %s240 = ssub.s32 %s38, %s45
      %s241 = sor.u32 %s239, %s240
      %p242 = scmp.eq.s32.totalorder %s241, 0
      %s244 = sadd.s32 %s243, 1
      %s245 = scalar_select %p242, %s243, %s244
      %p248 = pneg %p242
      %p249 = scmp.eq.s32.totalorder %s30, 7
      %p250 = por %p248, %p249
      %p251 = scmp.ne.s32.totalorder %s243, %s246
      %p252 = scmp.eq.s32.totalorder %s30, 0
      %p253 = por %p251, %p252
      %p254 = scmp.ne.s32.totalorder %s243, %s246
      %p255 = scmp.eq.s32.totalorder %s35, 7
      %p256 = por %p254, %p255
      %p257 = scmp.ne.s32.totalorder %s246, %s247
      %p258 = scmp.eq.s32.totalorder %s35, 0
      %p259 = por %p257, %p258
      %p260 = scmp.ne.s32.totalorder %s246, %s247
      %p261 = scmp.eq.s32.totalorder %s36, 7
      %p262 = por %p260, %p261
      %p264 = scmp.ne.s32.totalorder %s247, %s263
      %p265 = scmp.eq.s32.totalorder %s36, 0
      %p266 = por %p264, %p265
      %s267 = ssub.s32 %s37, %s49
      %s268 = ssub.s32 %s38, %s45
      %s269 = sor.u32 %s267, %s268
      %p270 = scmp.eq.s32.totalorder %s269, 0
      %s272 = sadd.s32 %s271, 1
      %s273 = scalar_select %p270, %s271, %s272
      %p276 = pneg %p270
      %p277 = scmp.eq.s32.totalorder %s30, 7
      %p278 = por %p276, %p277
      %p279 = scmp.ne.s32.totalorder %s271, %s274
      %p280 = scmp.eq.s32.totalorder %s30, 0
      %p281 = por %p279, %p280
      %p282 = scmp.ne.s32.totalorder %s271, %s274
      %p283 = scmp.eq.s32.totalorder %s35, 7
      %p284 = por %p282, %p283
      %p285 = scmp.ne.s32.totalorder %s274, %s275
      %p286 = scmp.eq.s32.totalorder %s35, 0
      %p287 = por %p285, %p286
      %p288 = scmp.ne.s32.totalorder %s274, %s275
      %p289 = scmp.eq.s32.totalorder %s36, 7
      %p290 = por %p288, %p289
      %p292 = scmp.ne.s32.totalorder %s275, %s291
      %p293 = scmp.eq.s32.totalorder %s36, 0
      %p294 = por %p292, %p293
      %s295 = ssub.s32 %s37, %s49
      %p296 = scmp.eq.s32.totalorder %s295, 0
      %s298 = sadd.s32 %s297, 1
      %s299 = scalar_select %p296, %s297, %s298
      %p302 = pneg %p296
      %p303 = scmp.eq.s32.totalorder %s30, 7
      %p304 = por %p302, %p303
      %p305 = scmp.ne.s32.totalorder %s297, %s300
      %p306 = scmp.eq.s32.totalorder %s30, 0
      %p307 = por %p305, %p306
      %p308 = scmp.ne.s32.totalorder %s297, %s300
      %p309 = scmp.eq.s32.totalorder %s35, 7
      %p310 = por %p308, %p309
      %p311 = scmp.ne.s32.totalorder %s300, %s301
      %p312 = scmp.eq.s32.totalorder %s35, 0
      %p313 = por %p311, %p312
      %p314 = scmp.ne.s32.totalorder %s300, %s301
      %p315 = scmp.eq.s32.totalorder %s36, 7
      %p316 = por %p314, %p315
      %p318 = scmp.ne.s32.totalorder %s301, %s317
      %p319 = scmp.eq.s32.totalorder %s36, 0
      %p320 = por %p318, %p319
      %s321 = ssub.s32 %s37, %s49
      %s322 = ssub.s32 %s38, %s45
      %s323 = sor.u32 %s321, %s322
      %p324 = scmp.eq.s32.totalorder %s323, 0
      %s326 = sadd.s32 %s325, 1
      %s327 = scalar_select %p324, %s325, %s326
      %p330 = pneg %p324
      %p331 = scmp.eq.s32.totalorder %s30, 7
      %p332 = por %p330, %p331
      %p333 = scmp.ne.s32.totalorder %s325, %s328
      %p334 = scmp.eq.s32.totalorder %s30, 0
      %p335 = por %p333, %p334
      %p336 = scmp.ne.s32.totalorder %s325, %s328
      %p337 = scmp.eq.s32.totalorder %s35, 7
      %p338 = por %p336, %p337
      %p339 = scmp.ne.s32.totalorder %s328, %s329
      %p340 = scmp.eq.s32.totalorder %s35, 0
      %p341 = por %p339, %p340
      %p342 = scmp.ne.s32.totalorder %s328, %s329
      %p343 = scmp.eq.s32.totalorder %s36, 7
      %p344 = por %p342, %p343
      %p346 = scmp.ne.s32.totalorder %s329, %s345
      %p347 = scmp.eq.s32.totalorder %s36, 0
      %p348 = por %p346, %p347
      %s349 = ssub.s32 %s37, %s49
      %p350 = scmp.eq.s32.totalorder %s349, 0
      %s352 = sadd.s32 %s351, 1
      %s353 = scalar_select %p350, %s351, %s352
      %p356 = pneg %p350
      %p357 = scmp.eq.s32.totalorder %s30, 7
      %p358 = por %p356, %p357
      %p359 = scmp.ne.s32.totalorder %s351, %s354
      %p360 = scmp.eq.s32.totalorder %s30, 0
      %p361 = por %p359, %p360
      %p362 = scmp.ne.s32.totalorder %s351, %s354
      %p363 = scmp.eq.s32.totalorder %s35, 7
      %p364 = por %p362, %p363
      %p365 = scmp.ne.s32.totalorder %s354, %s355
      %p366 = scmp.eq.s32.totalorder %s35, 0
      %p367 = por %p365, %p366
      %p368 = scmp.ne.s32.totalorder %s354, %s355
      %p369 = scmp.eq.s32.totalorder %s36, 7
      %p370 = por %p368, %p369
      %p372 = scmp.ne.s32.totalorder %s355, %s371
      %p373 = scmp.eq.s32.totalorder %s36, 0
      %p374 = por %p372, %p373
      %p375 = scmp.le.s32.totalorder 1, %s30
      %p376 = scmp.lt.s32.totalorder %s30, 9
      %p377 = pnand %p375, %p376
      %p378 = pneg %p377
      // Predicated region
      $region9: #{tpu_custom_call.1} parent=5 // pred_check
        _
      $region10: #{tpu_custom_call.1} parent=5 // pred_check_branch
        %380 = sbr.rel (%p377) target = $region12
      $region11: #{tpu_custom_call.1} parent=5 // pred_region
        %s381 = ssub.s32 %s30, 1
        // Predicated region
        $region13: #{tpu_custom_call.1} parent=11 // pred_check
          %p382 = pneg %p63
        $region14: #{tpu_custom_call.1} parent=11 // pred_check_branch
          %384 = sbr.rel (%p382) target = $region16
        $region15: #{tpu_custom_call.1} parent=11 // pred_region
          %s386 = ssub.s32 16, 16
          %387 = vsyncadd [#allocation8], %s386
          %s389 = sshll.u32 %s0, 4
          %s390 = int_to_ptr.vmem [resolvable:$true] %s389
          %392 = dma.vmem_to_smem %s390, 16, [#allocation5], [#allocation8]
        $region16: #{tpu_custom_call.1} parent=11 // pred_fallthru
          _
      $region12: #{tpu_custom_call.1} parent=5 // pred_fallthru
        _
      %p393 = scmp.lt.s32.totalorder %s30, 8
      // Predicated region
      $region17: #{tpu_custom_call.1} parent=5 // pred_check
        %p394 = pneg %p393
      $region18: #{tpu_custom_call.1} parent=5 // pred_check_branch
        %396 = sbr.rel (%p394) target = $region20
      $region19: #{tpu_custom_call.1} parent=5 // pred_region
        // Predicated region
        $region21: #{tpu_custom_call.1} parent=19 // pred_check
          %p397 = pneg %p85
        $region22: #{tpu_custom_call.1} parent=19 // pred_check_branch
          %399 = sbr.rel (%p397) target = $region24
        $region23: #{tpu_custom_call.1} parent=19 // pred_region
          %p400 = scmp.lt.s32.totalorder %s37, 1
          %s401 = scalar_select %p400, %s37, 1
          %p402 = scmp.lt.s32.totalorder %s38, 3
          %s403 = scalar_select %p402, %s38, 3
          %s404 = smul.addr %s401, 4
          %s405 = sadd.s32 %s403, %s404
          %s406 = scalar_lea.vmem %s1, %s405
        $region24: #{tpu_custom_call.1} parent=19 // pred_fallthru
          _
        // Predicated region
        $region25: #{tpu_custom_call.1} parent=19 // pred_check
          %p407 = pneg %p113
        $region26: #{tpu_custom_call.1} parent=19 // pred_check_branch
          %409 = sbr.rel (%p407) target = $region28
        $region27: #{tpu_custom_call.1} parent=19 // pred_region
          %s410 = sand.u32 %s103, 1
          %s411 = scalar_lea.sflag [#allocation6], %s410
          %s412 = sand.u32 %s103, 1
          %s413 = scalar_lea.vmem [#allocation9], %s412
          %s415 = ssub.s32 16, 16
          %416 = vsyncadd %s411, %s415
          %s417 = smul.addr %s37, 4
          %s418 = sadd.s32 %s38, %s417
          %s419 = smul.addr %s418, 16
          %s420 = scalar_lea.hbm %s2, %s419
          %s422 = sshll.u32 %s413, 4
          %s423 = int_to_ptr.vmem [resolvable:$true] %s422
          %425 = dma.hbm_to_vmem [thread:$0]  %s420, 16, %s423, %s411
        $region28: #{tpu_custom_call.1} parent=19 // pred_fallthru
          _
        // Predicated region
        $region29: #{tpu_custom_call.1} parent=19 // pred_check
          %p426 = pneg %p141
        $region30: #{tpu_custom_call.1} parent=19 // pred_check_branch
          %428 = sbr.rel (%p426) target = $region32
        $region31: #{tpu_custom_call.1} parent=19 // pred_region
          %s429 = sand.u32 %s131, 1
          %s430 = sand.u32 %s131, 1
          %s431 = smul.addr %s430, 96
          %s432 = scalar_lea.vmem [#allocation10], %s431
          %s433 = smul.addr %s37, 48
          %s434 = sadd.s32 %s38, %s433
          %s435 = smul.addr %s434, 8
          %s436 = scalar_lea.vmem %s3, %s435
          // Predicated region
          $region33: #{tpu_custom_call.1} parent=31 // pred_check
            _
          $region34: #{tpu_custom_call.1} parent=31 // pred_check_branch
            %438 = sbr.rel (0) target = $region36
          $region35: #{tpu_custom_call.1} parent=31 // pred_region
            // Predicated region
            $region37: #{tpu_custom_call.1} parent=35 // pred_check
              _
            $region38: #{tpu_custom_call.1} parent=35 // pred_check_branch
              %440 = sbr.rel (0) target = $region40
            $region39: #{tpu_custom_call.1} parent=35 // pred_region
              // Predicated region
              $region52: #{tpu_custom_call.1} parent=39 // pred_check
                _
              $region53: #{tpu_custom_call.1} parent=39 // pred_check_branch
                %477 = sbr.rel (0) target = $region55
              $region54: #{tpu_custom_call.1} parent=39 // pred_region
                loop: start=0, step=1, limit=1
                $region56: #{tpu_custom_call.1} parent=54 // loop_pre_header
                  _
                $region57: #{tpu_custom_call.1} parent=54 // loop_header
                  %s479 = sphi 0, %s483
                  %p480 = scmp.ge.s32.totalorder %s479, 1
                  %s484 = sphi %s436, %s436
                  %s485 = sphi %s432, %s432
                $region58: #{tpu_custom_call.1} parent=54 // loop_header_branch
                  %482 = sbr.rel (%p480) target = $region62
                $region59: #{tpu_custom_call.1} parent=54 // loop_body
                  %v486 = vld [vmem:[%s484] sm:$0xff]
                  %487 = vst [vmem:[%s485] sm:$0xff] %v486
                  %v488 = vld [vmem:[%s484 + $0x20] sm:$0xff]
                  %489 = vst [vmem:[%s485 + $0x8] sm:$0xff] %v488
                  %v490 = vld [vmem:[%s484 + $0x40] sm:$0xff]
                  %491 = vst [vmem:[%s485 + $0x10] sm:$0xff] %v490
                  %v492 = vld [vmem:[%s484 + $0x60] sm:$0xff]
                  %493 = vst [vmem:[%s485 + $0x18] sm:$0xff] %v492
                  %v494 = vld [vmem:[%s484 + $0x80] sm:$0xff]
                  %495 = vst [vmem:[%s485 + $0x20] sm:$0xff] %v494
                  %v496 = vld [vmem:[%s484 + $0xa0] sm:$0xff]
                  %497 = vst [vmem:[%s485 + $0x28] sm:$0xff] %v496
                  %v498 = vld [vmem:[%s484 + $0xc0] sm:$0xff]
                  %499 = vst [vmem:[%s485 + $0x30] sm:$0xff] %v498
                  %v500 = vld [vmem:[%s484 + $0xe0] sm:$0xff]
                  %501 = vst [vmem:[%s485 + $0x38] sm:$0xff] %v500
                  %v502 = vld [vmem:[%s484 + $0x100] sm:$0xff]
                  %503 = vst [vmem:[%s485 + $0x40] sm:$0xff] %v502
                  %v504 = vld [vmem:[%s484 + $0x120] sm:$0xff]
                  %505 = vst [vmem:[%s485 + $0x48] sm:$0xff] %v504
                  %v506 = vld [vmem:[%s484 + $0x140] sm:$0xff]
                  %507 = vst [vmem:[%s485 + $0x50] sm:$0xff] %v506
                  %v508 = vld [vmem:[%s484 + $0x160] sm:$0xff]
                  %509 = vst [vmem:[%s485 + $0x58] sm:$0xff] %v508
                $region60: #{tpu_custom_call.1} parent=54 // loop_footer
                  %s483 = sadd.s32 1, %s479
                $region61: #{tpu_custom_call.1} parent=54 // loop_footer_branch
                  %478 = sbr.rel target = $region57
                $region62: #{tpu_custom_call.1} parent=54 // loop_exit
                  _
              $region55: #{tpu_custom_call.1} parent=39 // pred_fallthru
                _
              // Predicated region
              $region63: #{tpu_custom_call.1} parent=39 // pred_check
                _
              $region64: #{tpu_custom_call.1} parent=39 // pred_check_branch
                %511 = sbr.rel target = $region66
              $region65: #{tpu_custom_call.1} parent=39 // pred_region
                _
              $region66: #{tpu_custom_call.1} parent=39 // pred_fallthru
                _
            $region40: #{tpu_custom_call.1} parent=35 // pred_fallthru
              _
            // Predicated region
            $region41: #{tpu_custom_call.1} parent=35 // pred_check
              _
            $region42: #{tpu_custom_call.1} parent=35 // pred_check_branch
              %442 = sbr.rel target = $region44
            $region43: #{tpu_custom_call.1} parent=35 // pred_region
              loop: start=0, step=1, limit=1
              $region45: #{tpu_custom_call.1} parent=43 // loop_pre_header
                _
              $region46: #{tpu_custom_call.1} parent=43 // loop_header
                %s445 = sphi 0, %s449
                %p446 = scmp.ge.s32.totalorder %s445, 1
                %s450 = sphi %s436, %s436
                %s451 = sphi %s432, %s432
              $region47: #{tpu_custom_call.1} parent=43 // loop_header_branch
                %448 = sbr.rel (%p446) target = $region51
              $region48: #{tpu_custom_call.1} parent=43 // loop_body
                %v452 = vld [vmem:[%s450] sm:$0xff]
                %453 = vst [vmem:[%s451] sm:$0xff] %v452
                %v454 = vld [vmem:[%s450 + $0x20] sm:$0xff]
                %455 = vst [vmem:[%s451 + $0x8] sm:$0xff] %v454
                %v456 = vld [vmem:[%s450 + $0x40] sm:$0xff]
                %457 = vst [vmem:[%s451 + $0x10] sm:$0xff] %v456
                %v458 = vld [vmem:[%s450 + $0x60] sm:$0xff]
                %459 = vst [vmem:[%s451 + $0x18] sm:$0xff] %v458
                %v460 = vld [vmem:[%s450 + $0x80] sm:$0xff]
                %461 = vst [vmem:[%s451 + $0x20] sm:$0xff] %v460
                %v462 = vld [vmem:[%s450 + $0xa0] sm:$0xff]
                %463 = vst [vmem:[%s451 + $0x28] sm:$0xff] %v462
                %v464 = vld [vmem:[%s450 + $0xc0] sm:$0xff]
                %465 = vst [vmem:[%s451 + $0x30] sm:$0xff] %v464
                %v466 = vld [vmem:[%s450 + $0xe0] sm:$0xff]
                %467 = vst [vmem:[%s451 + $0x38] sm:$0xff] %v466
                %v468 = vld [vmem:[%s450 + $0x100] sm:$0xff]
                %469 = vst [vmem:[%s451 + $0x40] sm:$0xff] %v468
                %v470 = vld [vmem:[%s450 + $0x120] sm:$0xff]
                %471 = vst [vmem:[%s451 + $0x48] sm:$0xff] %v470
                %v472 = vld [vmem:[%s450 + $0x140] sm:$0xff]
                %473 = vst [vmem:[%s451 + $0x50] sm:$0xff] %v472
                %v474 = vld [vmem:[%s450 + $0x160] sm:$0xff]
                %475 = vst [vmem:[%s451 + $0x58] sm:$0xff] %v474
              $region49: #{tpu_custom_call.1} parent=43 // loop_footer
                %s449 = sadd.s32 1, %s445
              $region50: #{tpu_custom_call.1} parent=43 // loop_footer_branch
                %444 = sbr.rel target = $region46
              $region51: #{tpu_custom_call.1} parent=43 // loop_exit
                _
            $region44: #{tpu_custom_call.1} parent=35 // pred_fallthru
              _
          $region36: #{tpu_custom_call.1} parent=31 // pred_fallthru
            _
          %512 = vnop
        $region32: #{tpu_custom_call.1} parent=19 // pred_fallthru
          _
        // Predicated region
        $region67: #{tpu_custom_call.1} parent=19 // pred_check
          %p513 = pneg %p169
        $region68: #{tpu_custom_call.1} parent=19 // pred_check_branch
          %515 = sbr.rel (%p513) target = $region70
        $region69: #{tpu_custom_call.1} parent=19 // pred_region
          %s516 = sand.u32 %s30, 1
          %s517 = scalar_lea.sflag [#allocation12], %s516
          %s518 = sand.u32 %s159, 1
          %s519 = smul.addr %s518, 96
          %s520 = scalar_lea.vmem [#allocation11], %s519
          %s522 = ssub.s32 1536, 1536
          %523 = vsyncadd %s517, %s522
          %s524 = smul.addr %s37, 48
          %s525 = sadd.s32 %s38, %s524
          %s526 = smul.addr %s525, 128
          %s527 = scalar_lea.hbm %s4, %s526
          %s528 = sshll.u32 %s520, 4
          %s529 = int_to_ptr.vmem [resolvable:$true] %s528
          %534 = dma.hbm_to_vmem [thread:$0]  %s527, 1536, %s529, %s517, 512, 128, 8
        $region70: #{tpu_custom_call.1} parent=19 // pred_fallthru
          _
        // Predicated region
        $region71: #{tpu_custom_call.1} parent=19 // pred_check
          %p535 = pneg %p197
        $region72: #{tpu_custom_call.1} parent=19 // pred_check_branch
          %537 = sbr.rel (%p535) target = $region74
        $region73: #{tpu_custom_call.1} parent=19 // pred_region
          %s538 = sand.u32 %s187, 1
          %s539 = sand.u32 %s187, 1
          %s540 = smul.addr %s539, 32
          %s541 = scalar_lea.vmem [#allocation13], %s540
          %s542 = smul.addr %s37, 16
          %s543 = sadd.s32 %s38, %s542
          %s544 = smul.addr %s543, 8
          %s545 = scalar_lea.vmem %s5, %s544
          // Predicated region
          $region75: #{tpu_custom_call.1} parent=73 // pred_check
            _
          $region76: #{tpu_custom_call.1} parent=73 // pred_check_branch
            %547 = sbr.rel (0) target = $region78
          $region77: #{tpu_custom_call.1} parent=73 // pred_region
            // Predicated region
            $region79: #{tpu_custom_call.1} parent=77 // pred_check
              _
            $region80: #{tpu_custom_call.1} parent=77 // pred_check_branch
              %549 = sbr.rel (0) target = $region82
            $region81: #{tpu_custom_call.1} parent=77 // pred_region
              // Predicated region
              $region94: #{tpu_custom_call.1} parent=81 // pred_check
                _
              $region95: #{tpu_custom_call.1} parent=81 // pred_check_branch
                %570 = sbr.rel (0) target = $region97
              $region96: #{tpu_custom_call.1} parent=81 // pred_region
                loop: start=0, step=1, limit=1
                $region98: #{tpu_custom_call.1} parent=96 // loop_pre_header
                  _
                $region99: #{tpu_custom_call.1} parent=96 // loop_header
                  %s572 = sphi 0, %s576
                  %p573 = scmp.ge.s32.totalorder %s572, 1
                  %s577 = sphi %s545, %s545
                  %s578 = sphi %s541, %s541
                $region100: #{tpu_custom_call.1} parent=96 // loop_header_branch
                  %575 = sbr.rel (%p573) target = $region104
                $region101: #{tpu_custom_call.1} parent=96 // loop_body
                  %v579 = vld [vmem:[%s577] sm:$0xff]
                  %580 = vst [vmem:[%s578] sm:$0xff] %v579
                  %v581 = vld [vmem:[%s577 + $0x20] sm:$0xff]
                  %582 = vst [vmem:[%s578 + $0x8] sm:$0xff] %v581
                  %v583 = vld [vmem:[%s577 + $0x40] sm:$0xff]
                  %584 = vst [vmem:[%s578 + $0x10] sm:$0xff] %v583
                  %v585 = vld [vmem:[%s577 + $0x60] sm:$0xff]
                  %586 = vst [vmem:[%s578 + $0x18] sm:$0xff] %v585
                $region102: #{tpu_custom_call.1} parent=96 // loop_footer
                  %s576 = sadd.s32 1, %s572
                $region103: #{tpu_custom_call.1} parent=96 // loop_footer_branch
                  %571 = sbr.rel target = $region99
                $region104: #{tpu_custom_call.1} parent=96 // loop_exit
                  _
              $region97: #{tpu_custom_call.1} parent=81 // pred_fallthru
                _
              // Predicated region
              $region105: #{tpu_custom_call.1} parent=81 // pred_check
                _
              $region106: #{tpu_custom_call.1} parent=81 // pred_check_branch
                %588 = sbr.rel target = $region108
              $region107: #{tpu_custom_call.1} parent=81 // pred_region
                _
              $region108: #{tpu_custom_call.1} parent=81 // pred_fallthru
                _
            $region82: #{tpu_custom_call.1} parent=77 // pred_fallthru
              _
            // Predicated region
            $region83: #{tpu_custom_call.1} parent=77 // pred_check
              _
            $region84: #{tpu_custom_call.1} parent=77 // pred_check_branch
              %551 = sbr.rel target = $region86
            $region85: #{tpu_custom_call.1} parent=77 // pred_region
              loop: start=0, step=1, limit=1
              $region87: #{tpu_custom_call.1} parent=85 // loop_pre_header
                _
              $region88: #{tpu_custom_call.1} parent=85 // loop_header
                %s554 = sphi 0, %s558
                %p555 = scmp.ge.s32.totalorder %s554, 1
                %s559 = sphi %s545, %s545
                %s560 = sphi %s541, %s541
              $region89: #{tpu_custom_call.1} parent=85 // loop_header_branch
                %557 = sbr.rel (%p555) target = $region93
              $region90: #{tpu_custom_call.1} parent=85 // loop_body
                %v561 = vld [vmem:[%s559] sm:$0xff]
                %562 = vst [vmem:[%s560] sm:$0xff] %v561
                %v563 = vld [vmem:[%s559 + $0x20] sm:$0xff]
                %564 = vst [vmem:[%s560 + $0x8] sm:$0xff] %v563
                %v565 = vld [vmem:[%s559 + $0x40] sm:$0xff]
                %566 = vst [vmem:[%s560 + $0x10] sm:$0xff] %v565
                %v567 = vld [vmem:[%s559 + $0x60] sm:$0xff]
                %568 = vst [vmem:[%s560 + $0x18] sm:$0xff] %v567
              $region91: #{tpu_custom_call.1} parent=85 // loop_footer
                %s558 = sadd.s32 1, %s554
              $region92: #{tpu_custom_call.1} parent=85 // loop_footer_branch
                %553 = sbr.rel target = $region88
              $region93: #{tpu_custom_call.1} parent=85 // loop_exit
                _
            $region86: #{tpu_custom_call.1} parent=77 // pred_fallthru
              _
          $region78: #{tpu_custom_call.1} parent=73 // pred_fallthru
            _
          %589 = vnop
        $region74: #{tpu_custom_call.1} parent=19 // pred_fallthru
          _
        // Predicated region
        $region109: #{tpu_custom_call.1} parent=19 // pred_check
          %p590 = pneg %p225
        $region110: #{tpu_custom_call.1} parent=19 // pred_check_branch
          %592 = sbr.rel (%p590) target = $region112
        $region111: #{tpu_custom_call.1} parent=19 // pred_region
          %s593 = sand.u32 %s30, 1
          %s594 = scalar_lea.sflag [#allocation12], %s593
          %s595 = sand.u32 %s215, 1
          %s596 = smul.addr %s595, 96
          %s597 = scalar_lea.vmem [#allocation14], %s596
          %s599 = ssub.s32 1536, 1536
          %600 = vsyncadd %s594, %s599
          %s601 = smul.addr %s37, 48
          %s602 = sadd.s32 %s38, %s601
          %s603 = smul.addr %s602, 128
          %s604 = scalar_lea.hbm %s6, %s603
          %s605 = sshll.u32 %s597, 4
          %s606 = int_to_ptr.vmem [resolvable:$true] %s605
          %611 = dma.hbm_to_vmem [thread:$0]  %s604, 1536, %s606, %s594, 512, 128, 8
        $region112: #{tpu_custom_call.1} parent=19 // pred_fallthru
          _
        // Predicated region
        $region113: #{tpu_custom_call.1} parent=19 // pred_check
          %p612 = pneg %p253
        $region114: #{tpu_custom_call.1} parent=19 // pred_check_branch
          %614 = sbr.rel (%p612) target = $region116
        $region115: #{tpu_custom_call.1} parent=19 // pred_region
          %s615 = sand.u32 %s30, 1
          %s616 = scalar_lea.sflag [#allocation16], %s615
          %s617 = sand.u32 %s243, 1
          %s618 = smul.addr %s617, 96
          %s619 = scalar_lea.vmem [#allocation15], %s618
          %s621 = ssub.s32 1536, 1536
          %622 = vsyncadd %s616, %s621
          %s623 = smul.addr %s37, 48
          %s624 = sadd.s32 %s38, %s623
          %s625 = smul.addr %s624, 128
          %s626 = scalar_lea.hbm %s7, %s625
          %s627 = sshll.u32 %s619, 4
          %s628 = int_to_ptr.vmem [resolvable:$true] %s627
          %633 = dma.hbm_to_vmem [thread:$0]  %s626, 1536, %s628, %s616, 512, 128, 8
        $region116: #{tpu_custom_call.1} parent=19 // pred_fallthru
          _
        // Predicated region
        $region117: #{tpu_custom_call.1} parent=19 // pred_check
          %p634 = pneg %p281
        $region118: #{tpu_custom_call.1} parent=19 // pred_check_branch
          %636 = sbr.rel (%p634) target = $region120
        $region119: #{tpu_custom_call.1} parent=19 // pred_region
          %s637 = sand.u32 %s30, 1
          %s638 = scalar_lea.sflag [#allocation16], %s637
          %s639 = sand.u32 %s271, 1
          %s640 = smul.addr %s639, 32
          %s641 = scalar_lea.vmem [#allocation17], %s640
          %s643 = ssub.s32 512, 512
          %644 = vsyncadd %s638, %s643
          %s645 = smul.addr %s37, 16
          %s646 = sadd.s32 %s38, %s645
          %s647 = smul.addr %s646, 128
          %s648 = scalar_lea.hbm %s8, %s647
          %s649 = sshll.u32 %s641, 4
          %s650 = int_to_ptr.vmem [resolvable:$true] %s649
          %655 = dma.hbm_to_vmem [thread:$0]  %s648, 512, %s650, %s638, 512, 128, 8
        $region120: #{tpu_custom_call.1} parent=19 // pred_fallthru
          _
        // Predicated region
        $region121: #{tpu_custom_call.1} parent=19 // pred_check
          %p656 = pneg %p307
        $region122: #{tpu_custom_call.1} parent=19 // pred_check_branch
          %658 = sbr.rel (%p656) target = $region124
        $region123: #{tpu_custom_call.1} parent=19 // pred_region
          %p659 = scmp.lt.s32.totalorder %s37, 1
          %s660 = scalar_select %p659, %s37, 1
          %s661 = smul.addr %s660, 4
          %s662 = smul.addr %s661, 8
          %s663 = scalar_lea.vmem %s9, %s662
        $region124: #{tpu_custom_call.1} parent=19 // pred_fallthru
          _
        // Predicated region
        $region125: #{tpu_custom_call.1} parent=19 // pred_check
          %p664 = pneg %p335
        $region126: #{tpu_custom_call.1} parent=19 // pred_check_branch
          %666 = sbr.rel (%p664) target = $region128
        $region127: #{tpu_custom_call.1} parent=19 // pred_region
          %s667 = smul.u32 16, %s38
          %p668 = scmp.lt.s32.totalorder %s37, 1
          %s669 = scalar_select %p668, %s37, 1
          %p670 = scmp.lt.s32.totalorder %s667, 63
          %s671 = scalar_select %p670, %s667, 63
          %s672 = smul.addr %s669, 64
          %s673 = sadd.s32 %s671, %s672
          %s674 = smul.addr %s673, 8
          %s675 = scalar_lea.vmem %s10, %s674
          %s676 = smul.u32 16, %s38
        $region128: #{tpu_custom_call.1} parent=19 // pred_fallthru
          _
      $region20: #{tpu_custom_call.1} parent=5 // pred_fallthru
        _
      %p677 = scmp.le.s32.totalorder 1, %s30
      %p678 = scmp.lt.s32.totalorder %s30, 9
      %p679 = pnand %p677, %p678
      %p680 = pneg %p679
      // Predicated region
      $region129: #{tpu_custom_call.1} parent=5 // pred_check
        _
      $region130: #{tpu_custom_call.1} parent=5 // pred_check_branch
        %682 = sbr.rel (%p679) target = $region132
      $region131: #{tpu_custom_call.1} parent=5 // pred_region
        %s683 = ssub.s32 %s30, 1
        // Predicated region
        $region133: #{tpu_custom_call.1} parent=131 // pred_check
          %p684 = pneg %p63
        $region134: #{tpu_custom_call.1} parent=131 // pred_check_branch
          %686 = sbr.rel (%p684) target = $region136
        $region135: #{tpu_custom_call.1} parent=131 // pred_region
          %687 = dma.done [#allocation8], 16
        $region136: #{tpu_custom_call.1} parent=131 // pred_fallthru
          _
        %s688 = sand.u32 %s106, 1
        %s689 = scalar_lea.sflag [#allocation6], %s688
        %s690 = sand.u32 %s106, 1
        %s691 = scalar_lea.vmem [#allocation9], %s690
        // Predicated region
        $region137: #{tpu_custom_call.1} parent=131 // pred_check
          %p692 = pneg %p119
        $region138: #{tpu_custom_call.1} parent=131 // pred_check_branch
          %694 = sbr.rel (%p692) target = $region140
        $region139: #{tpu_custom_call.1} parent=131 // pred_region
          %695 = dma.done %s689, 16
        $region140: #{tpu_custom_call.1} parent=131 // pred_fallthru
          _
        %s696 = sand.u32 %s134, 1
        %s697 = sand.u32 %s134, 1
        %s698 = smul.addr %s697, 96
        %s699 = scalar_lea.vmem [#allocation10], %s698
        // Predicated region
        $region141: #{tpu_custom_call.1} parent=131 // pred_check
          %p700 = pneg %p147
        $region142: #{tpu_custom_call.1} parent=131 // pred_check_branch
          %702 = sbr.rel (%p700) target = $region144
        $region143: #{tpu_custom_call.1} parent=131 // pred_region
          _
        $region144: #{tpu_custom_call.1} parent=131 // pred_fallthru
          _
        %s703 = sand.u32 %s35, 1
        %s704 = scalar_lea.sflag [#allocation12], %s703
        %s705 = sand.u32 %s162, 1
        %s706 = smul.addr %s705, 96
        %s707 = scalar_lea.vmem [#allocation11], %s706
        // Predicated region
        $region145: #{tpu_custom_call.1} parent=131 // pred_check
          %p708 = pneg %p175
        $region146: #{tpu_custom_call.1} parent=131 // pred_check_branch
          %710 = sbr.rel (%p708) target = $region148
        $region147: #{tpu_custom_call.1} parent=131 // pred_region
          %711 = dma.done %s704, 1536
        $region148: #{tpu_custom_call.1} parent=131 // pred_fallthru
          _
        %s712 = sand.u32 %s190, 1
        %s713 = sand.u32 %s190, 1
        %s714 = smul.addr %s713, 32
        %s715 = scalar_lea.vmem [#allocation13], %s714
        // Predicated region
        $region149: #{tpu_custom_call.1} parent=131 // pred_check
          %p716 = pneg %p203
        $region150: #{tpu_custom_call.1} parent=131 // pred_check_branch
          %718 = sbr.rel (%p716) target = $region152
        $region151: #{tpu_custom_call.1} parent=131 // pred_region
          _
        $region152: #{tpu_custom_call.1} parent=131 // pred_fallthru
          _
        %s719 = sand.u32 %s35, 1
        %s720 = scalar_lea.sflag [#allocation12], %s719
        %s721 = sand.u32 %s218, 1
        %s722 = smul.addr %s721, 96
        %s723 = scalar_lea.vmem [#allocation14], %s722
        // Predicated region
        $region153: #{tpu_custom_call.1} parent=131 // pred_check
          %p724 = pneg %p231
        $region154: #{tpu_custom_call.1} parent=131 // pred_check_branch
          %726 = sbr.rel (%p724) target = $region156
        $region155: #{tpu_custom_call.1} parent=131 // pred_region
          %727 = dma.done %s720, 1536
        $region156: #{tpu_custom_call.1} parent=131 // pred_fallthru
          _
        %s728 = sand.u32 %s35, 1
        %s729 = scalar_lea.sflag [#allocation16], %s728
        %s730 = sand.u32 %s246, 1
        %s731 = smul.addr %s730, 96
        %s732 = scalar_lea.vmem [#allocation15], %s731
        // Predicated region
        $region157: #{tpu_custom_call.1} parent=131 // pred_check
          %p733 = pneg %p259
        $region158: #{tpu_custom_call.1} parent=131 // pred_check_branch
          %735 = sbr.rel (%p733) target = $region160
        $region159: #{tpu_custom_call.1} parent=131 // pred_region
          %736 = dma.done %s729, 1536
        $region160: #{tpu_custom_call.1} parent=131 // pred_fallthru
          _
        %s737 = sand.u32 %s35, 1
        %s738 = scalar_lea.sflag [#allocation16], %s737
        %s739 = sand.u32 %s274, 1
        %s740 = smul.addr %s739, 32
        %s741 = scalar_lea.vmem [#allocation17], %s740
        // Predicated region
        $region161: #{tpu_custom_call.1} parent=131 // pred_check
          %p742 = pneg %p287
        $region162: #{tpu_custom_call.1} parent=131 // pred_check_branch
          %744 = sbr.rel (%p742) target = $region164
        $region163: #{tpu_custom_call.1} parent=131 // pred_region
          %745 = dma.done %s738, 512
        $region164: #{tpu_custom_call.1} parent=131 // pred_fallthru
          _
        %746 = sfence
        %p747 = pneg %p63
        %p748 = pneg %p60
        %p749 = scmp.lt.s32.totalorder %s39, 1
        %s750 = scalar_select %p749, %s39, 1
        %p751 = scmp.lt.s32.totalorder %s40, 3
        %s752 = scalar_select %p751, %s40, 3
        %s753 = smul.addr %s750, 4
        %s754 = sadd.s32 %s752, %s753
        %s755 = scalar_lea.vmem %s1, %s754
        %p756 = pneg %p91
        %p757 = pneg %p88
        %s758 = sand.u32 %s106, 1
        %s759 = scalar_lea.sflag [#allocation6], %s758
        %s760 = sand.u32 %s106, 1
        %s761 = scalar_lea.vmem [#allocation9], %s760
        %p762 = pneg %p119
        %p763 = pneg %p116
        %s764 = sand.u32 %s134, 1
        %s765 = sand.u32 %s134, 1
        %s766 = smul.addr %s765, 96
        %s767 = scalar_lea.vmem [#allocation10], %s766
        %p768 = pneg %p147
        %p769 = pneg %p144
        %s770 = sand.u32 %s35, 1
        %s771 = scalar_lea.sflag [#allocation12], %s770
        %s772 = sand.u32 %s162, 1
        %s773 = smul.addr %s772, 96
        %s774 = scalar_lea.vmem [#allocation11], %s773
        %p775 = pneg %p175
        %p776 = pneg %p172
        %s777 = sand.u32 %s190, 1
        %s778 = sand.u32 %s190, 1
        %s779 = smul.addr %s778, 32
        %s780 = scalar_lea.vmem [#allocation13], %s779
        %p781 = pneg %p203
        %p782 = pneg %p200
        %s783 = sand.u32 %s35, 1
        %s784 = scalar_lea.sflag [#allocation12], %s783
        %s785 = sand.u32 %s218, 1
        %s786 = smul.addr %s785, 96
        %s787 = scalar_lea.vmem [#allocation14], %s786
        %p788 = pneg %p231
        %p789 = pneg %p228
        %s790 = sand.u32 %s35, 1
        %s791 = scalar_lea.sflag [#allocation16], %s790
        %s792 = sand.u32 %s246, 1
        %s793 = smul.addr %s792, 96
        %s794 = scalar_lea.vmem [#allocation15], %s793
        %p795 = pneg %p259
        %p796 = pneg %p256
        %s797 = sand.u32 %s35, 1
        %s798 = scalar_lea.sflag [#allocation16], %s797
        %s799 = sand.u32 %s274, 1
        %s800 = smul.addr %s799, 32
        %s801 = scalar_lea.vmem [#allocation17], %s800
        %p802 = pneg %p287
        %p803 = pneg %p284
        %p804 = scmp.lt.s32.totalorder %s39, 1
        %s805 = scalar_select %p804, %s39, 1
        %s806 = smul.addr %s805, 4
        %s807 = smul.addr %s806, 8
        %s808 = scalar_lea.vmem %s9, %s807
        %p809 = pneg %p313
        %p810 = pneg %p310
        %s811 = smul.u32 16, %s40
        %p812 = scmp.lt.s32.totalorder %s39, 1
        %s813 = scalar_select %p812, %s39, 1
        %p814 = scmp.lt.s32.totalorder %s811, 63
        %s815 = scalar_select %p814, %s811, 63
        %s816 = smul.addr %s813, 64
        %s817 = sadd.s32 %s815, %s816
        %s818 = smul.addr %s817, 8
        %s819 = scalar_lea.vmem %s10, %s818
        %p820 = pneg %p341
        %p821 = pneg %p338
        %p822 = pneg %p367
        %p823 = pneg %p364
        %s824 = sand.u32 %s354, 1
        %s825 = scalar_lea.sflag [#allocation7], %s824
        %s826 = sand.u32 %s354, 1
        %s827 = scalar_lea.vmem [#allocation18], %s826
        %p828 = scmp.lt.s32.totalorder %s39, 1
        %s829 = scalar_select %p828, %s39, 1
        %p830 = scmp.lt.s32.totalorder %s40, 3
        %s831 = scalar_select %p830, %s40, 3
        %s832 = smul.addr %s829, 4
        %s833 = sadd.s32 %s831, %s832
        %s834 = scalar_lea.vmem %s1, %s833
        %p835 = scmp.lt.s32.totalorder %s39, 1
        %s836 = scalar_select %p835, %s39, 1
        %s837 = smul.addr %s836, 4
        %s838 = smul.addr %s837, 8
        %s839 = scalar_lea.vmem %s9, %s838
        %s840 = smul.u32 16, %s40
        %p841 = scmp.lt.s32.totalorder %s39, 1
        %s842 = scalar_select %p841, %s39, 1
        %p843 = scmp.lt.s32.totalorder %s840, 63
        %s844 = scalar_select %p843, %s840, 63
        %s845 = smul.addr %s842, 64
        %s846 = sadd.s32 %s844, %s845
        %s847 = smul.addr %s846, 8
        %s848 = scalar_lea.vmem %s10, %s847
        %s849 = smul.u32 16, %s40
        %p850 = scmp.eq.s32.totalorder %s40, 0
        // Predicated region
        $region165: #{tpu_custom_call.1} parent=131 // pred_check
          %p851 = pneg %p850
        $region166: #{tpu_custom_call.1} parent=131 // pred_check_branch
          %853 = sbr.rel (%p851) target = $region168
        $region167: #{tpu_custom_call.1} parent=131 // pred_region
          %854 = vst [vmem:[#allocation2] sm:$0x1] 0.0
          %855 = vst [vmem:[#allocation3] sm:$0x1] 0.0
          %vm856 = vcmask 7168
          %857 = vst.msk [vmem:[#allocation4] sm:$0xff] %vm856, 0.0
          %858 = vst.msk [vmem:[#allocation4 + $0x8] sm:$0xff] %vm856, 0.0
          %859 = vst.msk [vmem:[#allocation4 + $0x10] sm:$0xff] %vm856, 0.0
          %860 = vst.msk [vmem:[#allocation4 + $0x18] sm:$0xff] %vm856, 0.0
          %861 = vst.msk [vmem:[#allocation4 + $0x20] sm:$0xff] %vm856, 0.0
          %862 = vst.msk [vmem:[#allocation4 + $0x28] sm:$0xff] %vm856, 0.0
          %863 = vst.msk [vmem:[#allocation4 + $0x30] sm:$0xff] %vm856, 0.0
          %864 = vst.msk [vmem:[#allocation4 + $0x38] sm:$0xff] %vm856, 0.0
          %865 = vst.msk [vmem:[#allocation4 + $0x40] sm:$0xff] %vm856, 0.0
          %866 = vst.msk [vmem:[#allocation4 + $0x48] sm:$0xff] %vm856, 0.0
          %867 = vst.msk [vmem:[#allocation4 + $0x50] sm:$0xff] %vm856, 0.0
          %868 = vst.msk [vmem:[#allocation4 + $0x58] sm:$0xff] %vm856, 0.0
          %869 = vst.msk [vmem:[#allocation4 + $0x60] sm:$0xff] %vm856, 0.0
          %870 = vst.msk [vmem:[#allocation4 + $0x68] sm:$0xff] %vm856, 0.0
          %871 = vst.msk [vmem:[#allocation4 + $0x70] sm:$0xff] %vm856, 0.0
          %872 = vst.msk [vmem:[#allocation4 + $0x78] sm:$0xff] %vm856, 0.0
        $region168: #{tpu_custom_call.1} parent=131 // pred_fallthru
          _
        %s873 = smul.u32 %s39, 4
        %s874 = sld [smem:[#allocation5 + %s873]]
        %s875 = sadd.s32 %s873, 1
        %s876 = sld [smem:[#allocation5 + %s875]]
        %v877 = vld [vmem:[%s834] sm:$0x1]
        %v878 = vld [vmem:[%s691] sm:$0x1]
        %v879 = vstv %s874
        %v880 = vmul.f32 %v879, %v878
        %v881 = vld [vmem:[%s715] sm:$0xff]
        %v882 = vld [vmem:[%s715 + $0x8] sm:$0xff]
        %v883 = vld [vmem:[%s715 + $0x10] sm:$0xff]
        %v884 = vld [vmem:[%s715 + $0x18] sm:$0xff]
        %v885 = vld [vmem:[%s699] sm:$0xff]
        %v886 = vld [vmem:[%s699 + $0x8] sm:$0xff]
        %v887 = vld [vmem:[%s699 + $0x10] sm:$0xff]
        %v888 = vld [vmem:[%s699 + $0x18] sm:$0xff]
        %s889 = scalar_lea.vmem %s699, 32 [#allocation10]
        %v890 = vld [vmem:[%s889] sm:$0xff]
        %v891 = vld [vmem:[%s889 + $0x8] sm:$0xff]
        %v892 = vld [vmem:[%s889 + $0x10] sm:$0xff]
        %v893 = vld [vmem:[%s889 + $0x18] sm:$0xff]
        %s894 = scalar_lea.vmem %s699, 64 [#allocation10]
        %v895 = vld [vmem:[%s894] sm:$0xff]
        %v896 = vld [vmem:[%s894 + $0x8] sm:$0xff]
        %v897 = vld [vmem:[%s894 + $0x10] sm:$0xff]
        %v898 = vld [vmem:[%s894 + $0x18] sm:$0xff]
        %v899 = vld [vmem:[%s707] sm:$0xff]
        %v900 = vld [vmem:[%s707 + $0x8] sm:$0xff]
        %v901 = vld [vmem:[%s707 + $0x10] sm:$0xff]
        %v902 = vld [vmem:[%s707 + $0x18] sm:$0xff]
        %s903 = scalar_lea.vmem %s707, 32 [#allocation11]
        %v904 = vld [vmem:[%s903] sm:$0xff]
        %v905 = vld [vmem:[%s903 + $0x8] sm:$0xff]
        %v906 = vld [vmem:[%s903 + $0x10] sm:$0xff]
        %v907 = vld [vmem:[%s903 + $0x18] sm:$0xff]
        %s908 = scalar_lea.vmem %s707, 64 [#allocation11]
        %v909 = vld [vmem:[%s908] sm:$0xff]
        %v910 = vld [vmem:[%s908 + $0x8] sm:$0xff]
        %v911 = vld [vmem:[%s908 + $0x10] sm:$0xff]
        %v912 = vld [vmem:[%s908 + $0x18] sm:$0xff]
        %v913 = vmul.f32 %v881, %v885
        %v914 = vmul.f32 %v882, %v886
        %v915 = vmul.f32 %v883, %v887
        %v916 = vmul.f32 %v884, %v888
        %v917 = vmul.f32 %v881, %v890
        %v918 = vmul.f32 %v882, %v891
        %v919 = vmul.f32 %v883, %v892
        %v920 = vmul.f32 %v884, %v893
        %v921 = vmul.f32 %v881, %v895
        %v922 = vmul.f32 %v882, %v896
        %v923 = vmul.f32 %v883, %v897
        %v924 = vmul.f32 %v884, %v898
        %v925 = vadd.f32 %v881, %v882
        %v926 = vadd.f32 %v925, %v883
        %v927 = vadd.f32 %v926, %v884
        %v928 = vrot.slane %v927, 4
        %v929 = vadd.f32 %v927, %v928
        %v930 = vrot.slane %v929, 2
        %v931 = vadd.f32 %v929, %v930
        %v932 = vrot.slane %v931, 1
        %v933 = vadd.f32 %v931, %v932
        %v934 = vadd.f32 %v913, %v914
        %v935 = vadd.f32 %v934, %v915
        %v936 = vadd.f32 %v935, %v916
        %v937 = vrot.slane %v936, 4
        %v938 = vadd.f32 %v936, %v937
        %v939 = vrot.slane %v938, 2
        %v940 = vadd.f32 %v938, %v939
        %v941 = vrot.slane %v940, 1
        %v942 = vadd.f32 %v940, %v941
        %v943 = vadd.f32 %v917, %v918
        %v944 = vadd.f32 %v943, %v919
        %v945 = vadd.f32 %v944, %v920
        %v946 = vrot.slane %v945, 4
        %v947 = vadd.f32 %v945, %v946
        %v948 = vrot.slane %v947, 2
        %v949 = vadd.f32 %v947, %v948
        %v950 = vrot.slane %v949, 1
        %v951 = vadd.f32 %v949, %v950
        %v952 = vadd.f32 %v921, %v922
        %v953 = vadd.f32 %v952, %v923
        %v954 = vadd.f32 %v953, %v924
        %v955 = vrot.slane %v954, 4
        %v956 = vadd.f32 %v954, %v955
        %v957 = vrot.slane %v956, 2
        %v958 = vadd.f32 %v956, %v957
        %v959 = vrot.slane %v958, 1
        %v960 = vadd.f32 %v958, %v959
        %v961 = vmul.f32 %v913, %v885
        %v962 = vmul.f32 %v914, %v886
        %v963 = vmul.f32 %v915, %v887
        %v964 = vmul.f32 %v916, %v888
        %v965 = vmul.f32 %v917, %v890
        %v966 = vmul.f32 %v918, %v891
        %v967 = vmul.f32 %v919, %v892
        %v968 = vmul.f32 %v920, %v893
        %v969 = vadd.f32 %v961, %v965
        %v970 = vadd.f32 %v962, %v966
        %v971 = vadd.f32 %v963, %v967
        %v972 = vadd.f32 %v964, %v968
        %v973 = vmul.f32 %v921, %v895
        %v974 = vmul.f32 %v922, %v896
        %v975 = vmul.f32 %v923, %v897
        %v976 = vmul.f32 %v924, %v898
        %v977 = vadd.f32 %v969, %v973
        %v978 = vadd.f32 %v970, %v974
        %v979 = vadd.f32 %v971, %v975
        %v980 = vadd.f32 %v972, %v976
        %v981 = vadd.f32 %v977, %v978
        %v982 = vadd.f32 %v981, %v979
        %v983 = vadd.f32 %v982, %v980
        %v984 = vrot.slane %v983, 4
        %v985 = vadd.f32 %v983, %v984
        %v986 = vrot.slane %v985, 2
        %v987 = vadd.f32 %v985, %v986
        %v988 = vrot.slane %v987, 1
        %v989 = vadd.f32 %v987, %v988
        %v990 = vmul.f32 %v881, %v899
        %v991 = vmul.f32 %v882, %v900
        %v992 = vmul.f32 %v883, %v901
        %v993 = vmul.f32 %v884, %v902
        %v994 = vadd.f32 %v990, %v991
        %v995 = vadd.f32 %v994, %v992
        %v996 = vadd.f32 %v995, %v993
        %v997 = vrot.slane %v996, 4
        %v998 = vadd.f32 %v996, %v997
        %v999 = vrot.slane %v998, 2
        %v1000 = vadd.f32 %v998, %v999
        %v1001 = vrot.slane %v1000, 1
        %v1002 = vadd.f32 %v1000, %v1001
        %v1003 = vmul.f32 %v881, %v904
        %v1004 = vmul.f32 %v882, %v905
        %v1005 = vmul.f32 %v883, %v906
        %v1006 = vmul.f32 %v884, %v907
        %v1007 = vadd.f32 %v1003, %v1004
        %v1008 = vadd.f32 %v1007, %v1005
        %v1009 = vadd.f32 %v1008, %v1006
        %v1010 = vrot.slane %v1009, 4
        %v1011 = vadd.f32 %v1009, %v1010
        %v1012 = vrot.slane %v1011, 2
        %v1013 = vadd.f32 %v1011, %v1012
        %v1014 = vrot.slane %v1013, 1
        %v1015 = vadd.f32 %v1013, %v1014
        %v1016 = vmul.f32 %v881, %v909
        %v1017 = vmul.f32 %v882, %v910
        %v1018 = vmul.f32 %v883, %v911
        %v1019 = vmul.f32 %v884, %v912
        %v1020 = vadd.f32 %v1016, %v1017
        %v1021 = vadd.f32 %v1020, %v1018
        %v1022 = vadd.f32 %v1021, %v1019
        %v1023 = vrot.slane %v1022, 4
        %v1024 = vadd.f32 %v1022, %v1023
        %v1025 = vrot.slane %v1024, 2
        %v1026 = vadd.f32 %v1024, %v1025
        %v1027 = vrot.slane %v1026, 1
        %v1028 = vadd.f32 %v1026, %v1027
        %v1029 = vmul.f32 %v899, %v899
        %v1030 = vmul.f32 %v900, %v900
        %v1031 = vmul.f32 %v901, %v901
        %v1032 = vmul.f32 %v902, %v902
        %v1033 = vmul.f32 %v904, %v904
        %v1034 = vmul.f32 %v905, %v905
        %v1035 = vmul.f32 %v906, %v906
        %v1036 = vmul.f32 %v907, %v907
        %v1037 = vadd.f32 %v1029, %v1033
        %v1038 = vadd.f32 %v1030, %v1034
        %v1039 = vadd.f32 %v1031, %v1035
        %v1040 = vadd.f32 %v1032, %v1036
        %v1041 = vmul.f32 %v909, %v909
        %v1042 = vmul.f32 %v910, %v910
        %v1043 = vmul.f32 %v911, %v911
        %v1044 = vmul.f32 %v912, %v912
        %v1045 = vadd.f32 %v1037, %v1041
        %v1046 = vadd.f32 %v1038, %v1042
        %v1047 = vadd.f32 %v1039, %v1043
        %v1048 = vadd.f32 %v1040, %v1044
        %v1049 = vmul.f32 %v881, %v1045
        %v1050 = vmul.f32 %v882, %v1046
        %v1051 = vmul.f32 %v883, %v1047
        %v1052 = vmul.f32 %v884, %v1048
        %v1053 = vadd.f32 %v1049, %v1050
        %v1054 = vadd.f32 %v1053, %v1051
        %v1055 = vadd.f32 %v1054, %v1052
        %v1056 = vrot.slane %v1055, 4
        %v1057 = vadd.f32 %v1055, %v1056
        %v1058 = vrot.slane %v1057, 2
        %v1059 = vadd.f32 %v1057, %v1058
        %v1060 = vrot.slane %v1059, 1
        %v1061 = vadd.f32 %v1059, %v1060
        %v1062 = vmul.f32 %v913, %v899
        %v1063 = vmul.f32 %v914, %v900
        %v1064 = vmul.f32 %v915, %v901
        %v1065 = vmul.f32 %v916, %v902
        %v1066 = vadd.f32 %v1062, %v1063
        %v1067 = vadd.f32 %v1066, %v1064
        %v1068 = vadd.f32 %v1067, %v1065
        %v1069 = vrot.slane %v1068, 4
        %v1070 = vadd.f32 %v1068, %v1069
        %v1071 = vrot.slane %v1070, 2
        %v1072 = vadd.f32 %v1070, %v1071
        %v1073 = vrot.slane %v1072, 1
        %v1074 = vadd.f32 %v1072, %v1073
        %v1075 = vmul.f32 %v913, %v904
        %v1076 = vmul.f32 %v914, %v905
        %v1077 = vmul.f32 %v915, %v906
        %v1078 = vmul.f32 %v916, %v907
        %v1079 = vadd.f32 %v1075, %v1076
        %v1080 = vadd.f32 %v1079, %v1077
        %v1081 = vadd.f32 %v1080, %v1078
        %v1082 = vrot.slane %v1081, 4
        %v1083 = vadd.f32 %v1081, %v1082
        %v1084 = vrot.slane %v1083, 2
        %v1085 = vadd.f32 %v1083, %v1084
        %v1086 = vrot.slane %v1085, 1
        %v1087 = vadd.f32 %v1085, %v1086
        %v1088 = vmul.f32 %v913, %v909
        %v1089 = vmul.f32 %v914, %v910
        %v1090 = vmul.f32 %v915, %v911
        %v1091 = vmul.f32 %v916, %v912
        %v1092 = vadd.f32 %v1088, %v1089
        %v1093 = vadd.f32 %v1092, %v1090
        %v1094 = vadd.f32 %v1093, %v1091
        %v1095 = vrot.slane %v1094, 4
        %v1096 = vadd.f32 %v1094, %v1095
        %v1097 = vrot.slane %v1096, 2
        %v1098 = vadd.f32 %v1096, %v1097
        %v1099 = vrot.slane %v1098, 1
        %v1100 = vadd.f32 %v1098, %v1099
        %v1101 = vmul.f32 %v917, %v899
        %v1102 = vmul.f32 %v918, %v900
        %v1103 = vmul.f32 %v919, %v901
        %v1104 = vmul.f32 %v920, %v902
        %v1105 = vadd.f32 %v1101, %v1102
        %v1106 = vadd.f32 %v1105, %v1103
        %v1107 = vadd.f32 %v1106, %v1104
        %v1108 = vrot.slane %v1107, 4
        %v1109 = vadd.f32 %v1107, %v1108
        %v1110 = vrot.slane %v1109, 2
        %v1111 = vadd.f32 %v1109, %v1110
        %v1112 = vrot.slane %v1111, 1
        %v1113 = vadd.f32 %v1111, %v1112
        %v1114 = vmul.f32 %v917, %v904
        %v1115 = vmul.f32 %v918, %v905
        %v1116 = vmul.f32 %v919, %v906
        %v1117 = vmul.f32 %v920, %v907
        %v1118 = vadd.f32 %v1114, %v1115
        %v1119 = vadd.f32 %v1118, %v1116
        %v1120 = vadd.f32 %v1119, %v1117
        %v1121 = vrot.slane %v1120, 4
        %v1122 = vadd.f32 %v1120, %v1121
        %v1123 = vrot.slane %v1122, 2
        %v1124 = vadd.f32 %v1122, %v1123
        %v1125 = vrot.slane %v1124, 1
        %v1126 = vadd.f32 %v1124, %v1125
        %v1127 = vmul.f32 %v917, %v909
        %v1128 = vmul.f32 %v918, %v910
        %v1129 = vmul.f32 %v919, %v911
        %v1130 = vmul.f32 %v920, %v912
        %v1131 = vadd.f32 %v1127, %v1128
        %v1132 = vadd.f32 %v1131, %v1129
        %v1133 = vadd.f32 %v1132, %v1130
        %v1134 = vrot.slane %v1133, 4
        %v1135 = vadd.f32 %v1133, %v1134
        %v1136 = vrot.slane %v1135, 2
        %v1137 = vadd.f32 %v1135, %v1136
        %v1138 = vrot.slane %v1137, 1
        %v1139 = vadd.f32 %v1137, %v1138
        %v1140 = vmul.f32 %v921, %v899
        %v1141 = vmul.f32 %v922, %v900
        %v1142 = vmul.f32 %v923, %v901
        %v1143 = vmul.f32 %v924, %v902
        %v1144 = vadd.f32 %v1140, %v1141
        %v1145 = vadd.f32 %v1144, %v1142
        %v1146 = vadd.f32 %v1145, %v1143
        %v1147 = vrot.slane %v1146, 4
        %v1148 = vadd.f32 %v1146, %v1147
        %v1149 = vrot.slane %v1148, 2
        %v1150 = vadd.f32 %v1148, %v1149
        %v1151 = vrot.slane %v1150, 1
        %v1152 = vadd.f32 %v1150, %v1151
        %v1153 = vmul.f32 %v921, %v904
        %v1154 = vmul.f32 %v922, %v905
        %v1155 = vmul.f32 %v923, %v906
        %v1156 = vmul.f32 %v924, %v907
        %v1157 = vadd.f32 %v1153, %v1154
        %v1158 = vadd.f32 %v1157, %v1155
        %v1159 = vadd.f32 %v1158, %v1156
        %v1160 = vrot.slane %v1159, 4
        %v1161 = vadd.f32 %v1159, %v1160
        %v1162 = vrot.slane %v1161, 2
        %v1163 = vadd.f32 %v1161, %v1162
        %v1164 = vrot.slane %v1163, 1
        %v1165 = vadd.f32 %v1163, %v1164
        %v1166 = vmul.f32 %v921, %v909
        %v1167 = vmul.f32 %v922, %v910
        %v1168 = vmul.f32 %v923, %v911
        %v1169 = vmul.f32 %v924, %v912
        %v1170 = vadd.f32 %v1166, %v1167
        %v1171 = vadd.f32 %v1170, %v1168
        %v1172 = vadd.f32 %v1171, %v1169
        %v1173 = vrot.slane %v1172, 4
        %v1174 = vadd.f32 %v1172, %v1173
        %v1175 = vrot.slane %v1174, 2
        %v1176 = vadd.f32 %v1174, %v1175
        %v1177 = vrot.slane %v1176, 1
        %v1178 = vadd.f32 %v1176, %v1177
        %v1179 = vadd.f32 %v933, 1e-05
        %v1180 = vrcp.pop %v1179
        %v1181 = vmul.f32 1.0, %v1180
        %v1182 = vmul.f32 %v933, %v1181
        %v1183 = vsub.f32 2.0, %v1182
        %v1184 = vmul.f32 %v1181, %v1183
        %v1185 = vmul.f32 %v942, %v942
        %v1186 = vmul.f32 %v951, %v951
        %v1187 = vadd.f32 %v1185, %v1186
        %v1188 = vmul.f32 %v960, %v960
        %v1189 = vadd.f32 %v1187, %v1188
        %v1190 = vmul.f32 %v1184, %v1189
        %v1191 = vsub.f32 %v989, %v1190
        %v1192 = vmul.f32 %v1002, %v1002
        %v1193 = vmul.f32 %v1015, %v1015
        %v1194 = vadd.f32 %v1192, %v1193
        %v1195 = vmul.f32 %v1028, %v1028
        %v1196 = vadd.f32 %v1194, %v1195
        %v1197 = vmul.f32 %v1184, %v1196
        %v1198 = vsub.f32 %v1061, %v1197
        %v1199 = vmul.f32 %v1184, %v942
        %v1200 = vmul.f32 %v1199, %v1002
        %v1201 = vsub.f32 %v1074, %v1200
        %v1202 = vmul.f32 %v1199, %v1015
        %v1203 = vsub.f32 %v1087, %v1202
        %v1204 = vmul.f32 %v1199, %v1028
        %v1205 = vsub.f32 %v1100, %v1204
        %v1206 = vmul.f32 %v1184, %v951
        %v1207 = vmul.f32 %v1206, %v1002
        %v1208 = vsub.f32 %v1113, %v1207
        %v1209 = vmul.f32 %v1206, %v1015
        %v1210 = vsub.f32 %v1126, %v1209
        %v1211 = vmul.f32 %v1206, %v1028
        %v1212 = vsub.f32 %v1139, %v1211
        %v1213 = vmul.f32 %v1184, %v960
        %v1214 = vmul.f32 %v1213, %v1002
        %v1215 = vsub.f32 %v1152, %v1214
        %v1216 = vmul.f32 %v1213, %v1015
        %v1217 = vsub.f32 %v1165, %v1216
        %v1218 = vmul.f32 %v1213, %v1028
        %v1219 = vsub.f32 %v1178, %v1218
        %v1220 = vmul.f32 %v1201, %v1201
        %v1221 = vmul.f32 %v1210, %v1210
        %v1222 = vmul.f32 %v1219, %v1219
        %v1223 = vmul.f32 %v1203, %v1203
        %v1224 = vmul.f32 %v1208, %v1208
        %v1225 = vmul.f32 %v1205, %v1205
        %v1226 = vmul.f32 %v1215, %v1215
        %v1227 = vmul.f32 %v1212, %v1212
        %v1228 = vmul.f32 %v1217, %v1217
        %v1229 = vmul.f32 %v1212, %v1217
        %v1230 = vmul.f32 %v1210, %v1219
        %v1231 = vsub.f32 %v1229, %v1230
        %v1232 = vmul.f32 %v1231, 2.0
        %v1233 = vadd.f32 %v1221, %v1222
        %v1234 = vsub.f32 %v1233, %v1220
        %v1235 = vadd.f32 %v1234, %v1227
        %v1236 = vadd.f32 %v1235, %v1228
        %v1237 = vadd.f32 %v1220, %v1221
        %v1238 = vadd.f32 %v1237, %v1222
        %v1239 = vadd.f32 %v1238, %v1223
        %v1240 = vadd.f32 %v1239, %v1224
        %v1241 = vadd.f32 %v1240, %v1225
        %v1242 = vadd.f32 %v1241, %v1226
        %v1243 = vadd.f32 %v1242, %v1227
        %v1244 = vadd.f32 %v1243, %v1228
        %v1245 = vmul.f32 %v1244, -2.0
        %v1246 = vmul.f32 %v1201, %v1212
        %v1247 = vmul.f32 %v1246, %v1217
        %v1248 = vmul.f32 %v1210, %v1215
        %v1249 = vmul.f32 %v1248, %v1205
        %v1250 = vadd.f32 %v1247, %v1249
        %v1251 = vmul.f32 %v1219, %v1203
        %v1252 = vmul.f32 %v1251, %v1208
        %v1253 = vadd.f32 %v1250, %v1252
        %v1254 = vmul.f32 %v1201, %v1210
        %v1255 = vmul.f32 %v1254, %v1219
        %v1256 = vsub.f32 %v1253, %v1255
        %v1257 = vmul.f32 %v1212, %v1215
        %v1258 = vmul.f32 %v1257, %v1203
        %v1259 = vsub.f32 %v1256, %v1258
        %v1260 = vmul.f32 %v1217, %v1208
        %v1261 = vmul.f32 %v1260, %v1205
        %v1262 = vsub.f32 %v1259, %v1261
        %v1263 = vmul.f32 %v1262, 8.0
        %v1264 = vadd.f32 %v1205, %v1215
        %v1265 = vadd.f32 %v1212, %v1217
        %v1266 = vadd.f32 %v1203, %v1208
        %v1267 = vsub.f32 %v1212, %v1217
        %v1268 = vsub.f32 %v1205, %v1215
        %v1269 = vsub.f32 %v1203, %v1208
        %v1270 = vadd.f32 %v1201, %v1210
        %v1271 = vsub.f32 %v1201, %v1210
        %v1272 = vadd.f32 %v1223, %v1225
        %v1273 = vsub.f32 %v1272, %v1224
        %v1274 = vsub.f32 %v1273, %v1226
        %v1275 = vmul.f32 %v1274, %v1274
        %v1276 = vadd.f32 %v1236, %v1232
        %v1277 = vsub.f32 %v1236, %v1232
        %v1278 = vmul.f32 %v1276, %v1277
        %v1279 = vadd.f32 %v1275, %v1278
        %v1280 = vsub.f32 0.0, %v1264
        %v1281 = vmul.f32 %v1280, %v1267
        %v1282 = vsub.f32 %v1271, %v1219
        %v1283 = vmul.f32 %v1269, %v1282
        %v1284 = vadd.f32 %v1281, %v1283
        %v1285 = vsub.f32 0.0, %v1268
        %v1286 = vmul.f32 %v1285, %v1265
        %v1287 = vadd.f32 %v1271, %v1219
        %v1288 = vmul.f32 %v1269, %v1287
        %v1289 = vadd.f32 %v1286, %v1288
        %v1290 = vmul.f32 %v1284, %v1289
        %v1291 = vadd.f32 %v1279, %v1290
        %v1292 = vmul.f32 %v1280, %v1265
        %v1293 = vsub.f32 %v1270, %v1219
        %v1294 = vmul.f32 %v1266, %v1293
        %v1295 = vsub.f32 %v1292, %v1294
        %v1296 = vmul.f32 %v1285, %v1267
        %v1297 = vadd.f32 %v1270, %v1219
        %v1298 = vmul.f32 %v1266, %v1297
        %v1299 = vsub.f32 %v1296, %v1298
        %v1300 = vmul.f32 %v1295, %v1299
        %v1301 = vadd.f32 %v1291, %v1300
        %v1302 = vmul.f32 %v1266, %v1265
        %v1303 = vmul.f32 %v1264, %v1287
        %v1304 = vadd.f32 %v1302, %v1303
        %v1305 = vsub.f32 0.0, %v1269
        %v1306 = vmul.f32 %v1305, %v1267
        %v1307 = vmul.f32 %v1264, %v1297
        %v1308 = vadd.f32 %v1306, %v1307
        %v1309 = vmul.f32 %v1304, %v1308
        %v1310 = vadd.f32 %v1301, %v1309
        %v1311 = vmul.f32 %v1266, %v1267
        %v1312 = vmul.f32 %v1268, %v1282
        %v1313 = vadd.f32 %v1311, %v1312
        %v1314 = vmul.f32 %v1305, %v1265
        %v1315 = vmul.f32 %v1268, %v1293
        %v1316 = vadd.f32 %v1314, %v1315
        %v1317 = vmul.f32 %v1313, %v1316
        %v1318 = vadd.f32 %v1310, %v1317
        %v1319 = vadd.f32 %v1191, %v1198
        %v1320 = vmul.f32 %v1319, 0.5
        %v1321 = vmul.f32 %v1320, %v1320
        %v1322 = vadd.f32 %v1321, %v1245
        %v1323 = vmul.f32 %v1322, %v1320
        %v1324 = vadd.f32 %v1323, %v1263
        %v1325 = vmul.f32 %v1321, 2.0
        %v1326 = vmul.f32 %v1325, %v1320
        %v1327 = vadd.f32 %v1326, %v1323
        %v1328 = vadd.f32 %v1327, %v1324
        %v1329 = vmul.f32 %v1324, %v1320
        %v1330 = vadd.f32 %v1329, %v1318
        %v1331 = vadd.f32 %v1328, 1e-12
        %v1332 = vrcp.pop %v1331
        %v1333 = vmul.f32 %v1330, %v1332
        %v1334 = vsub.f32 %v1320, %v1333
        %v1335 = vmul.f32 %v1334, %v1334
        %v1336 = vadd.f32 %v1335, %v1245
        %v1337 = vmul.f32 %v1336, %v1334
        %v1338 = vadd.f32 %v1337, %v1263
        %v1339 = vmul.f32 %v1335, 2.0
        %v1340 = vmul.f32 %v1339, %v1334
        %v1341 = vadd.f32 %v1340, %v1337
        %v1342 = vadd.f32 %v1341, %v1338
        %v1343 = vmul.f32 %v1338, %v1334
        %v1344 = vadd.f32 %v1343, %v1318
        %v1345 = vadd.f32 %v1342, 1e-12
        %v1346 = vrcp.pop %v1345
        %v1347 = vmul.f32 %v1344, %v1346
        %v1348 = vsub.f32 %v1334, %v1347
        %v1349 = vmul.f32 %v1348, %v1348
        %v1350 = vadd.f32 %v1349, %v1245
        %v1351 = vmul.f32 %v1350, %v1348
        %v1352 = vadd.f32 %v1351, %v1263
        %v1353 = vmul.f32 %v1349, 2.0
        %v1354 = vmul.f32 %v1353, %v1348
        %v1355 = vadd.f32 %v1354, %v1351
        %v1356 = vadd.f32 %v1355, %v1352
        %v1357 = vmul.f32 %v1352, %v1348
        %v1358 = vadd.f32 %v1357, %v1318
        %v1359 = vadd.f32 %v1356, 1e-12
        %v1360 = vrcp.pop %v1359
        %v1361 = vmul.f32 %v1358, %v1360
        %v1362 = vsub.f32 %v1348, %v1361
        %v1363 = vmul.f32 %v1362, %v1362
        %v1364 = vadd.f32 %v1363, %v1245
        %v1365 = vmul.f32 %v1364, %v1362
        %v1366 = vadd.f32 %v1365, %v1263
        %v1367 = vmul.f32 %v1363, 2.0
        %v1368 = vmul.f32 %v1367, %v1362
        %v1369 = vadd.f32 %v1368, %v1365
        %v1370 = vadd.f32 %v1369, %v1366
        %v1371 = vmul.f32 %v1366, %v1362
        %v1372 = vadd.f32 %v1371, %v1318
        %v1373 = vadd.f32 %v1370, 1e-12
        %v1374 = vrcp.pop %v1373
        %v1375 = vmul.f32 %v1372, %v1374
        %v1376 = vsub.f32 %v1362, %v1375
        %v1377 = vmul.f32 %v1376, %v1376
        %v1378 = vadd.f32 %v1377, %v1245
        %v1379 = vmul.f32 %v1378, %v1376
        %v1380 = vadd.f32 %v1379, %v1263
        %v1381 = vmul.f32 %v1377, 2.0
        %v1382 = vmul.f32 %v1381, %v1376
        %v1383 = vadd.f32 %v1382, %v1379
        %v1384 = vadd.f32 %v1383, %v1380
        %v1385 = vmul.f32 %v1380, %v1376
        %v1386 = vadd.f32 %v1385, %v1318
        %v1387 = vadd.f32 %v1384, 1e-12
        %v1388 = vrcp.pop %v1387
        %v1389 = vmul.f32 %v1386, %v1388
        %v1390 = vsub.f32 %v1376, %v1389
        %v1391 = vmul.f32 %v1390, %v1390
        %v1392 = vadd.f32 %v1391, %v1245
        %v1393 = vmul.f32 %v1392, %v1390
        %v1394 = vadd.f32 %v1393, %v1263
        %v1395 = vmul.f32 %v1391, 2.0
        %v1396 = vmul.f32 %v1395, %v1390
        %v1397 = vadd.f32 %v1396, %v1393
        %v1398 = vadd.f32 %v1397, %v1394
        %v1399 = vmul.f32 %v1394, %v1390
        %v1400 = vadd.f32 %v1399, %v1318
        %v1401 = vadd.f32 %v1398, 1e-12
        %v1402 = vrcp.pop %v1401
        %v1403 = vmul.f32 %v1400, %v1402
        %v1404 = vsub.f32 %v1390, %v1403
        %v1405 = vmul.f32 %v1404, %v1404
        %v1406 = vadd.f32 %v1405, %v1245
        %v1407 = vmul.f32 %v1406, %v1404
        %v1408 = vadd.f32 %v1407, %v1263
        %v1409 = vmul.f32 %v1405, 2.0
        %v1410 = vmul.f32 %v1409, %v1404
        %v1411 = vadd.f32 %v1410, %v1407
        %v1412 = vadd.f32 %v1411, %v1408
        %v1413 = vmul.f32 %v1408, %v1404
        %v1414 = vadd.f32 %v1413, %v1318
        %v1415 = vadd.f32 %v1412, 1e-12
        %v1416 = vrcp.pop %v1415
        %v1417 = vmul.f32 %v1414, %v1416
        %v1418 = vsub.f32 %v1404, %v1417
        %v1419 = vmul.f32 %v1418, %v1418
        %v1420 = vadd.f32 %v1419, %v1245
        %v1421 = vmul.f32 %v1420, %v1418
        %v1422 = vadd.f32 %v1421, %v1263
        %v1423 = vmul.f32 %v1419, 2.0
        %v1424 = vmul.f32 %v1423, %v1418
        %v1425 = vadd.f32 %v1424, %v1421
        %v1426 = vadd.f32 %v1425, %v1422
        %v1427 = vmul.f32 %v1422, %v1418
        %v1428 = vadd.f32 %v1427, %v1318
        %v1429 = vadd.f32 %v1426, 1e-12
        %v1430 = vrcp.pop %v1429
        %v1431 = vmul.f32 %v1428, %v1430
        %v1432 = vsub.f32 %v1418, %v1431
        %v1433 = vmul.f32 %v1432, %v1432
        %v1434 = vadd.f32 %v1433, %v1245
        %v1435 = vmul.f32 %v1434, %v1432
        %v1436 = vadd.f32 %v1435, %v1263
        %v1437 = vmul.f32 %v1433, 2.0
        %v1438 = vmul.f32 %v1437, %v1432
        %v1439 = vadd.f32 %v1438, %v1435
        %v1440 = vadd.f32 %v1439, %v1436
        %v1441 = vmul.f32 %v1436, %v1432
        %v1442 = vadd.f32 %v1441, %v1318
        %v1443 = vadd.f32 %v1440, 1e-12
        %v1444 = vrcp.pop %v1443
        %v1445 = vmul.f32 %v1442, %v1444
        %v1446 = vsub.f32 %v1432, %v1445
        %v1447 = vmul.f32 %v1446, %v1446
        %v1448 = vadd.f32 %v1447, %v1245
        %v1449 = vmul.f32 %v1448, %v1446
        %v1450 = vadd.f32 %v1449, %v1263
        %v1451 = vmul.f32 %v1447, 2.0
        %v1452 = vmul.f32 %v1451, %v1446
        %v1453 = vadd.f32 %v1452, %v1449
        %v1454 = vadd.f32 %v1453, %v1450
        %v1455 = vmul.f32 %v1450, %v1446
        %v1456 = vadd.f32 %v1455, %v1318
        %v1457 = vadd.f32 %v1454, 1e-12
        %v1458 = vrcp.pop %v1457
        %v1459 = vmul.f32 %v1456, %v1458
        %v1460 = vsub.f32 %v1446, %v1459
        %v1461 = vsub.f32 %v1320, %v1460
        %v1462 = vmul.f32 %v1461, 2.0
        %v1463 = vmul.f32 %v1462, %v1181
        %v1464 = vmax.f32 %v1463, 0.0
        %v1465 = vadd.f32 %v1464, 1e-05
        %v1466 = vrsqrt.pop %v1465
        %v1467 = vmul.f32 %v1465, %v1466
        %vm1468 = vcmp.eq.f32.partialorder %v1465, inf
        %v1469 = vsel %vm1468, %v1465, %v1467
        %vm1470 = vcmp.eq.f32.partialorder %v1465, 0.0
        %v1471 = vand.u32 %v1465, 2147483648
        %v1472 = vsel %vm1470, %v1471, %v1469
        %v1473 = vmul.f32 %v1472, %v880
        %v1474 = vld [vmem:[#allocation2] sm:$0x1]
        %v1475 = vmul.f32 %v877, %v1473
        %v1476 = vmul.f32 %v1475, %v1473
        %v1477 = vadd.f32 %v1474, %v1476
        %1478 = vst [vmem:[#allocation2] sm:$0x1] %v1477
        %v1479 = vld [vmem:[%s741] sm:$0xff]
        %v1480 = vld [vmem:[%s741 + $0x8] sm:$0xff]
        %v1481 = vld [vmem:[%s741 + $0x10] sm:$0xff]
        %v1482 = vld [vmem:[%s741 + $0x18] sm:$0xff]
        %v1483 = vld [vmem:[%s723] sm:$0xff]
        %v1484 = vld [vmem:[%s723 + $0x8] sm:$0xff]
        %v1485 = vld [vmem:[%s723 + $0x10] sm:$0xff]
        %v1486 = vld [vmem:[%s723 + $0x18] sm:$0xff]
        %s1487 = scalar_lea.vmem %s723, 32 [#allocation14]
        %v1488 = vld [vmem:[%s1487] sm:$0xff]
        %v1489 = vld [vmem:[%s1487 + $0x8] sm:$0xff]
        %v1490 = vld [vmem:[%s1487 + $0x10] sm:$0xff]
        %v1491 = vld [vmem:[%s1487 + $0x18] sm:$0xff]
        %s1492 = scalar_lea.vmem %s723, 64 [#allocation14]
        %v1493 = vld [vmem:[%s1492] sm:$0xff]
        %v1494 = vld [vmem:[%s1492 + $0x8] sm:$0xff]
        %v1495 = vld [vmem:[%s1492 + $0x10] sm:$0xff]
        %v1496 = vld [vmem:[%s1492 + $0x18] sm:$0xff]
        %v1497 = vld [vmem:[%s732] sm:$0xff]
        %v1498 = vld [vmem:[%s732 + $0x8] sm:$0xff]
        %v1499 = vld [vmem:[%s732 + $0x10] sm:$0xff]
        %v1500 = vld [vmem:[%s732 + $0x18] sm:$0xff]
        %s1501 = scalar_lea.vmem %s732, 32 [#allocation15]
        %v1502 = vld [vmem:[%s1501] sm:$0xff]
        %v1503 = vld [vmem:[%s1501 + $0x8] sm:$0xff]
        %v1504 = vld [vmem:[%s1501 + $0x10] sm:$0xff]
        %v1505 = vld [vmem:[%s1501 + $0x18] sm:$0xff]
        %s1506 = scalar_lea.vmem %s732, 64 [#allocation15]
        %v1507 = vld [vmem:[%s1506] sm:$0xff]
        %v1508 = vld [vmem:[%s1506 + $0x8] sm:$0xff]
        %v1509 = vld [vmem:[%s1506 + $0x10] sm:$0xff]
        %v1510 = vld [vmem:[%s1506 + $0x18] sm:$0xff]
        %v1511 = vmul.f32 %v1479, %v1483
        %v1512 = vmul.f32 %v1480, %v1484
        %v1513 = vmul.f32 %v1481, %v1485
        %v1514 = vmul.f32 %v1482, %v1486
        %v1515 = vmul.f32 %v1479, %v1488
        %v1516 = vmul.f32 %v1480, %v1489
        %v1517 = vmul.f32 %v1481, %v1490
        %v1518 = vmul.f32 %v1482, %v1491
        %v1519 = vmul.f32 %v1479, %v1493
        %v1520 = vmul.f32 %v1480, %v1494
        %v1521 = vmul.f32 %v1481, %v1495
        %v1522 = vmul.f32 %v1482, %v1496
        %v1523 = vadd.f32 %v1479, %v1480
        %v1524 = vadd.f32 %v1523, %v1481
        %v1525 = vadd.f32 %v1524, %v1482
        %v1526 = vrot.slane %v1525, 4
        %v1527 = vadd.f32 %v1525, %v1526
        %v1528 = vrot.slane %v1527, 2
        %v1529 = vadd.f32 %v1527, %v1528
        %v1530 = vrot.slane %v1529, 1
        %v1531 = vadd.f32 %v1529, %v1530
        %v1532 = vadd.f32 %v1511, %v1512
        %v1533 = vadd.f32 %v1532, %v1513
        %v1534 = vadd.f32 %v1533, %v1514
        %v1535 = vrot.slane %v1534, 4
        %v1536 = vadd.f32 %v1534, %v1535
        %v1537 = vrot.slane %v1536, 2
        %v1538 = vadd.f32 %v1536, %v1537
        %v1539 = vrot.slane %v1538, 1
        %v1540 = vadd.f32 %v1538, %v1539
        %v1541 = vadd.f32 %v1515, %v1516
        %v1542 = vadd.f32 %v1541, %v1517
        %v1543 = vadd.f32 %v1542, %v1518
        %v1544 = vrot.slane %v1543, 4
        %v1545 = vadd.f32 %v1543, %v1544
        %v1546 = vrot.slane %v1545, 2
        %v1547 = vadd.f32 %v1545, %v1546
        %v1548 = vrot.slane %v1547, 1
        %v1549 = vadd.f32 %v1547, %v1548
        %v1550 = vadd.f32 %v1519, %v1520
        %v1551 = vadd.f32 %v1550, %v1521
        %v1552 = vadd.f32 %v1551, %v1522
        %v1553 = vrot.slane %v1552, 4
        %v1554 = vadd.f32 %v1552, %v1553
        %v1555 = vrot.slane %v1554, 2
        %v1556 = vadd.f32 %v1554, %v1555
        %v1557 = vrot.slane %v1556, 1
        %v1558 = vadd.f32 %v1556, %v1557
        %v1559 = vmul.f32 %v1511, %v1483
        %v1560 = vmul.f32 %v1512, %v1484
        %v1561 = vmul.f32 %v1513, %v1485
        %v1562 = vmul.f32 %v1514, %v1486
        %v1563 = vmul.f32 %v1515, %v1488
        %v1564 = vmul.f32 %v1516, %v1489
        %v1565 = vmul.f32 %v1517, %v1490
        %v1566 = vmul.f32 %v1518, %v1491
        %v1567 = vadd.f32 %v1559, %v1563
        %v1568 = vadd.f32 %v1560, %v1564
        %v1569 = vadd.f32 %v1561, %v1565
        %v1570 = vadd.f32 %v1562, %v1566
        %v1571 = vmul.f32 %v1519, %v1493
        %v1572 = vmul.f32 %v1520, %v1494
        %v1573 = vmul.f32 %v1521, %v1495
        %v1574 = vmul.f32 %v1522, %v1496
        %v1575 = vadd.f32 %v1567, %v1571
        %v1576 = vadd.f32 %v1568, %v1572
        %v1577 = vadd.f32 %v1569, %v1573
        %v1578 = vadd.f32 %v1570, %v1574
        %v1579 = vadd.f32 %v1575, %v1576
        %v1580 = vadd.f32 %v1579, %v1577
        %v1581 = vadd.f32 %v1580, %v1578
        %v1582 = vrot.slane %v1581, 4
        %v1583 = vadd.f32 %v1581, %v1582
        %v1584 = vrot.slane %v1583, 2
        %v1585 = vadd.f32 %v1583, %v1584
        %v1586 = vrot.slane %v1585, 1
        %v1587 = vadd.f32 %v1585, %v1586
        %v1588 = vmul.f32 %v1479, %v1497
        %v1589 = vmul.f32 %v1480, %v1498
        %v1590 = vmul.f32 %v1481, %v1499
        %v1591 = vmul.f32 %v1482, %v1500
        %v1592 = vadd.f32 %v1588, %v1589
        %v1593 = vadd.f32 %v1592, %v1590
        %v1594 = vadd.f32 %v1593, %v1591
        %v1595 = vrot.slane %v1594, 4
        %v1596 = vadd.f32 %v1594, %v1595
        %v1597 = vrot.slane %v1596, 2
        %v1598 = vadd.f32 %v1596, %v1597
        %v1599 = vrot.slane %v1598, 1
        %v1600 = vadd.f32 %v1598, %v1599
        %v1601 = vmul.f32 %v1479, %v1502
        %v1602 = vmul.f32 %v1480, %v1503
        %v1603 = vmul.f32 %v1481, %v1504
        %v1604 = vmul.f32 %v1482, %v1505
        %v1605 = vadd.f32 %v1601, %v1602
        %v1606 = vadd.f32 %v1605, %v1603
        %v1607 = vadd.f32 %v1606, %v1604
        %v1608 = vrot.slane %v1607, 4
        %v1609 = vadd.f32 %v1607, %v1608
        %v1610 = vrot.slane %v1609, 2
        %v1611 = vadd.f32 %v1609, %v1610
        %v1612 = vrot.slane %v1611, 1
        %v1613 = vadd.f32 %v1611, %v1612
        %v1614 = vmul.f32 %v1479, %v1507
        %v1615 = vmul.f32 %v1480, %v1508
        %v1616 = vmul.f32 %v1481, %v1509
        %v1617 = vmul.f32 %v1482, %v1510
        %v1618 = vadd.f32 %v1614, %v1615
        %v1619 = vadd.f32 %v1618, %v1616
        %v1620 = vadd.f32 %v1619, %v1617
        %v1621 = vrot.slane %v1620, 4
        %v1622 = vadd.f32 %v1620, %v1621
        %v1623 = vrot.slane %v1622, 2
        %v1624 = vadd.f32 %v1622, %v1623
        %v1625 = vrot.slane %v1624, 1
        %v1626 = vadd.f32 %v1624, %v1625
        %v1627 = vmul.f32 %v1497, %v1497
        %v1628 = vmul.f32 %v1498, %v1498
        %v1629 = vmul.f32 %v1499, %v1499
        %v1630 = vmul.f32 %v1500, %v1500
        %v1631 = vmul.f32 %v1502, %v1502
        %v1632 = vmul.f32 %v1503, %v1503
        %v1633 = vmul.f32 %v1504, %v1504
        %v1634 = vmul.f32 %v1505, %v1505
        %v1635 = vadd.f32 %v1627, %v1631
        %v1636 = vadd.f32 %v1628, %v1632
        %v1637 = vadd.f32 %v1629, %v1633
        %v1638 = vadd.f32 %v1630, %v1634
        %v1639 = vmul.f32 %v1507, %v1507
        %v1640 = vmul.f32 %v1508, %v1508
        %v1641 = vmul.f32 %v1509, %v1509
        %v1642 = vmul.f32 %v1510, %v1510
        %v1643 = vadd.f32 %v1635, %v1639
        %v1644 = vadd.f32 %v1636, %v1640
        %v1645 = vadd.f32 %v1637, %v1641
        %v1646 = vadd.f32 %v1638, %v1642
        %v1647 = vmul.f32 %v1479, %v1643
        %v1648 = vmul.f32 %v1480, %v1644
        %v1649 = vmul.f32 %v1481, %v1645
        %v1650 = vmul.f32 %v1482, %v1646
        %v1651 = vadd.f32 %v1647, %v1648
        %v1652 = vadd.f32 %v1651, %v1649
        %v1653 = vadd.f32 %v1652, %v1650
        %v1654 = vrot.slane %v1653, 4
        %v1655 = vadd.f32 %v1653, %v1654
        %v1656 = vrot.slane %v1655, 2
        %v1657 = vadd.f32 %v1655, %v1656
        %v1658 = vrot.slane %v1657, 1
        %v1659 = vadd.f32 %v1657, %v1658
        %v1660 = vmul.f32 %v1511, %v1497
        %v1661 = vmul.f32 %v1512, %v1498
        %v1662 = vmul.f32 %v1513, %v1499
        %v1663 = vmul.f32 %v1514, %v1500
        %v1664 = vadd.f32 %v1660, %v1661
        %v1665 = vadd.f32 %v1664, %v1662
        %v1666 = vadd.f32 %v1665, %v1663
        %v1667 = vrot.slane %v1666, 4
        %v1668 = vadd.f32 %v1666, %v1667
        %v1669 = vrot.slane %v1668, 2
        %v1670 = vadd.f32 %v1668, %v1669
        %v1671 = vrot.slane %v1670, 1
        %v1672 = vadd.f32 %v1670, %v1671
        %v1673 = vmul.f32 %v1511, %v1502
        %v1674 = vmul.f32 %v1512, %v1503
        %v1675 = vmul.f32 %v1513, %v1504
        %v1676 = vmul.f32 %v1514, %v1505
        %v1677 = vadd.f32 %v1673, %v1674
        %v1678 = vadd.f32 %v1677, %v1675
        %v1679 = vadd.f32 %v1678, %v1676
        %v1680 = vrot.slane %v1679, 4
        %v1681 = vadd.f32 %v1679, %v1680
        %v1682 = vrot.slane %v1681, 2
        %v1683 = vadd.f32 %v1681, %v1682
        %v1684 = vrot.slane %v1683, 1
        %v1685 = vadd.f32 %v1683, %v1684
        %v1686 = vmul.f32 %v1511, %v1507
        %v1687 = vmul.f32 %v1512, %v1508
        %v1688 = vmul.f32 %v1513, %v1509
        %v1689 = vmul.f32 %v1514, %v1510
        %v1690 = vadd.f32 %v1686, %v1687
        %v1691 = vadd.f32 %v1690, %v1688
        %v1692 = vadd.f32 %v1691, %v1689
        %v1693 = vrot.slane %v1692, 4
        %v1694 = vadd.f32 %v1692, %v1693
        %v1695 = vrot.slane %v1694, 2
        %v1696 = vadd.f32 %v1694, %v1695
        %v1697 = vrot.slane %v1696, 1
        %v1698 = vadd.f32 %v1696, %v1697
        %v1699 = vmul.f32 %v1515, %v1497
        %v1700 = vmul.f32 %v1516, %v1498
        %v1701 = vmul.f32 %v1517, %v1499
        %v1702 = vmul.f32 %v1518, %v1500
        %v1703 = vadd.f32 %v1699, %v1700
        %v1704 = vadd.f32 %v1703, %v1701
        %v1705 = vadd.f32 %v1704, %v1702
        %v1706 = vrot.slane %v1705, 4
        %v1707 = vadd.f32 %v1705, %v1706
        %v1708 = vrot.slane %v1707, 2
        %v1709 = vadd.f32 %v1707, %v1708
        %v1710 = vrot.slane %v1709, 1
        %v1711 = vadd.f32 %v1709, %v1710
        %v1712 = vmul.f32 %v1515, %v1502
        %v1713 = vmul.f32 %v1516, %v1503
        %v1714 = vmul.f32 %v1517, %v1504
        %v1715 = vmul.f32 %v1518, %v1505
        %v1716 = vadd.f32 %v1712, %v1713
        %v1717 = vadd.f32 %v1716, %v1714
        %v1718 = vadd.f32 %v1717, %v1715
        %v1719 = vrot.slane %v1718, 4
        %v1720 = vadd.f32 %v1718, %v1719
        %v1721 = vrot.slane %v1720, 2
        %v1722 = vadd.f32 %v1720, %v1721
        %v1723 = vrot.slane %v1722, 1
        %v1724 = vadd.f32 %v1722, %v1723
        %v1725 = vmul.f32 %v1515, %v1507
        %v1726 = vmul.f32 %v1516, %v1508
        %v1727 = vmul.f32 %v1517, %v1509
        %v1728 = vmul.f32 %v1518, %v1510
        %v1729 = vadd.f32 %v1725, %v1726
        %v1730 = vadd.f32 %v1729, %v1727
        %v1731 = vadd.f32 %v1730, %v1728
        %v1732 = vrot.slane %v1731, 4
        %v1733 = vadd.f32 %v1731, %v1732
        %v1734 = vrot.slane %v1733, 2
        %v1735 = vadd.f32 %v1733, %v1734
        %v1736 = vrot.slane %v1735, 1
        %v1737 = vadd.f32 %v1735, %v1736
        %v1738 = vmul.f32 %v1519, %v1497
        %v1739 = vmul.f32 %v1520, %v1498
        %v1740 = vmul.f32 %v1521, %v1499
        %v1741 = vmul.f32 %v1522, %v1500
        %v1742 = vadd.f32 %v1738, %v1739
        %v1743 = vadd.f32 %v1742, %v1740
        %v1744 = vadd.f32 %v1743, %v1741
        %v1745 = vrot.slane %v1744, 4
        %v1746 = vadd.f32 %v1744, %v1745
        %v1747 = vrot.slane %v1746, 2
        %v1748 = vadd.f32 %v1746, %v1747
        %v1749 = vrot.slane %v1748, 1
        %v1750 = vadd.f32 %v1748, %v1749
        %v1751 = vmul.f32 %v1519, %v1502
        %v1752 = vmul.f32 %v1520, %v1503
        %v1753 = vmul.f32 %v1521, %v1504
        %v1754 = vmul.f32 %v1522, %v1505
        %v1755 = vadd.f32 %v1751, %v1752
        %v1756 = vadd.f32 %v1755, %v1753
        %v1757 = vadd.f32 %v1756, %v1754
        %v1758 = vrot.slane %v1757, 4
        %v1759 = vadd.f32 %v1757, %v1758
        %v1760 = vrot.slane %v1759, 2
        %v1761 = vadd.f32 %v1759, %v1760
        %v1762 = vrot.slane %v1761, 1
        %v1763 = vadd.f32 %v1761, %v1762
        %v1764 = vmul.f32 %v1519, %v1507
        %v1765 = vmul.f32 %v1520, %v1508
        %v1766 = vmul.f32 %v1521, %v1509
        %v1767 = vmul.f32 %v1522, %v1510
        %v1768 = vadd.f32 %v1764, %v1765
        %v1769 = vadd.f32 %v1768, %v1766
        %v1770 = vadd.f32 %v1769, %v1767
        %v1771 = vrot.slane %v1770, 4
        %v1772 = vadd.f32 %v1770, %v1771
        %v1773 = vrot.slane %v1772, 2
        %v1774 = vadd.f32 %v1772, %v1773
        %v1775 = vrot.slane %v1774, 1
        %v1776 = vadd.f32 %v1774, %v1775
        %v1777 = vadd.f32 %v1531, 1e-05
        %v1778 = vrcp.pop %v1777
        %v1779 = vmul.f32 1.0, %v1778
        %v1780 = vmul.f32 %v1531, %v1779
        %v1781 = vsub.f32 2.0, %v1780
        %v1782 = vmul.f32 %v1779, %v1781
        %v1783 = vmul.f32 %v1540, %v1540
        %v1784 = vmul.f32 %v1549, %v1549
        %v1785 = vadd.f32 %v1783, %v1784
        %v1786 = vmul.f32 %v1558, %v1558
        %v1787 = vadd.f32 %v1785, %v1786
        %v1788 = vmul.f32 %v1782, %v1787
        %v1789 = vsub.f32 %v1587, %v1788
        %v1790 = vmul.f32 %v1600, %v1600
        %v1791 = vmul.f32 %v1613, %v1613
        %v1792 = vadd.f32 %v1790, %v1791
        %v1793 = vmul.f32 %v1626, %v1626
        %v1794 = vadd.f32 %v1792, %v1793
        %v1795 = vmul.f32 %v1782, %v1794
        %v1796 = vsub.f32 %v1659, %v1795
        %v1797 = vmul.f32 %v1782, %v1540
        %v1798 = vmul.f32 %v1797, %v1600
        %v1799 = vsub.f32 %v1672, %v1798
        %v1800 = vmul.f32 %v1797, %v1613
        %v1801 = vsub.f32 %v1685, %v1800
        %v1802 = vmul.f32 %v1797, %v1626
        %v1803 = vsub.f32 %v1698, %v1802
        %v1804 = vmul.f32 %v1782, %v1549
        %v1805 = vmul.f32 %v1804, %v1600
        %v1806 = vsub.f32 %v1711, %v1805
        %v1807 = vmul.f32 %v1804, %v1613
        %v1808 = vsub.f32 %v1724, %v1807
        %v1809 = vmul.f32 %v1804, %v1626
        %v1810 = vsub.f32 %v1737, %v1809
        %v1811 = vmul.f32 %v1782, %v1558
        %v1812 = vmul.f32 %v1811, %v1600
        %v1813 = vsub.f32 %v1750, %v1812
        %v1814 = vmul.f32 %v1811, %v1613
        %v1815 = vsub.f32 %v1763, %v1814
        %v1816 = vmul.f32 %v1811, %v1626
        %v1817 = vsub.f32 %v1776, %v1816
        %v1818 = vmul.f32 %v1799, %v1799
        %v1819 = vmul.f32 %v1808, %v1808
        %v1820 = vmul.f32 %v1817, %v1817
        %v1821 = vmul.f32 %v1801, %v1801
        %v1822 = vmul.f32 %v1806, %v1806
        %v1823 = vmul.f32 %v1803, %v1803
        %v1824 = vmul.f32 %v1813, %v1813
        %v1825 = vmul.f32 %v1810, %v1810
        %v1826 = vmul.f32 %v1815, %v1815
        %v1827 = vmul.f32 %v1810, %v1815
        %v1828 = vmul.f32 %v1808, %v1817
        %v1829 = vsub.f32 %v1827, %v1828
        %v1830 = vmul.f32 %v1829, 2.0
        %v1831 = vadd.f32 %v1819, %v1820
        %v1832 = vsub.f32 %v1831, %v1818
        %v1833 = vadd.f32 %v1832, %v1825
        %v1834 = vadd.f32 %v1833, %v1826
        %v1835 = vadd.f32 %v1818, %v1819
        %v1836 = vadd.f32 %v1835, %v1820
        %v1837 = vadd.f32 %v1836, %v1821
        %v1838 = vadd.f32 %v1837, %v1822
        %v1839 = vadd.f32 %v1838, %v1823
        %v1840 = vadd.f32 %v1839, %v1824
        %v1841 = vadd.f32 %v1840, %v1825
        %v1842 = vadd.f32 %v1841, %v1826
        %v1843 = vmul.f32 %v1842, -2.0
        %v1844 = vmul.f32 %v1799, %v1810
        %v1845 = vmul.f32 %v1844, %v1815
        %v1846 = vmul.f32 %v1808, %v1813
        %v1847 = vmul.f32 %v1846, %v1803
        %v1848 = vadd.f32 %v1845, %v1847
        %v1849 = vmul.f32 %v1817, %v1801
        %v1850 = vmul.f32 %v1849, %v1806
        %v1851 = vadd.f32 %v1848, %v1850
        %v1852 = vmul.f32 %v1799, %v1808
        %v1853 = vmul.f32 %v1852, %v1817
        %v1854 = vsub.f32 %v1851, %v1853
        %v1855 = vmul.f32 %v1810, %v1813
        %v1856 = vmul.f32 %v1855, %v1801
        %v1857 = vsub.f32 %v1854, %v1856
        %v1858 = vmul.f32 %v1815, %v1806
        %v1859 = vmul.f32 %v1858, %v1803
        %v1860 = vsub.f32 %v1857, %v1859
        %v1861 = vmul.f32 %v1860, 8.0
        %v1862 = vadd.f32 %v1803, %v1813
        %v1863 = vadd.f32 %v1810, %v1815
        %v1864 = vadd.f32 %v1801, %v1806
        %v1865 = vsub.f32 %v1810, %v1815
        %v1866 = vsub.f32 %v1803, %v1813
        %v1867 = vsub.f32 %v1801, %v1806
        %v1868 = vadd.f32 %v1799, %v1808
        %v1869 = vsub.f32 %v1799, %v1808
        %v1870 = vadd.f32 %v1821, %v1823
        %v1871 = vsub.f32 %v1870, %v1822
        %v1872 = vsub.f32 %v1871, %v1824
        %v1873 = vmul.f32 %v1872, %v1872
        %v1874 = vadd.f32 %v1834, %v1830
        %v1875 = vsub.f32 %v1834, %v1830
        %v1876 = vmul.f32 %v1874, %v1875
        %v1877 = vadd.f32 %v1873, %v1876
        %v1878 = vsub.f32 0.0, %v1862
        %v1879 = vmul.f32 %v1878, %v1865
        %v1880 = vsub.f32 %v1869, %v1817
        %v1881 = vmul.f32 %v1867, %v1880
        %v1882 = vadd.f32 %v1879, %v1881
        %v1883 = vsub.f32 0.0, %v1866
        %v1884 = vmul.f32 %v1883, %v1863
        %v1885 = vadd.f32 %v1869, %v1817
        %v1886 = vmul.f32 %v1867, %v1885
        %v1887 = vadd.f32 %v1884, %v1886
        %v1888 = vmul.f32 %v1882, %v1887
        %v1889 = vadd.f32 %v1877, %v1888
        %v1890 = vmul.f32 %v1878, %v1863
        %v1891 = vsub.f32 %v1868, %v1817
        %v1892 = vmul.f32 %v1864, %v1891
        %v1893 = vsub.f32 %v1890, %v1892
        %v1894 = vmul.f32 %v1883, %v1865
        %v1895 = vadd.f32 %v1868, %v1817
        %v1896 = vmul.f32 %v1864, %v1895
        %v1897 = vsub.f32 %v1894, %v1896
        %v1898 = vmul.f32 %v1893, %v1897
        %v1899 = vadd.f32 %v1889, %v1898
        %v1900 = vmul.f32 %v1864, %v1863
        %v1901 = vmul.f32 %v1862, %v1885
        %v1902 = vadd.f32 %v1900, %v1901
        %v1903 = vsub.f32 0.0, %v1867
        %v1904 = vmul.f32 %v1903, %v1865
        %v1905 = vmul.f32 %v1862, %v1895
        %v1906 = vadd.f32 %v1904, %v1905
        %v1907 = vmul.f32 %v1902, %v1906
        %v1908 = vadd.f32 %v1899, %v1907
        %v1909 = vmul.f32 %v1864, %v1865
        %v1910 = vmul.f32 %v1866, %v1880
        %v1911 = vadd.f32 %v1909, %v1910
        %v1912 = vmul.f32 %v1903, %v1863
        %v1913 = vmul.f32 %v1866, %v1891
        %v1914 = vadd.f32 %v1912, %v1913
        %v1915 = vmul.f32 %v1911, %v1914
        %v1916 = vadd.f32 %v1908, %v1915
        %v1917 = vadd.f32 %v1789, %v1796
        %v1918 = vmul.f32 %v1917, 0.5
        %v1919 = vmul.f32 %v1918, %v1918
        %v1920 = vadd.f32 %v1919, %v1843
        %v1921 = vmul.f32 %v1920, %v1918
        %v1922 = vadd.f32 %v1921, %v1861
        %v1923 = vmul.f32 %v1919, 2.0
        %v1924 = vmul.f32 %v1923, %v1918
        %v1925 = vadd.f32 %v1924, %v1921
        %v1926 = vadd.f32 %v1925, %v1922
        %v1927 = vmul.f32 %v1922, %v1918
        %v1928 = vadd.f32 %v1927, %v1916
        %v1929 = vadd.f32 %v1926, 1e-12
        %v1930 = vrcp.pop %v1929
        %v1931 = vmul.f32 %v1928, %v1930
        %v1932 = vsub.f32 %v1918, %v1931
        %v1933 = vmul.f32 %v1932, %v1932
        %v1934 = vadd.f32 %v1933, %v1843
        %v1935 = vmul.f32 %v1934, %v1932
        %v1936 = vadd.f32 %v1935, %v1861
        %v1937 = vmul.f32 %v1933, 2.0
        %v1938 = vmul.f32 %v1937, %v1932
        %v1939 = vadd.f32 %v1938, %v1935
        %v1940 = vadd.f32 %v1939, %v1936
        %v1941 = vmul.f32 %v1936, %v1932
        %v1942 = vadd.f32 %v1941, %v1916
        %v1943 = vadd.f32 %v1940, 1e-12
        %v1944 = vrcp.pop %v1943
        %v1945 = vmul.f32 %v1942, %v1944
        %v1946 = vsub.f32 %v1932, %v1945
        %v1947 = vmul.f32 %v1946, %v1946
        %v1948 = vadd.f32 %v1947, %v1843
        %v1949 = vmul.f32 %v1948, %v1946
        %v1950 = vadd.f32 %v1949, %v1861
        %v1951 = vmul.f32 %v1947, 2.0
        %v1952 = vmul.f32 %v1951, %v1946
        %v1953 = vadd.f32 %v1952, %v1949
        %v1954 = vadd.f32 %v1953, %v1950
        %v1955 = vmul.f32 %v1950, %v1946
        %v1956 = vadd.f32 %v1955, %v1916
        %v1957 = vadd.f32 %v1954, 1e-12
        %v1958 = vrcp.pop %v1957
        %v1959 = vmul.f32 %v1956, %v1958
        %v1960 = vsub.f32 %v1946, %v1959
        %v1961 = vmul.f32 %v1960, %v1960
        %v1962 = vadd.f32 %v1961, %v1843
        %v1963 = vmul.f32 %v1962, %v1960
        %v1964 = vadd.f32 %v1963, %v1861
        %v1965 = vmul.f32 %v1961, 2.0
        %v1966 = vmul.f32 %v1965, %v1960
        %v1967 = vadd.f32 %v1966, %v1963
        %v1968 = vadd.f32 %v1967, %v1964
        %v1969 = vmul.f32 %v1964, %v1960
        %v1970 = vadd.f32 %v1969, %v1916
        %v1971 = vadd.f32 %v1968, 1e-12
        %v1972 = vrcp.pop %v1971
        %v1973 = vmul.f32 %v1970, %v1972
        %v1974 = vsub.f32 %v1960, %v1973
        %v1975 = vmul.f32 %v1974, %v1974
        %v1976 = vadd.f32 %v1975, %v1843
        %v1977 = vmul.f32 %v1976, %v1974
        %v1978 = vadd.f32 %v1977, %v1861
        %v1979 = vmul.f32 %v1975, 2.0
        %v1980 = vmul.f32 %v1979, %v1974
        %v1981 = vadd.f32 %v1980, %v1977
        %v1982 = vadd.f32 %v1981, %v1978
        %v1983 = vmul.f32 %v1978, %v1974
        %v1984 = vadd.f32 %v1983, %v1916
        %v1985 = vadd.f32 %v1982, 1e-12
        %v1986 = vrcp.pop %v1985
        %v1987 = vmul.f32 %v1984, %v1986
        %v1988 = vsub.f32 %v1974, %v1987
        %v1989 = vmul.f32 %v1988, %v1988
        %v1990 = vadd.f32 %v1989, %v1843
        %v1991 = vmul.f32 %v1990, %v1988
        %v1992 = vadd.f32 %v1991, %v1861
        %v1993 = vmul.f32 %v1989, 2.0
        %v1994 = vmul.f32 %v1993, %v1988
        %v1995 = vadd.f32 %v1994, %v1991
        %v1996 = vadd.f32 %v1995, %v1992
        %v1997 = vmul.f32 %v1992, %v1988
        %v1998 = vadd.f32 %v1997, %v1916
        %v1999 = vadd.f32 %v1996, 1e-12
        %v2000 = vrcp.pop %v1999
        %v2001 = vmul.f32 %v1998, %v2000
        %v2002 = vsub.f32 %v1988, %v2001
        %v2003 = vmul.f32 %v2002, %v2002
        %v2004 = vadd.f32 %v2003, %v1843
        %v2005 = vmul.f32 %v2004, %v2002
        %v2006 = vadd.f32 %v2005, %v1861
        %v2007 = vmul.f32 %v2003, 2.0
        %v2008 = vmul.f32 %v2007, %v2002
        %v2009 = vadd.f32 %v2008, %v2005
        %v2010 = vadd.f32 %v2009, %v2006
        %v2011 = vmul.f32 %v2006, %v2002
        %v2012 = vadd.f32 %v2011, %v1916
        %v2013 = vadd.f32 %v2010, 1e-12
        %v2014 = vrcp.pop %v2013
        %v2015 = vmul.f32 %v2012, %v2014
        %v2016 = vsub.f32 %v2002, %v2015
        %v2017 = vmul.f32 %v2016, %v2016
        %v2018 = vadd.f32 %v2017, %v1843
        %v2019 = vmul.f32 %v2018, %v2016
        %v2020 = vadd.f32 %v2019, %v1861
        %v2021 = vmul.f32 %v2017, 2.0
        %v2022 = vmul.f32 %v2021, %v2016
        %v2023 = vadd.f32 %v2022, %v2019
        %v2024 = vadd.f32 %v2023, %v2020
        %v2025 = vmul.f32 %v2020, %v2016
        %v2026 = vadd.f32 %v2025, %v1916
        %v2027 = vadd.f32 %v2024, 1e-12
        %v2028 = vrcp.pop %v2027
        %v2029 = vmul.f32 %v2026, %v2028
        %v2030 = vsub.f32 %v2016, %v2029
        %v2031 = vmul.f32 %v2030, %v2030
        %v2032 = vadd.f32 %v2031, %v1843
        %v2033 = vmul.f32 %v2032, %v2030
        %v2034 = vadd.f32 %v2033, %v1861
        %v2035 = vmul.f32 %v2031, 2.0
        %v2036 = vmul.f32 %v2035, %v2030
        %v2037 = vadd.f32 %v2036, %v2033
        %v2038 = vadd.f32 %v2037, %v2034
        %v2039 = vmul.f32 %v2034, %v2030
        %v2040 = vadd.f32 %v2039, %v1916
        %v2041 = vadd.f32 %v2038, 1e-12
        %v2042 = vrcp.pop %v2041
        %v2043 = vmul.f32 %v2040, %v2042
        %v2044 = vsub.f32 %v2030, %v2043
        %v2045 = vmul.f32 %v2044, %v2044
        %v2046 = vadd.f32 %v2045, %v1843
        %v2047 = vmul.f32 %v2046, %v2044
        %v2048 = vadd.f32 %v2047, %v1861
        %v2049 = vmul.f32 %v2045, 2.0
        %v2050 = vmul.f32 %v2049, %v2044
        %v2051 = vadd.f32 %v2050, %v2047
        %v2052 = vadd.f32 %v2051, %v2048
        %v2053 = vmul.f32 %v2048, %v2044
        %v2054 = vadd.f32 %v2053, %v1916
        %v2055 = vadd.f32 %v2052, 1e-12
        %v2056 = vrcp.pop %v2055
        %v2057 = vmul.f32 %v2054, %v2056
        %v2058 = vsub.f32 %v2044, %v2057
        %v2059 = vsub.f32 %v1918, %v2058
        %v2060 = vmul.f32 %v2059, 2.0
        %v2061 = vmul.f32 %v2060, %v1779
        %v2062 = vmax.f32 %v2061, 0.0
        %v2063 = vadd.f32 %v2062, 1e-05
        %v2064 = vrsqrt.pop %v2063
        %v2065 = vmul.f32 %v2063, %v2064
        %vm2066 = vcmp.eq.f32.partialorder %v2063, inf
        %v2067 = vsel %vm2066, %v2063, %v2065
        %vm2068 = vcmp.eq.f32.partialorder %v2063, 0.0
        %v2069 = vand.u32 %v2063, 2147483648
        %v2070 = vsel %vm2068, %v2069, %v2067
        %v2071 = vmul.f32 %v2070, %v880
        %v2072 = vld [vmem:[#allocation3] sm:$0x1]
        %v2073 = vmul.f32 %v877, %v2071
        %v2074 = vmul.f32 %v2073, %v2071
        %v2075 = vadd.f32 %v2072, %v2074
        %2076 = vst [vmem:[#allocation3] sm:$0x1] %v2075
        %v2077 = vld [vmem:[%s848] sm:$0xff]
        %v2078 = vld [vmem:[%s848 + $0x8] sm:$0xff]
        %v2079 = vld [vmem:[%s848 + $0x10] sm:$0xff]
        %v2080 = vld [vmem:[%s848 + $0x18] sm:$0xff]
        %v2081 = vld [vmem:[%s848 + $0x20] sm:$0xff]
        %v2082 = vld [vmem:[%s848 + $0x28] sm:$0xff]
        %v2083 = vld [vmem:[%s848 + $0x30] sm:$0xff]
        %v2084 = vld [vmem:[%s848 + $0x38] sm:$0xff]
        %v2085 = vld [vmem:[%s848 + $0x40] sm:$0xff]
        %v2086 = vld [vmem:[%s848 + $0x48] sm:$0xff]
        %v2087 = vld [vmem:[%s848 + $0x50] sm:$0xff]
        %v2088 = vld [vmem:[%s848 + $0x58] sm:$0xff]
        %v2089 = vld [vmem:[%s848 + $0x60] sm:$0xff]
        %v2090 = vld [vmem:[%s848 + $0x68] sm:$0xff]
        %v2091 = vld [vmem:[%s848 + $0x70] sm:$0xff]
        %v2092 = vld [vmem:[%s848 + $0x78] sm:$0xff]
        %v2093 = vld [vmem:[%s839] sm:$0xff]
        %v2094 = vld [vmem:[%s839 + $0x8] sm:$0xff]
        %v2095 = vld [vmem:[%s839 + $0x10] sm:$0xff]
        %v2096 = vld [vmem:[%s839 + $0x18] sm:$0xff]
        %2098 = vset.pattern.permute.xlu0 0
        %2099 = vperm.xlu0 %2098, %v2077
        %v2100 = vpop.permute.xlu0 %2099
        %2103 = vset.pattern.permute.xlu0 0
        %2104 = vperm.xlu0 %2103, %v2078
        %v2105 = vpop.permute.xlu0 %2104
        %2108 = vset.pattern.permute.xlu0 0
        %2109 = vperm.xlu0 %2108, %v2079
        %v2110 = vpop.permute.xlu0 %2109
        %2113 = vset.pattern.permute.xlu0 0
        %2114 = vperm.xlu0 %2113, %v2080
        %v2115 = vpop.permute.xlu0 %2114
        %2118 = vset.pattern.permute.xlu0 0
        %2119 = vperm.xlu0 %2118, %v2081
        %v2120 = vpop.permute.xlu0 %2119
        %2123 = vset.pattern.permute.xlu0 0
        %2124 = vperm.xlu0 %2123, %v2082
        %v2125 = vpop.permute.xlu0 %2124
        %2128 = vset.pattern.permute.xlu0 0
        %2129 = vperm.xlu0 %2128, %v2083
        %v2130 = vpop.permute.xlu0 %2129
        %2133 = vset.pattern.permute.xlu0 0
        %2134 = vperm.xlu0 %2133, %v2084
        %v2135 = vpop.permute.xlu0 %2134
        %2138 = vset.pattern.permute.xlu0 0
        %2139 = vperm.xlu0 %2138, %v2085
        %v2140 = vpop.permute.xlu0 %2139
        %2143 = vset.pattern.permute.xlu0 0
        %2144 = vperm.xlu0 %2143, %v2086
        %v2145 = vpop.permute.xlu0 %2144
        %2148 = vset.pattern.permute.xlu0 0
        %2149 = vperm.xlu0 %2148, %v2087
        %v2150 = vpop.permute.xlu0 %2149
        %2153 = vset.pattern.permute.xlu0 0
        %2154 = vperm.xlu0 %2153, %v2088
        %v2155 = vpop.permute.xlu0 %2154
        %2158 = vset.pattern.permute.xlu0 0
        %2159 = vperm.xlu0 %2158, %v2089
        %v2160 = vpop.permute.xlu0 %2159
        %2163 = vset.pattern.permute.xlu0 0
        %2164 = vperm.xlu0 %2163, %v2090
        %v2165 = vpop.permute.xlu0 %2164
        %2168 = vset.pattern.permute.xlu0 0
        %2169 = vperm.xlu0 %2168, %v2091
        %v2170 = vpop.permute.xlu0 %2169
        %2173 = vset.pattern.permute.xlu0 0
        %2174 = vperm.xlu0 %2173, %v2092
        %v2175 = vpop.permute.xlu0 %2174
        %v2177 = vlaneseq
        %v2178 = vshrl.u32 %v2177, 7
        %v2179 = vsub.s32 0, %v2178
        %v2180 = vrot.slane %v2093, %v2179
        %v2181 = vlaneseq
        %v2182 = vshrl.u32 %v2181, 7
        %v2183 = vsub.s32 0, %v2182
        %v2184 = vrot.slane %v2094, %v2183
        %v2185 = vlaneseq
        %v2186 = vshrl.u32 %v2185, 7
        %v2187 = vsub.s32 0, %v2186
        %v2188 = vrot.slane %v2095, %v2187
        %v2189 = vlaneseq
        %v2190 = vshrl.u32 %v2189, 7
        %v2191 = vsub.s32 0, %v2190
        %v2192 = vrot.slane %v2096, %v2191
        %v2193 = vsub.f32 %v2100, %v2180
        %v2194 = vsub.f32 %v2100, %v2184
        %v2195 = vsub.f32 %v2100, %v2188
        %v2196 = vsub.f32 %v2100, %v2192
        %v2197 = vsub.f32 %v2105, %v2180
        %v2198 = vsub.f32 %v2105, %v2184
        %v2199 = vsub.f32 %v2105, %v2188
        %v2200 = vsub.f32 %v2105, %v2192
        %v2201 = vsub.f32 %v2110, %v2180
        %v2202 = vsub.f32 %v2110, %v2184
        %v2203 = vsub.f32 %v2110, %v2188
        %v2204 = vsub.f32 %v2110, %v2192
        %v2205 = vsub.f32 %v2115, %v2180
        %v2206 = vsub.f32 %v2115, %v2184
        %v2207 = vsub.f32 %v2115, %v2188
        %v2208 = vsub.f32 %v2115, %v2192
        %v2209 = vsub.f32 %v2120, %v2180
        %v2210 = vsub.f32 %v2120, %v2184
        %v2211 = vsub.f32 %v2120, %v2188
        %v2212 = vsub.f32 %v2120, %v2192
        %v2213 = vsub.f32 %v2125, %v2180
        %v2214 = vsub.f32 %v2125, %v2184
        %v2215 = vsub.f32 %v2125, %v2188
        %v2216 = vsub.f32 %v2125, %v2192
        %v2217 = vsub.f32 %v2130, %v2180
        %v2218 = vsub.f32 %v2130, %v2184
        %v2219 = vsub.f32 %v2130, %v2188
        %v2220 = vsub.f32 %v2130, %v2192
        %v2221 = vsub.f32 %v2135, %v2180
        %v2222 = vsub.f32 %v2135, %v2184
        %v2223 = vsub.f32 %v2135, %v2188
        %v2224 = vsub.f32 %v2135, %v2192
        %v2225 = vsub.f32 %v2140, %v2180
        %v2226 = vsub.f32 %v2140, %v2184
        %v2227 = vsub.f32 %v2140, %v2188
        %v2228 = vsub.f32 %v2140, %v2192
        %v2229 = vsub.f32 %v2145, %v2180
        %v2230 = vsub.f32 %v2145, %v2184
        %v2231 = vsub.f32 %v2145, %v2188
        %v2232 = vsub.f32 %v2145, %v2192
        %v2233 = vsub.f32 %v2150, %v2180
        %v2234 = vsub.f32 %v2150, %v2184
        %v2235 = vsub.f32 %v2150, %v2188
        %v2236 = vsub.f32 %v2150, %v2192
        %v2237 = vsub.f32 %v2155, %v2180
        %v2238 = vsub.f32 %v2155, %v2184
        %v2239 = vsub.f32 %v2155, %v2188
        %v2240 = vsub.f32 %v2155, %v2192
        %v2241 = vsub.f32 %v2160, %v2180
        %v2242 = vsub.f32 %v2160, %v2184
        %v2243 = vsub.f32 %v2160, %v2188
        %v2244 = vsub.f32 %v2160, %v2192
        %v2245 = vsub.f32 %v2165, %v2180
        %v2246 = vsub.f32 %v2165, %v2184
        %v2247 = vsub.f32 %v2165, %v2188
        %v2248 = vsub.f32 %v2165, %v2192
        %v2249 = vsub.f32 %v2170, %v2180
        %v2250 = vsub.f32 %v2170, %v2184
        %v2251 = vsub.f32 %v2170, %v2188
        %v2252 = vsub.f32 %v2170, %v2192
        %v2253 = vsub.f32 %v2175, %v2180
        %v2254 = vsub.f32 %v2175, %v2184
        %v2255 = vsub.f32 %v2175, %v2188
        %v2256 = vsub.f32 %v2175, %v2192
        %2257 = vset.pattern.permute.xlu0 1
        %2258 = vperm.xlu0 %2257, %v2077
        %v2259 = vpop.permute.xlu0 %2258
        %2261 = vset.pattern.permute.xlu0 1
        %2262 = vperm.xlu0 %2261, %v2078
        %v2263 = vpop.permute.xlu0 %2262
        %2265 = vset.pattern.permute.xlu0 1
        %2266 = vperm.xlu0 %2265, %v2079
        %v2267 = vpop.permute.xlu0 %2266
        %2269 = vset.pattern.permute.xlu0 1
        %2270 = vperm.xlu0 %2269, %v2080
        %v2271 = vpop.permute.xlu0 %2270
        %2273 = vset.pattern.permute.xlu0 1
        %2274 = vperm.xlu0 %2273, %v2081
        %v2275 = vpop.permute.xlu0 %2274
        %2277 = vset.pattern.permute.xlu0 1
        %2278 = vperm.xlu0 %2277, %v2082
        %v2279 = vpop.permute.xlu0 %2278
        %2281 = vset.pattern.permute.xlu0 1
        %2282 = vperm.xlu0 %2281, %v2083
        %v2283 = vpop.permute.xlu0 %2282
        %2285 = vset.pattern.permute.xlu0 1
        %2286 = vperm.xlu0 %2285, %v2084
        %v2287 = vpop.permute.xlu0 %2286
        %2289 = vset.pattern.permute.xlu0 1
        %2290 = vperm.xlu0 %2289, %v2085
        %v2291 = vpop.permute.xlu0 %2290
        %2293 = vset.pattern.permute.xlu0 1
        %2294 = vperm.xlu0 %2293, %v2086
        %v2295 = vpop.permute.xlu0 %2294
        %2297 = vset.pattern.permute.xlu0 1
        %2298 = vperm.xlu0 %2297, %v2087
        %v2299 = vpop.permute.xlu0 %2298
        %2301 = vset.pattern.permute.xlu0 1
        %2302 = vperm.xlu0 %2301, %v2088
        %v2303 = vpop.permute.xlu0 %2302
        %2305 = vset.pattern.permute.xlu0 1
        %2306 = vperm.xlu0 %2305, %v2089
        %v2307 = vpop.permute.xlu0 %2306
        %2309 = vset.pattern.permute.xlu0 1
        %2310 = vperm.xlu0 %2309, %v2090
        %v2311 = vpop.permute.xlu0 %2310
        %2313 = vset.pattern.permute.xlu0 1
        %2314 = vperm.xlu0 %2313, %v2091
        %v2315 = vpop.permute.xlu0 %2314
        %2317 = vset.pattern.permute.xlu0 1
        %2318 = vperm.xlu0 %2317, %v2092
        %v2319 = vpop.permute.xlu0 %2318
        %v2321 = vlaneseq
        %v2322 = vshrl.u32 %v2321, 7
        %v2323 = vsub.s32 1, %v2322
        %v2324 = vrot.slane %v2093, %v2323
        %v2325 = vlaneseq
        %v2326 = vshrl.u32 %v2325, 7
        %v2327 = vsub.s32 1, %v2326
        %v2328 = vrot.slane %v2094, %v2327
        %v2329 = vlaneseq
        %v2330 = vshrl.u32 %v2329, 7
        %v2331 = vsub.s32 1, %v2330
        %v2332 = vrot.slane %v2095, %v2331
        %v2333 = vlaneseq
        %v2334 = vshrl.u32 %v2333, 7
        %v2335 = vsub.s32 1, %v2334
        %v2336 = vrot.slane %v2096, %v2335
        %v2337 = vsub.f32 %v2259, %v2324
        %v2338 = vsub.f32 %v2259, %v2328
        %v2339 = vsub.f32 %v2259, %v2332
        %v2340 = vsub.f32 %v2259, %v2336
        %v2341 = vsub.f32 %v2263, %v2324
        %v2342 = vsub.f32 %v2263, %v2328
        %v2343 = vsub.f32 %v2263, %v2332
        %v2344 = vsub.f32 %v2263, %v2336
        %v2345 = vsub.f32 %v2267, %v2324
        %v2346 = vsub.f32 %v2267, %v2328
        %v2347 = vsub.f32 %v2267, %v2332
        %v2348 = vsub.f32 %v2267, %v2336
        %v2349 = vsub.f32 %v2271, %v2324
        %v2350 = vsub.f32 %v2271, %v2328
        %v2351 = vsub.f32 %v2271, %v2332
        %v2352 = vsub.f32 %v2271, %v2336
        %v2353 = vsub.f32 %v2275, %v2324
        %v2354 = vsub.f32 %v2275, %v2328
        %v2355 = vsub.f32 %v2275, %v2332
        %v2356 = vsub.f32 %v2275, %v2336
        %v2357 = vsub.f32 %v2279, %v2324
        %v2358 = vsub.f32 %v2279, %v2328
        %v2359 = vsub.f32 %v2279, %v2332
        %v2360 = vsub.f32 %v2279, %v2336
        %v2361 = vsub.f32 %v2283, %v2324
        %v2362 = vsub.f32 %v2283, %v2328
        %v2363 = vsub.f32 %v2283, %v2332
        %v2364 = vsub.f32 %v2283, %v2336
        %v2365 = vsub.f32 %v2287, %v2324
        %v2366 = vsub.f32 %v2287, %v2328
        %v2367 = vsub.f32 %v2287, %v2332
        %v2368 = vsub.f32 %v2287, %v2336
        %v2369 = vsub.f32 %v2291, %v2324
        %v2370 = vsub.f32 %v2291, %v2328
        %v2371 = vsub.f32 %v2291, %v2332
        %v2372 = vsub.f32 %v2291, %v2336
        %v2373 = vsub.f32 %v2295, %v2324
        %v2374 = vsub.f32 %v2295, %v2328
        %v2375 = vsub.f32 %v2295, %v2332
        %v2376 = vsub.f32 %v2295, %v2336
        %v2377 = vsub.f32 %v2299, %v2324
        %v2378 = vsub.f32 %v2299, %v2328
        %v2379 = vsub.f32 %v2299, %v2332
        %v2380 = vsub.f32 %v2299, %v2336
        %v2381 = vsub.f32 %v2303, %v2324
        %v2382 = vsub.f32 %v2303, %v2328
        %v2383 = vsub.f32 %v2303, %v2332
        %v2384 = vsub.f32 %v2303, %v2336
        %v2385 = vsub.f32 %v2307, %v2324
        %v2386 = vsub.f32 %v2307, %v2328
        %v2387 = vsub.f32 %v2307, %v2332
        %v2388 = vsub.f32 %v2307, %v2336
        %v2389 = vsub.f32 %v2311, %v2324
        %v2390 = vsub.f32 %v2311, %v2328
        %v2391 = vsub.f32 %v2311, %v2332
        %v2392 = vsub.f32 %v2311, %v2336
        %v2393 = vsub.f32 %v2315, %v2324
        %v2394 = vsub.f32 %v2315, %v2328
        %v2395 = vsub.f32 %v2315, %v2332
        %v2396 = vsub.f32 %v2315, %v2336
        %v2397 = vsub.f32 %v2319, %v2324
        %v2398 = vsub.f32 %v2319, %v2328
        %v2399 = vsub.f32 %v2319, %v2332
        %v2400 = vsub.f32 %v2319, %v2336
        %2401 = vset.pattern.permute.xlu0 2
        %2402 = vperm.xlu0 %2401, %v2077
        %v2403 = vpop.permute.xlu0 %2402
        %2405 = vset.pattern.permute.xlu0 2
        %2406 = vperm.xlu0 %2405, %v2078
        %v2407 = vpop.permute.xlu0 %2406
        %2409 = vset.pattern.permute.xlu0 2
        %2410 = vperm.xlu0 %2409, %v2079
        %v2411 = vpop.permute.xlu0 %2410
        %2413 = vset.pattern.permute.xlu0 2
        %2414 = vperm.xlu0 %2413, %v2080
        %v2415 = vpop.permute.xlu0 %2414
        %2417 = vset.pattern.permute.xlu0 2
        %2418 = vperm.xlu0 %2417, %v2081
        %v2419 = vpop.permute.xlu0 %2418
        %2421 = vset.pattern.permute.xlu0 2
        %2422 = vperm.xlu0 %2421, %v2082
        %v2423 = vpop.permute.xlu0 %2422
        %2425 = vset.pattern.permute.xlu0 2
        %2426 = vperm.xlu0 %2425, %v2083
        %v2427 = vpop.permute.xlu0 %2426
        %2429 = vset.pattern.permute.xlu0 2
        %2430 = vperm.xlu0 %2429, %v2084
        %v2431 = vpop.permute.xlu0 %2430
        %2433 = vset.pattern.permute.xlu0 2
        %2434 = vperm.xlu0 %2433, %v2085
        %v2435 = vpop.permute.xlu0 %2434
        %2437 = vset.pattern.permute.xlu0 2
        %2438 = vperm.xlu0 %2437, %v2086
        %v2439 = vpop.permute.xlu0 %2438
        %2441 = vset.pattern.permute.xlu0 2
        %2442 = vperm.xlu0 %2441, %v2087
        %v2443 = vpop.permute.xlu0 %2442
        %2445 = vset.pattern.permute.xlu0 2
        %2446 = vperm.xlu0 %2445, %v2088
        %v2447 = vpop.permute.xlu0 %2446
        %2449 = vset.pattern.permute.xlu0 2
        %2450 = vperm.xlu0 %2449, %v2089
        %v2451 = vpop.permute.xlu0 %2450
        %2453 = vset.pattern.permute.xlu0 2
        %2454 = vperm.xlu0 %2453, %v2090
        %v2455 = vpop.permute.xlu0 %2454
        %2457 = vset.pattern.permute.xlu0 2
        %2458 = vperm.xlu0 %2457, %v2091
        %v2459 = vpop.permute.xlu0 %2458
        %2461 = vset.pattern.permute.xlu0 2
        %2462 = vperm.xlu0 %2461, %v2092
        %v2463 = vpop.permute.xlu0 %2462
        %v2465 = vlaneseq
        %v2466 = vshrl.u32 %v2465, 7
        %v2467 = vsub.s32 2, %v2466
        %v2468 = vrot.slane %v2093, %v2467
        %v2469 = vlaneseq
        %v2470 = vshrl.u32 %v2469, 7
        %v2471 = vsub.s32 2, %v2470
        %v2472 = vrot.slane %v2094, %v2471
        %v2473 = vlaneseq
        %v2474 = vshrl.u32 %v2473, 7
        %v2475 = vsub.s32 2, %v2474
        %v2476 = vrot.slane %v2095, %v2475
        %v2477 = vlaneseq
        %v2478 = vshrl.u32 %v2477, 7
        %v2479 = vsub.s32 2, %v2478
        %v2480 = vrot.slane %v2096, %v2479
        %v2481 = vsub.f32 %v2403, %v2468
        %v2482 = vsub.f32 %v2403, %v2472
        %v2483 = vsub.f32 %v2403, %v2476
        %v2484 = vsub.f32 %v2403, %v2480
        %v2485 = vsub.f32 %v2407, %v2468
        %v2486 = vsub.f32 %v2407, %v2472
        %v2487 = vsub.f32 %v2407, %v2476
        %v2488 = vsub.f32 %v2407, %v2480
        %v2489 = vsub.f32 %v2411, %v2468
        %v2490 = vsub.f32 %v2411, %v2472
        %v2491 = vsub.f32 %v2411, %v2476
        %v2492 = vsub.f32 %v2411, %v2480
        %v2493 = vsub.f32 %v2415, %v2468
        %v2494 = vsub.f32 %v2415, %v2472
        %v2495 = vsub.f32 %v2415, %v2476
        %v2496 = vsub.f32 %v2415, %v2480
        %v2497 = vsub.f32 %v2419, %v2468
        %v2498 = vsub.f32 %v2419, %v2472
        %v2499 = vsub.f32 %v2419, %v2476
        %v2500 = vsub.f32 %v2419, %v2480
        %v2501 = vsub.f32 %v2423, %v2468
        %v2502 = vsub.f32 %v2423, %v2472
        %v2503 = vsub.f32 %v2423, %v2476
        %v2504 = vsub.f32 %v2423, %v2480
        %v2505 = vsub.f32 %v2427, %v2468
        %v2506 = vsub.f32 %v2427, %v2472
        %v2507 = vsub.f32 %v2427, %v2476
        %v2508 = vsub.f32 %v2427, %v2480
        %v2509 = vsub.f32 %v2431, %v2468
        %v2510 = vsub.f32 %v2431, %v2472
        %v2511 = vsub.f32 %v2431, %v2476
        %v2512 = vsub.f32 %v2431, %v2480
        %v2513 = vsub.f32 %v2435, %v2468
        %v2514 = vsub.f32 %v2435, %v2472
        %v2515 = vsub.f32 %v2435, %v2476
        %v2516 = vsub.f32 %v2435, %v2480
        %v2517 = vsub.f32 %v2439, %v2468
        %v2518 = vsub.f32 %v2439, %v2472
        %v2519 = vsub.f32 %v2439, %v2476
        %v2520 = vsub.f32 %v2439, %v2480
        %v2521 = vsub.f32 %v2443, %v2468
        %v2522 = vsub.f32 %v2443, %v2472
        %v2523 = vsub.f32 %v2443, %v2476
        %v2524 = vsub.f32 %v2443, %v2480
        %v2525 = vsub.f32 %v2447, %v2468
        %v2526 = vsub.f32 %v2447, %v2472
        %v2527 = vsub.f32 %v2447, %v2476
        %v2528 = vsub.f32 %v2447, %v2480
        %v2529 = vsub.f32 %v2451, %v2468
        %v2530 = vsub.f32 %v2451, %v2472
        %v2531 = vsub.f32 %v2451, %v2476
        %v2532 = vsub.f32 %v2451, %v2480
        %v2533 = vsub.f32 %v2455, %v2468
        %v2534 = vsub.f32 %v2455, %v2472
        %v2535 = vsub.f32 %v2455, %v2476
        %v2536 = vsub.f32 %v2455, %v2480
        %v2537 = vsub.f32 %v2459, %v2468
        %v2538 = vsub.f32 %v2459, %v2472
        %v2539 = vsub.f32 %v2459, %v2476
        %v2540 = vsub.f32 %v2459, %v2480
        %v2541 = vsub.f32 %v2463, %v2468
        %v2542 = vsub.f32 %v2463, %v2472
        %v2543 = vsub.f32 %v2463, %v2476
        %v2544 = vsub.f32 %v2463, %v2480
        %v2545 = vmul.f32 %v2193, %v2193
        %v2546 = vmul.f32 %v2194, %v2194
        %v2547 = vmul.f32 %v2195, %v2195
        %v2548 = vmul.f32 %v2196, %v2196
        %v2549 = vmul.f32 %v2197, %v2197
        %v2550 = vmul.f32 %v2198, %v2198
        %v2551 = vmul.f32 %v2199, %v2199
        %v2552 = vmul.f32 %v2200, %v2200
        %v2553 = vmul.f32 %v2201, %v2201
        %v2554 = vmul.f32 %v2202, %v2202
        %v2555 = vmul.f32 %v2203, %v2203
        %v2556 = vmul.f32 %v2204, %v2204
        %v2557 = vmul.f32 %v2205, %v2205
        %v2558 = vmul.f32 %v2206, %v2206
        %v2559 = vmul.f32 %v2207, %v2207
        %v2560 = vmul.f32 %v2208, %v2208
        %v2561 = vmul.f32 %v2209, %v2209
        %v2562 = vmul.f32 %v2210, %v2210
        %v2563 = vmul.f32 %v2211, %v2211
        %v2564 = vmul.f32 %v2212, %v2212
        %v2565 = vmul.f32 %v2213, %v2213
        %v2566 = vmul.f32 %v2214, %v2214
        %v2567 = vmul.f32 %v2215, %v2215
        %v2568 = vmul.f32 %v2216, %v2216
        %v2569 = vmul.f32 %v2217, %v2217
        %v2570 = vmul.f32 %v2218, %v2218
        %v2571 = vmul.f32 %v2219, %v2219
        %v2572 = vmul.f32 %v2220, %v2220
        %v2573 = vmul.f32 %v2221, %v2221
        %v2574 = vmul.f32 %v2222, %v2222
        %v2575 = vmul.f32 %v2223, %v2223
        %v2576 = vmul.f32 %v2224, %v2224
        %v2577 = vmul.f32 %v2225, %v2225
        %v2578 = vmul.f32 %v2226, %v2226
        %v2579 = vmul.f32 %v2227, %v2227
        %v2580 = vmul.f32 %v2228, %v2228
        %v2581 = vmul.f32 %v2229, %v2229
        %v2582 = vmul.f32 %v2230, %v2230
        %v2583 = vmul.f32 %v2231, %v2231
        %v2584 = vmul.f32 %v2232, %v2232
        %v2585 = vmul.f32 %v2233, %v2233
        %v2586 = vmul.f32 %v2234, %v2234
        %v2587 = vmul.f32 %v2235, %v2235
        %v2588 = vmul.f32 %v2236, %v2236
        %v2589 = vmul.f32 %v2237, %v2237
        %v2590 = vmul.f32 %v2238, %v2238
        %v2591 = vmul.f32 %v2239, %v2239
        %v2592 = vmul.f32 %v2240, %v2240
        %v2593 = vmul.f32 %v2241, %v2241
        %v2594 = vmul.f32 %v2242, %v2242
        %v2595 = vmul.f32 %v2243, %v2243
        %v2596 = vmul.f32 %v2244, %v2244
        %v2597 = vmul.f32 %v2245, %v2245
        %v2598 = vmul.f32 %v2246, %v2246
        %v2599 = vmul.f32 %v2247, %v2247
        %v2600 = vmul.f32 %v2248, %v2248
        %v2601 = vmul.f32 %v2249, %v2249
        %v2602 = vmul.f32 %v2250, %v2250
        %v2603 = vmul.f32 %v2251, %v2251
        %v2604 = vmul.f32 %v2252, %v2252
        %v2605 = vmul.f32 %v2253, %v2253
        %v2606 = vmul.f32 %v2254, %v2254
        %v2607 = vmul.f32 %v2255, %v2255
        %v2608 = vmul.f32 %v2256, %v2256
        %v2609 = vmul.f32 %v2337, %v2337
        %v2610 = vmul.f32 %v2338, %v2338
        %v2611 = vmul.f32 %v2339, %v2339
        %v2612 = vmul.f32 %v2340, %v2340
        %v2613 = vmul.f32 %v2341, %v2341
        %v2614 = vmul.f32 %v2342, %v2342
        %v2615 = vmul.f32 %v2343, %v2343
        %v2616 = vmul.f32 %v2344, %v2344
        %v2617 = vmul.f32 %v2345, %v2345
        %v2618 = vmul.f32 %v2346, %v2346
        %v2619 = vmul.f32 %v2347, %v2347
        %v2620 = vmul.f32 %v2348, %v2348
        %v2621 = vmul.f32 %v2349, %v2349
        %v2622 = vmul.f32 %v2350, %v2350
        %v2623 = vmul.f32 %v2351, %v2351
        %v2624 = vmul.f32 %v2352, %v2352
        %v2625 = vmul.f32 %v2353, %v2353
        %v2626 = vmul.f32 %v2354, %v2354
        %v2627 = vmul.f32 %v2355, %v2355
        %v2628 = vmul.f32 %v2356, %v2356
        %v2629 = vmul.f32 %v2357, %v2357
        %v2630 = vmul.f32 %v2358, %v2358
        %v2631 = vmul.f32 %v2359, %v2359
        %v2632 = vmul.f32 %v2360, %v2360
        %v2633 = vmul.f32 %v2361, %v2361
        %v2634 = vmul.f32 %v2362, %v2362
        %v2635 = vmul.f32 %v2363, %v2363
        %v2636 = vmul.f32 %v2364, %v2364
        %v2637 = vmul.f32 %v2365, %v2365
        %v2638 = vmul.f32 %v2366, %v2366
        %v2639 = vmul.f32 %v2367, %v2367
        %v2640 = vmul.f32 %v2368, %v2368
        %v2641 = vmul.f32 %v2369, %v2369
        %v2642 = vmul.f32 %v2370, %v2370
        %v2643 = vmul.f32 %v2371, %v2371
        %v2644 = vmul.f32 %v2372, %v2372
        %v2645 = vmul.f32 %v2373, %v2373
        %v2646 = vmul.f32 %v2374, %v2374
        %v2647 = vmul.f32 %v2375, %v2375
        %v2648 = vmul.f32 %v2376, %v2376
        %v2649 = vmul.f32 %v2377, %v2377
        %v2650 = vmul.f32 %v2378, %v2378
        %v2651 = vmul.f32 %v2379, %v2379
        %v2652 = vmul.f32 %v2380, %v2380
        %v2653 = vmul.f32 %v2381, %v2381
        %v2654 = vmul.f32 %v2382, %v2382
        %v2655 = vmul.f32 %v2383, %v2383
        %v2656 = vmul.f32 %v2384, %v2384
        %v2657 = vmul.f32 %v2385, %v2385
        %v2658 = vmul.f32 %v2386, %v2386
        %v2659 = vmul.f32 %v2387, %v2387
        %v2660 = vmul.f32 %v2388, %v2388
        %v2661 = vmul.f32 %v2389, %v2389
        %v2662 = vmul.f32 %v2390, %v2390
        %v2663 = vmul.f32 %v2391, %v2391
        %v2664 = vmul.f32 %v2392, %v2392
        %v2665 = vmul.f32 %v2393, %v2393
        %v2666 = vmul.f32 %v2394, %v2394
        %v2667 = vmul.f32 %v2395, %v2395
        %v2668 = vmul.f32 %v2396, %v2396
        %v2669 = vmul.f32 %v2397, %v2397
        %v2670 = vmul.f32 %v2398, %v2398
        %v2671 = vmul.f32 %v2399, %v2399
        %v2672 = vmul.f32 %v2400, %v2400
        %v2673 = vadd.f32 %v2545, %v2609
        %v2674 = vadd.f32 %v2546, %v2610
        %v2675 = vadd.f32 %v2547, %v2611
        %v2676 = vadd.f32 %v2548, %v2612
        %v2677 = vadd.f32 %v2549, %v2613
        %v2678 = vadd.f32 %v2550, %v2614
        %v2679 = vadd.f32 %v2551, %v2615
        %v2680 = vadd.f32 %v2552, %v2616
        %v2681 = vadd.f32 %v2553, %v2617
        %v2682 = vadd.f32 %v2554, %v2618
        %v2683 = vadd.f32 %v2555, %v2619
        %v2684 = vadd.f32 %v2556, %v2620
        %v2685 = vadd.f32 %v2557, %v2621
        %v2686 = vadd.f32 %v2558, %v2622
        %v2687 = vadd.f32 %v2559, %v2623
        %v2688 = vadd.f32 %v2560, %v2624
        %v2689 = vadd.f32 %v2561, %v2625
        %v2690 = vadd.f32 %v2562, %v2626
        %v2691 = vadd.f32 %v2563, %v2627
        %v2692 = vadd.f32 %v2564, %v2628
        %v2693 = vadd.f32 %v2565, %v2629
        %v2694 = vadd.f32 %v2566, %v2630
        %v2695 = vadd.f32 %v2567, %v2631
        %v2696 = vadd.f32 %v2568, %v2632
        %v2697 = vadd.f32 %v2569, %v2633
        %v2698 = vadd.f32 %v2570, %v2634
        %v2699 = vadd.f32 %v2571, %v2635
        %v2700 = vadd.f32 %v2572, %v2636
        %v2701 = vadd.f32 %v2573, %v2637
        %v2702 = vadd.f32 %v2574, %v2638
        %v2703 = vadd.f32 %v2575, %v2639
        %v2704 = vadd.f32 %v2576, %v2640
        %v2705 = vadd.f32 %v2577, %v2641
        %v2706 = vadd.f32 %v2578, %v2642
        %v2707 = vadd.f32 %v2579, %v2643
        %v2708 = vadd.f32 %v2580, %v2644
        %v2709 = vadd.f32 %v2581, %v2645
        %v2710 = vadd.f32 %v2582, %v2646
        %v2711 = vadd.f32 %v2583, %v2647
        %v2712 = vadd.f32 %v2584, %v2648
        %v2713 = vadd.f32 %v2585, %v2649
        %v2714 = vadd.f32 %v2586, %v2650
        %v2715 = vadd.f32 %v2587, %v2651
        %v2716 = vadd.f32 %v2588, %v2652
        %v2717 = vadd.f32 %v2589, %v2653
        %v2718 = vadd.f32 %v2590, %v2654
        %v2719 = vadd.f32 %v2591, %v2655
        %v2720 = vadd.f32 %v2592, %v2656
        %v2721 = vadd.f32 %v2593, %v2657
        %v2722 = vadd.f32 %v2594, %v2658
        %v2723 = vadd.f32 %v2595, %v2659
        %v2724 = vadd.f32 %v2596, %v2660
        %v2725 = vadd.f32 %v2597, %v2661
        %v2726 = vadd.f32 %v2598, %v2662
        %v2727 = vadd.f32 %v2599, %v2663
        %v2728 = vadd.f32 %v2600, %v2664
        %v2729 = vadd.f32 %v2601, %v2665
        %v2730 = vadd.f32 %v2602, %v2666
        %v2731 = vadd.f32 %v2603, %v2667
        %v2732 = vadd.f32 %v2604, %v2668
        %v2733 = vadd.f32 %v2605, %v2669
        %v2734 = vadd.f32 %v2606, %v2670
        %v2735 = vadd.f32 %v2607, %v2671
        %v2736 = vadd.f32 %v2608, %v2672
        %v2737 = vmul.f32 %v2481, %v2481
        %v2738 = vmul.f32 %v2482, %v2482
        %v2739 = vmul.f32 %v2483, %v2483
        %v2740 = vmul.f32 %v2484, %v2484
        %v2741 = vmul.f32 %v2485, %v2485
        %v2742 = vmul.f32 %v2486, %v2486
        %v2743 = vmul.f32 %v2487, %v2487
        %v2744 = vmul.f32 %v2488, %v2488
        %v2745 = vmul.f32 %v2489, %v2489
        %v2746 = vmul.f32 %v2490, %v2490
        %v2747 = vmul.f32 %v2491, %v2491
        %v2748 = vmul.f32 %v2492, %v2492
        %v2749 = vmul.f32 %v2493, %v2493
        %v2750 = vmul.f32 %v2494, %v2494
        %v2751 = vmul.f32 %v2495, %v2495
        %v2752 = vmul.f32 %v2496, %v2496
        %v2753 = vmul.f32 %v2497, %v2497
        %v2754 = vmul.f32 %v2498, %v2498
        %v2755 = vmul.f32 %v2499, %v2499
        %v2756 = vmul.f32 %v2500, %v2500
        %v2757 = vmul.f32 %v2501, %v2501
        %v2758 = vmul.f32 %v2502, %v2502
        %v2759 = vmul.f32 %v2503, %v2503
        %v2760 = vmul.f32 %v2504, %v2504
        %v2761 = vmul.f32 %v2505, %v2505
        %v2762 = vmul.f32 %v2506, %v2506
        %v2763 = vmul.f32 %v2507, %v2507
        %v2764 = vmul.f32 %v2508, %v2508
        %v2765 = vmul.f32 %v2509, %v2509
        %v2766 = vmul.f32 %v2510, %v2510
        %v2767 = vmul.f32 %v2511, %v2511
        %v2768 = vmul.f32 %v2512, %v2512
        %v2769 = vmul.f32 %v2513, %v2513
        %v2770 = vmul.f32 %v2514, %v2514
        %v2771 = vmul.f32 %v2515, %v2515
        %v2772 = vmul.f32 %v2516, %v2516
        %v2773 = vmul.f32 %v2517, %v2517
        %v2774 = vmul.f32 %v2518, %v2518
        %v2775 = vmul.f32 %v2519, %v2519
        %v2776 = vmul.f32 %v2520, %v2520
        %v2777 = vmul.f32 %v2521, %v2521
        %v2778 = vmul.f32 %v2522, %v2522
        %v2779 = vmul.f32 %v2523, %v2523
        %v2780 = vmul.f32 %v2524, %v2524
        %v2781 = vmul.f32 %v2525, %v2525
        %v2782 = vmul.f32 %v2526, %v2526
        %v2783 = vmul.f32 %v2527, %v2527
        %v2784 = vmul.f32 %v2528, %v2528
        %v2785 = vmul.f32 %v2529, %v2529
        %v2786 = vmul.f32 %v2530, %v2530
        %v2787 = vmul.f32 %v2531, %v2531
        %v2788 = vmul.f32 %v2532, %v2532
        %v2789 = vmul.f32 %v2533, %v2533
        %v2790 = vmul.f32 %v2534, %v2534
        %v2791 = vmul.f32 %v2535, %v2535
        %v2792 = vmul.f32 %v2536, %v2536
        %v2793 = vmul.f32 %v2537, %v2537
        %v2794 = vmul.f32 %v2538, %v2538
        %v2795 = vmul.f32 %v2539, %v2539
        %v2796 = vmul.f32 %v2540, %v2540
        %v2797 = vmul.f32 %v2541, %v2541
        %v2798 = vmul.f32 %v2542, %v2542
        %v2799 = vmul.f32 %v2543, %v2543
        %v2800 = vmul.f32 %v2544, %v2544
        %v2801 = vadd.f32 %v2673, %v2737
        %v2802 = vadd.f32 %v2674, %v2738
        %v2803 = vadd.f32 %v2675, %v2739
        %v2804 = vadd.f32 %v2676, %v2740
        %v2805 = vadd.f32 %v2677, %v2741
        %v2806 = vadd.f32 %v2678, %v2742
        %v2807 = vadd.f32 %v2679, %v2743
        %v2808 = vadd.f32 %v2680, %v2744
        %v2809 = vadd.f32 %v2681, %v2745
        %v2810 = vadd.f32 %v2682, %v2746
        %v2811 = vadd.f32 %v2683, %v2747
        %v2812 = vadd.f32 %v2684, %v2748
        %v2813 = vadd.f32 %v2685, %v2749
        %v2814 = vadd.f32 %v2686, %v2750
        %v2815 = vadd.f32 %v2687, %v2751
        %v2816 = vadd.f32 %v2688, %v2752
        %v2817 = vadd.f32 %v2689, %v2753
        %v2818 = vadd.f32 %v2690, %v2754
        %v2819 = vadd.f32 %v2691, %v2755
        %v2820 = vadd.f32 %v2692, %v2756
        %v2821 = vadd.f32 %v2693, %v2757
        %v2822 = vadd.f32 %v2694, %v2758
        %v2823 = vadd.f32 %v2695, %v2759
        %v2824 = vadd.f32 %v2696, %v2760
        %v2825 = vadd.f32 %v2697, %v2761
        %v2826 = vadd.f32 %v2698, %v2762
        %v2827 = vadd.f32 %v2699, %v2763
        %v2828 = vadd.f32 %v2700, %v2764
        %v2829 = vadd.f32 %v2701, %v2765
        %v2830 = vadd.f32 %v2702, %v2766
        %v2831 = vadd.f32 %v2703, %v2767
        %v2832 = vadd.f32 %v2704, %v2768
        %v2833 = vadd.f32 %v2705, %v2769
        %v2834 = vadd.f32 %v2706, %v2770
        %v2835 = vadd.f32 %v2707, %v2771
        %v2836 = vadd.f32 %v2708, %v2772
        %v2837 = vadd.f32 %v2709, %v2773
        %v2838 = vadd.f32 %v2710, %v2774
        %v2839 = vadd.f32 %v2711, %v2775
        %v2840 = vadd.f32 %v2712, %v2776
        %v2841 = vadd.f32 %v2713, %v2777
        %v2842 = vadd.f32 %v2714, %v2778
        %v2843 = vadd.f32 %v2715, %v2779
        %v2844 = vadd.f32 %v2716, %v2780
        %v2845 = vadd.f32 %v2717, %v2781
        %v2846 = vadd.f32 %v2718, %v2782
        %v2847 = vadd.f32 %v2719, %v2783
        %v2848 = vadd.f32 %v2720, %v2784
        %v2849 = vadd.f32 %v2721, %v2785
        %v2850 = vadd.f32 %v2722, %v2786
        %v2851 = vadd.f32 %v2723, %v2787
        %v2852 = vadd.f32 %v2724, %v2788
        %v2853 = vadd.f32 %v2725, %v2789
        %v2854 = vadd.f32 %v2726, %v2790
        %v2855 = vadd.f32 %v2727, %v2791
        %v2856 = vadd.f32 %v2728, %v2792
        %v2857 = vadd.f32 %v2729, %v2793
        %v2858 = vadd.f32 %v2730, %v2794
        %v2859 = vadd.f32 %v2731, %v2795
        %v2860 = vadd.f32 %v2732, %v2796
        %v2861 = vadd.f32 %v2733, %v2797
        %v2862 = vadd.f32 %v2734, %v2798
        %v2863 = vadd.f32 %v2735, %v2799
        %v2864 = vadd.f32 %v2736, %v2800
        %2865 = vset.pattern.permute.xlu0 3
        %2866 = vperm.xlu0 %2865, %v2077
        %v2867 = vpop.permute.xlu0 %2866
        %2869 = vset.pattern.permute.xlu0 3
        %2870 = vperm.xlu0 %2869, %v2078
        %v2871 = vpop.permute.xlu0 %2870
        %2873 = vset.pattern.permute.xlu0 3
        %2874 = vperm.xlu0 %2873, %v2079
        %v2875 = vpop.permute.xlu0 %2874
        %2877 = vset.pattern.permute.xlu0 3
        %2878 = vperm.xlu0 %2877, %v2080
        %v2879 = vpop.permute.xlu0 %2878
        %2881 = vset.pattern.permute.xlu0 3
        %2882 = vperm.xlu0 %2881, %v2081
        %v2883 = vpop.permute.xlu0 %2882
        %2885 = vset.pattern.permute.xlu0 3
        %2886 = vperm.xlu0 %2885, %v2082
        %v2887 = vpop.permute.xlu0 %2886
        %2889 = vset.pattern.permute.xlu0 3
        %2890 = vperm.xlu0 %2889, %v2083
        %v2891 = vpop.permute.xlu0 %2890
        %2893 = vset.pattern.permute.xlu0 3
        %2894 = vperm.xlu0 %2893, %v2084
        %v2895 = vpop.permute.xlu0 %2894
        %2897 = vset.pattern.permute.xlu0 3
        %2898 = vperm.xlu0 %2897, %v2085
        %v2899 = vpop.permute.xlu0 %2898
        %2901 = vset.pattern.permute.xlu0 3
        %2902 = vperm.xlu0 %2901, %v2086
        %v2903 = vpop.permute.xlu0 %2902
        %2905 = vset.pattern.permute.xlu0 3
        %2906 = vperm.xlu0 %2905, %v2087
        %v2907 = vpop.permute.xlu0 %2906
        %2909 = vset.pattern.permute.xlu0 3
        %2910 = vperm.xlu0 %2909, %v2088
        %v2911 = vpop.permute.xlu0 %2910
        %2913 = vset.pattern.permute.xlu0 3
        %2914 = vperm.xlu0 %2913, %v2089
        %v2915 = vpop.permute.xlu0 %2914
        %2917 = vset.pattern.permute.xlu0 3
        %2918 = vperm.xlu0 %2917, %v2090
        %v2919 = vpop.permute.xlu0 %2918
        %2921 = vset.pattern.permute.xlu0 3
        %2922 = vperm.xlu0 %2921, %v2091
        %v2923 = vpop.permute.xlu0 %2922
        %2925 = vset.pattern.permute.xlu0 3
        %2926 = vperm.xlu0 %2925, %v2092
        %v2927 = vpop.permute.xlu0 %2926
        %v2929 = vlaneseq
        %v2930 = vshrl.u32 %v2929, 7
        %v2931 = vsub.s32 3, %v2930
        %v2932 = vrot.slane %v2093, %v2931
        %v2933 = vlaneseq
        %v2934 = vshrl.u32 %v2933, 7
        %v2935 = vsub.s32 3, %v2934
        %v2936 = vrot.slane %v2094, %v2935
        %v2937 = vlaneseq
        %v2938 = vshrl.u32 %v2937, 7
        %v2939 = vsub.s32 3, %v2938
        %v2940 = vrot.slane %v2095, %v2939
        %v2941 = vlaneseq
        %v2942 = vshrl.u32 %v2941, 7
        %v2943 = vsub.s32 3, %v2942
        %v2944 = vrot.slane %v2096, %v2943
        %v2945 = vsub.f32 %v2867, %v2932
        %v2946 = vsub.f32 %v2867, %v2936
        %v2947 = vsub.f32 %v2867, %v2940
        %v2948 = vsub.f32 %v2867, %v2944
        %v2949 = vsub.f32 %v2871, %v2932
        %v2950 = vsub.f32 %v2871, %v2936
        %v2951 = vsub.f32 %v2871, %v2940
        %v2952 = vsub.f32 %v2871, %v2944
        %v2953 = vsub.f32 %v2875, %v2932
        %v2954 = vsub.f32 %v2875, %v2936
        %v2955 = vsub.f32 %v2875, %v2940
        %v2956 = vsub.f32 %v2875, %v2944
        %v2957 = vsub.f32 %v2879, %v2932
        %v2958 = vsub.f32 %v2879, %v2936
        %v2959 = vsub.f32 %v2879, %v2940
        %v2960 = vsub.f32 %v2879, %v2944
        %v2961 = vsub.f32 %v2883, %v2932
        %v2962 = vsub.f32 %v2883, %v2936
        %v2963 = vsub.f32 %v2883, %v2940
        %v2964 = vsub.f32 %v2883, %v2944
        %v2965 = vsub.f32 %v2887, %v2932
        %v2966 = vsub.f32 %v2887, %v2936
        %v2967 = vsub.f32 %v2887, %v2940
        %v2968 = vsub.f32 %v2887, %v2944
        %v2969 = vsub.f32 %v2891, %v2932
        %v2970 = vsub.f32 %v2891, %v2936
        %v2971 = vsub.f32 %v2891, %v2940
        %v2972 = vsub.f32 %v2891, %v2944
        %v2973 = vsub.f32 %v2895, %v2932
        %v2974 = vsub.f32 %v2895, %v2936
        %v2975 = vsub.f32 %v2895, %v2940
        %v2976 = vsub.f32 %v2895, %v2944
        %v2977 = vsub.f32 %v2899, %v2932
        %v2978 = vsub.f32 %v2899, %v2936
        %v2979 = vsub.f32 %v2899, %v2940
        %v2980 = vsub.f32 %v2899, %v2944
        %v2981 = vsub.f32 %v2903, %v2932
        %v2982 = vsub.f32 %v2903, %v2936
        %v2983 = vsub.f32 %v2903, %v2940
        %v2984 = vsub.f32 %v2903, %v2944
        %v2985 = vsub.f32 %v2907, %v2932
        %v2986 = vsub.f32 %v2907, %v2936
        %v2987 = vsub.f32 %v2907, %v2940
        %v2988 = vsub.f32 %v2907, %v2944
        %v2989 = vsub.f32 %v2911, %v2932
        %v2990 = vsub.f32 %v2911, %v2936
        %v2991 = vsub.f32 %v2911, %v2940
        %v2992 = vsub.f32 %v2911, %v2944
        %v2993 = vsub.f32 %v2915, %v2932
        %v2994 = vsub.f32 %v2915, %v2936
        %v2995 = vsub.f32 %v2915, %v2940
        %v2996 = vsub.f32 %v2915, %v2944
        %v2997 = vsub.f32 %v2919, %v2932
        %v2998 = vsub.f32 %v2919, %v2936
        %v2999 = vsub.f32 %v2919, %v2940
        %v3000 = vsub.f32 %v2919, %v2944
        %v3001 = vsub.f32 %v2923, %v2932
        %v3002 = vsub.f32 %v2923, %v2936
        %v3003 = vsub.f32 %v2923, %v2940
        %v3004 = vsub.f32 %v2923, %v2944
        %v3005 = vsub.f32 %v2927, %v2932
        %v3006 = vsub.f32 %v2927, %v2936
        %v3007 = vsub.f32 %v2927, %v2940
        %v3008 = vsub.f32 %v2927, %v2944
        %3009 = vset.pattern.permute.xlu0 4
        %3010 = vperm.xlu0 %3009, %v2077
        %v3011 = vpop.permute.xlu0 %3010
        %3013 = vset.pattern.permute.xlu0 4
        %3014 = vperm.xlu0 %3013, %v2078
        %v3015 = vpop.permute.xlu0 %3014
        %3017 = vset.pattern.permute.xlu0 4
        %3018 = vperm.xlu0 %3017, %v2079
        %v3019 = vpop.permute.xlu0 %3018
        %3021 = vset.pattern.permute.xlu0 4
        %3022 = vperm.xlu0 %3021, %v2080
        %v3023 = vpop.permute.xlu0 %3022
        %3025 = vset.pattern.permute.xlu0 4
        %3026 = vperm.xlu0 %3025, %v2081
        %v3027 = vpop.permute.xlu0 %3026
        %3029 = vset.pattern.permute.xlu0 4
        %3030 = vperm.xlu0 %3029, %v2082
        %v3031 = vpop.permute.xlu0 %3030
        %3033 = vset.pattern.permute.xlu0 4
        %3034 = vperm.xlu0 %3033, %v2083
        %v3035 = vpop.permute.xlu0 %3034
        %3037 = vset.pattern.permute.xlu0 4
        %3038 = vperm.xlu0 %3037, %v2084
        %v3039 = vpop.permute.xlu0 %3038
        %3041 = vset.pattern.permute.xlu0 4
        %3042 = vperm.xlu0 %3041, %v2085
        %v3043 = vpop.permute.xlu0 %3042
        %3045 = vset.pattern.permute.xlu0 4
        %3046 = vperm.xlu0 %3045, %v2086
        %v3047 = vpop.permute.xlu0 %3046
        %3049 = vset.pattern.permute.xlu0 4
        %3050 = vperm.xlu0 %3049, %v2087
        %v3051 = vpop.permute.xlu0 %3050
        %3053 = vset.pattern.permute.xlu0 4
        %3054 = vperm.xlu0 %3053, %v2088
        %v3055 = vpop.permute.xlu0 %3054
        %3057 = vset.pattern.permute.xlu0 4
        %3058 = vperm.xlu0 %3057, %v2089
        %v3059 = vpop.permute.xlu0 %3058
        %3061 = vset.pattern.permute.xlu0 4
        %3062 = vperm.xlu0 %3061, %v2090
        %v3063 = vpop.permute.xlu0 %3062
        %3065 = vset.pattern.permute.xlu0 4
        %3066 = vperm.xlu0 %3065, %v2091
        %v3067 = vpop.permute.xlu0 %3066
        %3069 = vset.pattern.permute.xlu0 4
        %3070 = vperm.xlu0 %3069, %v2092
        %v3071 = vpop.permute.xlu0 %3070
        %v3073 = vlaneseq
        %v3074 = vshrl.u32 %v3073, 7
        %v3075 = vsub.s32 4, %v3074
        %v3076 = vrot.slane %v2093, %v3075
        %v3077 = vlaneseq
        %v3078 = vshrl.u32 %v3077, 7
        %v3079 = vsub.s32 4, %v3078
        %v3080 = vrot.slane %v2094, %v3079
        %v3081 = vlaneseq
        %v3082 = vshrl.u32 %v3081, 7
        %v3083 = vsub.s32 4, %v3082
        %v3084 = vrot.slane %v2095, %v3083
        %v3085 = vlaneseq
        %v3086 = vshrl.u32 %v3085, 7
        %v3087 = vsub.s32 4, %v3086
        %v3088 = vrot.slane %v2096, %v3087
        %v3089 = vsub.f32 %v3011, %v3076
        %v3090 = vsub.f32 %v3011, %v3080
        %v3091 = vsub.f32 %v3011, %v3084
        %v3092 = vsub.f32 %v3011, %v3088
        %v3093 = vsub.f32 %v3015, %v3076
        %v3094 = vsub.f32 %v3015, %v3080
        %v3095 = vsub.f32 %v3015, %v3084
        %v3096 = vsub.f32 %v3015, %v3088
        %v3097 = vsub.f32 %v3019, %v3076
        %v3098 = vsub.f32 %v3019, %v3080
        %v3099 = vsub.f32 %v3019, %v3084
        %v3100 = vsub.f32 %v3019, %v3088
        %v3101 = vsub.f32 %v3023, %v3076
        %v3102 = vsub.f32 %v3023, %v3080
        %v3103 = vsub.f32 %v3023, %v3084
        %v3104 = vsub.f32 %v3023, %v3088
        %v3105 = vsub.f32 %v3027, %v3076
        %v3106 = vsub.f32 %v3027, %v3080
        %v3107 = vsub.f32 %v3027, %v3084
        %v3108 = vsub.f32 %v3027, %v3088
        %v3109 = vsub.f32 %v3031, %v3076
        %v3110 = vsub.f32 %v3031, %v3080
        %v3111 = vsub.f32 %v3031, %v3084
        %v3112 = vsub.f32 %v3031, %v3088
        %v3113 = vsub.f32 %v3035, %v3076
        %v3114 = vsub.f32 %v3035, %v3080
        %v3115 = vsub.f32 %v3035, %v3084
        %v3116 = vsub.f32 %v3035, %v3088
        %v3117 = vsub.f32 %v3039, %v3076
        %v3118 = vsub.f32 %v3039, %v3080
        %v3119 = vsub.f32 %v3039, %v3084
        %v3120 = vsub.f32 %v3039, %v3088
        %v3121 = vsub.f32 %v3043, %v3076
        %v3122 = vsub.f32 %v3043, %v3080
        %v3123 = vsub.f32 %v3043, %v3084
        %v3124 = vsub.f32 %v3043, %v3088
        %v3125 = vsub.f32 %v3047, %v3076
        %v3126 = vsub.f32 %v3047, %v3080
        %v3127 = vsub.f32 %v3047, %v3084
        %v3128 = vsub.f32 %v3047, %v3088
        %v3129 = vsub.f32 %v3051, %v3076
        %v3130 = vsub.f32 %v3051, %v3080
        %v3131 = vsub.f32 %v3051, %v3084
        %v3132 = vsub.f32 %v3051, %v3088
        %v3133 = vsub.f32 %v3055, %v3076
        %v3134 = vsub.f32 %v3055, %v3080
        %v3135 = vsub.f32 %v3055, %v3084
        %v3136 = vsub.f32 %v3055, %v3088
        %v3137 = vsub.f32 %v3059, %v3076
        %v3138 = vsub.f32 %v3059, %v3080
        %v3139 = vsub.f32 %v3059, %v3084
        %v3140 = vsub.f32 %v3059, %v3088
        %v3141 = vsub.f32 %v3063, %v3076
        %v3142 = vsub.f32 %v3063, %v3080
        %v3143 = vsub.f32 %v3063, %v3084
        %v3144 = vsub.f32 %v3063, %v3088
        %v3145 = vsub.f32 %v3067, %v3076
        %v3146 = vsub.f32 %v3067, %v3080
        %v3147 = vsub.f32 %v3067, %v3084
        %v3148 = vsub.f32 %v3067, %v3088
        %v3149 = vsub.f32 %v3071, %v3076
        %v3150 = vsub.f32 %v3071, %v3080
        %v3151 = vsub.f32 %v3071, %v3084
        %v3152 = vsub.f32 %v3071, %v3088
        %3153 = vset.pattern.permute.xlu0 5
        %3154 = vperm.xlu0 %3153, %v2077
        %v3155 = vpop.permute.xlu0 %3154
        %3157 = vset.pattern.permute.xlu0 5
        %3158 = vperm.xlu0 %3157, %v2078
        %v3159 = vpop.permute.xlu0 %3158
        %3161 = vset.pattern.permute.xlu0 5
        %3162 = vperm.xlu0 %3161, %v2079
        %v3163 = vpop.permute.xlu0 %3162
        %3165 = vset.pattern.permute.xlu0 5
        %3166 = vperm.xlu0 %3165, %v2080
        %v3167 = vpop.permute.xlu0 %3166
        %3169 = vset.pattern.permute.xlu0 5
        %3170 = vperm.xlu0 %3169, %v2081
        %v3171 = vpop.permute.xlu0 %3170
        %3173 = vset.pattern.permute.xlu0 5
        %3174 = vperm.xlu0 %3173, %v2082
        %v3175 = vpop.permute.xlu0 %3174
        %3177 = vset.pattern.permute.xlu0 5
        %3178 = vperm.xlu0 %3177, %v2083
        %v3179 = vpop.permute.xlu0 %3178
        %3181 = vset.pattern.permute.xlu0 5
        %3182 = vperm.xlu0 %3181, %v2084
        %v3183 = vpop.permute.xlu0 %3182
        %3185 = vset.pattern.permute.xlu0 5
        %3186 = vperm.xlu0 %3185, %v2085
        %v3187 = vpop.permute.xlu0 %3186
        %3189 = vset.pattern.permute.xlu0 5
        %3190 = vperm.xlu0 %3189, %v2086
        %v3191 = vpop.permute.xlu0 %3190
        %3193 = vset.pattern.permute.xlu0 5
        %3194 = vperm.xlu0 %3193, %v2087
        %v3195 = vpop.permute.xlu0 %3194
        %3197 = vset.pattern.permute.xlu0 5
        %3198 = vperm.xlu0 %3197, %v2088
        %v3199 = vpop.permute.xlu0 %3198
        %3201 = vset.pattern.permute.xlu0 5
        %3202 = vperm.xlu0 %3201, %v2089
        %v3203 = vpop.permute.xlu0 %3202
        %3205 = vset.pattern.permute.xlu0 5
        %3206 = vperm.xlu0 %3205, %v2090
        %v3207 = vpop.permute.xlu0 %3206
        %3209 = vset.pattern.permute.xlu0 5
        %3210 = vperm.xlu0 %3209, %v2091
        %v3211 = vpop.permute.xlu0 %3210
        %3213 = vset.pattern.permute.xlu0 5
        %3214 = vperm.xlu0 %3213, %v2092
        %v3215 = vpop.permute.xlu0 %3214
        %v3217 = vlaneseq
        %v3218 = vshrl.u32 %v3217, 7
        %v3219 = vsub.s32 5, %v3218
        %v3220 = vrot.slane %v2093, %v3219
        %v3221 = vlaneseq
        %v3222 = vshrl.u32 %v3221, 7
        %v3223 = vsub.s32 5, %v3222
        %v3224 = vrot.slane %v2094, %v3223
        %v3225 = vlaneseq
        %v3226 = vshrl.u32 %v3225, 7
        %v3227 = vsub.s32 5, %v3226
        %v3228 = vrot.slane %v2095, %v3227
        %v3229 = vlaneseq
        %v3230 = vshrl.u32 %v3229, 7
        %v3231 = vsub.s32 5, %v3230
        %v3232 = vrot.slane %v2096, %v3231
        %v3233 = vsub.f32 %v3155, %v3220
        %v3234 = vsub.f32 %v3155, %v3224
        %v3235 = vsub.f32 %v3155, %v3228
        %v3236 = vsub.f32 %v3155, %v3232
        %v3237 = vsub.f32 %v3159, %v3220
        %v3238 = vsub.f32 %v3159, %v3224
        %v3239 = vsub.f32 %v3159, %v3228
        %v3240 = vsub.f32 %v3159, %v3232
        %v3241 = vsub.f32 %v3163, %v3220
        %v3242 = vsub.f32 %v3163, %v3224
        %v3243 = vsub.f32 %v3163, %v3228
        %v3244 = vsub.f32 %v3163, %v3232
        %v3245 = vsub.f32 %v3167, %v3220
        %v3246 = vsub.f32 %v3167, %v3224
        %v3247 = vsub.f32 %v3167, %v3228
        %v3248 = vsub.f32 %v3167, %v3232
        %v3249 = vsub.f32 %v3171, %v3220
        %v3250 = vsub.f32 %v3171, %v3224
        %v3251 = vsub.f32 %v3171, %v3228
        %v3252 = vsub.f32 %v3171, %v3232
        %v3253 = vsub.f32 %v3175, %v3220
        %v3254 = vsub.f32 %v3175, %v3224
        %v3255 = vsub.f32 %v3175, %v3228
        %v3256 = vsub.f32 %v3175, %v3232
        %v3257 = vsub.f32 %v3179, %v3220
        %v3258 = vsub.f32 %v3179, %v3224
        %v3259 = vsub.f32 %v3179, %v3228
        %v3260 = vsub.f32 %v3179, %v3232
        %v3261 = vsub.f32 %v3183, %v3220
        %v3262 = vsub.f32 %v3183, %v3224
        %v3263 = vsub.f32 %v3183, %v3228
        %v3264 = vsub.f32 %v3183, %v3232
        %v3265 = vsub.f32 %v3187, %v3220
        %v3266 = vsub.f32 %v3187, %v3224
        %v3267 = vsub.f32 %v3187, %v3228
        %v3268 = vsub.f32 %v3187, %v3232
        %v3269 = vsub.f32 %v3191, %v3220
        %v3270 = vsub.f32 %v3191, %v3224
        %v3271 = vsub.f32 %v3191, %v3228
        %v3272 = vsub.f32 %v3191, %v3232
        %v3273 = vsub.f32 %v3195, %v3220
        %v3274 = vsub.f32 %v3195, %v3224
        %v3275 = vsub.f32 %v3195, %v3228
        %v3276 = vsub.f32 %v3195, %v3232
        %v3277 = vsub.f32 %v3199, %v3220
        %v3278 = vsub.f32 %v3199, %v3224
        %v3279 = vsub.f32 %v3199, %v3228
        %v3280 = vsub.f32 %v3199, %v3232
        %v3281 = vsub.f32 %v3203, %v3220
        %v3282 = vsub.f32 %v3203, %v3224
        %v3283 = vsub.f32 %v3203, %v3228
        %v3284 = vsub.f32 %v3203, %v3232
        %v3285 = vsub.f32 %v3207, %v3220
        %v3286 = vsub.f32 %v3207, %v3224
        %v3287 = vsub.f32 %v3207, %v3228
        %v3288 = vsub.f32 %v3207, %v3232
        %v3289 = vsub.f32 %v3211, %v3220
        %v3290 = vsub.f32 %v3211, %v3224
        %v3291 = vsub.f32 %v3211, %v3228
        %v3292 = vsub.f32 %v3211, %v3232
        %v3293 = vsub.f32 %v3215, %v3220
        %v3294 = vsub.f32 %v3215, %v3224
        %v3295 = vsub.f32 %v3215, %v3228
        %v3296 = vsub.f32 %v3215, %v3232
        %v3297 = vmul.f32 %v2945, %v2945
        %v3298 = vmul.f32 %v2946, %v2946
        %v3299 = vmul.f32 %v2947, %v2947
        %v3300 = vmul.f32 %v2948, %v2948
        %v3301 = vmul.f32 %v2949, %v2949
        %v3302 = vmul.f32 %v2950, %v2950
        %v3303 = vmul.f32 %v2951, %v2951
        %v3304 = vmul.f32 %v2952, %v2952
        %v3305 = vmul.f32 %v2953, %v2953
        %v3306 = vmul.f32 %v2954, %v2954
        %v3307 = vmul.f32 %v2955, %v2955
        %v3308 = vmul.f32 %v2956, %v2956
        %v3309 = vmul.f32 %v2957, %v2957
        %v3310 = vmul.f32 %v2958, %v2958
        %v3311 = vmul.f32 %v2959, %v2959
        %v3312 = vmul.f32 %v2960, %v2960
        %v3313 = vmul.f32 %v2961, %v2961
        %v3314 = vmul.f32 %v2962, %v2962
        %v3315 = vmul.f32 %v2963, %v2963
        %v3316 = vmul.f32 %v2964, %v2964
        %v3317 = vmul.f32 %v2965, %v2965
        %v3318 = vmul.f32 %v2966, %v2966
        %v3319 = vmul.f32 %v2967, %v2967
        %v3320 = vmul.f32 %v2968, %v2968
        %v3321 = vmul.f32 %v2969, %v2969
        %v3322 = vmul.f32 %v2970, %v2970
        %v3323 = vmul.f32 %v2971, %v2971
        %v3324 = vmul.f32 %v2972, %v2972
        %v3325 = vmul.f32 %v2973, %v2973
        %v3326 = vmul.f32 %v2974, %v2974
        %v3327 = vmul.f32 %v2975, %v2975
        %v3328 = vmul.f32 %v2976, %v2976
        %v3329 = vmul.f32 %v2977, %v2977
        %v3330 = vmul.f32 %v2978, %v2978
        %v3331 = vmul.f32 %v2979, %v2979
        %v3332 = vmul.f32 %v2980, %v2980
        %v3333 = vmul.f32 %v2981, %v2981
        %v3334 = vmul.f32 %v2982, %v2982
        %v3335 = vmul.f32 %v2983, %v2983
        %v3336 = vmul.f32 %v2984, %v2984
        %v3337 = vmul.f32 %v2985, %v2985
        %v3338 = vmul.f32 %v2986, %v2986
        %v3339 = vmul.f32 %v2987, %v2987
        %v3340 = vmul.f32 %v2988, %v2988
        %v3341 = vmul.f32 %v2989, %v2989
        %v3342 = vmul.f32 %v2990, %v2990
        %v3343 = vmul.f32 %v2991, %v2991
        %v3344 = vmul.f32 %v2992, %v2992
        %v3345 = vmul.f32 %v2993, %v2993
        %v3346 = vmul.f32 %v2994, %v2994
        %v3347 = vmul.f32 %v2995, %v2995
        %v3348 = vmul.f32 %v2996, %v2996
        %v3349 = vmul.f32 %v2997, %v2997
        %v3350 = vmul.f32 %v2998, %v2998
        %v3351 = vmul.f32 %v2999, %v2999
        %v3352 = vmul.f32 %v3000, %v3000
        %v3353 = vmul.f32 %v3001, %v3001
        %v3354 = vmul.f32 %v3002, %v3002
        %v3355 = vmul.f32 %v3003, %v3003
        %v3356 = vmul.f32 %v3004, %v3004
        %v3357 = vmul.f32 %v3005, %v3005
        %v3358 = vmul.f32 %v3006, %v3006
        %v3359 = vmul.f32 %v3007, %v3007
        %v3360 = vmul.f32 %v3008, %v3008
        %v3361 = vmul.f32 %v3089, %v3089
        %v3362 = vmul.f32 %v3090, %v3090
        %v3363 = vmul.f32 %v3091, %v3091
        %v3364 = vmul.f32 %v3092, %v3092
        %v3365 = vmul.f32 %v3093, %v3093
        %v3366 = vmul.f32 %v3094, %v3094
        %v3367 = vmul.f32 %v3095, %v3095
        %v3368 = vmul.f32 %v3096, %v3096
        %v3369 = vmul.f32 %v3097, %v3097
        %v3370 = vmul.f32 %v3098, %v3098
        %v3371 = vmul.f32 %v3099, %v3099
        %v3372 = vmul.f32 %v3100, %v3100
        %v3373 = vmul.f32 %v3101, %v3101
        %v3374 = vmul.f32 %v3102, %v3102
        %v3375 = vmul.f32 %v3103, %v3103
        %v3376 = vmul.f32 %v3104, %v3104
        %v3377 = vmul.f32 %v3105, %v3105
        %v3378 = vmul.f32 %v3106, %v3106
        %v3379 = vmul.f32 %v3107, %v3107
        %v3380 = vmul.f32 %v3108, %v3108
        %v3381 = vmul.f32 %v3109, %v3109
        %v3382 = vmul.f32 %v3110, %v3110
        %v3383 = vmul.f32 %v3111, %v3111
        %v3384 = vmul.f32 %v3112, %v3112
        %v3385 = vmul.f32 %v3113, %v3113
        %v3386 = vmul.f32 %v3114, %v3114
        %v3387 = vmul.f32 %v3115, %v3115
        %v3388 = vmul.f32 %v3116, %v3116
        %v3389 = vmul.f32 %v3117, %v3117
        %v3390 = vmul.f32 %v3118, %v3118
        %v3391 = vmul.f32 %v3119, %v3119
        %v3392 = vmul.f32 %v3120, %v3120
        %v3393 = vmul.f32 %v3121, %v3121
        %v3394 = vmul.f32 %v3122, %v3122
        %v3395 = vmul.f32 %v3123, %v3123
        %v3396 = vmul.f32 %v3124, %v3124
        %v3397 = vmul.f32 %v3125, %v3125
        %v3398 = vmul.f32 %v3126, %v3126
        %v3399 = vmul.f32 %v3127, %v3127
        %v3400 = vmul.f32 %v3128, %v3128
        %v3401 = vmul.f32 %v3129, %v3129
        %v3402 = vmul.f32 %v3130, %v3130
        %v3403 = vmul.f32 %v3131, %v3131
        %v3404 = vmul.f32 %v3132, %v3132
        %v3405 = vmul.f32 %v3133, %v3133
        %v3406 = vmul.f32 %v3134, %v3134
        %v3407 = vmul.f32 %v3135, %v3135
        %v3408 = vmul.f32 %v3136, %v3136
        %v3409 = vmul.f32 %v3137, %v3137
        %v3410 = vmul.f32 %v3138, %v3138
        %v3411 = vmul.f32 %v3139, %v3139
        %v3412 = vmul.f32 %v3140, %v3140
        %v3413 = vmul.f32 %v3141, %v3141
        %v3414 = vmul.f32 %v3142, %v3142
        %v3415 = vmul.f32 %v3143, %v3143
        %v3416 = vmul.f32 %v3144, %v3144
        %v3417 = vmul.f32 %v3145, %v3145
        %v3418 = vmul.f32 %v3146, %v3146
        %v3419 = vmul.f32 %v3147, %v3147
        %v3420 = vmul.f32 %v3148, %v3148
        %v3421 = vmul.f32 %v3149, %v3149
        %v3422 = vmul.f32 %v3150, %v3150
        %v3423 = vmul.f32 %v3151, %v3151
        %v3424 = vmul.f32 %v3152, %v3152
        %v3425 = vadd.f32 %v3297, %v3361
        %v3426 = vadd.f32 %v3298, %v3362
        %v3427 = vadd.f32 %v3299, %v3363
        %v3428 = vadd.f32 %v3300, %v3364
        %v3429 = vadd.f32 %v3301, %v3365
        %v3430 = vadd.f32 %v3302, %v3366
        %v3431 = vadd.f32 %v3303, %v3367
        %v3432 = vadd.f32 %v3304, %v3368
        %v3433 = vadd.f32 %v3305, %v3369
        %v3434 = vadd.f32 %v3306, %v3370
        %v3435 = vadd.f32 %v3307, %v3371
        %v3436 = vadd.f32 %v3308, %v3372
        %v3437 = vadd.f32 %v3309, %v3373
        %v3438 = vadd.f32 %v3310, %v3374
        %v3439 = vadd.f32 %v3311, %v3375
        %v3440 = vadd.f32 %v3312, %v3376
        %v3441 = vadd.f32 %v3313, %v3377
        %v3442 = vadd.f32 %v3314, %v3378
        %v3443 = vadd.f32 %v3315, %v3379
        %v3444 = vadd.f32 %v3316, %v3380
        %v3445 = vadd.f32 %v3317, %v3381
        %v3446 = vadd.f32 %v3318, %v3382
        %v3447 = vadd.f32 %v3319, %v3383
        %v3448 = vadd.f32 %v3320, %v3384
        %v3449 = vadd.f32 %v3321, %v3385
        %v3450 = vadd.f32 %v3322, %v3386
        %v3451 = vadd.f32 %v3323, %v3387
        %v3452 = vadd.f32 %v3324, %v3388
        %v3453 = vadd.f32 %v3325, %v3389
        %v3454 = vadd.f32 %v3326, %v3390
        %v3455 = vadd.f32 %v3327, %v3391
        %v3456 = vadd.f32 %v3328, %v3392
        %v3457 = vadd.f32 %v3329, %v3393
        %v3458 = vadd.f32 %v3330, %v3394
        %v3459 = vadd.f32 %v3331, %v3395
        %v3460 = vadd.f32 %v3332, %v3396
        %v3461 = vadd.f32 %v3333, %v3397
        %v3462 = vadd.f32 %v3334, %v3398
        %v3463 = vadd.f32 %v3335, %v3399
        %v3464 = vadd.f32 %v3336, %v3400
        %v3465 = vadd.f32 %v3337, %v3401
        %v3466 = vadd.f32 %v3338, %v3402
        %v3467 = vadd.f32 %v3339, %v3403
        %v3468 = vadd.f32 %v3340, %v3404
        %v3469 = vadd.f32 %v3341, %v3405
        %v3470 = vadd.f32 %v3342, %v3406
        %v3471 = vadd.f32 %v3343, %v3407
        %v3472 = vadd.f32 %v3344, %v3408
        %v3473 = vadd.f32 %v3345, %v3409
        %v3474 = vadd.f32 %v3346, %v3410
        %v3475 = vadd.f32 %v3347, %v3411
        %v3476 = vadd.f32 %v3348, %v3412
        %v3477 = vadd.f32 %v3349, %v3413
        %v3478 = vadd.f32 %v3350, %v3414
        %v3479 = vadd.f32 %v3351, %v3415
        %v3480 = vadd.f32 %v3352, %v3416
        %v3481 = vadd.f32 %v3353, %v3417
        %v3482 = vadd.f32 %v3354, %v3418
        %v3483 = vadd.f32 %v3355, %v3419
        %v3484 = vadd.f32 %v3356, %v3420
        %v3485 = vadd.f32 %v3357, %v3421
        %v3486 = vadd.f32 %v3358, %v3422
        %v3487 = vadd.f32 %v3359, %v3423
        %v3488 = vadd.f32 %v3360, %v3424
        %v3489 = vmul.f32 %v3233, %v3233
        %v3490 = vmul.f32 %v3234, %v3234
        %v3491 = vmul.f32 %v3235, %v3235
        %v3492 = vmul.f32 %v3236, %v3236
        %v3493 = vmul.f32 %v3237, %v3237
        %v3494 = vmul.f32 %v3238, %v3238
        %v3495 = vmul.f32 %v3239, %v3239
        %v3496 = vmul.f32 %v3240, %v3240
        %v3497 = vmul.f32 %v3241, %v3241
        %v3498 = vmul.f32 %v3242, %v3242
        %v3499 = vmul.f32 %v3243, %v3243
        %v3500 = vmul.f32 %v3244, %v3244
        %v3501 = vmul.f32 %v3245, %v3245
        %v3502 = vmul.f32 %v3246, %v3246
        %v3503 = vmul.f32 %v3247, %v3247
        %v3504 = vmul.f32 %v3248, %v3248
        %v3505 = vmul.f32 %v3249, %v3249
        %v3506 = vmul.f32 %v3250, %v3250
        %v3507 = vmul.f32 %v3251, %v3251
        %v3508 = vmul.f32 %v3252, %v3252
        %v3509 = vmul.f32 %v3253, %v3253
        %v3510 = vmul.f32 %v3254, %v3254
        %v3511 = vmul.f32 %v3255, %v3255
        %v3512 = vmul.f32 %v3256, %v3256
        %v3513 = vmul.f32 %v3257, %v3257
        %v3514 = vmul.f32 %v3258, %v3258
        %v3515 = vmul.f32 %v3259, %v3259
        %v3516 = vmul.f32 %v3260, %v3260
        %v3517 = vmul.f32 %v3261, %v3261
        %v3518 = vmul.f32 %v3262, %v3262
        %v3519 = vmul.f32 %v3263, %v3263
        %v3520 = vmul.f32 %v3264, %v3264
        %v3521 = vmul.f32 %v3265, %v3265
        %v3522 = vmul.f32 %v3266, %v3266
        %v3523 = vmul.f32 %v3267, %v3267
        %v3524 = vmul.f32 %v3268, %v3268
        %v3525 = vmul.f32 %v3269, %v3269
        %v3526 = vmul.f32 %v3270, %v3270
        %v3527 = vmul.f32 %v3271, %v3271
        %v3528 = vmul.f32 %v3272, %v3272
        %v3529 = vmul.f32 %v3273, %v3273
        %v3530 = vmul.f32 %v3274, %v3274
        %v3531 = vmul.f32 %v3275, %v3275
        %v3532 = vmul.f32 %v3276, %v3276
        %v3533 = vmul.f32 %v3277, %v3277
        %v3534 = vmul.f32 %v3278, %v3278
        %v3535 = vmul.f32 %v3279, %v3279
        %v3536 = vmul.f32 %v3280, %v3280
        %v3537 = vmul.f32 %v3281, %v3281
        %v3538 = vmul.f32 %v3282, %v3282
        %v3539 = vmul.f32 %v3283, %v3283
        %v3540 = vmul.f32 %v3284, %v3284
        %v3541 = vmul.f32 %v3285, %v3285
        %v3542 = vmul.f32 %v3286, %v3286
        %v3543 = vmul.f32 %v3287, %v3287
        %v3544 = vmul.f32 %v3288, %v3288
        %v3545 = vmul.f32 %v3289, %v3289
        %v3546 = vmul.f32 %v3290, %v3290
        %v3547 = vmul.f32 %v3291, %v3291
        %v3548 = vmul.f32 %v3292, %v3292
        %v3549 = vmul.f32 %v3293, %v3293
        %v3550 = vmul.f32 %v3294, %v3294
        %v3551 = vmul.f32 %v3295, %v3295
        %v3552 = vmul.f32 %v3296, %v3296
        %v3553 = vadd.f32 %v3425, %v3489
        %v3554 = vadd.f32 %v3426, %v3490
        %v3555 = vadd.f32 %v3427, %v3491
        %v3556 = vadd.f32 %v3428, %v3492
        %v3557 = vadd.f32 %v3429, %v3493
        %v3558 = vadd.f32 %v3430, %v3494
        %v3559 = vadd.f32 %v3431, %v3495
        %v3560 = vadd.f32 %v3432, %v3496
        %v3561 = vadd.f32 %v3433, %v3497
        %v3562 = vadd.f32 %v3434, %v3498
        %v3563 = vadd.f32 %v3435, %v3499
        %v3564 = vadd.f32 %v3436, %v3500
        %v3565 = vadd.f32 %v3437, %v3501
        %v3566 = vadd.f32 %v3438, %v3502
        %v3567 = vadd.f32 %v3439, %v3503
        %v3568 = vadd.f32 %v3440, %v3504
        %v3569 = vadd.f32 %v3441, %v3505
        %v3570 = vadd.f32 %v3442, %v3506
        %v3571 = vadd.f32 %v3443, %v3507
        %v3572 = vadd.f32 %v3444, %v3508
        %v3573 = vadd.f32 %v3445, %v3509
        %v3574 = vadd.f32 %v3446, %v3510
        %v3575 = vadd.f32 %v3447, %v3511
        %v3576 = vadd.f32 %v3448, %v3512
        %v3577 = vadd.f32 %v3449, %v3513
        %v3578 = vadd.f32 %v3450, %v3514
        %v3579 = vadd.f32 %v3451, %v3515
        %v3580 = vadd.f32 %v3452, %v3516
        %v3581 = vadd.f32 %v3453, %v3517
        %v3582 = vadd.f32 %v3454, %v3518
        %v3583 = vadd.f32 %v3455, %v3519
        %v3584 = vadd.f32 %v3456, %v3520
        %v3585 = vadd.f32 %v3457, %v3521
        %v3586 = vadd.f32 %v3458, %v3522
        %v3587 = vadd.f32 %v3459, %v3523
        %v3588 = vadd.f32 %v3460, %v3524
        %v3589 = vadd.f32 %v3461, %v3525
        %v3590 = vadd.f32 %v3462, %v3526
        %v3591 = vadd.f32 %v3463, %v3527
        %v3592 = vadd.f32 %v3464, %v3528
        %v3593 = vadd.f32 %v3465, %v3529
        %v3594 = vadd.f32 %v3466, %v3530
        %v3595 = vadd.f32 %v3467, %v3531
        %v3596 = vadd.f32 %v3468, %v3532
        %v3597 = vadd.f32 %v3469, %v3533
        %v3598 = vadd.f32 %v3470, %v3534
        %v3599 = vadd.f32 %v3471, %v3535
        %v3600 = vadd.f32 %v3472, %v3536
        %v3601 = vadd.f32 %v3473, %v3537
        %v3602 = vadd.f32 %v3474, %v3538
        %v3603 = vadd.f32 %v3475, %v3539
        %v3604 = vadd.f32 %v3476, %v3540
        %v3605 = vadd.f32 %v3477, %v3541
        %v3606 = vadd.f32 %v3478, %v3542
        %v3607 = vadd.f32 %v3479, %v3543
        %v3608 = vadd.f32 %v3480, %v3544
        %v3609 = vadd.f32 %v3481, %v3545
        %v3610 = vadd.f32 %v3482, %v3546
        %v3611 = vadd.f32 %v3483, %v3547
        %v3612 = vadd.f32 %v3484, %v3548
        %v3613 = vadd.f32 %v3485, %v3549
        %v3614 = vadd.f32 %v3486, %v3550
        %v3615 = vadd.f32 %v3487, %v3551
        %v3616 = vadd.f32 %v3488, %v3552
        %v3617 = vadd.f32 %v2801, 0.001
        %v3618 = vadd.f32 %v2802, 0.001
        %v3619 = vadd.f32 %v2803, 0.001
        %v3620 = vadd.f32 %v2804, 0.001
        %v3621 = vadd.f32 %v2805, 0.001
        %v3622 = vadd.f32 %v2806, 0.001
        %v3623 = vadd.f32 %v2807, 0.001
        %v3624 = vadd.f32 %v2808, 0.001
        %v3625 = vadd.f32 %v2809, 0.001
        %v3626 = vadd.f32 %v2810, 0.001
        %v3627 = vadd.f32 %v2811, 0.001
        %v3628 = vadd.f32 %v2812, 0.001
        %v3629 = vadd.f32 %v2813, 0.001
        %v3630 = vadd.f32 %v2814, 0.001
        %v3631 = vadd.f32 %v2815, 0.001
        %v3632 = vadd.f32 %v2816, 0.001
        %v3633 = vadd.f32 %v2817, 0.001
        %v3634 = vadd.f32 %v2818, 0.001
        %v3635 = vadd.f32 %v2819, 0.001
        %v3636 = vadd.f32 %v2820, 0.001
        %v3637 = vadd.f32 %v2821, 0.001
        %v3638 = vadd.f32 %v2822, 0.001
        %v3639 = vadd.f32 %v2823, 0.001
        %v3640 = vadd.f32 %v2824, 0.001
        %v3641 = vadd.f32 %v2825, 0.001
        %v3642 = vadd.f32 %v2826, 0.001
        %v3643 = vadd.f32 %v2827, 0.001
        %v3644 = vadd.f32 %v2828, 0.001
        %v3645 = vadd.f32 %v2829, 0.001
        %v3646 = vadd.f32 %v2830, 0.001
        %v3647 = vadd.f32 %v2831, 0.001
        %v3648 = vadd.f32 %v2832, 0.001
        %v3649 = vadd.f32 %v2833, 0.001
        %v3650 = vadd.f32 %v2834, 0.001
        %v3651 = vadd.f32 %v2835, 0.001
        %v3652 = vadd.f32 %v2836, 0.001
        %v3653 = vadd.f32 %v2837, 0.001
        %v3654 = vadd.f32 %v2838, 0.001
        %v3655 = vadd.f32 %v2839, 0.001
        %v3656 = vadd.f32 %v2840, 0.001
        %v3657 = vadd.f32 %v2841, 0.001
        %v3658 = vadd.f32 %v2842, 0.001
        %v3659 = vadd.f32 %v2843, 0.001
        %v3660 = vadd.f32 %v2844, 0.001
        %v3661 = vadd.f32 %v2845, 0.001
        %v3662 = vadd.f32 %v2846, 0.001
        %v3663 = vadd.f32 %v2847, 0.001
        %v3664 = vadd.f32 %v2848, 0.001
        %v3665 = vadd.f32 %v2849, 0.001
        %v3666 = vadd.f32 %v2850, 0.001
        %v3667 = vadd.f32 %v2851, 0.001
        %v3668 = vadd.f32 %v2852, 0.001
        %v3669 = vadd.f32 %v2853, 0.001
        %v3670 = vadd.f32 %v2854, 0.001
        %v3671 = vadd.f32 %v2855, 0.001
        %v3672 = vadd.f32 %v2856, 0.001
        %v3673 = vadd.f32 %v2857, 0.001
        %v3674 = vadd.f32 %v2858, 0.001
        %v3675 = vadd.f32 %v2859, 0.001
        %v3676 = vadd.f32 %v2860, 0.001
        %v3677 = vadd.f32 %v2861, 0.001
        %v3678 = vadd.f32 %v2862, 0.001
        %v3679 = vadd.f32 %v2863, 0.001
        %v3680 = vadd.f32 %v2864, 0.001
        %v3681 = vrsqrt.pop %v3617
        %v3682 = vmul.f32 %v3617, %v3681
        %vm3683 = vcmp.eq.f32.partialorder %v3617, inf
        %v3684 = vsel %vm3683, %v3617, %v3682
        %vm3685 = vcmp.eq.f32.partialorder %v3617, 0.0
        %v3686 = vand.u32 %v3617, 2147483648
        %v3687 = vsel %vm3685, %v3686, %v3684
        %v3688 = vrsqrt.pop %v3618
        %v3689 = vmul.f32 %v3618, %v3688
        %vm3690 = vcmp.eq.f32.partialorder %v3618, inf
        %v3691 = vsel %vm3690, %v3618, %v3689
        %vm3692 = vcmp.eq.f32.partialorder %v3618, 0.0
        %v3693 = vand.u32 %v3618, 2147483648
        %v3694 = vsel %vm3692, %v3693, %v3691
        %v3695 = vrsqrt.pop %v3619
        %v3696 = vmul.f32 %v3619, %v3695
        %vm3697 = vcmp.eq.f32.partialorder %v3619, inf
        %v3698 = vsel %vm3697, %v3619, %v3696
        %vm3699 = vcmp.eq.f32.partialorder %v3619, 0.0
        %v3700 = vand.u32 %v3619, 2147483648
        %v3701 = vsel %vm3699, %v3700, %v3698
        %v3702 = vrsqrt.pop %v3620
        %v3703 = vmul.f32 %v3620, %v3702
        %vm3704 = vcmp.eq.f32.partialorder %v3620, inf
        %v3705 = vsel %vm3704, %v3620, %v3703
        %vm3706 = vcmp.eq.f32.partialorder %v3620, 0.0
        %v3707 = vand.u32 %v3620, 2147483648
        %v3708 = vsel %vm3706, %v3707, %v3705
        %v3709 = vrsqrt.pop %v3621
        %v3710 = vmul.f32 %v3621, %v3709
        %vm3711 = vcmp.eq.f32.partialorder %v3621, inf
        %v3712 = vsel %vm3711, %v3621, %v3710
        %vm3713 = vcmp.eq.f32.partialorder %v3621, 0.0
        %v3714 = vand.u32 %v3621, 2147483648
        %v3715 = vsel %vm3713, %v3714, %v3712
        %v3716 = vrsqrt.pop %v3622
        %v3717 = vmul.f32 %v3622, %v3716
        %vm3718 = vcmp.eq.f32.partialorder %v3622, inf
        %v3719 = vsel %vm3718, %v3622, %v3717
        %vm3720 = vcmp.eq.f32.partialorder %v3622, 0.0
        %v3721 = vand.u32 %v3622, 2147483648
        %v3722 = vsel %vm3720, %v3721, %v3719
        %v3723 = vrsqrt.pop %v3623
        %v3724 = vmul.f32 %v3623, %v3723
        %vm3725 = vcmp.eq.f32.partialorder %v3623, inf
        %v3726 = vsel %vm3725, %v3623, %v3724
        %vm3727 = vcmp.eq.f32.partialorder %v3623, 0.0
        %v3728 = vand.u32 %v3623, 2147483648
        %v3729 = vsel %vm3727, %v3728, %v3726
        %v3730 = vrsqrt.pop %v3624
        %v3731 = vmul.f32 %v3624, %v3730
        %vm3732 = vcmp.eq.f32.partialorder %v3624, inf
        %v3733 = vsel %vm3732, %v3624, %v3731
        %vm3734 = vcmp.eq.f32.partialorder %v3624, 0.0
        %v3735 = vand.u32 %v3624, 2147483648
        %v3736 = vsel %vm3734, %v3735, %v3733
        %v3737 = vrsqrt.pop %v3625
        %v3738 = vmul.f32 %v3625, %v3737
        %vm3739 = vcmp.eq.f32.partialorder %v3625, inf
        %v3740 = vsel %vm3739, %v3625, %v3738
        %vm3741 = vcmp.eq.f32.partialorder %v3625, 0.0
        %v3742 = vand.u32 %v3625, 2147483648
        %v3743 = vsel %vm3741, %v3742, %v3740
        %v3744 = vrsqrt.pop %v3626
        %v3745 = vmul.f32 %v3626, %v3744
        %vm3746 = vcmp.eq.f32.partialorder %v3626, inf
        %v3747 = vsel %vm3746, %v3626, %v3745
        %vm3748 = vcmp.eq.f32.partialorder %v3626, 0.0
        %v3749 = vand.u32 %v3626, 2147483648
        %v3750 = vsel %vm3748, %v3749, %v3747
        %v3751 = vrsqrt.pop %v3627
        %v3752 = vmul.f32 %v3627, %v3751
        %vm3753 = vcmp.eq.f32.partialorder %v3627, inf
        %v3754 = vsel %vm3753, %v3627, %v3752
        %vm3755 = vcmp.eq.f32.partialorder %v3627, 0.0
        %v3756 = vand.u32 %v3627, 2147483648
        %v3757 = vsel %vm3755, %v3756, %v3754
        %v3758 = vrsqrt.pop %v3628
        %v3759 = vmul.f32 %v3628, %v3758
        %vm3760 = vcmp.eq.f32.partialorder %v3628, inf
        %v3761 = vsel %vm3760, %v3628, %v3759
        %vm3762 = vcmp.eq.f32.partialorder %v3628, 0.0
        %v3763 = vand.u32 %v3628, 2147483648
        %v3764 = vsel %vm3762, %v3763, %v3761
        %v3765 = vrsqrt.pop %v3629
        %v3766 = vmul.f32 %v3629, %v3765
        %vm3767 = vcmp.eq.f32.partialorder %v3629, inf
        %v3768 = vsel %vm3767, %v3629, %v3766
        %vm3769 = vcmp.eq.f32.partialorder %v3629, 0.0
        %v3770 = vand.u32 %v3629, 2147483648
        %v3771 = vsel %vm3769, %v3770, %v3768
        %v3772 = vrsqrt.pop %v3630
        %v3773 = vmul.f32 %v3630, %v3772
        %vm3774 = vcmp.eq.f32.partialorder %v3630, inf
        %v3775 = vsel %vm3774, %v3630, %v3773
        %vm3776 = vcmp.eq.f32.partialorder %v3630, 0.0
        %v3777 = vand.u32 %v3630, 2147483648
        %v3778 = vsel %vm3776, %v3777, %v3775
        %v3779 = vrsqrt.pop %v3631
        %v3780 = vmul.f32 %v3631, %v3779
        %vm3781 = vcmp.eq.f32.partialorder %v3631, inf
        %v3782 = vsel %vm3781, %v3631, %v3780
        %vm3783 = vcmp.eq.f32.partialorder %v3631, 0.0
        %v3784 = vand.u32 %v3631, 2147483648
        %v3785 = vsel %vm3783, %v3784, %v3782
        %v3786 = vrsqrt.pop %v3632
        %v3787 = vmul.f32 %v3632, %v3786
        %vm3788 = vcmp.eq.f32.partialorder %v3632, inf
        %v3789 = vsel %vm3788, %v3632, %v3787
        %vm3790 = vcmp.eq.f32.partialorder %v3632, 0.0
        %v3791 = vand.u32 %v3632, 2147483648
        %v3792 = vsel %vm3790, %v3791, %v3789
        %v3793 = vrsqrt.pop %v3633
        %v3794 = vmul.f32 %v3633, %v3793
        %vm3795 = vcmp.eq.f32.partialorder %v3633, inf
        %v3796 = vsel %vm3795, %v3633, %v3794
        %vm3797 = vcmp.eq.f32.partialorder %v3633, 0.0
        %v3798 = vand.u32 %v3633, 2147483648
        %v3799 = vsel %vm3797, %v3798, %v3796
        %v3800 = vrsqrt.pop %v3634
        %v3801 = vmul.f32 %v3634, %v3800
        %vm3802 = vcmp.eq.f32.partialorder %v3634, inf
        %v3803 = vsel %vm3802, %v3634, %v3801
        %vm3804 = vcmp.eq.f32.partialorder %v3634, 0.0
        %v3805 = vand.u32 %v3634, 2147483648
        %v3806 = vsel %vm3804, %v3805, %v3803
        %v3807 = vrsqrt.pop %v3635
        %v3808 = vmul.f32 %v3635, %v3807
        %vm3809 = vcmp.eq.f32.partialorder %v3635, inf
        %v3810 = vsel %vm3809, %v3635, %v3808
        %vm3811 = vcmp.eq.f32.partialorder %v3635, 0.0
        %v3812 = vand.u32 %v3635, 2147483648
        %v3813 = vsel %vm3811, %v3812, %v3810
        %v3814 = vrsqrt.pop %v3636
        %v3815 = vmul.f32 %v3636, %v3814
        %vm3816 = vcmp.eq.f32.partialorder %v3636, inf
        %v3817 = vsel %vm3816, %v3636, %v3815
        %vm3818 = vcmp.eq.f32.partialorder %v3636, 0.0
        %v3819 = vand.u32 %v3636, 2147483648
        %v3820 = vsel %vm3818, %v3819, %v3817
        %v3821 = vrsqrt.pop %v3637
        %v3822 = vmul.f32 %v3637, %v3821
        %vm3823 = vcmp.eq.f32.partialorder %v3637, inf
        %v3824 = vsel %vm3823, %v3637, %v3822
        %vm3825 = vcmp.eq.f32.partialorder %v3637, 0.0
        %v3826 = vand.u32 %v3637, 2147483648
        %v3827 = vsel %vm3825, %v3826, %v3824
        %v3828 = vrsqrt.pop %v3638
        %v3829 = vmul.f32 %v3638, %v3828
        %vm3830 = vcmp.eq.f32.partialorder %v3638, inf
        %v3831 = vsel %vm3830, %v3638, %v3829
        %vm3832 = vcmp.eq.f32.partialorder %v3638, 0.0
        %v3833 = vand.u32 %v3638, 2147483648
        %v3834 = vsel %vm3832, %v3833, %v3831
        %v3835 = vrsqrt.pop %v3639
        %v3836 = vmul.f32 %v3639, %v3835
        %vm3837 = vcmp.eq.f32.partialorder %v3639, inf
        %v3838 = vsel %vm3837, %v3639, %v3836
        %vm3839 = vcmp.eq.f32.partialorder %v3639, 0.0
        %v3840 = vand.u32 %v3639, 2147483648
        %v3841 = vsel %vm3839, %v3840, %v3838
        %v3842 = vrsqrt.pop %v3640
        %v3843 = vmul.f32 %v3640, %v3842
        %vm3844 = vcmp.eq.f32.partialorder %v3640, inf
        %v3845 = vsel %vm3844, %v3640, %v3843
        %vm3846 = vcmp.eq.f32.partialorder %v3640, 0.0
        %v3847 = vand.u32 %v3640, 2147483648
        %v3848 = vsel %vm3846, %v3847, %v3845
        %v3849 = vrsqrt.pop %v3641
        %v3850 = vmul.f32 %v3641, %v3849
        %vm3851 = vcmp.eq.f32.partialorder %v3641, inf
        %v3852 = vsel %vm3851, %v3641, %v3850
        %vm3853 = vcmp.eq.f32.partialorder %v3641, 0.0
        %v3854 = vand.u32 %v3641, 2147483648
        %v3855 = vsel %vm3853, %v3854, %v3852
        %v3856 = vrsqrt.pop %v3642
        %v3857 = vmul.f32 %v3642, %v3856
        %vm3858 = vcmp.eq.f32.partialorder %v3642, inf
        %v3859 = vsel %vm3858, %v3642, %v3857
        %vm3860 = vcmp.eq.f32.partialorder %v3642, 0.0
        %v3861 = vand.u32 %v3642, 2147483648
        %v3862 = vsel %vm3860, %v3861, %v3859
        %v3863 = vrsqrt.pop %v3643
        %v3864 = vmul.f32 %v3643, %v3863
        %vm3865 = vcmp.eq.f32.partialorder %v3643, inf
        %v3866 = vsel %vm3865, %v3643, %v3864
        %vm3867 = vcmp.eq.f32.partialorder %v3643, 0.0
        %v3868 = vand.u32 %v3643, 2147483648
        %v3869 = vsel %vm3867, %v3868, %v3866
        %v3870 = vrsqrt.pop %v3644
        %v3871 = vmul.f32 %v3644, %v3870
        %vm3872 = vcmp.eq.f32.partialorder %v3644, inf
        %v3873 = vsel %vm3872, %v3644, %v3871
        %vm3874 = vcmp.eq.f32.partialorder %v3644, 0.0
        %v3875 = vand.u32 %v3644, 2147483648
        %v3876 = vsel %vm3874, %v3875, %v3873
        %v3877 = vrsqrt.pop %v3645
        %v3878 = vmul.f32 %v3645, %v3877
        %vm3879 = vcmp.eq.f32.partialorder %v3645, inf
        %v3880 = vsel %vm3879, %v3645, %v3878
        %vm3881 = vcmp.eq.f32.partialorder %v3645, 0.0
        %v3882 = vand.u32 %v3645, 2147483648
        %v3883 = vsel %vm3881, %v3882, %v3880
        %v3884 = vrsqrt.pop %v3646
        %v3885 = vmul.f32 %v3646, %v3884
        %vm3886 = vcmp.eq.f32.partialorder %v3646, inf
        %v3887 = vsel %vm3886, %v3646, %v3885
        %vm3888 = vcmp.eq.f32.partialorder %v3646, 0.0
        %v3889 = vand.u32 %v3646, 2147483648
        %v3890 = vsel %vm3888, %v3889, %v3887
        %v3891 = vrsqrt.pop %v3647
        %v3892 = vmul.f32 %v3647, %v3891
        %vm3893 = vcmp.eq.f32.partialorder %v3647, inf
        %v3894 = vsel %vm3893, %v3647, %v3892
        %vm3895 = vcmp.eq.f32.partialorder %v3647, 0.0
        %v3896 = vand.u32 %v3647, 2147483648
        %v3897 = vsel %vm3895, %v3896, %v3894
        %v3898 = vrsqrt.pop %v3648
        %v3899 = vmul.f32 %v3648, %v3898
        %vm3900 = vcmp.eq.f32.partialorder %v3648, inf
        %v3901 = vsel %vm3900, %v3648, %v3899
        %vm3902 = vcmp.eq.f32.partialorder %v3648, 0.0
        %v3903 = vand.u32 %v3648, 2147483648
        %v3904 = vsel %vm3902, %v3903, %v3901
        %v3905 = vrsqrt.pop %v3649
        %v3906 = vmul.f32 %v3649, %v3905
        %vm3907 = vcmp.eq.f32.partialorder %v3649, inf
        %v3908 = vsel %vm3907, %v3649, %v3906
        %vm3909 = vcmp.eq.f32.partialorder %v3649, 0.0
        %v3910 = vand.u32 %v3649, 2147483648
        %v3911 = vsel %vm3909, %v3910, %v3908
        %v3912 = vrsqrt.pop %v3650
        %v3913 = vmul.f32 %v3650, %v3912
        %vm3914 = vcmp.eq.f32.partialorder %v3650, inf
        %v3915 = vsel %vm3914, %v3650, %v3913
        %vm3916 = vcmp.eq.f32.partialorder %v3650, 0.0
        %v3917 = vand.u32 %v3650, 2147483648
        %v3918 = vsel %vm3916, %v3917, %v3915
        %v3919 = vrsqrt.pop %v3651
        %v3920 = vmul.f32 %v3651, %v3919
        %vm3921 = vcmp.eq.f32.partialorder %v3651, inf
        %v3922 = vsel %vm3921, %v3651, %v3920
        %vm3923 = vcmp.eq.f32.partialorder %v3651, 0.0
        %v3924 = vand.u32 %v3651, 2147483648
        %v3925 = vsel %vm3923, %v3924, %v3922
        %v3926 = vrsqrt.pop %v3652
        %v3927 = vmul.f32 %v3652, %v3926
        %vm3928 = vcmp.eq.f32.partialorder %v3652, inf
        %v3929 = vsel %vm3928, %v3652, %v3927
        %vm3930 = vcmp.eq.f32.partialorder %v3652, 0.0
        %v3931 = vand.u32 %v3652, 2147483648
        %v3932 = vsel %vm3930, %v3931, %v3929
        %v3933 = vrsqrt.pop %v3653
        %v3934 = vmul.f32 %v3653, %v3933
        %vm3935 = vcmp.eq.f32.partialorder %v3653, inf
        %v3936 = vsel %vm3935, %v3653, %v3934
        %vm3937 = vcmp.eq.f32.partialorder %v3653, 0.0
        %v3938 = vand.u32 %v3653, 2147483648
        %v3939 = vsel %vm3937, %v3938, %v3936
        %v3940 = vrsqrt.pop %v3654
        %v3941 = vmul.f32 %v3654, %v3940
        %vm3942 = vcmp.eq.f32.partialorder %v3654, inf
        %v3943 = vsel %vm3942, %v3654, %v3941
        %vm3944 = vcmp.eq.f32.partialorder %v3654, 0.0
        %v3945 = vand.u32 %v3654, 2147483648
        %v3946 = vsel %vm3944, %v3945, %v3943
        %v3947 = vrsqrt.pop %v3655
        %v3948 = vmul.f32 %v3655, %v3947
        %vm3949 = vcmp.eq.f32.partialorder %v3655, inf
        %v3950 = vsel %vm3949, %v3655, %v3948
        %vm3951 = vcmp.eq.f32.partialorder %v3655, 0.0
        %v3952 = vand.u32 %v3655, 2147483648
        %v3953 = vsel %vm3951, %v3952, %v3950
        %v3954 = vrsqrt.pop %v3656
        %v3955 = vmul.f32 %v3656, %v3954
        %vm3956 = vcmp.eq.f32.partialorder %v3656, inf
        %v3957 = vsel %vm3956, %v3656, %v3955
        %vm3958 = vcmp.eq.f32.partialorder %v3656, 0.0
        %v3959 = vand.u32 %v3656, 2147483648
        %v3960 = vsel %vm3958, %v3959, %v3957
        %v3961 = vrsqrt.pop %v3657
        %v3962 = vmul.f32 %v3657, %v3961
        %vm3963 = vcmp.eq.f32.partialorder %v3657, inf
        %v3964 = vsel %vm3963, %v3657, %v3962
        %vm3965 = vcmp.eq.f32.partialorder %v3657, 0.0
        %v3966 = vand.u32 %v3657, 2147483648
        %v3967 = vsel %vm3965, %v3966, %v3964
        %v3968 = vrsqrt.pop %v3658
        %v3969 = vmul.f32 %v3658, %v3968
        %vm3970 = vcmp.eq.f32.partialorder %v3658, inf
        %v3971 = vsel %vm3970, %v3658, %v3969
        %vm3972 = vcmp.eq.f32.partialorder %v3658, 0.0
        %v3973 = vand.u32 %v3658, 2147483648
        %v3974 = vsel %vm3972, %v3973, %v3971
        %v3975 = vrsqrt.pop %v3659
        %v3976 = vmul.f32 %v3659, %v3975
        %vm3977 = vcmp.eq.f32.partialorder %v3659, inf
        %v3978 = vsel %vm3977, %v3659, %v3976
        %vm3979 = vcmp.eq.f32.partialorder %v3659, 0.0
        %v3980 = vand.u32 %v3659, 2147483648
        %v3981 = vsel %vm3979, %v3980, %v3978
        %v3982 = vrsqrt.pop %v3660
        %v3983 = vmul.f32 %v3660, %v3982
        %vm3984 = vcmp.eq.f32.partialorder %v3660, inf
        %v3985 = vsel %vm3984, %v3660, %v3983
        %vm3986 = vcmp.eq.f32.partialorder %v3660, 0.0
        %v3987 = vand.u32 %v3660, 2147483648
        %v3988 = vsel %vm3986, %v3987, %v3985
        %v3989 = vrsqrt.pop %v3661
        %v3990 = vmul.f32 %v3661, %v3989
        %vm3991 = vcmp.eq.f32.partialorder %v3661, inf
        %v3992 = vsel %vm3991, %v3661, %v3990
        %vm3993 = vcmp.eq.f32.partialorder %v3661, 0.0
        %v3994 = vand.u32 %v3661, 2147483648
        %v3995 = vsel %vm3993, %v3994, %v3992
        %v3996 = vrsqrt.pop %v3662
        %v3997 = vmul.f32 %v3662, %v3996
        %vm3998 = vcmp.eq.f32.partialorder %v3662, inf
        %v3999 = vsel %vm3998, %v3662, %v3997
        %vm4000 = vcmp.eq.f32.partialorder %v3662, 0.0
        %v4001 = vand.u32 %v3662, 2147483648
        %v4002 = vsel %vm4000, %v4001, %v3999
        %v4003 = vrsqrt.pop %v3663
        %v4004 = vmul.f32 %v3663, %v4003
        %vm4005 = vcmp.eq.f32.partialorder %v3663, inf
        %v4006 = vsel %vm4005, %v3663, %v4004
        %vm4007 = vcmp.eq.f32.partialorder %v3663, 0.0
        %v4008 = vand.u32 %v3663, 2147483648
        %v4009 = vsel %vm4007, %v4008, %v4006
        %v4010 = vrsqrt.pop %v3664
        %v4011 = vmul.f32 %v3664, %v4010
        %vm4012 = vcmp.eq.f32.partialorder %v3664, inf
        %v4013 = vsel %vm4012, %v3664, %v4011
        %vm4014 = vcmp.eq.f32.partialorder %v3664, 0.0
        %v4015 = vand.u32 %v3664, 2147483648
        %v4016 = vsel %vm4014, %v4015, %v4013
        %v4017 = vrsqrt.pop %v3665
        %v4018 = vmul.f32 %v3665, %v4017
        %vm4019 = vcmp.eq.f32.partialorder %v3665, inf
        %v4020 = vsel %vm4019, %v3665, %v4018
        %vm4021 = vcmp.eq.f32.partialorder %v3665, 0.0
        %v4022 = vand.u32 %v3665, 2147483648
        %v4023 = vsel %vm4021, %v4022, %v4020
        %v4024 = vrsqrt.pop %v3666
        %v4025 = vmul.f32 %v3666, %v4024
        %vm4026 = vcmp.eq.f32.partialorder %v3666, inf
        %v4027 = vsel %vm4026, %v3666, %v4025
        %vm4028 = vcmp.eq.f32.partialorder %v3666, 0.0
        %v4029 = vand.u32 %v3666, 2147483648
        %v4030 = vsel %vm4028, %v4029, %v4027
        %v4031 = vrsqrt.pop %v3667
        %v4032 = vmul.f32 %v3667, %v4031
        %vm4033 = vcmp.eq.f32.partialorder %v3667, inf
        %v4034 = vsel %vm4033, %v3667, %v4032
        %vm4035 = vcmp.eq.f32.partialorder %v3667, 0.0
        %v4036 = vand.u32 %v3667, 2147483648
        %v4037 = vsel %vm4035, %v4036, %v4034
        %v4038 = vrsqrt.pop %v3668
        %v4039 = vmul.f32 %v3668, %v4038
        %vm4040 = vcmp.eq.f32.partialorder %v3668, inf
        %v4041 = vsel %vm4040, %v3668, %v4039
        %vm4042 = vcmp.eq.f32.partialorder %v3668, 0.0
        %v4043 = vand.u32 %v3668, 2147483648
        %v4044 = vsel %vm4042, %v4043, %v4041
        %v4045 = vrsqrt.pop %v3669
        %v4046 = vmul.f32 %v3669, %v4045
        %vm4047 = vcmp.eq.f32.partialorder %v3669, inf
        %v4048 = vsel %vm4047, %v3669, %v4046
        %vm4049 = vcmp.eq.f32.partialorder %v3669, 0.0
        %v4050 = vand.u32 %v3669, 2147483648
        %v4051 = vsel %vm4049, %v4050, %v4048
        %v4052 = vrsqrt.pop %v3670
        %v4053 = vmul.f32 %v3670, %v4052
        %vm4054 = vcmp.eq.f32.partialorder %v3670, inf
        %v4055 = vsel %vm4054, %v3670, %v4053
        %vm4056 = vcmp.eq.f32.partialorder %v3670, 0.0
        %v4057 = vand.u32 %v3670, 2147483648
        %v4058 = vsel %vm4056, %v4057, %v4055
        %v4059 = vrsqrt.pop %v3671
        %v4060 = vmul.f32 %v3671, %v4059
        %vm4061 = vcmp.eq.f32.partialorder %v3671, inf
        %v4062 = vsel %vm4061, %v3671, %v4060
        %vm4063 = vcmp.eq.f32.partialorder %v3671, 0.0
        %v4064 = vand.u32 %v3671, 2147483648
        %v4065 = vsel %vm4063, %v4064, %v4062
        %v4066 = vrsqrt.pop %v3672
        %v4067 = vmul.f32 %v3672, %v4066
        %vm4068 = vcmp.eq.f32.partialorder %v3672, inf
        %v4069 = vsel %vm4068, %v3672, %v4067
        %vm4070 = vcmp.eq.f32.partialorder %v3672, 0.0
        %v4071 = vand.u32 %v3672, 2147483648
        %v4072 = vsel %vm4070, %v4071, %v4069
        %v4073 = vrsqrt.pop %v3673
        %v4074 = vmul.f32 %v3673, %v4073
        %vm4075 = vcmp.eq.f32.partialorder %v3673, inf
        %v4076 = vsel %vm4075, %v3673, %v4074
        %vm4077 = vcmp.eq.f32.partialorder %v3673, 0.0
        %v4078 = vand.u32 %v3673, 2147483648
        %v4079 = vsel %vm4077, %v4078, %v4076
        %v4080 = vrsqrt.pop %v3674
        %v4081 = vmul.f32 %v3674, %v4080
        %vm4082 = vcmp.eq.f32.partialorder %v3674, inf
        %v4083 = vsel %vm4082, %v3674, %v4081
        %vm4084 = vcmp.eq.f32.partialorder %v3674, 0.0
        %v4085 = vand.u32 %v3674, 2147483648
        %v4086 = vsel %vm4084, %v4085, %v4083
        %v4087 = vrsqrt.pop %v3675
        %v4088 = vmul.f32 %v3675, %v4087
        %vm4089 = vcmp.eq.f32.partialorder %v3675, inf
        %v4090 = vsel %vm4089, %v3675, %v4088
        %vm4091 = vcmp.eq.f32.partialorder %v3675, 0.0
        %v4092 = vand.u32 %v3675, 2147483648
        %v4093 = vsel %vm4091, %v4092, %v4090
        %v4094 = vrsqrt.pop %v3676
        %v4095 = vmul.f32 %v3676, %v4094
        %vm4096 = vcmp.eq.f32.partialorder %v3676, inf
        %v4097 = vsel %vm4096, %v3676, %v4095
        %vm4098 = vcmp.eq.f32.partialorder %v3676, 0.0
        %v4099 = vand.u32 %v3676, 2147483648
        %v4100 = vsel %vm4098, %v4099, %v4097
        %v4101 = vrsqrt.pop %v3677
        %v4102 = vmul.f32 %v3677, %v4101
        %vm4103 = vcmp.eq.f32.partialorder %v3677, inf
        %v4104 = vsel %vm4103, %v3677, %v4102
        %vm4105 = vcmp.eq.f32.partialorder %v3677, 0.0
        %v4106 = vand.u32 %v3677, 2147483648
        %v4107 = vsel %vm4105, %v4106, %v4104
        %v4108 = vrsqrt.pop %v3678
        %v4109 = vmul.f32 %v3678, %v4108
        %vm4110 = vcmp.eq.f32.partialorder %v3678, inf
        %v4111 = vsel %vm4110, %v3678, %v4109
        %vm4112 = vcmp.eq.f32.partialorder %v3678, 0.0
        %v4113 = vand.u32 %v3678, 2147483648
        %v4114 = vsel %vm4112, %v4113, %v4111
        %v4115 = vrsqrt.pop %v3679
        %v4116 = vmul.f32 %v3679, %v4115
        %vm4117 = vcmp.eq.f32.partialorder %v3679, inf
        %v4118 = vsel %vm4117, %v3679, %v4116
        %vm4119 = vcmp.eq.f32.partialorder %v3679, 0.0
        %v4120 = vand.u32 %v3679, 2147483648
        %v4121 = vsel %vm4119, %v4120, %v4118
        %v4122 = vrsqrt.pop %v3680
        %v4123 = vmul.f32 %v3680, %v4122
        %vm4124 = vcmp.eq.f32.partialorder %v3680, inf
        %v4125 = vsel %vm4124, %v3680, %v4123
        %vm4126 = vcmp.eq.f32.partialorder %v3680, 0.0
        %v4127 = vand.u32 %v3680, 2147483648
        %v4128 = vsel %vm4126, %v4127, %v4125
        %v4129 = vadd.f32 %v3553, 0.001
        %v4130 = vadd.f32 %v3554, 0.001
        %v4131 = vadd.f32 %v3555, 0.001
        %v4132 = vadd.f32 %v3556, 0.001
        %v4133 = vadd.f32 %v3557, 0.001
        %v4134 = vadd.f32 %v3558, 0.001
        %v4135 = vadd.f32 %v3559, 0.001
        %v4136 = vadd.f32 %v3560, 0.001
        %v4137 = vadd.f32 %v3561, 0.001
        %v4138 = vadd.f32 %v3562, 0.001
        %v4139 = vadd.f32 %v3563, 0.001
        %v4140 = vadd.f32 %v3564, 0.001
        %v4141 = vadd.f32 %v3565, 0.001
        %v4142 = vadd.f32 %v3566, 0.001
        %v4143 = vadd.f32 %v3567, 0.001
        %v4144 = vadd.f32 %v3568, 0.001
        %v4145 = vadd.f32 %v3569, 0.001
        %v4146 = vadd.f32 %v3570, 0.001
        %v4147 = vadd.f32 %v3571, 0.001
        %v4148 = vadd.f32 %v3572, 0.001
        %v4149 = vadd.f32 %v3573, 0.001
        %v4150 = vadd.f32 %v3574, 0.001
        %v4151 = vadd.f32 %v3575, 0.001
        %v4152 = vadd.f32 %v3576, 0.001
        %v4153 = vadd.f32 %v3577, 0.001
        %v4154 = vadd.f32 %v3578, 0.001
        %v4155 = vadd.f32 %v3579, 0.001
        %v4156 = vadd.f32 %v3580, 0.001
        %v4157 = vadd.f32 %v3581, 0.001
        %v4158 = vadd.f32 %v3582, 0.001
        %v4159 = vadd.f32 %v3583, 0.001
        %v4160 = vadd.f32 %v3584, 0.001
        %v4161 = vadd.f32 %v3585, 0.001
        %v4162 = vadd.f32 %v3586, 0.001
        %v4163 = vadd.f32 %v3587, 0.001
        %v4164 = vadd.f32 %v3588, 0.001
        %v4165 = vadd.f32 %v3589, 0.001
        %v4166 = vadd.f32 %v3590, 0.001
        %v4167 = vadd.f32 %v3591, 0.001
        %v4168 = vadd.f32 %v3592, 0.001
        %v4169 = vadd.f32 %v3593, 0.001
        %v4170 = vadd.f32 %v3594, 0.001
        %v4171 = vadd.f32 %v3595, 0.001
        %v4172 = vadd.f32 %v3596, 0.001
        %v4173 = vadd.f32 %v3597, 0.001
        %v4174 = vadd.f32 %v3598, 0.001
        %v4175 = vadd.f32 %v3599, 0.001
        %v4176 = vadd.f32 %v3600, 0.001
        %v4177 = vadd.f32 %v3601, 0.001
        %v4178 = vadd.f32 %v3602, 0.001
        %v4179 = vadd.f32 %v3603, 0.001
        %v4180 = vadd.f32 %v3604, 0.001
        %v4181 = vadd.f32 %v3605, 0.001
        %v4182 = vadd.f32 %v3606, 0.001
        %v4183 = vadd.f32 %v3607, 0.001
        %v4184 = vadd.f32 %v3608, 0.001
        %v4185 = vadd.f32 %v3609, 0.001
        %v4186 = vadd.f32 %v3610, 0.001
        %v4187 = vadd.f32 %v3611, 0.001
        %v4188 = vadd.f32 %v3612, 0.001
        %v4189 = vadd.f32 %v3613, 0.001
        %v4190 = vadd.f32 %v3614, 0.001
        %v4191 = vadd.f32 %v3615, 0.001
        %v4192 = vadd.f32 %v3616, 0.001
        %v4193 = vrsqrt.pop %v4129
        %v4194 = vmul.f32 %v4129, %v4193
        %vm4195 = vcmp.eq.f32.partialorder %v4129, inf
        %v4196 = vsel %vm4195, %v4129, %v4194
        %vm4197 = vcmp.eq.f32.partialorder %v4129, 0.0
        %v4198 = vand.u32 %v4129, 2147483648
        %v4199 = vsel %vm4197, %v4198, %v4196
        %v4200 = vrsqrt.pop %v4130
        %v4201 = vmul.f32 %v4130, %v4200
        %vm4202 = vcmp.eq.f32.partialorder %v4130, inf
        %v4203 = vsel %vm4202, %v4130, %v4201
        %vm4204 = vcmp.eq.f32.partialorder %v4130, 0.0
        %v4205 = vand.u32 %v4130, 2147483648
        %v4206 = vsel %vm4204, %v4205, %v4203
        %v4207 = vrsqrt.pop %v4131
        %v4208 = vmul.f32 %v4131, %v4207
        %vm4209 = vcmp.eq.f32.partialorder %v4131, inf
        %v4210 = vsel %vm4209, %v4131, %v4208
        %vm4211 = vcmp.eq.f32.partialorder %v4131, 0.0
        %v4212 = vand.u32 %v4131, 2147483648
        %v4213 = vsel %vm4211, %v4212, %v4210
        %v4214 = vrsqrt.pop %v4132
        %v4215 = vmul.f32 %v4132, %v4214
        %vm4216 = vcmp.eq.f32.partialorder %v4132, inf
        %v4217 = vsel %vm4216, %v4132, %v4215
        %vm4218 = vcmp.eq.f32.partialorder %v4132, 0.0
        %v4219 = vand.u32 %v4132, 2147483648
        %v4220 = vsel %vm4218, %v4219, %v4217
        %v4221 = vrsqrt.pop %v4133
        %v4222 = vmul.f32 %v4133, %v4221
        %vm4223 = vcmp.eq.f32.partialorder %v4133, inf
        %v4224 = vsel %vm4223, %v4133, %v4222
        %vm4225 = vcmp.eq.f32.partialorder %v4133, 0.0
        %v4226 = vand.u32 %v4133, 2147483648
        %v4227 = vsel %vm4225, %v4226, %v4224
        %v4228 = vrsqrt.pop %v4134
        %v4229 = vmul.f32 %v4134, %v4228
        %vm4230 = vcmp.eq.f32.partialorder %v4134, inf
        %v4231 = vsel %vm4230, %v4134, %v4229
        %vm4232 = vcmp.eq.f32.partialorder %v4134, 0.0
        %v4233 = vand.u32 %v4134, 2147483648
        %v4234 = vsel %vm4232, %v4233, %v4231
        %v4235 = vrsqrt.pop %v4135
        %v4236 = vmul.f32 %v4135, %v4235
        %vm4237 = vcmp.eq.f32.partialorder %v4135, inf
        %v4238 = vsel %vm4237, %v4135, %v4236
        %vm4239 = vcmp.eq.f32.partialorder %v4135, 0.0
        %v4240 = vand.u32 %v4135, 2147483648
        %v4241 = vsel %vm4239, %v4240, %v4238
        %v4242 = vrsqrt.pop %v4136
        %v4243 = vmul.f32 %v4136, %v4242
        %vm4244 = vcmp.eq.f32.partialorder %v4136, inf
        %v4245 = vsel %vm4244, %v4136, %v4243
        %vm4246 = vcmp.eq.f32.partialorder %v4136, 0.0
        %v4247 = vand.u32 %v4136, 2147483648
        %v4248 = vsel %vm4246, %v4247, %v4245
        %v4249 = vrsqrt.pop %v4137
        %v4250 = vmul.f32 %v4137, %v4249
        %vm4251 = vcmp.eq.f32.partialorder %v4137, inf
        %v4252 = vsel %vm4251, %v4137, %v4250
        %vm4253 = vcmp.eq.f32.partialorder %v4137, 0.0
        %v4254 = vand.u32 %v4137, 2147483648
        %v4255 = vsel %vm4253, %v4254, %v4252
        %v4256 = vrsqrt.pop %v4138
        %v4257 = vmul.f32 %v4138, %v4256
        %vm4258 = vcmp.eq.f32.partialorder %v4138, inf
        %v4259 = vsel %vm4258, %v4138, %v4257
        %vm4260 = vcmp.eq.f32.partialorder %v4138, 0.0
        %v4261 = vand.u32 %v4138, 2147483648
        %v4262 = vsel %vm4260, %v4261, %v4259
        %v4263 = vrsqrt.pop %v4139
        %v4264 = vmul.f32 %v4139, %v4263
        %vm4265 = vcmp.eq.f32.partialorder %v4139, inf
        %v4266 = vsel %vm4265, %v4139, %v4264
        %vm4267 = vcmp.eq.f32.partialorder %v4139, 0.0
        %v4268 = vand.u32 %v4139, 2147483648
        %v4269 = vsel %vm4267, %v4268, %v4266
        %v4270 = vrsqrt.pop %v4140
        %v4271 = vmul.f32 %v4140, %v4270
        %vm4272 = vcmp.eq.f32.partialorder %v4140, inf
        %v4273 = vsel %vm4272, %v4140, %v4271
        %vm4274 = vcmp.eq.f32.partialorder %v4140, 0.0
        %v4275 = vand.u32 %v4140, 2147483648
        %v4276 = vsel %vm4274, %v4275, %v4273
        %v4277 = vrsqrt.pop %v4141
        %v4278 = vmul.f32 %v4141, %v4277
        %vm4279 = vcmp.eq.f32.partialorder %v4141, inf
        %v4280 = vsel %vm4279, %v4141, %v4278
        %vm4281 = vcmp.eq.f32.partialorder %v4141, 0.0
        %v4282 = vand.u32 %v4141, 2147483648
        %v4283 = vsel %vm4281, %v4282, %v4280
        %v4284 = vrsqrt.pop %v4142
        %v4285 = vmul.f32 %v4142, %v4284
        %vm4286 = vcmp.eq.f32.partialorder %v4142, inf
        %v4287 = vsel %vm4286, %v4142, %v4285
        %vm4288 = vcmp.eq.f32.partialorder %v4142, 0.0
        %v4289 = vand.u32 %v4142, 2147483648
        %v4290 = vsel %vm4288, %v4289, %v4287
        %v4291 = vrsqrt.pop %v4143
        %v4292 = vmul.f32 %v4143, %v4291
        %vm4293 = vcmp.eq.f32.partialorder %v4143, inf
        %v4294 = vsel %vm4293, %v4143, %v4292
        %vm4295 = vcmp.eq.f32.partialorder %v4143, 0.0
        %v4296 = vand.u32 %v4143, 2147483648
        %v4297 = vsel %vm4295, %v4296, %v4294
        %v4298 = vrsqrt.pop %v4144
        %v4299 = vmul.f32 %v4144, %v4298
        %vm4300 = vcmp.eq.f32.partialorder %v4144, inf
        %v4301 = vsel %vm4300, %v4144, %v4299
        %vm4302 = vcmp.eq.f32.partialorder %v4144, 0.0
        %v4303 = vand.u32 %v4144, 2147483648
        %v4304 = vsel %vm4302, %v4303, %v4301
        %v4305 = vrsqrt.pop %v4145
        %v4306 = vmul.f32 %v4145, %v4305
        %vm4307 = vcmp.eq.f32.partialorder %v4145, inf
        %v4308 = vsel %vm4307, %v4145, %v4306
        %vm4309 = vcmp.eq.f32.partialorder %v4145, 0.0
        %v4310 = vand.u32 %v4145, 2147483648
        %v4311 = vsel %vm4309, %v4310, %v4308
        %v4312 = vrsqrt.pop %v4146
        %v4313 = vmul.f32 %v4146, %v4312
        %vm4314 = vcmp.eq.f32.partialorder %v4146, inf
        %v4315 = vsel %vm4314, %v4146, %v4313
        %vm4316 = vcmp.eq.f32.partialorder %v4146, 0.0
        %v4317 = vand.u32 %v4146, 2147483648
        %v4318 = vsel %vm4316, %v4317, %v4315
        %v4319 = vrsqrt.pop %v4147
        %v4320 = vmul.f32 %v4147, %v4319
        %vm4321 = vcmp.eq.f32.partialorder %v4147, inf
        %v4322 = vsel %vm4321, %v4147, %v4320
        %vm4323 = vcmp.eq.f32.partialorder %v4147, 0.0
        %v4324 = vand.u32 %v4147, 2147483648
        %v4325 = vsel %vm4323, %v4324, %v4322
        %v4326 = vrsqrt.pop %v4148
        %v4327 = vmul.f32 %v4148, %v4326
        %vm4328 = vcmp.eq.f32.partialorder %v4148, inf
        %v4329 = vsel %vm4328, %v4148, %v4327
        %vm4330 = vcmp.eq.f32.partialorder %v4148, 0.0
        %v4331 = vand.u32 %v4148, 2147483648
        %v4332 = vsel %vm4330, %v4331, %v4329
        %v4333 = vrsqrt.pop %v4149
        %v4334 = vmul.f32 %v4149, %v4333
        %vm4335 = vcmp.eq.f32.partialorder %v4149, inf
        %v4336 = vsel %vm4335, %v4149, %v4334
        %vm4337 = vcmp.eq.f32.partialorder %v4149, 0.0
        %v4338 = vand.u32 %v4149, 2147483648
        %v4339 = vsel %vm4337, %v4338, %v4336
        %v4340 = vrsqrt.pop %v4150
        %v4341 = vmul.f32 %v4150, %v4340
        %vm4342 = vcmp.eq.f32.partialorder %v4150, inf
        %v4343 = vsel %vm4342, %v4150, %v4341
        %vm4344 = vcmp.eq.f32.partialorder %v4150, 0.0
        %v4345 = vand.u32 %v4150, 2147483648
        %v4346 = vsel %vm4344, %v4345, %v4343
        %v4347 = vrsqrt.pop %v4151
        %v4348 = vmul.f32 %v4151, %v4347
        %vm4349 = vcmp.eq.f32.partialorder %v4151, inf
        %v4350 = vsel %vm4349, %v4151, %v4348
        %vm4351 = vcmp.eq.f32.partialorder %v4151, 0.0
        %v4352 = vand.u32 %v4151, 2147483648
        %v4353 = vsel %vm4351, %v4352, %v4350
        %v4354 = vrsqrt.pop %v4152
        %v4355 = vmul.f32 %v4152, %v4354
        %vm4356 = vcmp.eq.f32.partialorder %v4152, inf
        %v4357 = vsel %vm4356, %v4152, %v4355
        %vm4358 = vcmp.eq.f32.partialorder %v4152, 0.0
        %v4359 = vand.u32 %v4152, 2147483648
        %v4360 = vsel %vm4358, %v4359, %v4357
        %v4361 = vrsqrt.pop %v4153
        %v4362 = vmul.f32 %v4153, %v4361
        %vm4363 = vcmp.eq.f32.partialorder %v4153, inf
        %v4364 = vsel %vm4363, %v4153, %v4362
        %vm4365 = vcmp.eq.f32.partialorder %v4153, 0.0
        %v4366 = vand.u32 %v4153, 2147483648
        %v4367 = vsel %vm4365, %v4366, %v4364
        %v4368 = vrsqrt.pop %v4154
        %v4369 = vmul.f32 %v4154, %v4368
        %vm4370 = vcmp.eq.f32.partialorder %v4154, inf
        %v4371 = vsel %vm4370, %v4154, %v4369
        %vm4372 = vcmp.eq.f32.partialorder %v4154, 0.0
        %v4373 = vand.u32 %v4154, 2147483648
        %v4374 = vsel %vm4372, %v4373, %v4371
        %v4375 = vrsqrt.pop %v4155
        %v4376 = vmul.f32 %v4155, %v4375
        %vm4377 = vcmp.eq.f32.partialorder %v4155, inf
        %v4378 = vsel %vm4377, %v4155, %v4376
        %vm4379 = vcmp.eq.f32.partialorder %v4155, 0.0
        %v4380 = vand.u32 %v4155, 2147483648
        %v4381 = vsel %vm4379, %v4380, %v4378
        %v4382 = vrsqrt.pop %v4156
        %v4383 = vmul.f32 %v4156, %v4382
        %vm4384 = vcmp.eq.f32.partialorder %v4156, inf
        %v4385 = vsel %vm4384, %v4156, %v4383
        %vm4386 = vcmp.eq.f32.partialorder %v4156, 0.0
        %v4387 = vand.u32 %v4156, 2147483648
        %v4388 = vsel %vm4386, %v4387, %v4385
        %v4389 = vrsqrt.pop %v4157
        %v4390 = vmul.f32 %v4157, %v4389
        %vm4391 = vcmp.eq.f32.partialorder %v4157, inf
        %v4392 = vsel %vm4391, %v4157, %v4390
        %vm4393 = vcmp.eq.f32.partialorder %v4157, 0.0
        %v4394 = vand.u32 %v4157, 2147483648
        %v4395 = vsel %vm4393, %v4394, %v4392
        %v4396 = vrsqrt.pop %v4158
        %v4397 = vmul.f32 %v4158, %v4396
        %vm4398 = vcmp.eq.f32.partialorder %v4158, inf
        %v4399 = vsel %vm4398, %v4158, %v4397
        %vm4400 = vcmp.eq.f32.partialorder %v4158, 0.0
        %v4401 = vand.u32 %v4158, 2147483648
        %v4402 = vsel %vm4400, %v4401, %v4399
        %v4403 = vrsqrt.pop %v4159
        %v4404 = vmul.f32 %v4159, %v4403
        %vm4405 = vcmp.eq.f32.partialorder %v4159, inf
        %v4406 = vsel %vm4405, %v4159, %v4404
        %vm4407 = vcmp.eq.f32.partialorder %v4159, 0.0
        %v4408 = vand.u32 %v4159, 2147483648
        %v4409 = vsel %vm4407, %v4408, %v4406
        %v4410 = vrsqrt.pop %v4160
        %v4411 = vmul.f32 %v4160, %v4410
        %vm4412 = vcmp.eq.f32.partialorder %v4160, inf
        %v4413 = vsel %vm4412, %v4160, %v4411
        %vm4414 = vcmp.eq.f32.partialorder %v4160, 0.0
        %v4415 = vand.u32 %v4160, 2147483648
        %v4416 = vsel %vm4414, %v4415, %v4413
        %v4417 = vrsqrt.pop %v4161
        %v4418 = vmul.f32 %v4161, %v4417
        %vm4419 = vcmp.eq.f32.partialorder %v4161, inf
        %v4420 = vsel %vm4419, %v4161, %v4418
        %vm4421 = vcmp.eq.f32.partialorder %v4161, 0.0
        %v4422 = vand.u32 %v4161, 2147483648
        %v4423 = vsel %vm4421, %v4422, %v4420
        %v4424 = vrsqrt.pop %v4162
        %v4425 = vmul.f32 %v4162, %v4424
        %vm4426 = vcmp.eq.f32.partialorder %v4162, inf
        %v4427 = vsel %vm4426, %v4162, %v4425
        %vm4428 = vcmp.eq.f32.partialorder %v4162, 0.0
        %v4429 = vand.u32 %v4162, 2147483648
        %v4430 = vsel %vm4428, %v4429, %v4427
        %v4431 = vrsqrt.pop %v4163
        %v4432 = vmul.f32 %v4163, %v4431
        %vm4433 = vcmp.eq.f32.partialorder %v4163, inf
        %v4434 = vsel %vm4433, %v4163, %v4432
        %vm4435 = vcmp.eq.f32.partialorder %v4163, 0.0
        %v4436 = vand.u32 %v4163, 2147483648
        %v4437 = vsel %vm4435, %v4436, %v4434
        %v4438 = vrsqrt.pop %v4164
        %v4439 = vmul.f32 %v4164, %v4438
        %vm4440 = vcmp.eq.f32.partialorder %v4164, inf
        %v4441 = vsel %vm4440, %v4164, %v4439
        %vm4442 = vcmp.eq.f32.partialorder %v4164, 0.0
        %v4443 = vand.u32 %v4164, 2147483648
        %v4444 = vsel %vm4442, %v4443, %v4441
        %v4445 = vrsqrt.pop %v4165
        %v4446 = vmul.f32 %v4165, %v4445
        %vm4447 = vcmp.eq.f32.partialorder %v4165, inf
        %v4448 = vsel %vm4447, %v4165, %v4446
        %vm4449 = vcmp.eq.f32.partialorder %v4165, 0.0
        %v4450 = vand.u32 %v4165, 2147483648
        %v4451 = vsel %vm4449, %v4450, %v4448
        %v4452 = vrsqrt.pop %v4166
        %v4453 = vmul.f32 %v4166, %v4452
        %vm4454 = vcmp.eq.f32.partialorder %v4166, inf
        %v4455 = vsel %vm4454, %v4166, %v4453
        %vm4456 = vcmp.eq.f32.partialorder %v4166, 0.0
        %v4457 = vand.u32 %v4166, 2147483648
        %v4458 = vsel %vm4456, %v4457, %v4455
        %v4459 = vrsqrt.pop %v4167
        %v4460 = vmul.f32 %v4167, %v4459
        %vm4461 = vcmp.eq.f32.partialorder %v4167, inf
        %v4462 = vsel %vm4461, %v4167, %v4460
        %vm4463 = vcmp.eq.f32.partialorder %v4167, 0.0
        %v4464 = vand.u32 %v4167, 2147483648
        %v4465 = vsel %vm4463, %v4464, %v4462
        %v4466 = vrsqrt.pop %v4168
        %v4467 = vmul.f32 %v4168, %v4466
        %vm4468 = vcmp.eq.f32.partialorder %v4168, inf
        %v4469 = vsel %vm4468, %v4168, %v4467
        %vm4470 = vcmp.eq.f32.partialorder %v4168, 0.0
        %v4471 = vand.u32 %v4168, 2147483648
        %v4472 = vsel %vm4470, %v4471, %v4469
        %v4473 = vrsqrt.pop %v4169
        %v4474 = vmul.f32 %v4169, %v4473
        %vm4475 = vcmp.eq.f32.partialorder %v4169, inf
        %v4476 = vsel %vm4475, %v4169, %v4474
        %vm4477 = vcmp.eq.f32.partialorder %v4169, 0.0
        %v4478 = vand.u32 %v4169, 2147483648
        %v4479 = vsel %vm4477, %v4478, %v4476
        %v4480 = vrsqrt.pop %v4170
        %v4481 = vmul.f32 %v4170, %v4480
        %vm4482 = vcmp.eq.f32.partialorder %v4170, inf
        %v4483 = vsel %vm4482, %v4170, %v4481
        %vm4484 = vcmp.eq.f32.partialorder %v4170, 0.0
        %v4485 = vand.u32 %v4170, 2147483648
        %v4486 = vsel %vm4484, %v4485, %v4483
        %v4487 = vrsqrt.pop %v4171
        %v4488 = vmul.f32 %v4171, %v4487
        %vm4489 = vcmp.eq.f32.partialorder %v4171, inf
        %v4490 = vsel %vm4489, %v4171, %v4488
        %vm4491 = vcmp.eq.f32.partialorder %v4171, 0.0
        %v4492 = vand.u32 %v4171, 2147483648
        %v4493 = vsel %vm4491, %v4492, %v4490
        %v4494 = vrsqrt.pop %v4172
        %v4495 = vmul.f32 %v4172, %v4494
        %vm4496 = vcmp.eq.f32.partialorder %v4172, inf
        %v4497 = vsel %vm4496, %v4172, %v4495
        %vm4498 = vcmp.eq.f32.partialorder %v4172, 0.0
        %v4499 = vand.u32 %v4172, 2147483648
        %v4500 = vsel %vm4498, %v4499, %v4497
        %v4501 = vrsqrt.pop %v4173
        %v4502 = vmul.f32 %v4173, %v4501
        %vm4503 = vcmp.eq.f32.partialorder %v4173, inf
        %v4504 = vsel %vm4503, %v4173, %v4502
        %vm4505 = vcmp.eq.f32.partialorder %v4173, 0.0
        %v4506 = vand.u32 %v4173, 2147483648
        %v4507 = vsel %vm4505, %v4506, %v4504
        %v4508 = vrsqrt.pop %v4174
        %v4509 = vmul.f32 %v4174, %v4508
        %vm4510 = vcmp.eq.f32.partialorder %v4174, inf
        %v4511 = vsel %vm4510, %v4174, %v4509
        %vm4512 = vcmp.eq.f32.partialorder %v4174, 0.0
        %v4513 = vand.u32 %v4174, 2147483648
        %v4514 = vsel %vm4512, %v4513, %v4511
        %v4515 = vrsqrt.pop %v4175
        %v4516 = vmul.f32 %v4175, %v4515
        %vm4517 = vcmp.eq.f32.partialorder %v4175, inf
        %v4518 = vsel %vm4517, %v4175, %v4516
        %vm4519 = vcmp.eq.f32.partialorder %v4175, 0.0
        %v4520 = vand.u32 %v4175, 2147483648
        %v4521 = vsel %vm4519, %v4520, %v4518
        %v4522 = vrsqrt.pop %v4176
        %v4523 = vmul.f32 %v4176, %v4522
        %vm4524 = vcmp.eq.f32.partialorder %v4176, inf
        %v4525 = vsel %vm4524, %v4176, %v4523
        %vm4526 = vcmp.eq.f32.partialorder %v4176, 0.0
        %v4527 = vand.u32 %v4176, 2147483648
        %v4528 = vsel %vm4526, %v4527, %v4525
        %v4529 = vrsqrt.pop %v4177
        %v4530 = vmul.f32 %v4177, %v4529
        %vm4531 = vcmp.eq.f32.partialorder %v4177, inf
        %v4532 = vsel %vm4531, %v4177, %v4530
        %vm4533 = vcmp.eq.f32.partialorder %v4177, 0.0
        %v4534 = vand.u32 %v4177, 2147483648
        %v4535 = vsel %vm4533, %v4534, %v4532
        %v4536 = vrsqrt.pop %v4178
        %v4537 = vmul.f32 %v4178, %v4536
        %vm4538 = vcmp.eq.f32.partialorder %v4178, inf
        %v4539 = vsel %vm4538, %v4178, %v4537
        %vm4540 = vcmp.eq.f32.partialorder %v4178, 0.0
        %v4541 = vand.u32 %v4178, 2147483648
        %v4542 = vsel %vm4540, %v4541, %v4539
        %v4543 = vrsqrt.pop %v4179
        %v4544 = vmul.f32 %v4179, %v4543
        %vm4545 = vcmp.eq.f32.partialorder %v4179, inf
        %v4546 = vsel %vm4545, %v4179, %v4544
        %vm4547 = vcmp.eq.f32.partialorder %v4179, 0.0
        %v4548 = vand.u32 %v4179, 2147483648
        %v4549 = vsel %vm4547, %v4548, %v4546
        %v4550 = vrsqrt.pop %v4180
        %v4551 = vmul.f32 %v4180, %v4550
        %vm4552 = vcmp.eq.f32.partialorder %v4180, inf
        %v4553 = vsel %vm4552, %v4180, %v4551
        %vm4554 = vcmp.eq.f32.partialorder %v4180, 0.0
        %v4555 = vand.u32 %v4180, 2147483648
        %v4556 = vsel %vm4554, %v4555, %v4553
        %v4557 = vrsqrt.pop %v4181
        %v4558 = vmul.f32 %v4181, %v4557
        %vm4559 = vcmp.eq.f32.partialorder %v4181, inf
        %v4560 = vsel %vm4559, %v4181, %v4558
        %vm4561 = vcmp.eq.f32.partialorder %v4181, 0.0
        %v4562 = vand.u32 %v4181, 2147483648
        %v4563 = vsel %vm4561, %v4562, %v4560
        %v4564 = vrsqrt.pop %v4182
        %v4565 = vmul.f32 %v4182, %v4564
        %vm4566 = vcmp.eq.f32.partialorder %v4182, inf
        %v4567 = vsel %vm4566, %v4182, %v4565
        %vm4568 = vcmp.eq.f32.partialorder %v4182, 0.0
        %v4569 = vand.u32 %v4182, 2147483648
        %v4570 = vsel %vm4568, %v4569, %v4567
        %v4571 = vrsqrt.pop %v4183
        %v4572 = vmul.f32 %v4183, %v4571
        %vm4573 = vcmp.eq.f32.partialorder %v4183, inf
        %v4574 = vsel %vm4573, %v4183, %v4572
        %vm4575 = vcmp.eq.f32.partialorder %v4183, 0.0
        %v4576 = vand.u32 %v4183, 2147483648
        %v4577 = vsel %vm4575, %v4576, %v4574
        %v4578 = vrsqrt.pop %v4184
        %v4579 = vmul.f32 %v4184, %v4578
        %vm4580 = vcmp.eq.f32.partialorder %v4184, inf
        %v4581 = vsel %vm4580, %v4184, %v4579
        %vm4582 = vcmp.eq.f32.partialorder %v4184, 0.0
        %v4583 = vand.u32 %v4184, 2147483648
        %v4584 = vsel %vm4582, %v4583, %v4581
        %v4585 = vrsqrt.pop %v4185
        %v4586 = vmul.f32 %v4185, %v4585
        %vm4587 = vcmp.eq.f32.partialorder %v4185, inf
        %v4588 = vsel %vm4587, %v4185, %v4586
        %vm4589 = vcmp.eq.f32.partialorder %v4185, 0.0
        %v4590 = vand.u32 %v4185, 2147483648
        %v4591 = vsel %vm4589, %v4590, %v4588
        %v4592 = vrsqrt.pop %v4186
        %v4593 = vmul.f32 %v4186, %v4592
        %vm4594 = vcmp.eq.f32.partialorder %v4186, inf
        %v4595 = vsel %vm4594, %v4186, %v4593
        %vm4596 = vcmp.eq.f32.partialorder %v4186, 0.0
        %v4597 = vand.u32 %v4186, 2147483648
        %v4598 = vsel %vm4596, %v4597, %v4595
        %v4599 = vrsqrt.pop %v4187
        %v4600 = vmul.f32 %v4187, %v4599
        %vm4601 = vcmp.eq.f32.partialorder %v4187, inf
        %v4602 = vsel %vm4601, %v4187, %v4600
        %vm4603 = vcmp.eq.f32.partialorder %v4187, 0.0
        %v4604 = vand.u32 %v4187, 2147483648
        %v4605 = vsel %vm4603, %v4604, %v4602
        %v4606 = vrsqrt.pop %v4188
        %v4607 = vmul.f32 %v4188, %v4606
        %vm4608 = vcmp.eq.f32.partialorder %v4188, inf
        %v4609 = vsel %vm4608, %v4188, %v4607
        %vm4610 = vcmp.eq.f32.partialorder %v4188, 0.0
        %v4611 = vand.u32 %v4188, 2147483648
        %v4612 = vsel %vm4610, %v4611, %v4609
        %v4613 = vrsqrt.pop %v4189
        %v4614 = vmul.f32 %v4189, %v4613
        %vm4615 = vcmp.eq.f32.partialorder %v4189, inf
        %v4616 = vsel %vm4615, %v4189, %v4614
        %vm4617 = vcmp.eq.f32.partialorder %v4189, 0.0
        %v4618 = vand.u32 %v4189, 2147483648
        %v4619 = vsel %vm4617, %v4618, %v4616
        %v4620 = vrsqrt.pop %v4190
        %v4621 = vmul.f32 %v4190, %v4620
        %vm4622 = vcmp.eq.f32.partialorder %v4190, inf
        %v4623 = vsel %vm4622, %v4190, %v4621
        %vm4624 = vcmp.eq.f32.partialorder %v4190, 0.0
        %v4625 = vand.u32 %v4190, 2147483648
        %v4626 = vsel %vm4624, %v4625, %v4623
        %v4627 = vrsqrt.pop %v4191
        %v4628 = vmul.f32 %v4191, %v4627
        %vm4629 = vcmp.eq.f32.partialorder %v4191, inf
        %v4630 = vsel %vm4629, %v4191, %v4628
        %vm4631 = vcmp.eq.f32.partialorder %v4191, 0.0
        %v4632 = vand.u32 %v4191, 2147483648
        %v4633 = vsel %vm4631, %v4632, %v4630
        %v4634 = vrsqrt.pop %v4192
        %v4635 = vmul.f32 %v4192, %v4634
        %vm4636 = vcmp.eq.f32.partialorder %v4192, inf
        %v4637 = vsel %vm4636, %v4192, %v4635
        %vm4638 = vcmp.eq.f32.partialorder %v4192, 0.0
        %v4639 = vand.u32 %v4192, 2147483648
        %v4640 = vsel %vm4638, %v4639, %v4637
        %v4641 = vsub.f32 %v3687, %v4199
        %v4642 = vsub.f32 %v3694, %v4206
        %v4643 = vsub.f32 %v3701, %v4213
        %v4644 = vsub.f32 %v3708, %v4220
        %v4645 = vsub.f32 %v3715, %v4227
        %v4646 = vsub.f32 %v3722, %v4234
        %v4647 = vsub.f32 %v3729, %v4241
        %v4648 = vsub.f32 %v3736, %v4248
        %v4649 = vsub.f32 %v3743, %v4255
        %v4650 = vsub.f32 %v3750, %v4262
        %v4651 = vsub.f32 %v3757, %v4269
        %v4652 = vsub.f32 %v3764, %v4276
        %v4653 = vsub.f32 %v3771, %v4283
        %v4654 = vsub.f32 %v3778, %v4290
        %v4655 = vsub.f32 %v3785, %v4297
        %v4656 = vsub.f32 %v3792, %v4304
        %v4657 = vsub.f32 %v3799, %v4311
        %v4658 = vsub.f32 %v3806, %v4318
        %v4659 = vsub.f32 %v3813, %v4325
        %v4660 = vsub.f32 %v3820, %v4332
        %v4661 = vsub.f32 %v3827, %v4339
        %v4662 = vsub.f32 %v3834, %v4346
        %v4663 = vsub.f32 %v3841, %v4353
        %v4664 = vsub.f32 %v3848, %v4360
        %v4665 = vsub.f32 %v3855, %v4367
        %v4666 = vsub.f32 %v3862, %v4374
        %v4667 = vsub.f32 %v3869, %v4381
        %v4668 = vsub.f32 %v3876, %v4388
        %v4669 = vsub.f32 %v3883, %v4395
        %v4670 = vsub.f32 %v3890, %v4402
        %v4671 = vsub.f32 %v3897, %v4409
        %v4672 = vsub.f32 %v3904, %v4416
        %v4673 = vsub.f32 %v3911, %v4423
        %v4674 = vsub.f32 %v3918, %v4430
        %v4675 = vsub.f32 %v3925, %v4437
        %v4676 = vsub.f32 %v3932, %v4444
        %v4677 = vsub.f32 %v3939, %v4451
        %v4678 = vsub.f32 %v3946, %v4458
        %v4679 = vsub.f32 %v3953, %v4465
        %v4680 = vsub.f32 %v3960, %v4472
        %v4681 = vsub.f32 %v3967, %v4479
        %v4682 = vsub.f32 %v3974, %v4486
        %v4683 = vsub.f32 %v3981, %v4493
        %v4684 = vsub.f32 %v3988, %v4500
        %v4685 = vsub.f32 %v3995, %v4507
        %v4686 = vsub.f32 %v4002, %v4514
        %v4687 = vsub.f32 %v4009, %v4521
        %v4688 = vsub.f32 %v4016, %v4528
        %v4689 = vsub.f32 %v4023, %v4535
        %v4690 = vsub.f32 %v4030, %v4542
        %v4691 = vsub.f32 %v4037, %v4549
        %v4692 = vsub.f32 %v4044, %v4556
        %v4693 = vsub.f32 %v4051, %v4563
        %v4694 = vsub.f32 %v4058, %v4570
        %v4695 = vsub.f32 %v4065, %v4577
        %v4696 = vsub.f32 %v4072, %v4584
        %v4697 = vsub.f32 %v4079, %v4591
        %v4698 = vsub.f32 %v4086, %v4598
        %v4699 = vsub.f32 %v4093, %v4605
        %v4700 = vsub.f32 %v4100, %v4612
        %v4701 = vsub.f32 %v4107, %v4619
        %v4702 = vsub.f32 %v4114, %v4626
        %v4703 = vsub.f32 %v4121, %v4633
        %v4704 = vsub.f32 %v4128, %v4640
        %v4705 = vmul.f32 %v4641, %v4641
        %v4706 = vmul.f32 %v4642, %v4642
        %v4707 = vmul.f32 %v4643, %v4643
        %v4708 = vmul.f32 %v4644, %v4644
        %v4709 = vmul.f32 %v4645, %v4645
        %v4710 = vmul.f32 %v4646, %v4646
        %v4711 = vmul.f32 %v4647, %v4647
        %v4712 = vmul.f32 %v4648, %v4648
        %v4713 = vmul.f32 %v4649, %v4649
        %v4714 = vmul.f32 %v4650, %v4650
        %v4715 = vmul.f32 %v4651, %v4651
        %v4716 = vmul.f32 %v4652, %v4652
        %v4717 = vmul.f32 %v4653, %v4653
        %v4718 = vmul.f32 %v4654, %v4654
        %v4719 = vmul.f32 %v4655, %v4655
        %v4720 = vmul.f32 %v4656, %v4656
        %v4721 = vmul.f32 %v4657, %v4657
        %v4722 = vmul.f32 %v4658, %v4658
        %v4723 = vmul.f32 %v4659, %v4659
        %v4724 = vmul.f32 %v4660, %v4660
        %v4725 = vmul.f32 %v4661, %v4661
        %v4726 = vmul.f32 %v4662, %v4662
        %v4727 = vmul.f32 %v4663, %v4663
        %v4728 = vmul.f32 %v4664, %v4664
        %v4729 = vmul.f32 %v4665, %v4665
        %v4730 = vmul.f32 %v4666, %v4666
        %v4731 = vmul.f32 %v4667, %v4667
        %v4732 = vmul.f32 %v4668, %v4668
        %v4733 = vmul.f32 %v4669, %v4669
        %v4734 = vmul.f32 %v4670, %v4670
        %v4735 = vmul.f32 %v4671, %v4671
        %v4736 = vmul.f32 %v4672, %v4672
        %v4737 = vmul.f32 %v4673, %v4673
        %v4738 = vmul.f32 %v4674, %v4674
        %v4739 = vmul.f32 %v4675, %v4675
        %v4740 = vmul.f32 %v4676, %v4676
        %v4741 = vmul.f32 %v4677, %v4677
        %v4742 = vmul.f32 %v4678, %v4678
        %v4743 = vmul.f32 %v4679, %v4679
        %v4744 = vmul.f32 %v4680, %v4680
        %v4745 = vmul.f32 %v4681, %v4681
        %v4746 = vmul.f32 %v4682, %v4682
        %v4747 = vmul.f32 %v4683, %v4683
        %v4748 = vmul.f32 %v4684, %v4684
        %v4749 = vmul.f32 %v4685, %v4685
        %v4750 = vmul.f32 %v4686, %v4686
        %v4751 = vmul.f32 %v4687, %v4687
        %v4752 = vmul.f32 %v4688, %v4688
        %v4753 = vmul.f32 %v4689, %v4689
        %v4754 = vmul.f32 %v4690, %v4690
        %v4755 = vmul.f32 %v4691, %v4691
        %v4756 = vmul.f32 %v4692, %v4692
        %v4757 = vmul.f32 %v4693, %v4693
        %v4758 = vmul.f32 %v4694, %v4694
        %v4759 = vmul.f32 %v4695, %v4695
        %v4760 = vmul.f32 %v4696, %v4696
        %v4761 = vmul.f32 %v4697, %v4697
        %v4762 = vmul.f32 %v4698, %v4698
        %v4763 = vmul.f32 %v4699, %v4699
        %v4764 = vmul.f32 %v4700, %v4700
        %v4765 = vmul.f32 %v4701, %v4701
        %v4766 = vmul.f32 %v4702, %v4702
        %v4767 = vmul.f32 %v4703, %v4703
        %v4768 = vmul.f32 %v4704, %v4704
        %v4769 = vlaneseq
        %v4770 = vshrl.u32 %v4769, 7
        %v4771 = vsub.s32 6, %v4770
        %v4772 = vrot.slane %v2093, %v4771
        %v4773 = vlaneseq
        %v4774 = vshrl.u32 %v4773, 7
        %v4775 = vsub.s32 6, %v4774
        %v4776 = vrot.slane %v2094, %v4775
        %v4777 = vlaneseq
        %v4778 = vshrl.u32 %v4777, 7
        %v4779 = vsub.s32 6, %v4778
        %v4780 = vrot.slane %v2095, %v4779
        %v4781 = vlaneseq
        %v4782 = vshrl.u32 %v4781, 7
        %v4783 = vsub.s32 6, %v4782
        %v4784 = vrot.slane %v2096, %v4783
        %v4785 = vmul.f32 %v4772, %v4705
        %v4786 = vmul.f32 %v4776, %v4706
        %v4787 = vmul.f32 %v4780, %v4707
        %v4788 = vmul.f32 %v4784, %v4708
        %v4789 = vmul.f32 %v4772, %v4709
        %v4790 = vmul.f32 %v4776, %v4710
        %v4791 = vmul.f32 %v4780, %v4711
        %v4792 = vmul.f32 %v4784, %v4712
        %v4793 = vmul.f32 %v4772, %v4713
        %v4794 = vmul.f32 %v4776, %v4714
        %v4795 = vmul.f32 %v4780, %v4715
        %v4796 = vmul.f32 %v4784, %v4716
        %v4797 = vmul.f32 %v4772, %v4717
        %v4798 = vmul.f32 %v4776, %v4718
        %v4799 = vmul.f32 %v4780, %v4719
        %v4800 = vmul.f32 %v4784, %v4720
        %v4801 = vmul.f32 %v4772, %v4721
        %v4802 = vmul.f32 %v4776, %v4722
        %v4803 = vmul.f32 %v4780, %v4723
        %v4804 = vmul.f32 %v4784, %v4724
        %v4805 = vmul.f32 %v4772, %v4725
        %v4806 = vmul.f32 %v4776, %v4726
        %v4807 = vmul.f32 %v4780, %v4727
        %v4808 = vmul.f32 %v4784, %v4728
        %v4809 = vmul.f32 %v4772, %v4729
        %v4810 = vmul.f32 %v4776, %v4730
        %v4811 = vmul.f32 %v4780, %v4731
        %v4812 = vmul.f32 %v4784, %v4732
        %v4813 = vmul.f32 %v4772, %v4733
        %v4814 = vmul.f32 %v4776, %v4734
        %v4815 = vmul.f32 %v4780, %v4735
        %v4816 = vmul.f32 %v4784, %v4736
        %v4817 = vmul.f32 %v4772, %v4737
        %v4818 = vmul.f32 %v4776, %v4738
        %v4819 = vmul.f32 %v4780, %v4739
        %v4820 = vmul.f32 %v4784, %v4740
        %v4821 = vmul.f32 %v4772, %v4741
        %v4822 = vmul.f32 %v4776, %v4742
        %v4823 = vmul.f32 %v4780, %v4743
        %v4824 = vmul.f32 %v4784, %v4744
        %v4825 = vmul.f32 %v4772, %v4745
        %v4826 = vmul.f32 %v4776, %v4746
        %v4827 = vmul.f32 %v4780, %v4747
        %v4828 = vmul.f32 %v4784, %v4748
        %v4829 = vmul.f32 %v4772, %v4749
        %v4830 = vmul.f32 %v4776, %v4750
        %v4831 = vmul.f32 %v4780, %v4751
        %v4832 = vmul.f32 %v4784, %v4752
        %v4833 = vmul.f32 %v4772, %v4753
        %v4834 = vmul.f32 %v4776, %v4754
        %v4835 = vmul.f32 %v4780, %v4755
        %v4836 = vmul.f32 %v4784, %v4756
        %v4837 = vmul.f32 %v4772, %v4757
        %v4838 = vmul.f32 %v4776, %v4758
        %v4839 = vmul.f32 %v4780, %v4759
        %v4840 = vmul.f32 %v4784, %v4760
        %v4841 = vmul.f32 %v4772, %v4761
        %v4842 = vmul.f32 %v4776, %v4762
        %v4843 = vmul.f32 %v4780, %v4763
        %v4844 = vmul.f32 %v4784, %v4764
        %v4845 = vmul.f32 %v4772, %v4765
        %v4846 = vmul.f32 %v4776, %v4766
        %v4847 = vmul.f32 %v4780, %v4767
        %v4848 = vmul.f32 %v4784, %v4768
        %v4849 = vadd.f32 %v4785, %v4786
        %v4850 = vadd.f32 %v4849, %v4787
        %v4851 = vadd.f32 %v4850, %v4788
        %4852 = vadd.xlane.f32.xlu0 %v4851
        %v4853 = vpop.xlane.xlu0 %4852
        %v4854 = vadd.f32 %v4789, %v4790
        %v4855 = vadd.f32 %v4854, %v4791
        %v4856 = vadd.f32 %v4855, %v4792
        %4857 = vadd.xlane.f32.xlu0 %v4856
        %v4858 = vpop.xlane.xlu0 %4857
        %v4859 = vadd.f32 %v4793, %v4794
        %v4860 = vadd.f32 %v4859, %v4795
        %v4861 = vadd.f32 %v4860, %v4796
        %4862 = vadd.xlane.f32.xlu0 %v4861
        %v4863 = vpop.xlane.xlu0 %4862
        %v4864 = vadd.f32 %v4797, %v4798
        %v4865 = vadd.f32 %v4864, %v4799
        %v4866 = vadd.f32 %v4865, %v4800
        %4867 = vadd.xlane.f32.xlu0 %v4866
        %v4868 = vpop.xlane.xlu0 %4867
        %v4869 = vadd.f32 %v4801, %v4802
        %v4870 = vadd.f32 %v4869, %v4803
        %v4871 = vadd.f32 %v4870, %v4804
        %4872 = vadd.xlane.f32.xlu0 %v4871
        %v4873 = vpop.xlane.xlu0 %4872
        %v4874 = vadd.f32 %v4805, %v4806
        %v4875 = vadd.f32 %v4874, %v4807
        %v4876 = vadd.f32 %v4875, %v4808
        %4877 = vadd.xlane.f32.xlu0 %v4876
        %v4878 = vpop.xlane.xlu0 %4877
        %v4879 = vadd.f32 %v4809, %v4810
        %v4880 = vadd.f32 %v4879, %v4811
        %v4881 = vadd.f32 %v4880, %v4812
        %4882 = vadd.xlane.f32.xlu0 %v4881
        %v4883 = vpop.xlane.xlu0 %4882
        %v4884 = vadd.f32 %v4813, %v4814
        %v4885 = vadd.f32 %v4884, %v4815
        %v4886 = vadd.f32 %v4885, %v4816
        %4887 = vadd.xlane.f32.xlu0 %v4886
        %v4888 = vpop.xlane.xlu0 %4887
        %v4889 = vadd.f32 %v4817, %v4818
        %v4890 = vadd.f32 %v4889, %v4819
        %v4891 = vadd.f32 %v4890, %v4820
        %4892 = vadd.xlane.f32.xlu0 %v4891
        %v4893 = vpop.xlane.xlu0 %4892
        %v4894 = vadd.f32 %v4821, %v4822
        %v4895 = vadd.f32 %v4894, %v4823
        %v4896 = vadd.f32 %v4895, %v4824
        %4897 = vadd.xlane.f32.xlu0 %v4896
        %v4898 = vpop.xlane.xlu0 %4897
        %v4899 = vadd.f32 %v4825, %v4826
        %v4900 = vadd.f32 %v4899, %v4827
        %v4901 = vadd.f32 %v4900, %v4828
        %4902 = vadd.xlane.f32.xlu0 %v4901
        %v4903 = vpop.xlane.xlu0 %4902
        %v4904 = vadd.f32 %v4829, %v4830
        %v4905 = vadd.f32 %v4904, %v4831
        %v4906 = vadd.f32 %v4905, %v4832
        %4907 = vadd.xlane.f32.xlu0 %v4906
        %v4908 = vpop.xlane.xlu0 %4907
        %v4909 = vadd.f32 %v4833, %v4834
        %v4910 = vadd.f32 %v4909, %v4835
        %v4911 = vadd.f32 %v4910, %v4836
        %4912 = vadd.xlane.f32.xlu0 %v4911
        %v4913 = vpop.xlane.xlu0 %4912
        %v4914 = vadd.f32 %v4837, %v4838
        %v4915 = vadd.f32 %v4914, %v4839
        %v4916 = vadd.f32 %v4915, %v4840
        %4917 = vadd.xlane.f32.xlu0 %v4916
        %v4918 = vpop.xlane.xlu0 %4917
        %v4919 = vadd.f32 %v4841, %v4842
        %v4920 = vadd.f32 %v4919, %v4843
        %v4921 = vadd.f32 %v4920, %v4844
        %4922 = vadd.xlane.f32.xlu0 %v4921
        %v4923 = vpop.xlane.xlu0 %4922
        %v4924 = vadd.f32 %v4845, %v4846
        %v4925 = vadd.f32 %v4924, %v4847
        %v4926 = vadd.f32 %v4925, %v4848
        %4927 = vadd.xlane.f32.xlu0 %v4926
        %v4928 = vpop.xlane.xlu0 %4927
        %v4929 = vadd.f32 %v4853, 0.0
        %v4930 = vadd.f32 %v4858, 0.0
        %v4931 = vadd.f32 %v4863, 0.0
        %v4932 = vadd.f32 %v4868, 0.0
        %v4933 = vadd.f32 %v4873, 0.0
        %v4934 = vadd.f32 %v4878, 0.0
        %v4935 = vadd.f32 %v4883, 0.0
        %v4936 = vadd.f32 %v4888, 0.0
        %v4937 = vadd.f32 %v4893, 0.0
        %v4938 = vadd.f32 %v4898, 0.0
        %v4939 = vadd.f32 %v4903, 0.0
        %v4940 = vadd.f32 %v4908, 0.0
        %v4941 = vadd.f32 %v4913, 0.0
        %v4942 = vadd.f32 %v4918, 0.0
        %v4943 = vadd.f32 %v4923, 0.0
        %v4944 = vadd.f32 %v4928, 0.0
        %v4945 = vmul.f32 %v2077, %v4929
        %v4946 = vmul.f32 %v2078, %v4930
        %v4947 = vmul.f32 %v2079, %v4931
        %v4948 = vmul.f32 %v2080, %v4932
        %v4949 = vmul.f32 %v2081, %v4933
        %v4950 = vmul.f32 %v2082, %v4934
        %v4951 = vmul.f32 %v2083, %v4935
        %v4952 = vmul.f32 %v2084, %v4936
        %v4953 = vmul.f32 %v2085, %v4937
        %v4954 = vmul.f32 %v2086, %v4938
        %v4955 = vmul.f32 %v2087, %v4939
        %v4956 = vmul.f32 %v2088, %v4940
        %v4957 = vmul.f32 %v2089, %v4941
        %v4958 = vmul.f32 %v2090, %v4942
        %v4959 = vmul.f32 %v2091, %v4943
        %v4960 = vmul.f32 %v2092, %v4944
        %v4961 = vstv %s876
        %v4962 = vmul.f32 %v2077, %v4961
        %v4963 = vmul.f32 %v2078, %v4961
        %v4964 = vmul.f32 %v2079, %v4961
        %v4965 = vmul.f32 %v2080, %v4961
        %v4966 = vmul.f32 %v2081, %v4961
        %v4967 = vmul.f32 %v2082, %v4961
        %v4968 = vmul.f32 %v2083, %v4961
        %v4969 = vmul.f32 %v2084, %v4961
        %v4970 = vmul.f32 %v2085, %v4961
        %v4971 = vmul.f32 %v2086, %v4961
        %v4972 = vmul.f32 %v2087, %v4961
        %v4973 = vmul.f32 %v2088, %v4961
        %v4974 = vmul.f32 %v2089, %v4961
        %v4975 = vmul.f32 %v2090, %v4961
        %v4976 = vmul.f32 %v2091, %v4961
        %v4977 = vmul.f32 %v2092, %v4961
        %v4978 = vadd.f32 %v4962, 1e-05
        %v4979 = vadd.f32 %v4963, 1e-05
        %v4980 = vadd.f32 %v4964, 1e-05
        %v4981 = vadd.f32 %v4965, 1e-05
        %v4982 = vadd.f32 %v4966, 1e-05
        %v4983 = vadd.f32 %v4967, 1e-05
        %v4984 = vadd.f32 %v4968, 1e-05
        %v4985 = vadd.f32 %v4969, 1e-05
        %v4986 = vadd.f32 %v4970, 1e-05
        %v4987 = vadd.f32 %v4971, 1e-05
        %v4988 = vadd.f32 %v4972, 1e-05
        %v4989 = vadd.f32 %v4973, 1e-05
        %v4990 = vadd.f32 %v4974, 1e-05
        %v4991 = vadd.f32 %v4975, 1e-05
        %v4992 = vadd.f32 %v4976, 1e-05
        %v4993 = vadd.f32 %v4977, 1e-05
        %v4994 = vrcp.pop %v4978
        %v4995 = vmul.f32 %v4945, %v4994
        %v4996 = vrcp.pop %v4979
        %v4997 = vmul.f32 %v4946, %v4996
        %v4998 = vrcp.pop %v4980
        %v4999 = vmul.f32 %v4947, %v4998
        %v5000 = vrcp.pop %v4981
        %v5001 = vmul.f32 %v4948, %v5000
        %v5002 = vrcp.pop %v4982
        %v5003 = vmul.f32 %v4949, %v5002
        %v5004 = vrcp.pop %v4983
        %v5005 = vmul.f32 %v4950, %v5004
        %v5006 = vrcp.pop %v4984
        %v5007 = vmul.f32 %v4951, %v5006
        %v5008 = vrcp.pop %v4985
        %v5009 = vmul.f32 %v4952, %v5008
        %v5010 = vrcp.pop %v4986
        %v5011 = vmul.f32 %v4953, %v5010
        %v5012 = vrcp.pop %v4987
        %v5013 = vmul.f32 %v4954, %v5012
        %v5014 = vrcp.pop %v4988
        %v5015 = vmul.f32 %v4955, %v5014
        %v5016 = vrcp.pop %v4989
        %v5017 = vmul.f32 %v4956, %v5016
        %v5018 = vrcp.pop %v4990
        %v5019 = vmul.f32 %v4957, %v5018
        %v5020 = vrcp.pop %v4991
        %v5021 = vmul.f32 %v4958, %v5020
        %v5022 = vrcp.pop %v4992
        %v5023 = vmul.f32 %v4959, %v5022
        %v5024 = vrcp.pop %v4993
        %v5025 = vmul.f32 %v4960, %v5024
        %v5026 = vmul.f32 %v4995, %v879
        %v5027 = vmul.f32 %v4997, %v879
        %v5028 = vmul.f32 %v4999, %v879
        %v5029 = vmul.f32 %v5001, %v879
        %v5030 = vmul.f32 %v5003, %v879
        %v5031 = vmul.f32 %v5005, %v879
        %v5032 = vmul.f32 %v5007, %v879
        %v5033 = vmul.f32 %v5009, %v879
        %v5034 = vmul.f32 %v5011, %v879
        %v5035 = vmul.f32 %v5013, %v879
        %v5036 = vmul.f32 %v5015, %v879
        %v5037 = vmul.f32 %v5017, %v879
        %v5038 = vmul.f32 %v5019, %v879
        %v5039 = vmul.f32 %v5021, %v879
        %v5040 = vmul.f32 %v5023, %v879
        %v5041 = vmul.f32 %v5025, %v879
        %v5042 = vld [vmem:[#allocation4] sm:$0xff]
        %v5043 = vld [vmem:[#allocation4 + $0x8] sm:$0xff]
        %v5044 = vld [vmem:[#allocation4 + $0x10] sm:$0xff]
        %v5045 = vld [vmem:[#allocation4 + $0x18] sm:$0xff]
        %v5046 = vld [vmem:[#allocation4 + $0x20] sm:$0xff]
        %v5047 = vld [vmem:[#allocation4 + $0x28] sm:$0xff]
        %v5048 = vld [vmem:[#allocation4 + $0x30] sm:$0xff]
        %v5049 = vld [vmem:[#allocation4 + $0x38] sm:$0xff]
        %v5050 = vld [vmem:[#allocation4 + $0x40] sm:$0xff]
        %v5051 = vld [vmem:[#allocation4 + $0x48] sm:$0xff]
        %v5052 = vld [vmem:[#allocation4 + $0x50] sm:$0xff]
        %v5053 = vld [vmem:[#allocation4 + $0x58] sm:$0xff]
        %v5054 = vld [vmem:[#allocation4 + $0x60] sm:$0xff]
        %v5055 = vld [vmem:[#allocation4 + $0x68] sm:$0xff]
        %v5056 = vld [vmem:[#allocation4 + $0x70] sm:$0xff]
        %v5057 = vld [vmem:[#allocation4 + $0x78] sm:$0xff]
        %5058 = vrot.lane.b32.xlu0 %v2077, 127
        %v5059 = vpop.permute.xlu0 %5058
        %5060 = vrot.lane.b32.xlu0 %v2078, 127
        %v5061 = vpop.permute.xlu0 %5060
        %5062 = vrot.lane.b32.xlu0 %v2079, 127
        %v5063 = vpop.permute.xlu0 %5062
        %5064 = vrot.lane.b32.xlu0 %v2080, 127
        %v5065 = vpop.permute.xlu0 %5064
        %5066 = vrot.lane.b32.xlu0 %v2081, 127
        %v5067 = vpop.permute.xlu0 %5066
        %5068 = vrot.lane.b32.xlu0 %v2082, 127
        %v5069 = vpop.permute.xlu0 %5068
        %5070 = vrot.lane.b32.xlu0 %v2083, 127
        %v5071 = vpop.permute.xlu0 %5070
        %5072 = vrot.lane.b32.xlu0 %v2084, 127
        %v5073 = vpop.permute.xlu0 %5072
        %5074 = vrot.lane.b32.xlu0 %v2085, 127
        %v5075 = vpop.permute.xlu0 %5074
        %5076 = vrot.lane.b32.xlu0 %v2086, 127
        %v5077 = vpop.permute.xlu0 %5076
        %5078 = vrot.lane.b32.xlu0 %v2087, 127
        %v5079 = vpop.permute.xlu0 %5078
        %5080 = vrot.lane.b32.xlu0 %v2088, 127
        %v5081 = vpop.permute.xlu0 %5080
        %5082 = vrot.lane.b32.xlu0 %v2089, 127
        %v5083 = vpop.permute.xlu0 %5082
        %5084 = vrot.lane.b32.xlu0 %v2090, 127
        %v5085 = vpop.permute.xlu0 %5084
        %5086 = vrot.lane.b32.xlu0 %v2091, 127
        %v5087 = vpop.permute.xlu0 %5086
        %5088 = vrot.lane.b32.xlu0 %v2092, 127
        %v5089 = vpop.permute.xlu0 %5088
        %v5106 = vmul.f32 %v2077, %v5059
        %v5107 = vmul.f32 %v2078, %v5061
        %v5108 = vmul.f32 %v2079, %v5063
        %v5109 = vmul.f32 %v2080, %v5065
        %v5110 = vmul.f32 %v2081, %v5067
        %v5111 = vmul.f32 %v2082, %v5069
        %v5112 = vmul.f32 %v2083, %v5071
        %v5113 = vmul.f32 %v2084, %v5073
        %v5114 = vmul.f32 %v2085, %v5075
        %v5115 = vmul.f32 %v2086, %v5077
        %v5116 = vmul.f32 %v2087, %v5079
        %v5117 = vmul.f32 %v2088, %v5081
        %v5118 = vmul.f32 %v2089, %v5083
        %v5119 = vmul.f32 %v2090, %v5085
        %v5120 = vmul.f32 %v2091, %v5087
        %v5121 = vmul.f32 %v2092, %v5089
        %v5122 = vmul.f32 %v5106, %v5026
        %v5123 = vmul.f32 %v5107, %v5027
        %v5124 = vmul.f32 %v5108, %v5028
        %v5125 = vmul.f32 %v5109, %v5029
        %v5126 = vmul.f32 %v5110, %v5030
        %v5127 = vmul.f32 %v5111, %v5031
        %v5128 = vmul.f32 %v5112, %v5032
        %v5129 = vmul.f32 %v5113, %v5033
        %v5130 = vmul.f32 %v5114, %v5034
        %v5131 = vmul.f32 %v5115, %v5035
        %v5132 = vmul.f32 %v5116, %v5036
        %v5133 = vmul.f32 %v5117, %v5037
        %v5134 = vmul.f32 %v5118, %v5038
        %v5135 = vmul.f32 %v5119, %v5039
        %v5136 = vmul.f32 %v5120, %v5040
        %v5137 = vmul.f32 %v5121, %v5041
        %5154 = vrot.lane.b32.xlu0 %v5122, 122
        %v5155 = vpop.permute.xlu0 %5154
        %5156 = vrot.lane.b32.xlu0 %v5123, 122
        %v5157 = vpop.permute.xlu0 %5156
        %5158 = vrot.lane.b32.xlu0 %v5124, 122
        %v5159 = vpop.permute.xlu0 %5158
        %5160 = vrot.lane.b32.xlu0 %v5125, 122
        %v5161 = vpop.permute.xlu0 %5160
        %5162 = vrot.lane.b32.xlu0 %v5126, 122
        %v5163 = vpop.permute.xlu0 %5162
        %5164 = vrot.lane.b32.xlu0 %v5127, 122
        %v5165 = vpop.permute.xlu0 %5164
        %5166 = vrot.lane.b32.xlu0 %v5128, 122
        %v5167 = vpop.permute.xlu0 %5166
        %5168 = vrot.lane.b32.xlu0 %v5129, 122
        %v5169 = vpop.permute.xlu0 %5168
        %5170 = vrot.lane.b32.xlu0 %v5130, 122
        %v5171 = vpop.permute.xlu0 %5170
        %5172 = vrot.lane.b32.xlu0 %v5131, 122
        %v5173 = vpop.permute.xlu0 %5172
        %5174 = vrot.lane.b32.xlu0 %v5132, 122
        %v5175 = vpop.permute.xlu0 %5174
        %5176 = vrot.lane.b32.xlu0 %v5133, 122
        %v5177 = vpop.permute.xlu0 %5176
        %5178 = vrot.lane.b32.xlu0 %v5134, 122
        %v5179 = vpop.permute.xlu0 %5178
        %5180 = vrot.lane.b32.xlu0 %v5135, 122
        %v5181 = vpop.permute.xlu0 %5180
        %5182 = vrot.lane.b32.xlu0 %v5136, 122
        %v5183 = vpop.permute.xlu0 %5182
        %5184 = vrot.lane.b32.xlu0 %v5137, 122
        %v5185 = vpop.permute.xlu0 %5184
        %v5202 = vadd.f32 %v5042, %v5155
        %v5203 = vadd.f32 %v5043, %v5157
        %v5204 = vadd.f32 %v5044, %v5159
        %v5205 = vadd.f32 %v5045, %v5161
        %v5206 = vadd.f32 %v5046, %v5163
        %v5207 = vadd.f32 %v5047, %v5165
        %v5208 = vadd.f32 %v5048, %v5167
        %v5209 = vadd.f32 %v5049, %v5169
        %v5210 = vadd.f32 %v5050, %v5171
        %v5211 = vadd.f32 %v5051, %v5173
        %v5212 = vadd.f32 %v5052, %v5175
        %v5213 = vadd.f32 %v5053, %v5177
        %v5214 = vadd.f32 %v5054, %v5179
        %v5215 = vadd.f32 %v5055, %v5181
        %v5216 = vadd.f32 %v5056, %v5183
        %v5217 = vadd.f32 %v5057, %v5185
        %vm5218 = vcmask 7168
        %5219 = vst.msk [vmem:[#allocation4] sm:$0xff] %vm5218, %v5202
        %5220 = vst.msk [vmem:[#allocation4 + $0x8] sm:$0xff] %vm5218, %v5203
        %5221 = vst.msk [vmem:[#allocation4 + $0x10] sm:$0xff] %vm5218, %v5204
        %5222 = vst.msk [vmem:[#allocation4 + $0x18] sm:$0xff] %vm5218, %v5205
        %5223 = vst.msk [vmem:[#allocation4 + $0x20] sm:$0xff] %vm5218, %v5206
        %5224 = vst.msk [vmem:[#allocation4 + $0x28] sm:$0xff] %vm5218, %v5207
        %5225 = vst.msk [vmem:[#allocation4 + $0x30] sm:$0xff] %vm5218, %v5208
        %5226 = vst.msk [vmem:[#allocation4 + $0x38] sm:$0xff] %vm5218, %v5209
        %5227 = vst.msk [vmem:[#allocation4 + $0x40] sm:$0xff] %vm5218, %v5210
        %5228 = vst.msk [vmem:[#allocation4 + $0x48] sm:$0xff] %vm5218, %v5211
        %5229 = vst.msk [vmem:[#allocation4 + $0x50] sm:$0xff] %vm5218, %v5212
        %5230 = vst.msk [vmem:[#allocation4 + $0x58] sm:$0xff] %vm5218, %v5213
        %5231 = vst.msk [vmem:[#allocation4 + $0x60] sm:$0xff] %vm5218, %v5214
        %5232 = vst.msk [vmem:[#allocation4 + $0x68] sm:$0xff] %vm5218, %v5215
        %5233 = vst.msk [vmem:[#allocation4 + $0x70] sm:$0xff] %vm5218, %v5216
        %5234 = vst.msk [vmem:[#allocation4 + $0x78] sm:$0xff] %vm5218, %v5217
        %p5235 = scmp.eq.s32.totalorder %s40, 3
        // Predicated region
        $region169: #{tpu_custom_call.1} parent=131 // pred_check
          %p5236 = pneg %p5235
        $region170: #{tpu_custom_call.1} parent=131 // pred_check_branch
          %5238 = sbr.rel (%p5236) target = $region172
        $region171: #{tpu_custom_call.1} parent=131 // pred_region
          %s5239 = sadd.s32 %s873, 2
          %s5240 = sld [smem:[#allocation5 + %s5239]]
          %s5241 = sadd.s32 %s873, 3
          %s5242 = sld [smem:[#allocation5 + %s5241]]
          %v5243 = vld [vmem:[#allocation2] sm:$0x1]
          %vm5244 = vcmask 1040384
          %v5245 = vsel %vm5244, %v5243, 0.0
          %5246 = vadd.xlane.f32.xlu0 %v5245
          %v5247 = vpop.xlane.xlu0 %5246
          %v5248 = vrot.slane %v5247, 4
          %v5249 = vadd.f32 %v5247, %v5248
          %v5250 = vrot.slane %v5249, 2
          %v5251 = vadd.f32 %v5249, %v5250
          %v5252 = vrot.slane %v5251, 1
          %v5253 = vadd.f32 %v5251, %v5252
          %s5254 = vtos %v5253
          %v5255 = vstv %s5240
          %v5256 = vrcp.pop %v5255
          %s5257 = vtos %v5256
          %s5258 = smul.f32 %s5254, %s5257
          %v5259 = vld [vmem:[#allocation3] sm:$0x1]
          %v5260 = vsel %vm5244, %v5259, 0.0
          %5261 = vadd.xlane.f32.xlu0 %v5260
          %v5262 = vpop.xlane.xlu0 %5261
          %v5263 = vrot.slane %v5262, 4
          %v5264 = vadd.f32 %v5262, %v5263
          %v5265 = vrot.slane %v5264, 2
          %v5266 = vadd.f32 %v5264, %v5265
          %v5267 = vrot.slane %v5266, 1
          %v5268 = vadd.f32 %v5266, %v5267
          %s5269 = vtos %v5268
          %v5270 = vstv %s5240
          %v5271 = vrcp.pop %v5270
          %s5272 = vtos %v5271
          %s5273 = smul.f32 %s5269, %s5272
          %v5274 = vld [vmem:[#allocation4] sm:$0xff]
          %v5275 = vld [vmem:[#allocation4 + $0x8] sm:$0xff]
          %v5276 = vld [vmem:[#allocation4 + $0x10] sm:$0xff]
          %v5277 = vld [vmem:[#allocation4 + $0x18] sm:$0xff]
          %v5278 = vld [vmem:[#allocation4 + $0x20] sm:$0xff]
          %v5279 = vld [vmem:[#allocation4 + $0x28] sm:$0xff]
          %v5280 = vld [vmem:[#allocation4 + $0x30] sm:$0xff]
          %v5281 = vld [vmem:[#allocation4 + $0x38] sm:$0xff]
          %v5282 = vld [vmem:[#allocation4 + $0x40] sm:$0xff]
          %v5283 = vld [vmem:[#allocation4 + $0x48] sm:$0xff]
          %v5284 = vld [vmem:[#allocation4 + $0x50] sm:$0xff]
          %v5285 = vld [vmem:[#allocation4 + $0x58] sm:$0xff]
          %v5286 = vld [vmem:[#allocation4 + $0x60] sm:$0xff]
          %v5287 = vld [vmem:[#allocation4 + $0x68] sm:$0xff]
          %v5288 = vld [vmem:[#allocation4 + $0x70] sm:$0xff]
          %v5289 = vld [vmem:[#allocation4 + $0x78] sm:$0xff]
          %v5290 = vsel %vm5218, %v5274, 0.0
          %v5291 = vsel %vm5218, %v5275, 0.0
          %v5292 = vadd.f32 %v5290, %v5291
          %v5293 = vsel %vm5218, %v5276, 0.0
          %v5294 = vadd.f32 %v5292, %v5293
          %v5295 = vsel %vm5218, %v5277, 0.0
          %v5296 = vadd.f32 %v5294, %v5295
          %v5297 = vsel %vm5218, %v5278, 0.0
          %v5298 = vadd.f32 %v5296, %v5297
          %v5299 = vsel %vm5218, %v5279, 0.0
          %v5300 = vadd.f32 %v5298, %v5299
          %v5301 = vsel %vm5218, %v5280, 0.0
          %v5302 = vadd.f32 %v5300, %v5301
          %v5303 = vsel %vm5218, %v5281, 0.0
          %v5304 = vadd.f32 %v5302, %v5303
          %v5305 = vsel %vm5218, %v5282, 0.0
          %v5306 = vadd.f32 %v5304, %v5305
          %v5307 = vsel %vm5218, %v5283, 0.0
          %v5308 = vadd.f32 %v5306, %v5307
          %v5309 = vsel %vm5218, %v5284, 0.0
          %v5310 = vadd.f32 %v5308, %v5309
          %v5311 = vsel %vm5218, %v5285, 0.0
          %v5312 = vadd.f32 %v5310, %v5311
          %v5313 = vsel %vm5218, %v5286, 0.0
          %v5314 = vadd.f32 %v5312, %v5313
          %v5315 = vsel %vm5218, %v5287, 0.0
          %v5316 = vadd.f32 %v5314, %v5315
          %v5317 = vsel %vm5218, %v5288, 0.0
          %v5318 = vadd.f32 %v5316, %v5317
          %v5319 = vsel %vm5218, %v5289, 0.0
          %v5320 = vadd.f32 %v5318, %v5319
          %5321 = vadd.xlane.f32.xlu0 %v5320
          %v5322 = vpop.xlane.xlu0 %5321
          %v5323 = vrot.slane %v5322, 4
          %v5324 = vadd.f32 %v5322, %v5323
          %v5325 = vrot.slane %v5324, 2
          %v5326 = vadd.f32 %v5324, %v5325
          %v5327 = vrot.slane %v5326, 1
          %v5328 = vadd.f32 %v5326, %v5327
          %s5329 = vtos %v5328
          %s5330 = smul.f32 %s5329, 10.0
          %v5331 = vstv %s5242
          %v5332 = vrcp.pop %v5331
          %s5333 = vtos %v5332
          %s5334 = smul.f32 %s5330, %s5333
          %v5335 = vlaneseq
          %v5336 = vand.u32 %v5335, 127
          %vm5337 = vcmp.eq.s32.totalorder %v5336, 0
          %v5338 = vstv %s5258
          %v5339 = vsel %vm5337, %v5338, 0.0
          %vm5340 = vcmp.eq.s32.totalorder %v5336, 1
          %v5341 = vstv %s5273
          %v5342 = vsel %vm5340, %v5341, 0.0
          %v5343 = vadd.f32 %v5339, %v5342
          %vm5344 = vcmp.eq.s32.totalorder %v5336, 2
          %v5345 = vstv %s5334
          %v5346 = vsel %vm5344, %v5345, 0.0
          %v5347 = vadd.f32 %v5343, %v5346
          %5348 = vst [vmem:[%s827] sm:$0x1] %v5347
        $region172: #{tpu_custom_call.1} parent=131 // pred_fallthru
          _
        %s5349 = sand.u32 %s354, 1
        %s5350 = scalar_lea.sflag [#allocation7], %s5349
        %s5351 = sand.u32 %s354, 1
        %s5352 = scalar_lea.vmem [#allocation18], %s5351
        // Predicated region
        $region173: #{tpu_custom_call.1} parent=131 // pred_check
          %p5353 = pneg %p364
        $region174: #{tpu_custom_call.1} parent=131 // pred_check_branch
          %5355 = sbr.rel (%p5353) target = $region176
        $region175: #{tpu_custom_call.1} parent=131 // pred_region
          %s5357 = ssub.s32 16, 16
          %5358 = vsyncadd %s5350, %s5357
          %s5359 = smul.addr %s39, 16
          %s5360 = scalar_lea.hbm %s11, %s5359
          %s5362 = sshll.u32 %s5352, 4
          %s5363 = int_to_ptr.vmem [resolvable:$true] %s5362
          %5365 = dma.vmem_to_hbm [thread:$0]  %s5363, 16, %s5360, %s5350
        $region176: #{tpu_custom_call.1} parent=131 // pred_fallthru
          _
      $region132: #{tpu_custom_call.1} parent=5 // pred_fallthru
        _
      %p5366 = scmp.le.s32.totalorder 2, %s30
      // Predicated region
      $region177: #{tpu_custom_call.1} parent=5 // pred_check
        %p5367 = pneg %p5366
      $region178: #{tpu_custom_call.1} parent=5 // pred_check_branch
        %5369 = sbr.rel (%p5367) target = $region180
      $region179: #{tpu_custom_call.1} parent=5 // pred_region
        %s5370 = ssub.s32 %s30, 2
        // Predicated region
        $region181: #{tpu_custom_call.1} parent=179 // pred_check
          %p5371 = pneg %p370
        $region182: #{tpu_custom_call.1} parent=179 // pred_check_branch
          %5373 = sbr.rel (%p5371) target = $region184
        $region183: #{tpu_custom_call.1} parent=179 // pred_region
          %s5374 = sand.u32 %s355, 1
          %s5375 = scalar_lea.sflag [#allocation7], %s5374
          %s5376 = sand.u32 %s355, 1
          %s5377 = scalar_lea.vmem [#allocation18], %s5376
          %5378 = dma.done %s5375, 16
        $region184: #{tpu_custom_call.1} parent=179 // pred_fallthru
          _
      $region180: #{tpu_custom_call.1} parent=5 // pred_fallthru
        _
    $region6: #{tpu_custom_call.1} parent=1 // loop_footer
      %s34 = sadd.s32 1, %s30
    $region7: #{tpu_custom_call.1} parent=1 // loop_footer_branch
      %29 = sbr.rel target = $region3
    $region8: #{tpu_custom_call.1} parent=1 // loop_exit
      _
    %5379 = vsyncpa [#allocation6], 1
    %s5380 = scalar_lea.sflag [#allocation6], 1
    %5381 = vsyncpa %s5380, 1
    %5382 = vsyncpa [#allocation12], 1
    %s5383 = scalar_lea.sflag [#allocation12], 1
    %5384 = vsyncpa %s5383, 1
    %5385 = vsyncpa [#allocation16], 1
    %s5386 = scalar_lea.sflag [#allocation16], 1
    %5387 = vsyncpa %s5386, 1
    %5388 = vsyncpa [#allocation7], 1
    %s5389 = scalar_lea.sflag [#allocation7], 1
    %5390 = vsyncpa %s5389, 1
    %5391 = vsyncpa [#allocation8], 1
    %s5392 = scalar_lea.sflag [#allocation8], 1
    %5393 = vsyncpa %s5392, 1

</llo_original>
